<compile_context>
chip_gen: v6e
topology: v6e:2x2x1
jax: 0.10.0
libtpu: 0.0.40
codegen_flags: <defaults>
</compile_context>

<pallas_src>
import jax
import jax.numpy as jnp
from jax.experimental import pallas as pl
from jax.experimental.pallas import tpu as pltpu

EPS = 1e-5
# Matmul operand dtype (accumulation is always f32). bf16 feeds the MXU at native rate
# on v6e/v7x; set to jnp.float32 for bit-exact f32 convolutions.
MATMUL_DTYPE = jnp.bfloat16


# ----------------------------- small helpers ------------------------------

def _pick_div(n, target):
    """Largest divisor of n that is <= target (>= 1)."""
    t = int(min(n, max(1, target)))
    while n % t:
        t -= 1
    return t


def _pick_row_block(n, target):
    """Largest divisor of n that is <= target and a multiple of 8 (else n)."""
    if n <= target:
        return n
    t = (min(n, target) // 8) * 8
    while t >= 8:
        if n % t == 0:
            return t
        t -= 8
    return n


# --------------------------- conv1x1 (row tiled) ---------------------------

def _conv1x1_kernel(x_ref, w_ref, b_ref, o_ref):
    # x: (TM, Cin) f32, w: (Cin, Cout) bf16, b: (1, Cout) f32 -> o: (TM, Cout) f32
    o_ref[...] = (
        jnp.dot(x_ref[...].astype(MATMUL_DTYPE), w_ref[...],
                preferred_element_type=jnp.float32)
        + b_ref[...]
    )


def _conv1x1(x_nhwc, w_bf16, b):
    N, H, W, Cin = x_nhwc.shape
    Cout = w_bf16.shape[1]
    M = N * H * W
    x2 = x_nhwc.reshape(M, Cin)
    TM = _pick_row_block(M, 256)
    out = pl.pallas_call(
        _conv1x1_kernel,
        grid=(M // TM,),
        in_specs=[pl.BlockSpec((TM, Cin), lambda i: (i, 0)),
                  pl.BlockSpec((Cin, Cout), lambda i: (0, 0)),
                  pl.BlockSpec((1, Cout), lambda i: (0, 0))],
        out_specs=pl.BlockSpec((TM, Cout), lambda i: (i, 0)),
        out_shape=jax.ShapeDtypeStruct((M, Cout), jnp.float32),
        compiler_params=pltpu.CompilerParams(dimension_semantics=("parallel",)),
    )(x2, w_bf16, b)
    return out.reshape(N, H, W, Cout)


# ------------- fused conv3x3 + BN(train) + ReLU (+residual) layer -----------

def _pad_and_chunk(x_nhwc, th):
    """(N,H,W,C) -> (N*HT, (th+2)*(W+2)+2, C).

    Zero-pad spatially by 1, split H into HT = H/th chunks with a 1-row halo on
    each side, flatten each chunk row-major over (row, padded-col), and append 2
    overflow rows so the largest in-kernel shift window stays in bounds.
    This is the only inter-layer glue copy (~1x the tensor, vs. 9x for im2col);
    XLA fuses the strip+pad+stack chain into a single pass.
    """
    N, H, W, C = x_nhwc.shape
    ht = H // th
    xp = jnp.pad(x_nhwc, ((0, 0), (1, 1), (1, 1), (0, 0)))
    chunks = jnp.stack([xp[:, i * th:i * th + th + 2] for i in range(ht)], axis=1)
    flat = chunks.reshape(N * ht, (th + 2) * (W + 2), C)
    return jnp.pad(flat, ((0, 0), (0, 2), (0, 0)))


def _make_layer_kernel(TH, W, C, m_valid, residual):
    """residual in {"none", "self", "ext"}.

    Grid = (phase, tile):
      phase 0: accumulate global BN sum / sum-of-squares over valid positions.
      phase 1: recompute the conv tile, normalize (global batch stats), ReLU,
               fuse the residual add, store.
    The conv is 9 shifted matmuls: the (dy, dx) tap of the 3x3 kernel is the row
    window of the flattened padded chunk starting at offset dy*(W+2)+dx.  Columns
    w in [W, W+2) of each output row are padding garbage; they are masked out of
    the BN statistics and stripped in the wrapper.
    Recompute (instead of storing the raw conv and re-reading it) is the cheaper
    choice here: it costs one extra input read vs. an extra write + read, and the
    9 small MXU matmuls are not the bottleneck.
    """
    WP = W + 2
    OUT_ROWS = TH * WP
    CENTER = WP + 1                      # tap (dy=1, dx=1) == the layer's own input
    inv_m = 1.0 / float(m_valid)

    def conv_tile(x_ref, w_ref):
        acc = None
        center = None
        for dy in range(3):
            for dx in range(3):
                s = dy * WP + dx
                win = x_ref[s:s + OUT_ROWS, :]            # f32 shifted window
                if s == CENTER:
                    center = win                          # kept f32 for residual
                k = dy * 3 + dx
                wk = w_ref[k * C:(k + 1) * C, :]          # already MATMUL_DTYPE
                d = jnp.dot(win.astype(MATMUL_DTYPE), wk,
                            preferred_element_type=jnp.float32)
                acc = d if acc is None else acc + d
        return acc, center

    def body(x_ref, w_ref, g_ref, be_ref, r_ref, o_ref, sum_ref, ssq_ref):
        ph = pl.program_id(0)
        t = pl.program_id(1)

        acc, center = conv_tile(x_ref, w_ref)             # (OUT_ROWS, C) f32

        @pl.when(jnp.logical_and(ph == 0, t == 0))
        def _init():
            sum_ref[...] = jnp.zeros_like(sum_ref)
            ssq_ref[...] = jnp.zeros_like(ssq_ref)

        @pl.when(ph == 0)
        def _accumulate():
            # Mask the right-edge pad columns out of the batch statistics.
            col = jax.lax.broadcasted_iota(jnp.int32, (OUT_ROWS, 1), 0) % WP
            m = jnp.where(col < W, acc, 0.0)
            sum_ref[...] += jnp.sum(m, axis=0, keepdims=True)
            ssq_ref[...] += jnp.sum(m * m, axis=0, keepdims=True)

        @pl.when(ph == 1)
        def _normalize():
            # Global (all N*H*W positions) training-mode BN, biased variance.
            # NOTE: single-pass E[x^2]-E[x]^2 in f32; fine at these scales.
            mean = sum_ref[...] * inv_m
            var = jnp.maximum(ssq_ref[...] * inv_m - mean * mean, 0.0)
            scale = jax.lax.rsqrt(var + EPS) * g_ref[...]
            y = jnp.maximum((acc - mean) * scale + be_ref[...], 0.0)
            if residual == "self":
                y = y + center                            # x + L(x), f32
            elif residual == "ext":
                y = y + r_ref[CENTER:CENTER + OUT_ROWS, :]  # x0 + r2c(x0), f32
            o_ref[...] = y

    if residual == "ext":
        return body

    def body_no_resid(x_ref, w_ref, g_ref, be_ref, o_ref, sum_ref, ssq_ref):
        body(x_ref, w_ref, g_ref, be_ref, None, o_ref, sum_ref, ssq_ref)

    return body_no_resid


def _layer(x_chunks, p, *, N, H, W, C, TH, residual, resid_chunks=None):
    WP = W + 2
    HT = H // TH
    nt = N * HT
    CHUNK_ROWS = (TH + 2) * WP + 2
    OUT_ROWS = TH * WP
    m_valid = N * H * W

    kernel = _make_layer_kernel(TH, W, C, m_valid, residual)

    chunk_spec = pl.BlockSpec((None, CHUNK_ROWS, C), lambda ph, t: (t, 0, 0))
    const2 = lambda ph, t: (0, 0)
    in_specs = [chunk_spec,
                pl.BlockSpec((9 * C, C), const2),
                pl.BlockSpec((1, C), const2),
                pl.BlockSpec((1, C), const2)]
    args = [x_chunks, p["w"], p["gamma"], p["beta"]]
    if residual == "ext":
        # ph*t: during the stats phase only block 0 is (re)used -> no wasted DMA.
        in_specs.append(pl.BlockSpec((None, CHUNK_ROWS, C),
                                     lambda ph, t: (ph * t, 0, 0)))
        args.append(resid_chunks)

    yp = pl.pallas_call(
        kernel,
        grid=(2, nt),                                      # (phase, row tile)
        in_specs=in_specs,
        # ph*t: output block index stays 0 during the (store-free) stats phase so no
        # garbage writebacks happen; phase 1 visits each block exactly once.
        out_specs=pl.BlockSpec((None, OUT_ROWS, C), lambda ph, t: (ph * t, 0, 0)),
        out_shape=jax.ShapeDtypeStruct((nt, OUT_ROWS, C), jnp.float32),
        scratch_shapes=[pltpu.VMEM((1, C), jnp.float32),   # BN sum
                        pltpu.VMEM((1, C), jnp.float32)],  # BN sum of squares
        compiler_params=pltpu.CompilerParams(
            # Both axes carry the BN-stats reduction through shared scratch, so they
            # must stay sequential ("arbitrary"), not megacore-split.
            dimension_semantics=("arbitrary", "arbitrary"),
            vmem_limit_bytes=32 * 1024 * 1024),
    )(*args)

    # Strip the right-edge pad columns and un-chunk: (nt, TH*WP, C) -> (N, H, W, C).
    y = yp.reshape(N, HT, TH, WP, C)[:, :, :, :W, :].reshape(N, H, W, C)
    return y


# ------------------------------ 2x2 max pool -------------------------------

def _make_pool_kernel(C):
    def kernel(y_ref, o_ref):
        b = y_ref[...]                                   # (TB, 2, W2, 2C)
        a = jnp.maximum(b[:, 0], b[:, 1])                # max over the row pair
        o_ref[...] = jnp.maximum(a[:, :, :C], a[:, :, C:])  # max over the col pair
    return kernel


def _maxpool2x2(y_nhwc):
    N, H, W, C = y_nhwc.shape
    H2, W2 = H // 2, W // 2
    R = N * H2
    # Free view: row pairs on axis 1, column pairs packed into the lane dim (2C).
    yv = y_nhwc.reshape(R, 2, W2, 2 * C)
    TB = _pick_div(R, 256)
    pooled = pl.pallas_call(
        _make_pool_kernel(C),
        grid=(R // TB,),
        in_specs=[pl.BlockSpec((TB, 2, W2, 2 * C), lambda i: (i, 0, 0, 0))],
        out_specs=pl.BlockSpec((TB, W2, C), lambda i: (i, 0, 0)),
        out_shape=jax.ShapeDtypeStruct((R, W2, C), jnp.float32),
        compiler_params=pltpu.CompilerParams(dimension_semantics=("parallel",)),
    )(yv)
    return pooled.reshape(N, H2, W2, C)


# ------------------------------ full forward -------------------------------

def down_block_forward(x_nchw, params, *, row_tile=None):
    x = jnp.transpose(x_nchw, (0, 2, 3, 1)).astype(jnp.float32)   # -> NHWC
    N, H, W, Cin = x.shape
    Cout = params["conv1x1_w"].shape[1]
    assert H % 2 == 0 and W % 2 == 0, "maxpool(2,2) expects even spatial dims"

    # Row-tile height: target ~512 output rows (TH*(W+2)) per grid step by default.
    TH = row_tile if row_tile is not None else _pick_div(H, max(1, 512 // (W + 2)))
    assert H % TH == 0

    # Pre-cast matmul weights once (halves per-step weight DMA, drops in-kernel casts).
    w1 = params["conv1x1_w"].astype(MATMUL_DTYPE)
    l1 = dict(params["l1"], w=params["l1"]["w"].astype(MATMUL_DTYPE))
    l2 = dict(params["l2"], w=params["l2"]["w"].astype(MATMUL_DTYPE))

    # recurrent_block: conv1x1, then residual over two recurrent layers.
    x0 = _conv1x1(x, w1, params["conv1x1_b"])                      # (N,H,W,Cout)
    x0c = _pad_and_chunk(x0, TH)

    cfg = dict(N=N, H=H, W=W, C=Cout, TH=TH)
    # recurrent_layer 1: r1 = L1(x0 + L1(x0))
    a1 = _layer(x0c, l1, residual="self", **cfg)                   # L1(x0) + x0 (fused)
    r1 = _layer(_pad_and_chunk(a1, TH), l1, residual="none", **cfg)
    # recurrent_layer 2 + block residual: y = x0 + L2(r1 + L2(r1))
    a2 = _layer(_pad_and_chunk(r1, TH), l2, residual="self", **cfg)
    y = _layer(_pad_and_chunk(a2, TH), l2, residual="ext",
               resid_chunks=x0c, **cfg)

    pooled = _maxpool2x2(y)

    # back to PyTorch NCHW convention
    return jnp.transpose(pooled, (0, 3, 1, 2)), jnp.transpose(y, (0, 3, 1, 2))


# ------------------------- deterministic parameters ------------------------

def init_params(key, in_channels, out_channels):
    ks = jax.random.split(key, 4)

    def layer_params(k):
        k1, k2, k3 = jax.random.split(k, 3)
        # conv3x3 weight in (dy, dx, cin, cout), flattened to (9*cin, cout): row
        # block k = dy*3+dx matches the in-kernel shift offset dy*(W+2)+dx.
        w = 0.1 * jax.random.normal(k1, (3, 3, out_channels, out_channels),
                                    jnp.float32)
        return {
            "w": w.reshape(9 * out_channels, out_channels),
            # NOTE: no conv bias - with training-mode BatchNorm right after the conv
            # it cancels exactly under mean-centering.
            "gamma": 1.0 + 0.1 * jax.random.normal(k2, (1, out_channels),
                                                   jnp.float32),
            "beta": 0.1 * jax.random.normal(k3, (1, out_channels), jnp.float32),
        }

    return {
        "conv1x1_w": 0.1 * jax.random.normal(ks[0], (in_channels, out_channels),
                                             jnp.float32),
        "conv1x1_b": 0.1 * jax.random.normal(ks[1], (1, out_channels),
                                             jnp.float32),
        "l1": layer_params(ks[2]),
        "l2": layer_params(ks[3]),
    }


# ------------------------- pure-JAX reference (check) ----------------------

def _reference_forward(x_nchw, params):
    """Plain-XLA reference with the same matmul precision (bf16 ops, f32 accum)."""
    x = jnp.transpose(x_nchw, (0, 2, 3, 1)).astype(jnp.float32)
    w1, b1 = params["conv1x1_w"], params["conv1x1_b"]
    x0 = jnp.einsum("nhwc,cd->nhwd", x.astype(MATMUL_DTYPE), w1.astype(MATMUL_DTYPE),
                    preferred_element_type=jnp.float32) + b1[0]

    def layer(t, p):
        c = p["w"].shape[1]
        w4 = p["w"].reshape(3, 3, c, c)
        conv = jax.lax.conv_general_dilated(
            t.astype(MATMUL_DTYPE), w4.astype(MATMUL_DTYPE), (1, 1), "SAME",
            dimension_numbers=("NHWC", "HWIO", "NHWC"),
            preferred_element_type=jnp.float32)
        mean = jnp.mean(conv, axis=(0, 1, 2))
        var = jnp.mean((conv - mean) ** 2, axis=(0, 1, 2))
        return jnp.maximum((conv - mean) * jax.lax.rsqrt(var + EPS) * p["gamma"][0]
                           + p["beta"][0], 0.0)

    def rec(t, p):
        return layer(t + layer(t, p), p)

    y = x0 + rec(rec(x0, params["l1"]), params["l2"])
    n, h, w, c = y.shape
    pooled = jnp.max(y.reshape(n, h // 2, 2, w // 2, 2, c), axis=(2, 4))
    return jnp.transpose(pooled, (0, 3, 1, 2)), jnp.transpose(y, (0, 3, 1, 2))


if __name__ == "__main__":
    key = jax.random.PRNGKey(0)
    kx, kp = jax.random.split(key)

    N, Cin, H, W = 2, 4, 16, 16
    Cout = 8

    x = jax.random.normal(kx, (N, Cin, H, W), jnp.float32)
    params = init_params(kp, Cin, Cout)

    # row_tile=8 at this toy shape so the multi-chunk (halo) path is exercised:
    # layer grid = (2 phases, 4 row tiles).
    fwd = jax.jit(lambda xx, pp: down_block_forward(xx, pp, row_tile=8))
    pooled, full = fwd(x, params)
    jax.block_until_ready((pooled, full))

    assert pooled.shape == (N, Cout, H // 2, W // 2)
    assert full.shape == (N, Cout, H, W)
    assert pooled.dtype == jnp.float32 and full.dtype == jnp.float32

    # Correctness against a plain-XLA reference at the same matmul precision.
    ref_pooled, ref_full = jax.jit(_reference_forward)(x, params)
    assert bool(jnp.allclose(full, ref_full, rtol=1e-2, atol=1e-2)), "y mismatch"
    assert bool(jnp.allclose(pooled, ref_pooled, rtol=1e-2, atol=1e-2)), "pool mismatch"

    print("KERNEL_OK")
</pallas_src>

<mosaic_0001>
module attributes {stable_mosaic.version = 11 : i64} {
  func.func @_conv1x1_kernel(%arg0: i32, %arg1: memref<256x4xf32, #tpu.memory_space<vmem>>, %arg2: memref<4x8xbf16, #tpu.memory_space<vmem>>, %arg3: memref<1x8xf32, #tpu.memory_space<vmem>>, %arg4: memref<256x8xf32, #tpu.memory_space<vmem>>) attributes {dimension_semantics = [#tpu.dimension_semantics<parallel>], iteration_bounds = array<i64: 2>, scalar_prefetch = 0 : i64, scratch_operands = 0 : i64, tpu.core_type = #tpu.core_type<tc>, window_params = [{transform_indices = @transform_0, window_bounds = array<i64: 256, 4>}, {pipeline_mode = #tpu.pipeline_mode<synchronous>, transform_indices = @transform_1, window_bounds = array<i64: 4, 8>}, {pipeline_mode = #tpu.pipeline_mode<synchronous>, transform_indices = @transform_2, window_bounds = array<i64: 1, 8>}, {transform_indices = @transform_3, window_bounds = array<i64: 256, 8>}]} {
    %c0 = arith.constant 0 : index
    %c0_0 = arith.constant 0 : index
    %0 = vector.load %arg1[%c0, %c0_0] : memref<256x4xf32, #tpu.memory_space<vmem>>, vector<256x4xf32>
    %1 = arith.truncf %0 : vector<256x4xf32> to vector<256x4xbf16>
    %c0_1 = arith.constant 0 : index
    %c0_2 = arith.constant 0 : index
    %2 = vector.load %arg2[%c0_1, %c0_2] : memref<4x8xbf16, #tpu.memory_space<vmem>>, vector<4x8xbf16>
    %cst = arith.constant dense<0.000000e+00> : vector<256x8xf32>
    %3 = tpu.matmul %1, %2, %cst {dimension_numbers = #tpu.dot_dimension_numbers<[1], [0], [0], [1], [0, 0, 1, 1], [], []>} : vector<256x4xbf16>, vector<4x8xbf16>, vector<256x8xf32> -> vector<256x8xf32>
    %c0_3 = arith.constant 0 : index
    %c0_4 = arith.constant 0 : index
    %4 = vector.load %arg3[%c0_3, %c0_4] : memref<1x8xf32, #tpu.memory_space<vmem>>, vector<1x8xf32>
    %5 = vector.broadcast %4 : vector<1x8xf32> to vector<256x8xf32>
    %6 = arith.addf %3, %5 : vector<256x8xf32>
    %c0_5 = arith.constant 0 : index
    %c0_6 = arith.constant 0 : index
    %7 = vector.load %arg4[%c0_5, %c0_6] : memref<256x8xf32, #tpu.memory_space<vmem>>, vector<256x8xf32>
    tpu.vector_store %arg4[%c0_5, %c0_6], %6 {strides = array<i32>} : memref<256x8xf32, #tpu.memory_space<vmem>>, vector<256x8xf32>,
    return
  }
  func.func @transform_0(%arg0: i32) -> (i32, i32) {
    %c0_i32 = arith.constant 0 : i32
    %c0_i32_0 = arith.constant 0 : i32
    return %arg0, %c0_i32 : i32, i32
  }
  func.func @transform_1(%arg0: i32) -> (i32, i32) {
    %c0_i32 = arith.constant 0 : i32
    %c0_i32_0 = arith.constant 0 : i32
    %c0_i32_1 = arith.constant 0 : i32
    return %c0_i32, %c0_i32_0 : i32, i32
  }
  func.func @transform_2(%arg0: i32) -> (i32, i32) {
    %c0_i32 = arith.constant 0 : i32
    %c0_i32_0 = arith.constant 0 : i32
    %c0_i32_1 = arith.constant 0 : i32
    return %c0_i32, %c0_i32_0 : i32, i32
  }
  func.func @transform_3(%arg0: i32) -> (i32, i32) {
    %c0_i32 = arith.constant 0 : i32
    %c0_i32_0 = arith.constant 0 : i32
    return %arg0, %c0_i32 : i32, i32
  }
}

module attributes {stable_mosaic.version = 11 : i64} {
  func.func @body_no_resid(%arg0: i32, %arg1: i32, %arg2: memref<1x182x8xf32, #tpu.memory_space<vmem>>, %arg3: memref<72x8xbf16, #tpu.memory_space<vmem>>, %arg4: memref<1x8xf32, #tpu.memory_space<vmem>>, %arg5: memref<1x8xf32, #tpu.memory_space<vmem>>, %arg6: memref<1x144x8xf32, #tpu.memory_space<vmem>>, %arg7: memref<1x8xf32, #tpu.memory_space<vmem>>, %arg8: memref<1x8xf32, #tpu.memory_space<vmem>>) attributes {dimension_semantics = [#tpu.dimension_semantics<arbitrary>, #tpu.dimension_semantics<arbitrary>], iteration_bounds = array<i64: 2, 4>, scalar_prefetch = 0 : i64, scratch_operands = 2 : i64, tpu.core_type = #tpu.core_type<tc>, window_params = [{transform_indices = @transform_0, window_bounds = array<i64: 1, 182, 8>}, {pipeline_mode = #tpu.pipeline_mode<synchronous>, transform_indices = @transform_1, window_bounds = array<i64: 72, 8>}, {pipeline_mode = #tpu.pipeline_mode<synchronous>, transform_indices = @transform_2, window_bounds = array<i64: 1, 8>}, {pipeline_mode = #tpu.pipeline_mode<synchronous>, transform_indices = @transform_3, window_bounds = array<i64: 1, 8>}, {transform_indices = @transform_4, window_bounds = array<i64: 1, 144, 8>}]} {
    %c0 = arith.constant 0 : index
    %c0_0 = arith.constant 0 : index
    %c0_1 = arith.constant 0 : index
    %0 = vector.load %arg2[%c0, %c0_0, %c0_1] : memref<1x182x8xf32, #tpu.memory_space<vmem>>, vector<1x144x8xf32>
    %1 = vector.shape_cast %0 : vector<1x144x8xf32> to vector<144x8xf32>
    %c0_2 = arith.constant 0 : index
    %c0_3 = arith.constant 0 : index
    %2 = vector.load %arg3[%c0_2, %c0_3] : memref<72x8xbf16, #tpu.memory_space<vmem>>, vector<8x8xbf16>
    %3 = arith.truncf %1 : vector<144x8xf32> to vector<144x8xbf16>
    %cst = arith.constant dense<0.000000e+00> : vector<144x8xf32>
    %4 = tpu.matmul %3, %2, %cst {dimension_numbers = #tpu.dot_dimension_numbers<[1], [0], [0], [1], [0, 0, 1, 1], [], []>} : vector<144x8xbf16>, vector<8x8xbf16>, vector<144x8xf32> -> vector<144x8xf32>
    %c0_4 = arith.constant 0 : index
    %c1 = arith.constant 1 : index
    %c0_5 = arith.constant 0 : index
    %5 = vector.load %arg2[%c0_4, %c1, %c0_5] : memref<1x182x8xf32, #tpu.memory_space<vmem>>, vector<1x144x8xf32>
    %6 = vector.shape_cast %5 : vector<1x144x8xf32> to vector<144x8xf32>
    %c8 = arith.constant 8 : index
    %c0_6 = arith.constant 0 : index
    %7 = vector.load %arg3[%c8, %c0_6] : memref<72x8xbf16, #tpu.memory_space<vmem>>, vector<8x8xbf16>
    %8 = arith.truncf %6 : vector<144x8xf32> to vector<144x8xbf16>
    %cst_7 = arith.constant dense<0.000000e+00> : vector<144x8xf32>
    %9 = tpu.matmul %8, %7, %cst_7 {dimension_numbers = #tpu.dot_dimension_numbers<[1], [0], [0], [1], [0, 0, 1, 1], [], []>} : vector<144x8xbf16>, vector<8x8xbf16>, vector<144x8xf32> -> vector<144x8xf32>
    %10 = arith.addf %4, %9 : vector<144x8xf32>
    %c0_8 = arith.constant 0 : index
    %c2 = arith.constant 2 : index
    %c0_9 = arith.constant 0 : index
    %11 = vector.load %arg2[%c0_8, %c2, %c0_9] : memref<1x182x8xf32, #tpu.memory_space<vmem>>, vector<1x144x8xf32>
    %12 = vector.shape_cast %11 : vector<1x144x8xf32> to vector<144x8xf32>
    %c16 = arith.constant 16 : index
    %c0_10 = arith.constant 0 : index
    %13 = vector.load %arg3[%c16, %c0_10] : memref<72x8xbf16, #tpu.memory_space<vmem>>, vector<8x8xbf16>
    %14 = arith.truncf %12 : vector<144x8xf32> to vector<144x8xbf16>
    %cst_11 = arith.constant dense<0.000000e+00> : vector<144x8xf32>
    %15 = tpu.matmul %14, %13, %cst_11 {dimension_numbers = #tpu.dot_dimension_numbers<[1], [0], [0], [1], [0, 0, 1, 1], [], []>} : vector<144x8xbf16>, vector<8x8xbf16>, vector<144x8xf32> -> vector<144x8xf32>
    %16 = arith.addf %10, %15 : vector<144x8xf32>
    %c0_12 = arith.constant 0 : index
    %c18 = arith.constant 18 : index
    %c0_13 = arith.constant 0 : index
    %17 = vector.load %arg2[%c0_12, %c18, %c0_13] : memref<1x182x8xf32, #tpu.memory_space<vmem>>, vector<1x144x8xf32>
    %18 = vector.shape_cast %17 : vector<1x144x8xf32> to vector<144x8xf32>
    %c24 = arith.constant 24 : index
    %c0_14 = arith.constant 0 : index
    %19 = vector.load %arg3[%c24, %c0_14] : memref<72x8xbf16, #tpu.memory_space<vmem>>, vector<8x8xbf16>
    %20 = arith.truncf %18 : vector<144x8xf32> to vector<144x8xbf16>
    %cst_15 = arith.constant dense<0.000000e+00> : vector<144x8xf32>
    %21 = tpu.matmul %20, %19, %cst_15 {dimension_numbers = #tpu.dot_dimension_numbers<[1], [0], [0], [1], [0, 0, 1, 1], [], []>} : vector<144x8xbf16>, vector<8x8xbf16>, vector<144x8xf32> -> vector<144x8xf32>
    %22 = arith.addf %16, %21 : vector<144x8xf32>
    %c0_16 = arith.constant 0 : index
    %c19 = arith.constant 19 : index
    %c0_17 = arith.constant 0 : index
    %23 = vector.load %arg2[%c0_16, %c19, %c0_17] : memref<1x182x8xf32, #tpu.memory_space<vmem>>, vector<1x144x8xf32>
    %24 = vector.shape_cast %23 : vector<1x144x8xf32> to vector<144x8xf32>
    %c32 = arith.constant 32 : index
    %c0_18 = arith.constant 0 : index
    %25 = vector.load %arg3[%c32, %c0_18] : memref<72x8xbf16, #tpu.memory_space<vmem>>, vector<8x8xbf16>
    %26 = arith.truncf %24 : vector<144x8xf32> to vector<144x8xbf16>
    %cst_19 = arith.constant dense<0.000000e+00> : vector<144x8xf32>
    %27 = tpu.matmul %26, %25, %cst_19 {dimension_numbers = #tpu.dot_dimension_numbers<[1], [0], [0], [1], [0, 0, 1, 1], [], []>} : vector<144x8xbf16>, vector<8x8xbf16>, vector<144x8xf32> -> vector<144x8xf32>
    %28 = arith.addf %22, %27 : vector<144x8xf32>
    %c0_20 = arith.constant 0 : index
    %c20 = arith.constant 20 : index
    %c0_21 = arith.constant 0 : index
    %29 = vector.load %arg2[%c0_20, %c20, %c0_21] : memref<1x182x8xf32, #tpu.memory_space<vmem>>, vector<1x144x8xf32>
    %30 = vector.shape_cast %29 : vector<1x144x8xf32> to vector<144x8xf32>
    %c40 = arith.constant 40 : index
    %c0_22 = arith.constant 0 : index
    %31 = vector.load %arg3[%c40, %c0_22] : memref<72x8xbf16, #tpu.memory_space<vmem>>, vector<8x8xbf16>
    %32 = arith.truncf %30 : vector<144x8xf32> to vector<144x8xbf16>
    %cst_23 = arith.constant dense<0.000000e+00> : vector<144x8xf32>
    %33 = tpu.matmul %32, %31, %cst_23 {dimension_numbers = #tpu.dot_dimension_numbers<[1], [0], [0], [1], [0, 0, 1, 1], [], []>} : vector<144x8xbf16>, vector<8x8xbf16>, vector<144x8xf32> -> vector<144x8xf32>
    %34 = arith.addf %28, %33 : vector<144x8xf32>
    %c0_24 = arith.constant 0 : index
    %c36 = arith.constant 36 : index
    %c0_25 = arith.constant 0 : index
    %35 = vector.load %arg2[%c0_24, %c36, %c0_25] : memref<1x182x8xf32, #tpu.memory_space<vmem>>, vector<1x144x8xf32>
    %36 = vector.shape_cast %35 : vector<1x144x8xf32> to vector<144x8xf32>
    %c48 = arith.constant 48 : index
    %c0_26 = arith.constant 0 : index
    %37 = vector.load %arg3[%c48, %c0_26] : memref<72x8xbf16, #tpu.memory_space<vmem>>, vector<8x8xbf16>
    %38 = arith.truncf %36 : vector<144x8xf32> to vector<144x8xbf16>
    %cst_27 = arith.constant dense<0.000000e+00> : vector<144x8xf32>
    %39 = tpu.matmul %38, %37, %cst_27 {dimension_numbers = #tpu.dot_dimension_numbers<[1], [0], [0], [1], [0, 0, 1, 1], [], []>} : vector<144x8xbf16>, vector<8x8xbf16>, vector<144x8xf32> -> vector<144x8xf32>
    %40 = arith.addf %34, %39 : vector<144x8xf32>
    %c0_28 = arith.constant 0 : index
    %c37 = arith.constant 37 : index
    %c0_29 = arith.constant 0 : index
    %41 = vector.load %arg2[%c0_28, %c37, %c0_29] : memref<1x182x8xf32, #tpu.memory_space<vmem>>, vector<1x144x8xf32>
    %42 = vector.shape_cast %41 : vector<1x144x8xf32> to vector<144x8xf32>
    %c56 = arith.constant 56 : index
    %c0_30 = arith.constant 0 : index
    %43 = vector.load %arg3[%c56, %c0_30] : memref<72x8xbf16, #tpu.memory_space<vmem>>, vector<8x8xbf16>
    %44 = arith.truncf %42 : vector<144x8xf32> to vector<144x8xbf16>
    %cst_31 = arith.constant dense<0.000000e+00> : vector<144x8xf32>
    %45 = tpu.matmul %44, %43, %cst_31 {dimension_numbers = #tpu.dot_dimension_numbers<[1], [0], [0], [1], [0, 0, 1, 1], [], []>} : vector<144x8xbf16>, vector<8x8xbf16>, vector<144x8xf32> -> vector<144x8xf32>
    %46 = arith.addf %40, %45 : vector<144x8xf32>
    %c0_32 = arith.constant 0 : index
    %c38 = arith.constant 38 : index
    %c0_33 = arith.constant 0 : index
    %47 = vector.load %arg2[%c0_32, %c38, %c0_33] : memref<1x182x8xf32, #tpu.memory_space<vmem>>, vector<1x144x8xf32>
    %48 = vector.shape_cast %47 : vector<1x144x8xf32> to vector<144x8xf32>
    %c64 = arith.constant 64 : index
    %c0_34 = arith.constant 0 : index
    %49 = vector.load %arg3[%c64, %c0_34] : memref<72x8xbf16, #tpu.memory_space<vmem>>, vector<8x8xbf16>
    %50 = arith.truncf %48 : vector<144x8xf32> to vector<144x8xbf16>
    %cst_35 = arith.constant dense<0.000000e+00> : vector<144x8xf32>
    %51 = tpu.matmul %50, %49, %cst_35 {dimension_numbers = #tpu.dot_dimension_numbers<[1], [0], [0], [1], [0, 0, 1, 1], [], []>} : vector<144x8xbf16>, vector<8x8xbf16>, vector<144x8xf32> -> vector<144x8xf32>
    %52 = arith.addf %46, %51 : vector<144x8xf32>
    %c0_i32 = arith.constant 0 : i32
    %53 = arith.cmpi eq, %arg0, %c0_i32 : i32
    %c0_i32_36 = arith.constant 0 : i32
    %54 = arith.cmpi eq, %arg1, %c0_i32_36 : i32
    %55 = arith.andi %53, %54 : i1
    %56 = arith.extui %55 : i1 to i32
    %c0_i32_37 = arith.constant 0 : i32
    %57 = arith.cmpi ne, %56, %c0_i32_37 : i32
    scf.if %57 {
      %cst_41 = arith.constant 0.000000e+00 : f32
      %64 = vector.broadcast %cst_41 : f32 to vector<1x8xf32>
      %c0_42 = arith.constant 0 : index
      %c0_43 = arith.constant 0 : index
      %65 = vector.load %arg7[%c0_42, %c0_43] : memref<1x8xf32, #tpu.memory_space<vmem>>, vector<1x8xf32>
      tpu.vector_store %arg7[%c0_42, %c0_43], %64 {strides = array<i32>} : memref<1x8xf32, #tpu.memory_space<vmem>>, vector<1x8xf32>,
      %cst_44 = arith.constant 0.000000e+00 : f32
      %66 = vector.broadcast %cst_44 : f32 to vector<1x8xf32>
      %c0_45 = arith.constant 0 : index
      %c0_46 = arith.constant 0 : index
      %67 = vector.load %arg8[%c0_45, %c0_46] : memref<1x8xf32, #tpu.memory_space<vmem>>, vector<1x8xf32>
      tpu.vector_store %arg8[%c0_45, %c0_46], %66 {strides = array<i32>} : memref<1x8xf32, #tpu.memory_space<vmem>>, vector<1x8xf32>,
    } else {
    }
    %c0_i32_38 = arith.constant 0 : i32
    %58 = arith.cmpi eq, %arg0, %c0_i32_38 : i32
    %59 = arith.extui %58 : i1 to i32
    %c0_i32_39 = arith.constant 0 : i32
    %60 = arith.cmpi ne, %59, %c0_i32_39 : i32
    scf.if %60 {
      %64 = tpu.iota {dimensions = array<i32: 0>} : vector<144x1xi32>
      %c18_i32 = arith.constant 18 : i32
      %c0_i32_41 = arith.constant 0 : i32
      %65 = arith.cmpi eq, %c18_i32, %c0_i32_41 : i32
      %c1_i32_42 = arith.constant 1 : i32
      %66 = arith.select %65, %c1_i32_42, %c18_i32 : i32
      %67 = vector.broadcast %66 : i32 to vector<144x1xi32>
      %68 = arith.remsi %64, %67 : vector<144x1xi32>
      %c0_i32_43 = arith.constant 0 : i32
      %69 = vector.broadcast %c0_i32_43 : i32 to vector<144x1xi32>
      %70 = arith.cmpi ne, %68, %69 : vector<144x1xi32>
      %c0_i32_44 = arith.constant 0 : i32
      %71 = vector.broadcast %c0_i32_44 : i32 to vector<144x1xi32>
      %72 = arith.cmpi slt, %68, %71 : vector<144x1xi32>
      %c0_i32_45 = arith.constant 0 : i32
      %73 = arith.cmpi slt, %66, %c0_i32_45 : i32
      %74 = vector.broadcast %73 : i1 to vector<144x1xi1>
      %75 = vector.broadcast %74 : vector<144x1xi1> to vector<144x1xi1>
      %76 = arith.xori %72, %75 : vector<144x1xi1>
      %77 = arith.andi %76, %70 : vector<144x1xi1>
      %78 = vector.broadcast %66 : i32 to vector<144x1xi32>
      %79 = arith.addi %68, %78 : vector<144x1xi32>
      %80 = arith.select %77, %79, %68 : vector<144x1xi1>, vector<144x1xi32>
      %c16_i32 = arith.constant 16 : i32
      %81 = vector.broadcast %c16_i32 : i32 to vector<144x1xi32>
      %82 = arith.cmpi slt, %80, %81 : vector<144x1xi32>
      %cst_46 = arith.constant 0.000000e+00 : f32
      %83 = vector.shape_cast %82 : vector<144x1xi1> to vector<144x1xi1>
      %84 = vector.broadcast %83 : vector<144x1xi1> to vector<144x8xi1>
      %85 = vector.broadcast %cst_46 : f32 to vector<144x8xf32>
      %86 = arith.select %84, %52, %85 : vector<144x8xi1>, vector<144x8xf32>
      %c0_47 = arith.constant 0 : index
      %c0_48 = arith.constant 0 : index
      %87 = vector.load %arg7[%c0_47, %c0_48] : memref<1x8xf32, #tpu.memory_space<vmem>>, vector<1x8xf32>
      %cst_49 = arith.constant dense<0.000000e+00> : vector<8xf32>
      %88 = vector.multi_reduction <add>, %86, %cst_49 [0] : vector<144x8xf32> to vector<8xf32>
      %89 = vector.shape_cast %88 : vector<8xf32> to vector<1x8xf32>
      %90 = arith.addf %87, %89 : vector<1x8xf32>
      %c0_50 = arith.constant 0 : index
      %c0_51 = arith.constant 0 : index
      %91 = vector.load %arg7[%c0_50, %c0_51] : memref<1x8xf32, #tpu.memory_space<vmem>>, vector<1x8xf32>
      tpu.vector_store %arg7[%c0_50, %c0_51], %90 {strides = array<i32>} : memref<1x8xf32, #tpu.memory_space<vmem>>, vector<1x8xf32>,
      %c0_52 = arith.constant 0 : index
      %c0_53 = arith.constant 0 : index
      %92 = vector.load %arg8[%c0_52, %c0_53] : memref<1x8xf32, #tpu.memory_space<vmem>>, vector<1x8xf32>
      %93 = arith.mulf %86, %86 : vector<144x8xf32>
      %cst_54 = arith.constant dense<0.000000e+00> : vector<8xf32>
      %94 = vector.multi_reduction <add>, %93, %cst_54 [0] : vector<144x8xf32> to vector<8xf32>
      %95 = vector.shape_cast %94 : vector<8xf32> to vector<1x8xf32>
      %96 = arith.addf %92, %95 : vector<1x8xf32>
      %c0_55 = arith.constant 0 : index
      %c0_56 = arith.constant 0 : index
      %97 = vector.load %arg8[%c0_55, %c0_56] : memref<1x8xf32, #tpu.memory_space<vmem>>, vector<1x8xf32>
      tpu.vector_store %arg8[%c0_55, %c0_56], %96 {strides = array<i32>} : memref<1x8xf32, #tpu.memory_space<vmem>>, vector<1x8xf32>,
    } else {
    }
    %c1_i32 = arith.constant 1 : i32
    %61 = arith.cmpi eq, %arg0, %c1_i32 : i32
    %62 = arith.extui %61 : i1 to i32
    %c0_i32_40 = arith.constant 0 : i32
    %63 = arith.cmpi ne, %62, %c0_i32_40 : i32
    scf.if %63 {
      %c0_41 = arith.constant 0 : index
      %c0_42 = arith.constant 0 : index
      %64 = vector.load %arg7[%c0_41, %c0_42] : memref<1x8xf32, #tpu.memory_space<vmem>>, vector<1x8xf32>
      %cst_43 = arith.constant 0.001953125 : f32
      %65 = vector.broadcast %cst_43 : f32 to vector<1x8xf32>
      %66 = arith.mulf %64, %65 : vector<1x8xf32>
      %c0_44 = arith.constant 0 : index
      %c0_45 = arith.constant 0 : index
      %67 = vector.load %arg8[%c0_44, %c0_45] : memref<1x8xf32, #tpu.memory_space<vmem>>, vector<1x8xf32>
      %cst_46 = arith.constant 0.001953125 : f32
      %68 = vector.broadcast %cst_46 : f32 to vector<1x8xf32>
      %69 = arith.mulf %67, %68 : vector<1x8xf32>
      %70 = arith.mulf %66, %66 : vector<1x8xf32>
      %71 = arith.subf %69, %70 : vector<1x8xf32>
      %cst_47 = arith.constant 0.000000e+00 : f32
      %72 = vector.broadcast %cst_47 : f32 to vector<1x8xf32>
      %73 = arith.maximumf %71, %72 : vector<1x8xf32>
      %cst_48 = arith.constant 9.99999974E-6 : f32
      %74 = vector.broadcast %cst_48 : f32 to vector<1x8xf32>
      %75 = arith.addf %73, %74 : vector<1x8xf32>
      %76 = math.rsqrt %75 : vector<1x8xf32>
      %c0_49 = arith.constant 0 : index
      %c0_50 = arith.constant 0 : index
      %77 = vector.load %arg4[%c0_49, %c0_50] : memref<1x8xf32, #tpu.memory_space<vmem>>, vector<1x8xf32>
      %78 = arith.mulf %76, %77 : vector<1x8xf32>
      %79 = vector.broadcast %66 : vector<1x8xf32> to vector<144x8xf32>
      %80 = arith.subf %52, %79 : vector<144x8xf32>
      %81 = vector.broadcast %78 : vector<1x8xf32> to vector<144x8xf32>
      %82 = arith.mulf %80, %81 : vector<144x8xf32>
      %c0_51 = arith.constant 0 : index
      %c0_52 = arith.constant 0 : index
      %83 = vector.load %arg5[%c0_51, %c0_52] : memref<1x8xf32, #tpu.memory_space<vmem>>, vector<1x8xf32>
      %84 = vector.broadcast %83 : vector<1x8xf32> to vector<144x8xf32>
      %85 = arith.addf %82, %84 : vector<144x8xf32>
      %cst_53 = arith.constant 0.000000e+00 : f32
      %86 = vector.broadcast %cst_53 : f32 to vector<144x8xf32>
      %87 = arith.maximumf %85, %86 : vector<144x8xf32>
      %88 = arith.addf %87, %24 : vector<144x8xf32>
      %c0_54 = arith.constant 0 : index
      %c0_55 = arith.constant 0 : index
      %c0_56 = arith.constant 0 : index
      %89 = vector.load %arg6[%c0_54, %c0_55, %c0_56] : memref<1x144x8xf32, #tpu.memory_space<vmem>>, vector<1x144x8xf32>
      %90 = vector.shape_cast %89 : vector<1x144x8xf32> to vector<144x8xf32>
      %91 = vector.shape_cast %88 : vector<144x8xf32> to vector<1x144x8xf32>
      tpu.vector_store %arg6[%c0_54, %c0_55, %c0_56], %91 {strides = array<i32>} : memref<1x144x8xf32, #tpu.memory_space<vmem>>, vector<1x144x8xf32>,
    } else {
    }
    return
  }
  func.func @transform_0(%arg0: i32, %arg1: i32) -> (i32, i32, i32) {
    %c0_i32 = arith.constant 0 : i32
    %c0_i32_0 = arith.constant 0 : i32
    %c0_i32_1 = arith.constant 0 : i32
    return %arg1, %c0_i32, %c0_i32_0 : i32, i32, i32
  }
  func.func @transform_1(%arg0: i32, %arg1: i32) -> (i32, i32) {
    %c0_i32 = arith.constant 0 : i32
    %c0_i32_0 = arith.constant 0 : i32
    %c0_i32_1 = arith.constant 0 : i32
    return %c0_i32, %c0_i32_0 : i32, i32
  }
  func.func @transform_2(%arg0: i32, %arg1: i32) -> (i32, i32) {
    %c0_i32 = arith.constant 0 : i32
    %c0_i32_0 = arith.constant 0 : i32
    %c0_i32_1 = arith.constant 0 : i32
    return %c0_i32, %c0_i32_0 : i32, i32
  }
  func.func @transform_3(%arg0: i32, %arg1: i32) -> (i32, i32) {
    %c0_i32 = arith.constant 0 : i32
    %c0_i32_0 = arith.constant 0 : i32
    %c0_i32_1 = arith.constant 0 : i32
    return %c0_i32, %c0_i32_0 : i32, i32
  }
  func.func @transform_4(%arg0: i32, %arg1: i32) -> (i32, i32, i32) {
    %0 = arith.muli %arg0, %arg1 : i32
    %c0_i32 = arith.constant 0 : i32
    %c0_i32_0 = arith.constant 0 : i32
    %c0_i32_1 = arith.constant 0 : i32
    return %0, %c0_i32, %c0_i32_0 : i32, i32, i32
  }
}

module attributes {stable_mosaic.version = 11 : i64} {
  func.func @body(%arg0: i32, %arg1: i32, %arg2: memref<1x182x8xf32, #tpu.memory_space<vmem>>, %arg3: memref<72x8xbf16, #tpu.memory_space<vmem>>, %arg4: memref<1x8xf32, #tpu.memory_space<vmem>>, %arg5: memref<1x8xf32, #tpu.memory_space<vmem>>, %arg6: memref<1x182x8xf32, #tpu.memory_space<vmem>>, %arg7: memref<1x144x8xf32, #tpu.memory_space<vmem>>, %arg8: memref<1x8xf32, #tpu.memory_space<vmem>>, %arg9: memref<1x8xf32, #tpu.memory_space<vmem>>) attributes {dimension_semantics = [#tpu.dimension_semantics<arbitrary>, #tpu.dimension_semantics<arbitrary>], iteration_bounds = array<i64: 2, 4>, scalar_prefetch = 0 : i64, scratch_operands = 2 : i64, tpu.core_type = #tpu.core_type<tc>, window_params = [{transform_indices = @transform_0, window_bounds = array<i64: 1, 182, 8>}, {pipeline_mode = #tpu.pipeline_mode<synchronous>, transform_indices = @transform_1, window_bounds = array<i64: 72, 8>}, {pipeline_mode = #tpu.pipeline_mode<synchronous>, transform_indices = @transform_2, window_bounds = array<i64: 1, 8>}, {pipeline_mode = #tpu.pipeline_mode<synchronous>, transform_indices = @transform_3, window_bounds = array<i64: 1, 8>}, {transform_indices = @transform_4, window_bounds = array<i64: 1, 182, 8>}, {transform_indices = @transform_5, window_bounds = array<i64: 1, 144, 8>}]} {
    %c0 = arith.constant 0 : index
    %c0_0 = arith.constant 0 : index
    %c0_1 = arith.constant 0 : index
    %0 = vector.load %arg2[%c0, %c0_0, %c0_1] : memref<1x182x8xf32, #tpu.memory_space<vmem>>, vector<1x144x8xf32>
    %1 = vector.shape_cast %0 : vector<1x144x8xf32> to vector<144x8xf32>
    %c0_2 = arith.constant 0 : index
    %c0_3 = arith.constant 0 : index
    %2 = vector.load %arg3[%c0_2, %c0_3] : memref<72x8xbf16, #tpu.memory_space<vmem>>, vector<8x8xbf16>
    %3 = arith.truncf %1 : vector<144x8xf32> to vector<144x8xbf16>
    %cst = arith.constant dense<0.000000e+00> : vector<144x8xf32>
    %4 = tpu.matmul %3, %2, %cst {dimension_numbers = #tpu.dot_dimension_numbers<[1], [0], [0], [1], [0, 0, 1, 1], [], []>} : vector<144x8xbf16>, vector<8x8xbf16>, vector<144x8xf32> -> vector<144x8xf32>
    %c0_4 = arith.constant 0 : index
    %c1 = arith.constant 1 : index
    %c0_5 = arith.constant 0 : index
    %5 = vector.load %arg2[%c0_4, %c1, %c0_5] : memref<1x182x8xf32, #tpu.memory_space<vmem>>, vector<1x144x8xf32>
    %6 = vector.shape_cast %5 : vector<1x144x8xf32> to vector<144x8xf32>
    %c8 = arith.constant 8 : index
    %c0_6 = arith.constant 0 : index
    %7 = vector.load %arg3[%c8, %c0_6] : memref<72x8xbf16, #tpu.memory_space<vmem>>, vector<8x8xbf16>
    %8 = arith.truncf %6 : vector<144x8xf32> to vector<144x8xbf16>
    %cst_7 = arith.constant dense<0.000000e+00> : vector<144x8xf32>
    %9 = tpu.matmul %8, %7, %cst_7 {dimension_numbers = #tpu.dot_dimension_numbers<[1], [0], [0], [1], [0, 0, 1, 1], [], []>} : vector<144x8xbf16>, vector<8x8xbf16>, vector<144x8xf32> -> vector<144x8xf32>
    %10 = arith.addf %4, %9 : vector<144x8xf32>
    %c0_8 = arith.constant 0 : index
    %c2 = arith.constant 2 : index
    %c0_9 = arith.constant 0 : index
    %11 = vector.load %arg2[%c0_8, %c2, %c0_9] : memref<1x182x8xf32, #tpu.memory_space<vmem>>, vector<1x144x8xf32>
    %12 = vector.shape_cast %11 : vector<1x144x8xf32> to vector<144x8xf32>
    %c16 = arith.constant 16 : index
    %c0_10 = arith.constant 0 : index
    %13 = vector.load %arg3[%c16, %c0_10] : memref<72x8xbf16, #tpu.memory_space<vmem>>, vector<8x8xbf16>
    %14 = arith.truncf %12 : vector<144x8xf32> to vector<144x8xbf16>
    %cst_11 = arith.constant dense<0.000000e+00> : vector<144x8xf32>
    %15 = tpu.matmul %14, %13, %cst_11 {dimension_numbers = #tpu.dot_dimension_numbers<[1], [0], [0], [1], [0, 0, 1, 1], [], []>} : vector<144x8xbf16>, vector<8x8xbf16>, vector<144x8xf32> -> vector<144x8xf32>
    %16 = arith.addf %10, %15 : vector<144x8xf32>
    %c0_12 = arith.constant 0 : index
    %c18 = arith.constant 18 : index
    %c0_13 = arith.constant 0 : index
    %17 = vector.load %arg2[%c0_12, %c18, %c0_13] : memref<1x182x8xf32, #tpu.memory_space<vmem>>, vector<1x144x8xf32>
    %18 = vector.shape_cast %17 : vector<1x144x8xf32> to vector<144x8xf32>
    %c24 = arith.constant 24 : index
    %c0_14 = arith.constant 0 : index
    %19 = vector.load %arg3[%c24, %c0_14] : memref<72x8xbf16, #tpu.memory_space<vmem>>, vector<8x8xbf16>
    %20 = arith.truncf %18 : vector<144x8xf32> to vector<144x8xbf16>
    %cst_15 = arith.constant dense<0.000000e+00> : vector<144x8xf32>
    %21 = tpu.matmul %20, %19, %cst_15 {dimension_numbers = #tpu.dot_dimension_numbers<[1], [0], [0], [1], [0, 0, 1, 1], [], []>} : vector<144x8xbf16>, vector<8x8xbf16>, vector<144x8xf32> -> vector<144x8xf32>
    %22 = arith.addf %16, %21 : vector<144x8xf32>
    %c0_16 = arith.constant 0 : index
    %c19 = arith.constant 19 : index
    %c0_17 = arith.constant 0 : index
    %23 = vector.load %arg2[%c0_16, %c19, %c0_17] : memref<1x182x8xf32, #tpu.memory_space<vmem>>, vector<1x144x8xf32>
    %24 = vector.shape_cast %23 : vector<1x144x8xf32> to vector<144x8xf32>
    %c32 = arith.constant 32 : index
    %c0_18 = arith.constant 0 : index
    %25 = vector.load %arg3[%c32, %c0_18] : memref<72x8xbf16, #tpu.memory_space<vmem>>, vector<8x8xbf16>
    %26 = arith.truncf %24 : vector<144x8xf32> to vector<144x8xbf16>
    %cst_19 = arith.constant dense<0.000000e+00> : vector<144x8xf32>
    %27 = tpu.matmul %26, %25, %cst_19 {dimension_numbers = #tpu.dot_dimension_numbers<[1], [0], [0], [1], [0, 0, 1, 1], [], []>} : vector<144x8xbf16>, vector<8x8xbf16>, vector<144x8xf32> -> vector<144x8xf32>
    %28 = arith.addf %22, %27 : vector<144x8xf32>
    %c0_20 = arith.constant 0 : index
    %c20 = arith.constant 20 : index
    %c0_21 = arith.constant 0 : index
    %29 = vector.load %arg2[%c0_20, %c20, %c0_21] : memref<1x182x8xf32, #tpu.memory_space<vmem>>, vector<1x144x8xf32>
    %30 = vector.shape_cast %29 : vector<1x144x8xf32> to vector<144x8xf32>
    %c40 = arith.constant 40 : index
    %c0_22 = arith.constant 0 : index
    %31 = vector.load %arg3[%c40, %c0_22] : memref<72x8xbf16, #tpu.memory_space<vmem>>, vector<8x8xbf16>
    %32 = arith.truncf %30 : vector<144x8xf32> to vector<144x8xbf16>
    %cst_23 = arith.constant dense<0.000000e+00> : vector<144x8xf32>
    %33 = tpu.matmul %32, %31, %cst_23 {dimension_numbers = #tpu.dot_dimension_numbers<[1], [0], [0], [1], [0, 0, 1, 1], [], []>} : vector<144x8xbf16>, vector<8x8xbf16>, vector<144x8xf32> -> vector<144x8xf32>
    %34 = arith.addf %28, %33 : vector<144x8xf32>
    %c0_24 = arith.constant 0 : index
    %c36 = arith.constant 36 : index
    %c0_25 = arith.constant 0 : index
    %35 = vector.load %arg2[%c0_24, %c36, %c0_25] : memref<1x182x8xf32, #tpu.memory_space<vmem>>, vector<1x144x8xf32>
    %36 = vector.shape_cast %35 : vector<1x144x8xf32> to vector<144x8xf32>
    %c48 = arith.constant 48 : index
    %c0_26 = arith.constant 0 : index
    %37 = vector.load %arg3[%c48, %c0_26] : memref<72x8xbf16, #tpu.memory_space<vmem>>, vector<8x8xbf16>
    %38 = arith.truncf %36 : vector<144x8xf32> to vector<144x8xbf16>
    %cst_27 = arith.constant dense<0.000000e+00> : vector<144x8xf32>
    %39 = tpu.matmul %38, %37, %cst_27 {dimension_numbers = #tpu.dot_dimension_numbers<[1], [0], [0], [1], [0, 0, 1, 1], [], []>} : vector<144x8xbf16>, vector<8x8xbf16>, vector<144x8xf32> -> vector<144x8xf32>
    %40 = arith.addf %34, %39 : vector<144x8xf32>
    %c0_28 = arith.constant 0 : index
    %c37 = arith.constant 37 : index
    %c0_29 = arith.constant 0 : index
    %41 = vector.load %arg2[%c0_28, %c37, %c0_29] : memref<1x182x8xf32, #tpu.memory_space<vmem>>, vector<1x144x8xf32>
    %42 = vector.shape_cast %41 : vector<1x144x8xf32> to vector<144x8xf32>
    %c56 = arith.constant 56 : index
    %c0_30 = arith.constant 0 : index
    %43 = vector.load %arg3[%c56, %c0_30] : memref<72x8xbf16, #tpu.memory_space<vmem>>, vector<8x8xbf16>
    %44 = arith.truncf %42 : vector<144x8xf32> to vector<144x8xbf16>
    %cst_31 = arith.constant dense<0.000000e+00> : vector<144x8xf32>
    %45 = tpu.matmul %44, %43, %cst_31 {dimension_numbers = #tpu.dot_dimension_numbers<[1], [0], [0], [1], [0, 0, 1, 1], [], []>} : vector<144x8xbf16>, vector<8x8xbf16>, vector<144x8xf32> -> vector<144x8xf32>
    %46 = arith.addf %40, %45 : vector<144x8xf32>
    %c0_32 = arith.constant 0 : index
    %c38 = arith.constant 38 : index
    %c0_33 = arith.constant 0 : index
    %47 = vector.load %arg2[%c0_32, %c38, %c0_33] : memref<1x182x8xf32, #tpu.memory_space<vmem>>, vector<1x144x8xf32>
    %48 = vector.shape_cast %47 : vector<1x144x8xf32> to vector<144x8xf32>
    %c64 = arith.constant 64 : index
    %c0_34 = arith.constant 0 : index
    %49 = vector.load %arg3[%c64, %c0_34] : memref<72x8xbf16, #tpu.memory_space<vmem>>, vector<8x8xbf16>
    %50 = arith.truncf %48 : vector<144x8xf32> to vector<144x8xbf16>
    %cst_35 = arith.constant dense<0.000000e+00> : vector<144x8xf32>
    %51 = tpu.matmul %50, %49, %cst_35 {dimension_numbers = #tpu.dot_dimension_numbers<[1], [0], [0], [1], [0, 0, 1, 1], [], []>} : vector<144x8xbf16>, vector<8x8xbf16>, vector<144x8xf32> -> vector<144x8xf32>
    %52 = arith.addf %46, %51 : vector<144x8xf32>
    %c0_i32 = arith.constant 0 : i32
    %53 = arith.cmpi eq, %arg0, %c0_i32 : i32
    %c0_i32_36 = arith.constant 0 : i32
    %54 = arith.cmpi eq, %arg1, %c0_i32_36 : i32
    %55 = arith.andi %53, %54 : i1
    %56 = arith.extui %55 : i1 to i32
    %c0_i32_37 = arith.constant 0 : i32
    %57 = arith.cmpi ne, %56, %c0_i32_37 : i32
    scf.if %57 {
      %cst_41 = arith.constant 0.000000e+00 : f32
      %64 = vector.broadcast %cst_41 : f32 to vector<1x8xf32>
      %c0_42 = arith.constant 0 : index
      %c0_43 = arith.constant 0 : index
      %65 = vector.load %arg8[%c0_42, %c0_43] : memref<1x8xf32, #tpu.memory_space<vmem>>, vector<1x8xf32>
      tpu.vector_store %arg8[%c0_42, %c0_43], %64 {strides = array<i32>} : memref<1x8xf32, #tpu.memory_space<vmem>>, vector<1x8xf32>,
      %cst_44 = arith.constant 0.000000e+00 : f32
      %66 = vector.broadcast %cst_44 : f32 to vector<1x8xf32>
      %c0_45 = arith.constant 0 : index
      %c0_46 = arith.constant 0 : index
      %67 = vector.load %arg9[%c0_45, %c0_46] : memref<1x8xf32, #tpu.memory_space<vmem>>, vector<1x8xf32>
      tpu.vector_store %arg9[%c0_45, %c0_46], %66 {strides = array<i32>} : memref<1x8xf32, #tpu.memory_space<vmem>>, vector<1x8xf32>,
    } else {
    }
    %c0_i32_38 = arith.constant 0 : i32
    %58 = arith.cmpi eq, %arg0, %c0_i32_38 : i32
    %59 = arith.extui %58 : i1 to i32
    %c0_i32_39 = arith.constant 0 : i32
    %60 = arith.cmpi ne, %59, %c0_i32_39 : i32
    scf.if %60 {
      %64 = tpu.iota {dimensions = array<i32: 0>} : vector<144x1xi32>
      %c18_i32 = arith.constant 18 : i32
      %c0_i32_41 = arith.constant 0 : i32
      %65 = arith.cmpi eq, %c18_i32, %c0_i32_41 : i32
      %c1_i32_42 = arith.constant 1 : i32
      %66 = arith.select %65, %c1_i32_42, %c18_i32 : i32
      %67 = vector.broadcast %66 : i32 to vector<144x1xi32>
      %68 = arith.remsi %64, %67 : vector<144x1xi32>
      %c0_i32_43 = arith.constant 0 : i32
      %69 = vector.broadcast %c0_i32_43 : i32 to vector<144x1xi32>
      %70 = arith.cmpi ne, %68, %69 : vector<144x1xi32>
      %c0_i32_44 = arith.constant 0 : i32
      %71 = vector.broadcast %c0_i32_44 : i32 to vector<144x1xi32>
      %72 = arith.cmpi slt, %68, %71 : vector<144x1xi32>
      %c0_i32_45 = arith.constant 0 : i32
      %73 = arith.cmpi slt, %66, %c0_i32_45 : i32
      %74 = vector.broadcast %73 : i1 to vector<144x1xi1>
      %75 = vector.broadcast %74 : vector<144x1xi1> to vector<144x1xi1>
      %76 = arith.xori %72, %75 : vector<144x1xi1>
      %77 = arith.andi %76, %70 : vector<144x1xi1>
      %78 = vector.broadcast %66 : i32 to vector<144x1xi32>
      %79 = arith.addi %68, %78 : vector<144x1xi32>
      %80 = arith.select %77, %79, %68 : vector<144x1xi1>, vector<144x1xi32>
      %c16_i32 = arith.constant 16 : i32
      %81 = vector.broadcast %c16_i32 : i32 to vector<144x1xi32>
      %82 = arith.cmpi slt, %80, %81 : vector<144x1xi32>
      %cst_46 = arith.constant 0.000000e+00 : f32
      %83 = vector.shape_cast %82 : vector<144x1xi1> to vector<144x1xi1>
      %84 = vector.broadcast %83 : vector<144x1xi1> to vector<144x8xi1>
      %85 = vector.broadcast %cst_46 : f32 to vector<144x8xf32>
      %86 = arith.select %84, %52, %85 : vector<144x8xi1>, vector<144x8xf32>
      %c0_47 = arith.constant 0 : index
      %c0_48 = arith.constant 0 : index
      %87 = vector.load %arg8[%c0_47, %c0_48] : memref<1x8xf32, #tpu.memory_space<vmem>>, vector<1x8xf32>
      %cst_49 = arith.constant dense<0.000000e+00> : vector<8xf32>
      %88 = vector.multi_reduction <add>, %86, %cst_49 [0] : vector<144x8xf32> to vector<8xf32>
      %89 = vector.shape_cast %88 : vector<8xf32> to vector<1x8xf32>
      %90 = arith.addf %87, %89 : vector<1x8xf32>
      %c0_50 = arith.constant 0 : index
      %c0_51 = arith.constant 0 : index
      %91 = vector.load %arg8[%c0_50, %c0_51] : memref<1x8xf32, #tpu.memory_space<vmem>>, vector<1x8xf32>
      tpu.vector_store %arg8[%c0_50, %c0_51], %90 {strides = array<i32>} : memref<1x8xf32, #tpu.memory_space<vmem>>, vector<1x8xf32>,
      %c0_52 = arith.constant 0 : index
      %c0_53 = arith.constant 0 : index
      %92 = vector.load %arg9[%c0_52, %c0_53] : memref<1x8xf32, #tpu.memory_space<vmem>>, vector<1x8xf32>
      %93 = arith.mulf %86, %86 : vector<144x8xf32>
      %cst_54 = arith.constant dense<0.000000e+00> : vector<8xf32>
      %94 = vector.multi_reduction <add>, %93, %cst_54 [0] : vector<144x8xf32> to vector<8xf32>
      %95 = vector.shape_cast %94 : vector<8xf32> to vector<1x8xf32>
      %96 = arith.addf %92, %95 : vector<1x8xf32>
      %c0_55 = arith.constant 0 : index
      %c0_56 = arith.constant 0 : index
      %97 = vector.load %arg9[%c0_55, %c0_56] : memref<1x8xf32, #tpu.memory_space<vmem>>, vector<1x8xf32>
      tpu.vector_store %arg9[%c0_55, %c0_56], %96 {strides = array<i32>} : memref<1x8xf32, #tpu.memory_space<vmem>>, vector<1x8xf32>,
    } else {
    }
    %c1_i32 = arith.constant 1 : i32
    %61 = arith.cmpi eq, %arg0, %c1_i32 : i32
    %62 = arith.extui %61 : i1 to i32
    %c0_i32_40 = arith.constant 0 : i32
    %63 = arith.cmpi ne, %62, %c0_i32_40 : i32
    scf.if %63 {
      %c0_41 = arith.constant 0 : index
      %c0_42 = arith.constant 0 : index
      %64 = vector.load %arg8[%c0_41, %c0_42] : memref<1x8xf32, #tpu.memory_space<vmem>>, vector<1x8xf32>
      %cst_43 = arith.constant 0.001953125 : f32
      %65 = vector.broadcast %cst_43 : f32 to vector<1x8xf32>
      %66 = arith.mulf %64, %65 : vector<1x8xf32>
      %c0_44 = arith.constant 0 : index
      %c0_45 = arith.constant 0 : index
      %67 = vector.load %arg9[%c0_44, %c0_45] : memref<1x8xf32, #tpu.memory_space<vmem>>, vector<1x8xf32>
      %cst_46 = arith.constant 0.001953125 : f32
      %68 = vector.broadcast %cst_46 : f32 to vector<1x8xf32>
      %69 = arith.mulf %67, %68 : vector<1x8xf32>
      %70 = arith.mulf %66, %66 : vector<1x8xf32>
      %71 = arith.subf %69, %70 : vector<1x8xf32>
      %cst_47 = arith.constant 0.000000e+00 : f32
      %72 = vector.broadcast %cst_47 : f32 to vector<1x8xf32>
      %73 = arith.maximumf %71, %72 : vector<1x8xf32>
      %cst_48 = arith.constant 9.99999974E-6 : f32
      %74 = vector.broadcast %cst_48 : f32 to vector<1x8xf32>
      %75 = arith.addf %73, %74 : vector<1x8xf32>
      %76 = math.rsqrt %75 : vector<1x8xf32>
      %c0_49 = arith.constant 0 : index
      %c0_50 = arith.constant 0 : index
      %77 = vector.load %arg4[%c0_49, %c0_50] : memref<1x8xf32, #tpu.memory_space<vmem>>, vector<1x8xf32>
      %78 = arith.mulf %76, %77 : vector<1x8xf32>
      %79 = vector.broadcast %66 : vector<1x8xf32> to vector<144x8xf32>
      %80 = arith.subf %52, %79 : vector<144x8xf32>
      %81 = vector.broadcast %78 : vector<1x8xf32> to vector<144x8xf32>
      %82 = arith.mulf %80, %81 : vector<144x8xf32>
      %c0_51 = arith.constant 0 : index
      %c0_52 = arith.constant 0 : index
      %83 = vector.load %arg5[%c0_51, %c0_52] : memref<1x8xf32, #tpu.memory_space<vmem>>, vector<1x8xf32>
      %84 = vector.broadcast %83 : vector<1x8xf32> to vector<144x8xf32>
      %85 = arith.addf %82, %84 : vector<144x8xf32>
      %cst_53 = arith.constant 0.000000e+00 : f32
      %86 = vector.broadcast %cst_53 : f32 to vector<144x8xf32>
      %87 = arith.maximumf %85, %86 : vector<144x8xf32>
      %c0_54 = arith.constant 0 : index
      %c19_55 = arith.constant 19 : index
      %c0_56 = arith.constant 0 : index
      %88 = vector.load %arg6[%c0_54, %c19_55, %c0_56] : memref<1x182x8xf32, #tpu.memory_space<vmem>>, vector<1x144x8xf32>
      %89 = vector.shape_cast %88 : vector<1x144x8xf32> to vector<144x8xf32>
      %90 = arith.addf %87, %89 : vector<144x8xf32>
      %c0_57 = arith.constant 0 : index
      %c0_58 = arith.constant 0 : index
      %c0_59 = arith.constant 0 : index
      %91 = vector.load %arg7[%c0_57, %c0_58, %c0_59] : memref<1x144x8xf32, #tpu.memory_space<vmem>>, vector<1x144x8xf32>
      %92 = vector.shape_cast %91 : vector<1x144x8xf32> to vector<144x8xf32>
      %93 = vector.shape_cast %90 : vector<144x8xf32> to vector<1x144x8xf32>
      tpu.vector_store %arg7[%c0_57, %c0_58, %c0_59], %93 {strides = array<i32>} : memref<1x144x8xf32, #tpu.memory_space<vmem>>, vector<1x144x8xf32>,
    } else {
    }
    return
  }
  func.func @transform_0(%arg0: i32, %arg1: i32) -> (i32, i32, i32) {
    %c0_i32 = arith.constant 0 : i32
    %c0_i32_0 = arith.constant 0 : i32
    %c0_i32_1 = arith.constant 0 : i32
    return %arg1, %c0_i32, %c0_i32_0 : i32, i32, i32
  }
  func.func @transform_1(%arg0: i32, %arg1: i32) -> (i32, i32) {
    %c0_i32 = arith.constant 0 : i32
    %c0_i32_0 = arith.constant 0 : i32
    %c0_i32_1 = arith.constant 0 : i32
    return %c0_i32, %c0_i32_0 : i32, i32
  }
  func.func @transform_2(%arg0: i32, %arg1: i32) -> (i32, i32) {
    %c0_i32 = arith.constant 0 : i32
    %c0_i32_0 = arith.constant 0 : i32
    %c0_i32_1 = arith.constant 0 : i32
    return %c0_i32, %c0_i32_0 : i32, i32
  }
  func.func @transform_3(%arg0: i32, %arg1: i32) -> (i32, i32) {
    %c0_i32 = arith.constant 0 : i32
    %c0_i32_0 = arith.constant 0 : i32
    %c0_i32_1 = arith.constant 0 : i32
    return %c0_i32, %c0_i32_0 : i32, i32
  }
  func.func @transform_4(%arg0: i32, %arg1: i32) -> (i32, i32, i32) {
    %0 = arith.muli %arg0, %arg1 : i32
    %c0_i32 = arith.constant 0 : i32
    %c0_i32_0 = arith.constant 0 : i32
    %c0_i32_1 = arith.constant 0 : i32
    return %0, %c0_i32, %c0_i32_0 : i32, i32, i32
  }
  func.func @transform_5(%arg0: i32, %arg1: i32) -> (i32, i32, i32) {
    %0 = arith.muli %arg0, %arg1 : i32
    %c0_i32 = arith.constant 0 : i32
    %c0_i32_0 = arith.constant 0 : i32
    %c0_i32_1 = arith.constant 0 : i32
    return %0, %c0_i32, %c0_i32_0 : i32, i32, i32
  }
}

module attributes {stable_mosaic.version = 11 : i64} {
  func.func @body_no_resid(%arg0: i32, %arg1: i32, %arg2: memref<1x182x8xf32, #tpu.memory_space<vmem>>, %arg3: memref<72x8xbf16, #tpu.memory_space<vmem>>, %arg4: memref<1x8xf32, #tpu.memory_space<vmem>>, %arg5: memref<1x8xf32, #tpu.memory_space<vmem>>, %arg6: memref<1x144x8xf32, #tpu.memory_space<vmem>>, %arg7: memref<1x8xf32, #tpu.memory_space<vmem>>, %arg8: memref<1x8xf32, #tpu.memory_space<vmem>>) attributes {dimension_semantics = [#tpu.dimension_semantics<arbitrary>, #tpu.dimension_semantics<arbitrary>], iteration_bounds = array<i64: 2, 4>, scalar_prefetch = 0 : i64, scratch_operands = 2 : i64, tpu.core_type = #tpu.core_type<tc>, window_params = [{transform_indices = @transform_0, window_bounds = array<i64: 1, 182, 8>}, {pipeline_mode = #tpu.pipeline_mode<synchronous>, transform_indices = @transform_1, window_bounds = array<i64: 72, 8>}, {pipeline_mode = #tpu.pipeline_mode<synchronous>, transform_indices = @transform_2, window_bounds = array<i64: 1, 8>}, {pipeline_mode = #tpu.pipeline_mode<synchronous>, transform_indices = @transform_3, window_bounds = array<i64: 1, 8>}, {transform_indices = @transform_4, window_bounds = array<i64: 1, 144, 8>}]} {
    %c0 = arith.constant 0 : index
    %c0_0 = arith.constant 0 : index
    %c0_1 = arith.constant 0 : index
    %0 = vector.load %arg2[%c0, %c0_0, %c0_1] : memref<1x182x8xf32, #tpu.memory_space<vmem>>, vector<1x144x8xf32>
    %1 = vector.shape_cast %0 : vector<1x144x8xf32> to vector<144x8xf32>
    %c0_2 = arith.constant 0 : index
    %c0_3 = arith.constant 0 : index
    %2 = vector.load %arg3[%c0_2, %c0_3] : memref<72x8xbf16, #tpu.memory_space<vmem>>, vector<8x8xbf16>
    %3 = arith.truncf %1 : vector<144x8xf32> to vector<144x8xbf16>
    %cst = arith.constant dense<0.000000e+00> : vector<144x8xf32>
    %4 = tpu.matmul %3, %2, %cst {dimension_numbers = #tpu.dot_dimension_numbers<[1], [0], [0], [1], [0, 0, 1, 1], [], []>} : vector<144x8xbf16>, vector<8x8xbf16>, vector<144x8xf32> -> vector<144x8xf32>
    %c0_4 = arith.constant 0 : index
    %c1 = arith.constant 1 : index
    %c0_5 = arith.constant 0 : index
    %5 = vector.load %arg2[%c0_4, %c1, %c0_5] : memref<1x182x8xf32, #tpu.memory_space<vmem>>, vector<1x144x8xf32>
    %6 = vector.shape_cast %5 : vector<1x144x8xf32> to vector<144x8xf32>
    %c8 = arith.constant 8 : index
    %c0_6 = arith.constant 0 : index
    %7 = vector.load %arg3[%c8, %c0_6] : memref<72x8xbf16, #tpu.memory_space<vmem>>, vector<8x8xbf16>
    %8 = arith.truncf %6 : vector<144x8xf32> to vector<144x8xbf16>
    %cst_7 = arith.constant dense<0.000000e+00> : vector<144x8xf32>
    %9 = tpu.matmul %8, %7, %cst_7 {dimension_numbers = #tpu.dot_dimension_numbers<[1], [0], [0], [1], [0, 0, 1, 1], [], []>} : vector<144x8xbf16>, vector<8x8xbf16>, vector<144x8xf32> -> vector<144x8xf32>
    %10 = arith.addf %4, %9 : vector<144x8xf32>
    %c0_8 = arith.constant 0 : index
    %c2 = arith.constant 2 : index
    %c0_9 = arith.constant 0 : index
    %11 = vector.load %arg2[%c0_8, %c2, %c0_9] : memref<1x182x8xf32, #tpu.memory_space<vmem>>, vector<1x144x8xf32>
    %12 = vector.shape_cast %11 : vector<1x144x8xf32> to vector<144x8xf32>
    %c16 = arith.constant 16 : index
    %c0_10 = arith.constant 0 : index
    %13 = vector.load %arg3[%c16, %c0_10] : memref<72x8xbf16, #tpu.memory_space<vmem>>, vector<8x8xbf16>
    %14 = arith.truncf %12 : vector<144x8xf32> to vector<144x8xbf16>
    %cst_11 = arith.constant dense<0.000000e+00> : vector<144x8xf32>
    %15 = tpu.matmul %14, %13, %cst_11 {dimension_numbers = #tpu.dot_dimension_numbers<[1], [0], [0], [1], [0, 0, 1, 1], [], []>} : vector<144x8xbf16>, vector<8x8xbf16>, vector<144x8xf32> -> vector<144x8xf32>
    %16 = arith.addf %10, %15 : vector<144x8xf32>
    %c0_12 = arith.constant 0 : index
    %c18 = arith.constant 18 : index
    %c0_13 = arith.constant 0 : index
    %17 = vector.load %arg2[%c0_12, %c18, %c0_13] : memref<1x182x8xf32, #tpu.memory_space<vmem>>, vector<1x144x8xf32>
    %18 = vector.shape_cast %17 : vector<1x144x8xf32> to vector<144x8xf32>
    %c24 = arith.constant 24 : index
    %c0_14 = arith.constant 0 : index
    %19 = vector.load %arg3[%c24, %c0_14] : memref<72x8xbf16, #tpu.memory_space<vmem>>, vector<8x8xbf16>
    %20 = arith.truncf %18 : vector<144x8xf32> to vector<144x8xbf16>
    %cst_15 = arith.constant dense<0.000000e+00> : vector<144x8xf32>
    %21 = tpu.matmul %20, %19, %cst_15 {dimension_numbers = #tpu.dot_dimension_numbers<[1], [0], [0], [1], [0, 0, 1, 1], [], []>} : vector<144x8xbf16>, vector<8x8xbf16>, vector<144x8xf32> -> vector<144x8xf32>
    %22 = arith.addf %16, %21 : vector<144x8xf32>
    %c0_16 = arith.constant 0 : index
    %c19 = arith.constant 19 : index
    %c0_17 = arith.constant 0 : index
    %23 = vector.load %arg2[%c0_16, %c19, %c0_17] : memref<1x182x8xf32, #tpu.memory_space<vmem>>, vector<1x144x8xf32>
    %24 = vector.shape_cast %23 : vector<1x144x8xf32> to vector<144x8xf32>
    %c32 = arith.constant 32 : index
    %c0_18 = arith.constant 0 : index
    %25 = vector.load %arg3[%c32, %c0_18] : memref<72x8xbf16, #tpu.memory_space<vmem>>, vector<8x8xbf16>
    %26 = arith.truncf %24 : vector<144x8xf32> to vector<144x8xbf16>
    %cst_19 = arith.constant dense<0.000000e+00> : vector<144x8xf32>
    %27 = tpu.matmul %26, %25, %cst_19 {dimension_numbers = #tpu.dot_dimension_numbers<[1], [0], [0], [1], [0, 0, 1, 1], [], []>} : vector<144x8xbf16>, vector<8x8xbf16>, vector<144x8xf32> -> vector<144x8xf32>
    %28 = arith.addf %22, %27 : vector<144x8xf32>
    %c0_20 = arith.constant 0 : index
    %c20 = arith.constant 20 : index
    %c0_21 = arith.constant 0 : index
    %29 = vector.load %arg2[%c0_20, %c20, %c0_21] : memref<1x182x8xf32, #tpu.memory_space<vmem>>, vector<1x144x8xf32>
    %30 = vector.shape_cast %29 : vector<1x144x8xf32> to vector<144x8xf32>
    %c40 = arith.constant 40 : index
    %c0_22 = arith.constant 0 : index
    %31 = vector.load %arg3[%c40, %c0_22] : memref<72x8xbf16, #tpu.memory_space<vmem>>, vector<8x8xbf16>
    %32 = arith.truncf %30 : vector<144x8xf32> to vector<144x8xbf16>
    %cst_23 = arith.constant dense<0.000000e+00> : vector<144x8xf32>
    %33 = tpu.matmul %32, %31, %cst_23 {dimension_numbers = #tpu.dot_dimension_numbers<[1], [0], [0], [1], [0, 0, 1, 1], [], []>} : vector<144x8xbf16>, vector<8x8xbf16>, vector<144x8xf32> -> vector<144x8xf32>
    %34 = arith.addf %28, %33 : vector<144x8xf32>
    %c0_24 = arith.constant 0 : index
    %c36 = arith.constant 36 : index
    %c0_25 = arith.constant 0 : index
    %35 = vector.load %arg2[%c0_24, %c36, %c0_25] : memref<1x182x8xf32, #tpu.memory_space<vmem>>, vector<1x144x8xf32>
    %36 = vector.shape_cast %35 : vector<1x144x8xf32> to vector<144x8xf32>
    %c48 = arith.constant 48 : index
    %c0_26 = arith.constant 0 : index
    %37 = vector.load %arg3[%c48, %c0_26] : memref<72x8xbf16, #tpu.memory_space<vmem>>, vector<8x8xbf16>
    %38 = arith.truncf %36 : vector<144x8xf32> to vector<144x8xbf16>
    %cst_27 = arith.constant dense<0.000000e+00> : vector<144x8xf32>
    %39 = tpu.matmul %38, %37, %cst_27 {dimension_numbers = #tpu.dot_dimension_numbers<[1], [0], [0], [1], [0, 0, 1, 1], [], []>} : vector<144x8xbf16>, vector<8x8xbf16>, vector<144x8xf32> -> vector<144x8xf32>
    %40 = arith.addf %34, %39 : vector<144x8xf32>
    %c0_28 = arith.constant 0 : index
    %c37 = arith.constant 37 : index
    %c0_29 = arith.constant 0 : index
    %41 = vector.load %arg2[%c0_28, %c37, %c0_29] : memref<1x182x8xf32, #tpu.memory_space<vmem>>, vector<1x144x8xf32>
    %42 = vector.shape_cast %41 : vector<1x144x8xf32> to vector<144x8xf32>
    %c56 = arith.constant 56 : index
    %c0_30 = arith.constant 0 : index
    %43 = vector.load %arg3[%c56, %c0_30] : memref<72x8xbf16, #tpu.memory_space<vmem>>, vector<8x8xbf16>
    %44 = arith.truncf %42 : vector<144x8xf32> to vector<144x8xbf16>
    %cst_31 = arith.constant dense<0.000000e+00> : vector<144x8xf32>
    %45 = tpu.matmul %44, %43, %cst_31 {dimension_numbers = #tpu.dot_dimension_numbers<[1], [0], [0], [1], [0, 0, 1, 1], [], []>} : vector<144x8xbf16>, vector<8x8xbf16>, vector<144x8xf32> -> vector<144x8xf32>
    %46 = arith.addf %40, %45 : vector<144x8xf32>
    %c0_32 = arith.constant 0 : index
    %c38 = arith.constant 38 : index
    %c0_33 = arith.constant 0 : index
    %47 = vector.load %arg2[%c0_32, %c38, %c0_33] : memref<1x182x8xf32, #tpu.memory_space<vmem>>, vector<1x144x8xf32>
    %48 = vector.shape_cast %47 : vector<1x144x8xf32> to vector<144x8xf32>
    %c64 = arith.constant 64 : index
    %c0_34 = arith.constant 0 : index
    %49 = vector.load %arg3[%c64, %c0_34] : memref<72x8xbf16, #tpu.memory_space<vmem>>, vector<8x8xbf16>
    %50 = arith.truncf %48 : vector<144x8xf32> to vector<144x8xbf16>
    %cst_35 = arith.constant dense<0.000000e+00> : vector<144x8xf32>
    %51 = tpu.matmul %50, %49, %cst_35 {dimension_numbers = #tpu.dot_dimension_numbers<[1], [0], [0], [1], [0, 0, 1, 1], [], []>} : vector<144x8xbf16>, vector<8x8xbf16>, vector<144x8xf32> -> vector<144x8xf32>
    %52 = arith.addf %46, %51 : vector<144x8xf32>
    %c0_i32 = arith.constant 0 : i32
    %53 = arith.cmpi eq, %arg0, %c0_i32 : i32
    %c0_i32_36 = arith.constant 0 : i32
    %54 = arith.cmpi eq, %arg1, %c0_i32_36 : i32
    %55 = arith.andi %53, %54 : i1
    %56 = arith.extui %55 : i1 to i32
    %c0_i32_37 = arith.constant 0 : i32
    %57 = arith.cmpi ne, %56, %c0_i32_37 : i32
    scf.if %57 {
      %cst_41 = arith.constant 0.000000e+00 : f32
      %64 = vector.broadcast %cst_41 : f32 to vector<1x8xf32>
      %c0_42 = arith.constant 0 : index
      %c0_43 = arith.constant 0 : index
      %65 = vector.load %arg7[%c0_42, %c0_43] : memref<1x8xf32, #tpu.memory_space<vmem>>, vector<1x8xf32>
      tpu.vector_store %arg7[%c0_42, %c0_43], %64 {strides = array<i32>} : memref<1x8xf32, #tpu.memory_space<vmem>>, vector<1x8xf32>,
      %cst_44 = arith.constant 0.000000e+00 : f32
      %66 = vector.broadcast %cst_44 : f32 to vector<1x8xf32>
      %c0_45 = arith.constant 0 : index
      %c0_46 = arith.constant 0 : index
      %67 = vector.load %arg8[%c0_45, %c0_46] : memref<1x8xf32, #tpu.memory_space<vmem>>, vector<1x8xf32>
      tpu.vector_store %arg8[%c0_45, %c0_46], %66 {strides = array<i32>} : memref<1x8xf32, #tpu.memory_space<vmem>>, vector<1x8xf32>,
    } else {
    }
    %c0_i32_38 = arith.constant 0 : i32
    %58 = arith.cmpi eq, %arg0, %c0_i32_38 : i32
    %59 = arith.extui %58 : i1 to i32
    %c0_i32_39 = arith.constant 0 : i32
    %60 = arith.cmpi ne, %59, %c0_i32_39 : i32
    scf.if %60 {
      %64 = tpu.iota {dimensions = array<i32: 0>} : vector<144x1xi32>
      %c18_i32 = arith.constant 18 : i32
      %c0_i32_41 = arith.constant 0 : i32
      %65 = arith.cmpi eq, %c18_i32, %c0_i32_41 : i32
      %c1_i32_42 = arith.constant 1 : i32
      %66 = arith.select %65, %c1_i32_42, %c18_i32 : i32
      %67 = vector.broadcast %66 : i32 to vector<144x1xi32>
      %68 = arith.remsi %64, %67 : vector<144x1xi32>
      %c0_i32_43 = arith.constant 0 : i32
      %69 = vector.broadcast %c0_i32_43 : i32 to vector<144x1xi32>
      %70 = arith.cmpi ne, %68, %69 : vector<144x1xi32>
      %c0_i32_44 = arith.constant 0 : i32
      %71 = vector.broadcast %c0_i32_44 : i32 to vector<144x1xi32>
      %72 = arith.cmpi slt, %68, %71 : vector<144x1xi32>
      %c0_i32_45 = arith.constant 0 : i32
      %73 = arith.cmpi slt, %66, %c0_i32_45 : i32
      %74 = vector.broadcast %73 : i1 to vector<144x1xi1>
      %75 = vector.broadcast %74 : vector<144x1xi1> to vector<144x1xi1>
      %76 = arith.xori %72, %75 : vector<144x1xi1>
      %77 = arith.andi %76, %70 : vector<144x1xi1>
      %78 = vector.broadcast %66 : i32 to vector<144x1xi32>
      %79 = arith.addi %68, %78 : vector<144x1xi32>
      %80 = arith.select %77, %79, %68 : vector<144x1xi1>, vector<144x1xi32>
      %c16_i32 = arith.constant 16 : i32
      %81 = vector.broadcast %c16_i32 : i32 to vector<144x1xi32>
      %82 = arith.cmpi slt, %80, %81 : vector<144x1xi32>
      %cst_46 = arith.constant 0.000000e+00 : f32
      %83 = vector.shape_cast %82 : vector<144x1xi1> to vector<144x1xi1>
      %84 = vector.broadcast %83 : vector<144x1xi1> to vector<144x8xi1>
      %85 = vector.broadcast %cst_46 : f32 to vector<144x8xf32>
      %86 = arith.select %84, %52, %85 : vector<144x8xi1>, vector<144x8xf32>
      %c0_47 = arith.constant 0 : index
      %c0_48 = arith.constant 0 : index
      %87 = vector.load %arg7[%c0_47, %c0_48] : memref<1x8xf32, #tpu.memory_space<vmem>>, vector<1x8xf32>
      %cst_49 = arith.constant dense<0.000000e+00> : vector<8xf32>
      %88 = vector.multi_reduction <add>, %86, %cst_49 [0] : vector<144x8xf32> to vector<8xf32>
      %89 = vector.shape_cast %88 : vector<8xf32> to vector<1x8xf32>
      %90 = arith.addf %87, %89 : vector<1x8xf32>
      %c0_50 = arith.constant 0 : index
      %c0_51 = arith.constant 0 : index
      %91 = vector.load %arg7[%c0_50, %c0_51] : memref<1x8xf32, #tpu.memory_space<vmem>>, vector<1x8xf32>
      tpu.vector_store %arg7[%c0_50, %c0_51], %90 {strides = array<i32>} : memref<1x8xf32, #tpu.memory_space<vmem>>, vector<1x8xf32>,
      %c0_52 = arith.constant 0 : index
      %c0_53 = arith.constant 0 : index
      %92 = vector.load %arg8[%c0_52, %c0_53] : memref<1x8xf32, #tpu.memory_space<vmem>>, vector<1x8xf32>
      %93 = arith.mulf %86, %86 : vector<144x8xf32>
      %cst_54 = arith.constant dense<0.000000e+00> : vector<8xf32>
      %94 = vector.multi_reduction <add>, %93, %cst_54 [0] : vector<144x8xf32> to vector<8xf32>
      %95 = vector.shape_cast %94 : vector<8xf32> to vector<1x8xf32>
      %96 = arith.addf %92, %95 : vector<1x8xf32>
      %c0_55 = arith.constant 0 : index
      %c0_56 = arith.constant 0 : index
      %97 = vector.load %arg8[%c0_55, %c0_56] : memref<1x8xf32, #tpu.memory_space<vmem>>, vector<1x8xf32>
      tpu.vector_store %arg8[%c0_55, %c0_56], %96 {strides = array<i32>} : memref<1x8xf32, #tpu.memory_space<vmem>>, vector<1x8xf32>,
    } else {
    }
    %c1_i32 = arith.constant 1 : i32
    %61 = arith.cmpi eq, %arg0, %c1_i32 : i32
    %62 = arith.extui %61 : i1 to i32
    %c0_i32_40 = arith.constant 0 : i32
    %63 = arith.cmpi ne, %62, %c0_i32_40 : i32
    scf.if %63 {
      %c0_41 = arith.constant 0 : index
      %c0_42 = arith.constant 0 : index
      %64 = vector.load %arg7[%c0_41, %c0_42] : memref<1x8xf32, #tpu.memory_space<vmem>>, vector<1x8xf32>
      %cst_43 = arith.constant 0.001953125 : f32
      %65 = vector.broadcast %cst_43 : f32 to vector<1x8xf32>
      %66 = arith.mulf %64, %65 : vector<1x8xf32>
      %c0_44 = arith.constant 0 : index
      %c0_45 = arith.constant 0 : index
      %67 = vector.load %arg8[%c0_44, %c0_45] : memref<1x8xf32, #tpu.memory_space<vmem>>, vector<1x8xf32>
      %cst_46 = arith.constant 0.001953125 : f32
      %68 = vector.broadcast %cst_46 : f32 to vector<1x8xf32>
      %69 = arith.mulf %67, %68 : vector<1x8xf32>
      %70 = arith.mulf %66, %66 : vector<1x8xf32>
      %71 = arith.subf %69, %70 : vector<1x8xf32>
      %cst_47 = arith.constant 0.000000e+00 : f32
      %72 = vector.broadcast %cst_47 : f32 to vector<1x8xf32>
      %73 = arith.maximumf %71, %72 : vector<1x8xf32>
      %cst_48 = arith.constant 9.99999974E-6 : f32
      %74 = vector.broadcast %cst_48 : f32 to vector<1x8xf32>
      %75 = arith.addf %73, %74 : vector<1x8xf32>
      %76 = math.rsqrt %75 : vector<1x8xf32>
      %c0_49 = arith.constant 0 : index
      %c0_50 = arith.constant 0 : index
      %77 = vector.load %arg4[%c0_49, %c0_50] : memref<1x8xf32, #tpu.memory_space<vmem>>, vector<1x8xf32>
      %78 = arith.mulf %76, %77 : vector<1x8xf32>
      %79 = vector.broadcast %66 : vector<1x8xf32> to vector<144x8xf32>
      %80 = arith.subf %52, %79 : vector<144x8xf32>
      %81 = vector.broadcast %78 : vector<1x8xf32> to vector<144x8xf32>
      %82 = arith.mulf %80, %81 : vector<144x8xf32>
      %c0_51 = arith.constant 0 : index
      %c0_52 = arith.constant 0 : index
      %83 = vector.load %arg5[%c0_51, %c0_52] : memref<1x8xf32, #tpu.memory_space<vmem>>, vector<1x8xf32>
      %84 = vector.broadcast %83 : vector<1x8xf32> to vector<144x8xf32>
      %85 = arith.addf %82, %84 : vector<144x8xf32>
      %cst_53 = arith.constant 0.000000e+00 : f32
      %86 = vector.broadcast %cst_53 : f32 to vector<144x8xf32>
      %87 = arith.maximumf %85, %86 : vector<144x8xf32>
      %c0_54 = arith.constant 0 : index
      %c0_55 = arith.constant 0 : index
      %c0_56 = arith.constant 0 : index
      %88 = vector.load %arg6[%c0_54, %c0_55, %c0_56] : memref<1x144x8xf32, #tpu.memory_space<vmem>>, vector<1x144x8xf32>
      %89 = vector.shape_cast %88 : vector<1x144x8xf32> to vector<144x8xf32>
      %90 = vector.shape_cast %87 : vector<144x8xf32> to vector<1x144x8xf32>
      tpu.vector_store %arg6[%c0_54, %c0_55, %c0_56], %90 {strides = array<i32>} : memref<1x144x8xf32, #tpu.memory_space<vmem>>, vector<1x144x8xf32>,
    } else {
    }
    return
  }
  func.func @transform_0(%arg0: i32, %arg1: i32) -> (i32, i32, i32) {
    %c0_i32 = arith.constant 0 : i32
    %c0_i32_0 = arith.constant 0 : i32
    %c0_i32_1 = arith.constant 0 : i32
    return %arg1, %c0_i32, %c0_i32_0 : i32, i32, i32
  }
  func.func @transform_1(%arg0: i32, %arg1: i32) -> (i32, i32) {
    %c0_i32 = arith.constant 0 : i32
    %c0_i32_0 = arith.constant 0 : i32
    %c0_i32_1 = arith.constant 0 : i32
    return %c0_i32, %c0_i32_0 : i32, i32
  }
  func.func @transform_2(%arg0: i32, %arg1: i32) -> (i32, i32) {
    %c0_i32 = arith.constant 0 : i32
    %c0_i32_0 = arith.constant 0 : i32
    %c0_i32_1 = arith.constant 0 : i32
    return %c0_i32, %c0_i32_0 : i32, i32
  }
  func.func @transform_3(%arg0: i32, %arg1: i32) -> (i32, i32) {
    %c0_i32 = arith.constant 0 : i32
    %c0_i32_0 = arith.constant 0 : i32
    %c0_i32_1 = arith.constant 0 : i32
    return %c0_i32, %c0_i32_0 : i32, i32
  }
  func.func @transform_4(%arg0: i32, %arg1: i32) -> (i32, i32, i32) {
    %0 = arith.muli %arg0, %arg1 : i32
    %c0_i32 = arith.constant 0 : i32
    %c0_i32_0 = arith.constant 0 : i32
    %c0_i32_1 = arith.constant 0 : i32
    return %0, %c0_i32, %c0_i32_0 : i32, i32, i32
  }
}

module attributes {stable_mosaic.version = 11 : i64} {
  func.func @kernel(%arg0: i32, %arg1: memref<16x2x8x16xf32, #tpu.memory_space<vmem>>, %arg2: memref<16x8x8xf32, #tpu.memory_space<vmem>>) attributes {dimension_semantics = [#tpu.dimension_semantics<parallel>], iteration_bounds = array<i64: 1>, scalar_prefetch = 0 : i64, scratch_operands = 0 : i64, tpu.core_type = #tpu.core_type<tc>, window_params = [{transform_indices = @transform_0, window_bounds = array<i64: 16, 2, 8, 16>}, {transform_indices = @transform_1, window_bounds = array<i64: 16, 8, 8>}]} {
    %c0 = arith.constant 0 : index
    %c0_0 = arith.constant 0 : index
    %c0_1 = arith.constant 0 : index
    %c0_2 = arith.constant 0 : index
    %0 = vector.load %arg1[%c0, %c0_0, %c0_1, %c0_2] : memref<16x2x8x16xf32, #tpu.memory_space<vmem>>, vector<16x2x8x16xf32>
    %1 = vector.extract_strided_slice %0 {offsets = [0, 0, 0, 0], sizes = [16, 1, 8, 16], strides = [1, 1, 1, 1]} : vector<16x2x8x16xf32> to vector<16x1x8x16xf32>
    %2 = vector.shape_cast %1 : vector<16x1x8x16xf32> to vector<16x8x16xf32>
    %3 = vector.extract_strided_slice %0 {offsets = [0, 1, 0, 0], sizes = [16, 1, 8, 16], strides = [1, 1, 1, 1]} : vector<16x2x8x16xf32> to vector<16x1x8x16xf32>
    %4 = vector.shape_cast %3 : vector<16x1x8x16xf32> to vector<16x8x16xf32>
    %5 = arith.maximumf %2, %4 : vector<16x8x16xf32>
    %6 = vector.extract_strided_slice %5 {offsets = [0, 0, 0], sizes = [16, 8, 8], strides = [1, 1, 1]} : vector<16x8x16xf32> to vector<16x8x8xf32>
    %7 = vector.extract_strided_slice %5 {offsets = [0, 0, 8], sizes = [16, 8, 8], strides = [1, 1, 1]} : vector<16x8x16xf32> to vector<16x8x8xf32>
    %8 = arith.maximumf %6, %7 : vector<16x8x8xf32>
    %c0_3 = arith.constant 0 : index
    %c0_4 = arith.constant 0 : index
    %c0_5 = arith.constant 0 : index
    %9 = vector.load %arg2[%c0_3, %c0_4, %c0_5] : memref<16x8x8xf32, #tpu.memory_space<vmem>>, vector<16x8x8xf32>
    tpu.vector_store %arg2[%c0_3, %c0_4, %c0_5], %8 {strides = array<i32>} : memref<16x8x8xf32, #tpu.memory_space<vmem>>, vector<16x8x8xf32>,
    return
  }
  func.func @transform_0(%arg0: i32) -> (i32, i32, i32, i32) {
    %c0_i32 = arith.constant 0 : i32
    %c0_i32_0 = arith.constant 0 : i32
    %c0_i32_1 = arith.constant 0 : i32
    %c0_i32_2 = arith.constant 0 : i32
    return %arg0, %c0_i32, %c0_i32_0, %c0_i32_1 : i32, i32, i32, i32
  }
  func.func @transform_1(%arg0: i32) -> (i32, i32, i32) {
    %c0_i32 = arith.constant 0 : i32
    %c0_i32_0 = arith.constant 0 : i32
    %c0_i32_1 = arith.constant 0 : i32
    return %arg0, %c0_i32, %c0_i32_0 : i32, i32, i32
  }
}

</mosaic_0001>

<llo_original>
// kernel: _lambda_.6
$region0: #{_lambda_.6}
  #allocation0 [shape = 'u32[]', space=smem, size = 0x4, offset = 0x4, fixed_abs, tag = 'smem constant byte address 0x4 - core index']
  #allocation1 [shape = 'u32[144,128]{1,0:T(1,128)}', space=vmem, size = 0x12000, scoped, tag = 'internal scratch']
  %s0 = inlined_call_operand.vmem [shape: f32[512,4], index: 0, kind: input, shape index: {}]
  %s1 = inlined_call_operand.vmem [shape: bf16[4,8], index: 1, kind: input, shape index: {}]
  %s2 = inlined_call_operand.vmem [shape: f32[1,8], index: 2, kind: input, shape index: {}]
  %s3 = inlined_call_operand.vmem [shape: f32[512,8], index: 3, kind: output, shape index: {}]
  %s4 = sld [smem:[#allocation0]]
  $region45: #{_lambda_.6} parent=0
    _
  %s6 = ssub.s32 1, %s4
  %s7 = scalar_select 0, %s6, %s4
  loop: start=0, step=1, limit=4
  $region2: #{_lambda_.6} parent=0 // loop_pre_header
    _
  $region3: #{_lambda_.6} parent=0 // loop_header
    %s9 = sphi 0, %s13
    %p10 = scmp.ge.s32.totalorder %s9, 4
    %s19 = sphi 0, %s21
    %s22 = sphi 0, %s19
    %s23 = sphi 0, %s22
    %s39 = sphi 0, %s23
    %s43 = sphi 0, %s43
    %s45 = sphi 0, %s43
    %s46 = sphi 0, %s45
    %s60 = sphi 0, %s46
    %s64 = sphi 0, %s64
    %s66 = sphi 0, %s64
    %s67 = sphi 0, %s66
    %s81 = sphi 0, %s67
    %s87 = sphi 0, %s89
    %s90 = sphi 0, %s87
    %s91 = sphi 0, %s90
    %s107 = sphi 0, %s91
  $region4: #{_lambda_.6} parent=0 // loop_header_branch
    %12 = sbr.rel (%p10) target = $region8
  $region5: #{_lambda_.6} parent=0 // loop_body
    %s14 = ssub.s32 %s9, 1
    %s15 = ssub.s32 %s9, 2
    %s16 = sadd.s32 %s9, 1
    %s17 = ssub.s32 %s9, %s16
    %p18 = scmp.eq.s32.totalorder %s17, 0
    %s20 = sadd.s32 %s19, 1
    %s21 = scalar_select %p18, %s19, %s20
    %p24 = pneg %p18
    %p25 = scmp.eq.s32.totalorder %s9, 1
    %p26 = por %p24, %p25
    %p27 = scmp.ne.s32.totalorder %s19, %s22
    %p28 = scmp.eq.s32.totalorder %s9, 0
    %p29 = por %p27, %p28
    %p30 = scmp.ne.s32.totalorder %s19, %s22
    %p31 = scmp.eq.s32.totalorder %s14, 1
    %p32 = por %p30, %p31
    %p33 = scmp.ne.s32.totalorder %s22, %s23
    %p34 = scmp.eq.s32.totalorder %s14, 0
    %p35 = por %p33, %p34
    %p36 = scmp.ne.s32.totalorder %s22, %s23
    %p37 = scmp.eq.s32.totalorder %s15, 1
    %p38 = por %p36, %p37
    %p40 = scmp.ne.s32.totalorder %s23, %s39
    %p41 = scmp.eq.s32.totalorder %s15, 0
    %p42 = por %p40, %p41
    %s44 = sadd.s32 %s43, 1
    %p47 = scmp.eq.s32.totalorder %s9, 1
    %p48 = scmp.ne.s32.totalorder %s43, %s45
    %p49 = scmp.eq.s32.totalorder %s9, 0
    %p50 = por %p48, %p49
    %p51 = scmp.ne.s32.totalorder %s43, %s45
    %p52 = scmp.eq.s32.totalorder %s14, 1
    %p53 = por %p51, %p52
    %p54 = scmp.ne.s32.totalorder %s45, %s46
    %p55 = scmp.eq.s32.totalorder %s14, 0
    %p56 = por %p54, %p55
    %p57 = scmp.ne.s32.totalorder %s45, %s46
    %p58 = scmp.eq.s32.totalorder %s15, 1
    %p59 = por %p57, %p58
    %p61 = scmp.ne.s32.totalorder %s46, %s60
    %p62 = scmp.eq.s32.totalorder %s15, 0
    %p63 = por %p61, %p62
    %s65 = sadd.s32 %s64, 1
    %p68 = scmp.eq.s32.totalorder %s9, 1
    %p69 = scmp.ne.s32.totalorder %s64, %s66
    %p70 = scmp.eq.s32.totalorder %s9, 0
    %p71 = por %p69, %p70
    %p72 = scmp.ne.s32.totalorder %s64, %s66
    %p73 = scmp.eq.s32.totalorder %s14, 1
    %p74 = por %p72, %p73
    %p75 = scmp.ne.s32.totalorder %s66, %s67
    %p76 = scmp.eq.s32.totalorder %s14, 0
    %p77 = por %p75, %p76
    %p78 = scmp.ne.s32.totalorder %s66, %s67
    %p79 = scmp.eq.s32.totalorder %s15, 1
    %p80 = por %p78, %p79
    %p82 = scmp.ne.s32.totalorder %s67, %s81
    %p83 = scmp.eq.s32.totalorder %s15, 0
    %p84 = por %p82, %p83
    %s85 = ssub.s32 %s9, %s16
    %p86 = scmp.eq.s32.totalorder %s85, 0
    %s88 = sadd.s32 %s87, 1
    %s89 = scalar_select %p86, %s87, %s88
    %p92 = pneg %p86
    %p93 = scmp.eq.s32.totalorder %s9, 1
    %p94 = por %p92, %p93
    %p95 = scmp.ne.s32.totalorder %s87, %s90
    %p96 = scmp.eq.s32.totalorder %s9, 0
    %p97 = por %p95, %p96
    %p98 = scmp.ne.s32.totalorder %s87, %s90
    %p99 = scmp.eq.s32.totalorder %s14, 1
    %p100 = por %p98, %p99
    %p101 = scmp.ne.s32.totalorder %s90, %s91
    %p102 = scmp.eq.s32.totalorder %s14, 0
    %p103 = por %p101, %p102
    %p104 = scmp.ne.s32.totalorder %s90, %s91
    %p105 = scmp.eq.s32.totalorder %s15, 1
    %p106 = por %p104, %p105
    %p108 = scmp.ne.s32.totalorder %s91, %s107
    %p109 = scmp.eq.s32.totalorder %s15, 0
    %p110 = por %p108, %p109
    %p111 = scmp.le.s32.totalorder 1, %s9
    %p112 = scmp.lt.s32.totalorder %s9, 3
    %p113 = pnand %p111, %p112
    %p114 = pneg %p113
    // Predicated region
    $region9: #{_lambda_.6} parent=5 // pred_check
      _
    $region10: #{_lambda_.6} parent=5 // pred_check_branch
      %116 = sbr.rel (%p113) target = $region12
    $region11: #{_lambda_.6} parent=5 // pred_region
      %s117 = ssub.s32 %s9, 1
      // Predicated region
      $region13: #{_lambda_.6} parent=11 // pred_check
        %p118 = pneg %p56
      $region14: #{_lambda_.6} parent=11 // pred_check_branch
        %120 = sbr.rel (%p118) target = $region16
      $region15: #{_lambda_.6} parent=11 // pred_region
        _
      $region16: #{_lambda_.6} parent=11 // pred_fallthru
        _
      // Predicated region
      $region17: #{_lambda_.6} parent=11 // pred_check
        %p121 = pneg %p77
      $region18: #{_lambda_.6} parent=11 // pred_check_branch
        %123 = sbr.rel (%p121) target = $region20
      $region19: #{_lambda_.6} parent=11 // pred_region
        _
      $region20: #{_lambda_.6} parent=11 // pred_fallthru
        _
    $region12: #{_lambda_.6} parent=5 // pred_fallthru
      _
    %p124 = scmp.lt.s32.totalorder %s9, 2
    // Predicated region
    $region21: #{_lambda_.6} parent=5 // pred_check
      %p125 = pneg %p124
    $region22: #{_lambda_.6} parent=5 // pred_check_branch
      %127 = sbr.rel (%p125) target = $region24
    $region23: #{_lambda_.6} parent=5 // pred_region
      // Predicated region
      $region25: #{_lambda_.6} parent=23 // pred_check
        %p128 = pneg %p29
      $region26: #{_lambda_.6} parent=23 // pred_check_branch
        %130 = sbr.rel (%p128) target = $region28
      $region27: #{_lambda_.6} parent=23 // pred_region
        %s131 = smul.u32 32, %s9
        %p132 = scmp.lt.s32.totalorder %s131, 63
        %s133 = scalar_select %p132, %s131, 63
        %s134 = smul.addr %s133, 8
        %s135 = scalar_lea.vmem %s0, %s134
        %s136 = smul.u32 32, %s9
      $region28: #{_lambda_.6} parent=23 // pred_fallthru
        _
    $region24: #{_lambda_.6} parent=5 // pred_fallthru
      _
    %p137 = scmp.le.s32.totalorder 1, %s9
    %p138 = scmp.lt.s32.totalorder %s9, 3
    %p139 = pnand %p137, %p138
    %p140 = pneg %p139
    // Predicated region
    $region29: #{_lambda_.6} parent=5 // pred_check
      _
    $region30: #{_lambda_.6} parent=5 // pred_check_branch
      %142 = sbr.rel (%p139) target = $region32
    $region31: #{_lambda_.6} parent=5 // pred_region
      %s143 = ssub.s32 %s9, 1
      %s144 = smul.u32 32, %s14
      %p145 = scmp.lt.s32.totalorder %s144, 63
      %s146 = scalar_select %p145, %s144, 63
      %s147 = smul.addr %s146, 8
      %s148 = scalar_lea.vmem %s0, %s147
      %p149 = pneg %p35
      %p150 = pneg %p32
      %p151 = pneg %p56
      %p152 = pneg %p53
      %p153 = pneg %p77
      %p154 = pneg %p74
      %p155 = pneg %p103
      %p156 = pneg %p100
      %s157 = smul.u32 32, %s14
      %p158 = scmp.lt.s32.totalorder %s157, 63
      %s159 = scalar_select %p158, %s157, 63
      %s160 = smul.addr %s159, 8
      %s161 = scalar_lea.vmem %s3, %s160
      %s162 = smul.u32 32, %s14
      %p163 = scmp.lt.s32.totalorder %s162, 63
      %s164 = scalar_select %p163, %s162, 63
      %s165 = smul.addr %s164, 8
      %s166 = scalar_lea.vmem %s0, %s165
      %s167 = smul.u32 32, %s14
      %s168 = smul.u32 32, %s14
      %p169 = scmp.lt.s32.totalorder %s168, 63
      %s170 = scalar_select %p169, %s168, 63
      %s171 = smul.addr %s170, 8
      %s172 = scalar_lea.vmem %s3, %s171
      %s173 = smul.u32 32, %s14
      %v175 = vld [vmem:[%s166] sm:$0xff]
      %v176 = vld [vmem:[%s166 + $0x8] sm:$0xff]
      %v177 = vld [vmem:[%s166 + $0x10] sm:$0xff]
      %v178 = vld [vmem:[%s166 + $0x18] sm:$0xff]
      %v179 = vld [vmem:[%s166 + $0x20] sm:$0xff]
      %v180 = vld [vmem:[%s166 + $0x28] sm:$0xff]
      %v181 = vld [vmem:[%s166 + $0x30] sm:$0xff]
      %v182 = vld [vmem:[%s166 + $0x38] sm:$0xff]
      %v183 = vld [vmem:[%s166 + $0x40] sm:$0xff]
      %v184 = vld [vmem:[%s166 + $0x48] sm:$0xff]
      %v185 = vld [vmem:[%s166 + $0x50] sm:$0xff]
      %v186 = vld [vmem:[%s166 + $0x58] sm:$0xff]
      %v187 = vld [vmem:[%s166 + $0x60] sm:$0xff]
      %v188 = vld [vmem:[%s166 + $0x68] sm:$0xff]
      %v189 = vld [vmem:[%s166 + $0x70] sm:$0xff]
      %v190 = vld [vmem:[%s166 + $0x78] sm:$0xff]
      %v191 = vld [vmem:[%s166 + $0x80] sm:$0xff]
      %v192 = vld [vmem:[%s166 + $0x88] sm:$0xff]
      %v193 = vld [vmem:[%s166 + $0x90] sm:$0xff]
      %v194 = vld [vmem:[%s166 + $0x98] sm:$0xff]
      %v195 = vld [vmem:[%s166 + $0xa0] sm:$0xff]
      %v196 = vld [vmem:[%s166 + $0xa8] sm:$0xff]
      %v197 = vld [vmem:[%s166 + $0xb0] sm:$0xff]
      %v198 = vld [vmem:[%s166 + $0xb8] sm:$0xff]
      %v199 = vld [vmem:[%s166 + $0xc0] sm:$0xff]
      %v200 = vld [vmem:[%s166 + $0xc8] sm:$0xff]
      %v201 = vld [vmem:[%s166 + $0xd0] sm:$0xff]
      %v202 = vld [vmem:[%s166 + $0xd8] sm:$0xff]
      %v203 = vld [vmem:[%s166 + $0xe0] sm:$0xff]
      %v204 = vld [vmem:[%s166 + $0xe8] sm:$0xff]
      %v205 = vld [vmem:[%s166 + $0xf0] sm:$0xff]
      %v206 = vld [vmem:[%s166 + $0xf8] sm:$0xff]
      %v207 = vpack.c.bf16 %v176, %v175
      %v208 = vpack.c.bf16 %v178, %v177
      %v209 = vpack.c.bf16 %v180, %v179
      %v210 = vpack.c.bf16 %v182, %v181
      %v211 = vpack.c.bf16 %v184, %v183
      %v212 = vpack.c.bf16 %v186, %v185
      %v213 = vpack.c.bf16 %v188, %v187
      %v214 = vpack.c.bf16 %v190, %v189
      %v215 = vpack.c.bf16 %v192, %v191
      %v216 = vpack.c.bf16 %v194, %v193
      %v217 = vpack.c.bf16 %v196, %v195
      %v218 = vpack.c.bf16 %v198, %v197
      %v219 = vpack.c.bf16 %v200, %v199
      %v220 = vpack.c.bf16 %v202, %v201
      %v221 = vpack.c.bf16 %v204, %v203
      %v222 = vpack.c.bf16 %v206, %v205
      %v223 = vld [vmem:[%s1] sm:$0x3]
      %v224 = vld [vmem:[%s2] sm:$0x1]
      %v226 = vlaneseq
      %v227 = vshrl.u32 %v226, 7
      %v228 = vsub.s32 0, %v227
      %v229 = vrot.slane %v224, %v228
      %vm231 = vcmask 31744
      %v233 = vsel %vm231, %v207, 0
      %v236 = vsel %vm231, %v208, 0
      %v239 = vsel %vm231, %v209, 0
      %v242 = vsel %vm231, %v210, 0
      %v245 = vsel %vm231, %v211, 0
      %v248 = vsel %vm231, %v212, 0
      %v251 = vsel %vm231, %v213, 0
      %v254 = vsel %vm231, %v214, 0
      %v257 = vsel %vm231, %v215, 0
      %v260 = vsel %vm231, %v216, 0
      %v263 = vsel %vm231, %v217, 0
      %v266 = vsel %vm231, %v218, 0
      %v269 = vsel %vm231, %v219, 0
      %v272 = vsel %vm231, %v220, 0
      %v275 = vsel %vm231, %v221, 0
      %v278 = vsel %vm231, %v222, 0
      %vm280 = vcmask 1041408
      %v282 = vsel %vm280, %v223, 0
      %284 = vmatprep.subr.bf16.mxu0 0
      %285 = vmatpush1.bf16.msra.mxu0 0
      %286 = vmatprep.subr.bf16.mxu0 0
      %287 = vmatpush1.bf16.msra.mxu0 0
      %288 = vmatprep.subr.bf16.mxu0 0
      %289 = vmatpush1.bf16.msra.mxu0 0
      %290 = vmatprep.subr.bf16.mxu0 0
      %291 = vmatpush1.bf16.msra.mxu0 0
      %292 = vmatprep.subr.bf16.mxu0 0
      %293 = vmatpush1.bf16.msra.mxu0 0
      %294 = vmatprep.subr.bf16.mxu0 0
      %295 = vmatpush1.bf16.msra.mxu0 0
      %296 = vmatprep.subr.bf16.mxu0 0
      %297 = vmatpush1.bf16.msra.mxu0 0
      %298 = vmatprep.subr.bf16.mxu0 0
      %299 = vmatpush1.bf16.msra.mxu0 %v282
      %300 = vmatprep.subr.bf16.mxu0 0
      %301 = vmatpush2.bf16.msra.mxu0 0
      %302 = vmatprep.subr.bf16.mxu0 0
      %303 = vmatpush2.bf16.msra.mxu0 0
      %304 = vmatprep.subr.bf16.mxu0 0
      %305 = vmatpush2.bf16.msra.mxu0 0
      %306 = vmatprep.subr.bf16.mxu0 0
      %307 = vmatpush2.bf16.msra.mxu0 0
      %308 = vmatprep.subr.bf16.mxu0 0
      %309 = vmatpush2.bf16.msra.mxu0 0
      %310 = vmatprep.subr.bf16.mxu0 0
      %311 = vmatpush2.bf16.msra.mxu0 0
      %312 = vmatprep.subr.bf16.mxu0 0
      %313 = vmatpush2.bf16.msra.mxu0 0
      %314 = vmatprep.subr.bf16.mxu0 0
      %315 = vmatpush2.bf16.msra.mxu0 0
      %316 = vmatprep.mubr.bf16.mxu0 0
      %317 = vmatmul.mubr.bf16.gmra.mxu0 %v233
      %v318 = vpop.f32.mrf.mxu0
      %v319 = vadd.f32 %v229, %v318
      %v320 = vpop.f32.mrf.mxu0
      %v321 = vpop.f32.mrf.mxu0
      %v322 = vadd.f32 %v229, %v321
      %v323 = vpop.f32.mrf.mxu0
      %324 = vmatprep.mubr.bf16.mxu0 0
      %325 = vmatmul.mubr.bf16.gmra.mxu0 %v236
      %v326 = vpop.f32.mrf.mxu0
      %v327 = vadd.f32 %v229, %v326
      %v328 = vpop.f32.mrf.mxu0
      %v329 = vpop.f32.mrf.mxu0
      %v330 = vadd.f32 %v229, %v329
      %v331 = vpop.f32.mrf.mxu0
      %332 = vmatprep.mubr.bf16.mxu0 0
      %333 = vmatmul.mubr.bf16.gmra.mxu0 %v239
      %v334 = vpop.f32.mrf.mxu0
      %v335 = vadd.f32 %v229, %v334
      %v336 = vpop.f32.mrf.mxu0
      %v337 = vpop.f32.mrf.mxu0
      %v338 = vadd.f32 %v229, %v337
      %v339 = vpop.f32.mrf.mxu0
      %340 = vmatprep.mubr.bf16.mxu0 0
      %341 = vmatmul.mubr.bf16.gmra.mxu0 %v242
      %v342 = vpop.f32.mrf.mxu0
      %v343 = vadd.f32 %v229, %v342
      %v344 = vpop.f32.mrf.mxu0
      %v345 = vpop.f32.mrf.mxu0
      %v346 = vadd.f32 %v229, %v345
      %v347 = vpop.f32.mrf.mxu0
      %348 = vmatprep.mubr.bf16.mxu0 0
      %349 = vmatmul.mubr.bf16.gmra.mxu0 %v245
      %v350 = vpop.f32.mrf.mxu0
      %v351 = vadd.f32 %v229, %v350
      %v352 = vpop.f32.mrf.mxu0
      %v353 = vpop.f32.mrf.mxu0
      %v354 = vadd.f32 %v229, %v353
      %v355 = vpop.f32.mrf.mxu0
      %356 = vmatprep.mubr.bf16.mxu0 0
      %357 = vmatmul.mubr.bf16.gmra.mxu0 %v248
      %v358 = vpop.f32.mrf.mxu0
      %v359 = vadd.f32 %v229, %v358
      %v360 = vpop.f32.mrf.mxu0
      %v361 = vpop.f32.mrf.mxu0
      %v362 = vadd.f32 %v229, %v361
      %v363 = vpop.f32.mrf.mxu0
      %364 = vmatprep.mubr.bf16.mxu0 0
      %365 = vmatmul.mubr.bf16.gmra.mxu0 %v251
      %v366 = vpop.f32.mrf.mxu0
      %v367 = vadd.f32 %v229, %v366
      %v368 = vpop.f32.mrf.mxu0
      %v369 = vpop.f32.mrf.mxu0
      %v370 = vadd.f32 %v229, %v369
      %v371 = vpop.f32.mrf.mxu0
      %372 = vmatprep.mubr.bf16.mxu0 0
      %373 = vmatmul.mubr.bf16.gmra.mxu0 %v254
      %v374 = vpop.f32.mrf.mxu0
      %v375 = vadd.f32 %v229, %v374
      %v376 = vpop.f32.mrf.mxu0
      %v377 = vpop.f32.mrf.mxu0
      %v378 = vadd.f32 %v229, %v377
      %v379 = vpop.f32.mrf.mxu0
      %380 = vmatprep.mubr.bf16.mxu0 0
      %381 = vmatmul.mubr.bf16.gmra.mxu0 %v257
      %v382 = vpop.f32.mrf.mxu0
      %v383 = vadd.f32 %v229, %v382
      %v384 = vpop.f32.mrf.mxu0
      %v385 = vpop.f32.mrf.mxu0
      %v386 = vadd.f32 %v229, %v385
      %v387 = vpop.f32.mrf.mxu0
      %388 = vmatprep.mubr.bf16.mxu0 0
      %389 = vmatmul.mubr.bf16.gmra.mxu0 %v260
      %v390 = vpop.f32.mrf.mxu0
      %v391 = vadd.f32 %v229, %v390
      %v392 = vpop.f32.mrf.mxu0
      %v393 = vpop.f32.mrf.mxu0
      %v394 = vadd.f32 %v229, %v393
      %v395 = vpop.f32.mrf.mxu0
      %396 = vmatprep.mubr.bf16.mxu0 0
      %397 = vmatmul.mubr.bf16.gmra.mxu0 %v263
      %v398 = vpop.f32.mrf.mxu0
      %v399 = vadd.f32 %v229, %v398
      %v400 = vpop.f32.mrf.mxu0
      %v401 = vpop.f32.mrf.mxu0
      %v402 = vadd.f32 %v229, %v401
      %v403 = vpop.f32.mrf.mxu0
      %404 = vmatprep.mubr.bf16.mxu0 0
      %405 = vmatmul.mubr.bf16.gmra.mxu0 %v266
      %v406 = vpop.f32.mrf.mxu0
      %v407 = vadd.f32 %v229, %v406
      %v408 = vpop.f32.mrf.mxu0
      %v409 = vpop.f32.mrf.mxu0
      %v410 = vadd.f32 %v229, %v409
      %v411 = vpop.f32.mrf.mxu0
      %412 = vmatprep.mubr.bf16.mxu0 0
      %413 = vmatmul.mubr.bf16.gmra.mxu0 %v269
      %v414 = vpop.f32.mrf.mxu0
      %v415 = vadd.f32 %v229, %v414
      %v416 = vpop.f32.mrf.mxu0
      %v417 = vpop.f32.mrf.mxu0
      %v418 = vadd.f32 %v229, %v417
      %v419 = vpop.f32.mrf.mxu0
      %420 = vmatprep.mubr.bf16.mxu0 0
      %421 = vmatmul.mubr.bf16.gmra.mxu0 %v272
      %v422 = vpop.f32.mrf.mxu0
      %v423 = vadd.f32 %v229, %v422
      %v424 = vpop.f32.mrf.mxu0
      %v425 = vpop.f32.mrf.mxu0
      %v426 = vadd.f32 %v229, %v425
      %v427 = vpop.f32.mrf.mxu0
      %428 = vmatprep.mubr.bf16.mxu0 0
      %429 = vmatmul.mubr.bf16.gmra.mxu0 %v275
      %v430 = vpop.f32.mrf.mxu0
      %v431 = vadd.f32 %v229, %v430
      %v432 = vpop.f32.mrf.mxu0
      %v433 = vpop.f32.mrf.mxu0
      %v434 = vadd.f32 %v229, %v433
      %v435 = vpop.f32.mrf.mxu0
      %436 = vmatprep.mubr.bf16.mxu0 0
      %437 = vmatmul.mubr.bf16.gmra.mxu0 %v278
      %v438 = vpop.f32.mrf.mxu0
      %v439 = vadd.f32 %v229, %v438
      %v440 = vpop.f32.mrf.mxu0
      %v441 = vpop.f32.mrf.mxu0
      %v442 = vadd.f32 %v229, %v441
      %v443 = vpop.f32.mrf.mxu0
      %444 = vdwg.mxu0
      %vm445 = vcmask 64512
      %446 = vst.msk [vmem:[%s172] sm:$0xff] %vm445, %v319
      %447 = vst.msk [vmem:[%s172 + $0x8] sm:$0xff] %vm445, %v322
      %448 = vst.msk [vmem:[%s172 + $0x10] sm:$0xff] %vm445, %v327
      %449 = vst.msk [vmem:[%s172 + $0x18] sm:$0xff] %vm445, %v330
      %450 = vst.msk [vmem:[%s172 + $0x20] sm:$0xff] %vm445, %v335
      %451 = vst.msk [vmem:[%s172 + $0x28] sm:$0xff] %vm445, %v338
      %452 = vst.msk [vmem:[%s172 + $0x30] sm:$0xff] %vm445, %v343
      %453 = vst.msk [vmem:[%s172 + $0x38] sm:$0xff] %vm445, %v346
      %454 = vst.msk [vmem:[%s172 + $0x40] sm:$0xff] %vm445, %v351
      %455 = vst.msk [vmem:[%s172 + $0x48] sm:$0xff] %vm445, %v354
      %456 = vst.msk [vmem:[%s172 + $0x50] sm:$0xff] %vm445, %v359
      %457 = vst.msk [vmem:[%s172 + $0x58] sm:$0xff] %vm445, %v362
      %458 = vst.msk [vmem:[%s172 + $0x60] sm:$0xff] %vm445, %v367
      %459 = vst.msk [vmem:[%s172 + $0x68] sm:$0xff] %vm445, %v370
      %460 = vst.msk [vmem:[%s172 + $0x70] sm:$0xff] %vm445, %v375
      %461 = vst.msk [vmem:[%s172 + $0x78] sm:$0xff] %vm445, %v378
      %462 = vst.msk [vmem:[%s172 + $0x80] sm:$0xff] %vm445, %v383
      %463 = vst.msk [vmem:[%s172 + $0x88] sm:$0xff] %vm445, %v386
      %464 = vst.msk [vmem:[%s172 + $0x90] sm:$0xff] %vm445, %v391
      %465 = vst.msk [vmem:[%s172 + $0x98] sm:$0xff] %vm445, %v394
      %466 = vst.msk [vmem:[%s172 + $0xa0] sm:$0xff] %vm445, %v399
      %467 = vst.msk [vmem:[%s172 + $0xa8] sm:$0xff] %vm445, %v402
      %468 = vst.msk [vmem:[%s172 + $0xb0] sm:$0xff] %vm445, %v407
      %469 = vst.msk [vmem:[%s172 + $0xb8] sm:$0xff] %vm445, %v410
      %470 = vst.msk [vmem:[%s172 + $0xc0] sm:$0xff] %vm445, %v415
      %471 = vst.msk [vmem:[%s172 + $0xc8] sm:$0xff] %vm445, %v418
      %472 = vst.msk [vmem:[%s172 + $0xd0] sm:$0xff] %vm445, %v423
      %473 = vst.msk [vmem:[%s172 + $0xd8] sm:$0xff] %vm445, %v426
      %474 = vst.msk [vmem:[%s172 + $0xe0] sm:$0xff] %vm445, %v431
      %475 = vst.msk [vmem:[%s172 + $0xe8] sm:$0xff] %vm445, %v434
      %476 = vst.msk [vmem:[%s172 + $0xf0] sm:$0xff] %vm445, %v439
      %477 = vst.msk [vmem:[%s172 + $0xf8] sm:$0xff] %vm445, %v442
      %s478 = smul.u32 32, %s14
      %p479 = scmp.lt.s32.totalorder %s478, 63
      %s480 = scalar_select %p479, %s478, 63
      %s481 = smul.addr %s480, 8
      %s482 = scalar_lea.vmem %s3, %s481
      // Predicated region
      $region33: #{_lambda_.6} parent=31 // pred_check
        %p483 = pneg %p100
      $region34: #{_lambda_.6} parent=31 // pred_check_branch
        %485 = sbr.rel (%p483) target = $region36
      $region35: #{_lambda_.6} parent=31 // pred_region
        %s486 = smul.u32 32, %s14
      $region36: #{_lambda_.6} parent=31 // pred_fallthru
        _
    $region32: #{_lambda_.6} parent=5 // pred_fallthru
      _
    %p487 = scmp.le.s32.totalorder 2, %s9
    // Predicated region
    $region37: #{_lambda_.6} parent=5 // pred_check
      %p488 = pneg %p487
    $region38: #{_lambda_.6} parent=5 // pred_check_branch
      %490 = sbr.rel (%p488) target = $region40
    $region39: #{_lambda_.6} parent=5 // pred_region
      %s491 = ssub.s32 %s9, 2
      // Predicated region
      $region41: #{_lambda_.6} parent=39 // pred_check
        %p492 = pneg %p106
      $region42: #{_lambda_.6} parent=39 // pred_check_branch
        %494 = sbr.rel (%p492) target = $region44
      $region43: #{_lambda_.6} parent=39 // pred_region
        %s495 = smul.u32 32, %s15
        %p496 = scmp.lt.s32.totalorder %s495, 63
        %s497 = scalar_select %p496, %s495, 63
        %s498 = smul.addr %s497, 8
        %s499 = scalar_lea.vmem %s3, %s498
      $region44: #{_lambda_.6} parent=39 // pred_fallthru
        _
    $region40: #{_lambda_.6} parent=5 // pred_fallthru
      _
  $region6: #{_lambda_.6} parent=0 // loop_footer
    %s13 = sadd.s32 1, %s9
  $region7: #{_lambda_.6} parent=0 // loop_footer_branch
    %8 = sbr.rel target = $region3
  $region8: #{_lambda_.6} parent=0 // loop_exit
    _

// kernel: _lambda_.7
$region0: #{_lambda_.7}
  #allocation0 [shape = 'u32[]', space=smem, size = 0x4, offset = 0x4, fixed_abs, tag = 'smem constant byte address 0x4 - core index']
  #allocation1 [shape = 'u32[144,128]{1,0:T(1,128)}', space=vmem, size = 0x12000, scoped, tag = 'internal scratch']
  #allocation2 [shape = 'f32[1,8]{1,0:T(1,128)}', space=vmem, size = 0x200, scoped, tag = 'scratch operand']
  #allocation3 [shape = 'f32[1,8]{1,0:T(1,128)}', space=vmem, size = 0x200, scoped, tag = 'scratch operand']
  %s0 = inlined_call_operand.vmem [shape: f32[4,182,8], index: 0, kind: input, shape index: {}]
  %s1 = inlined_call_operand.vmem [shape: bf16[72,8], index: 1, kind: input, shape index: {}]
  %s2 = inlined_call_operand.vmem [shape: f32[1,8], index: 2, kind: input, shape index: {}]
  %s3 = inlined_call_operand.vmem [shape: f32[1,8], index: 3, kind: input, shape index: {}]
  %s4 = inlined_call_operand.vmem [shape: f32[4,144,8], index: 4, kind: output, shape index: {}]
  %s5 = sld [smem:[#allocation0]]
  $region61: #{_lambda_.7} parent=0
    _
  %s7 = ssub.s32 1, %s5
  %s8 = scalar_select 0, %s7, %s5
  loop: start=0, step=1, limit=10
  $region2: #{_lambda_.7} parent=0 // loop_pre_header
    _
  $region3: #{_lambda_.7} parent=0 // loop_header
    %s10 = sphi 0, %s14
    %p11 = scmp.ge.s32.totalorder %s10, 10
    %s17 = sphi 0, %s29
    %s18 = sphi 0, %s25
    %s19 = sphi 0, %s17
    %s20 = sphi 0, %s18
    %s21 = sphi 0, %s19
    %s22 = sphi 0, %s20
    %s32 = sphi 0, %s34
    %s35 = sphi 0, %s32
    %s36 = sphi 0, %s35
    %s52 = sphi 0, %s36
    %s56 = sphi 0, %s56
    %s58 = sphi 0, %s56
    %s59 = sphi 0, %s58
    %s73 = sphi 0, %s59
    %s77 = sphi 0, %s77
    %s79 = sphi 0, %s77
    %s80 = sphi 0, %s79
    %s94 = sphi 0, %s80
    %s98 = sphi 0, %s98
    %s100 = sphi 0, %s98
    %s101 = sphi 0, %s100
    %s115 = sphi 0, %s101
    %s123 = sphi 0, %s125
    %s126 = sphi 0, %s123
    %s127 = sphi 0, %s126
    %s143 = sphi 0, %s127
  $region4: #{_lambda_.7} parent=0 // loop_header_branch
    %13 = sbr.rel (%p11) target = $region8
  $region5: #{_lambda_.7} parent=0 // loop_body
    %s15 = ssub.s32 %s10, 1
    %s16 = ssub.s32 %s10, 2
    %s23 = sadd.s32 1, %s18
    %p24 = scmp.ge.s32.totalorder %s23, 4
    %s25 = scalar_select %p24, 0, %s23
    %s26 = sadd.s32 1, %s17
    %s27 = scalar_select %p24, %s26, %s17
    %p28 = scmp.ge.s32.totalorder %s27, 2
    %s29 = scalar_select %p28, 0, %s27
    %s30 = ssub.s32 %s18, %s25
    %p31 = scmp.eq.s32.totalorder %s30, 0
    %s33 = sadd.s32 %s32, 1
    %s34 = scalar_select %p31, %s32, %s33
    %p37 = pneg %p31
    %p38 = scmp.eq.s32.totalorder %s10, 7
    %p39 = por %p37, %p38
    %p40 = scmp.ne.s32.totalorder %s32, %s35
    %p41 = scmp.eq.s32.totalorder %s10, 0
    %p42 = por %p40, %p41
    %p43 = scmp.ne.s32.totalorder %s32, %s35
    %p44 = scmp.eq.s32.totalorder %s15, 7
    %p45 = por %p43, %p44
    %p46 = scmp.ne.s32.totalorder %s35, %s36
    %p47 = scmp.eq.s32.totalorder %s15, 0
    %p48 = por %p46, %p47
    %p49 = scmp.ne.s32.totalorder %s35, %s36
    %p50 = scmp.eq.s32.totalorder %s16, 7
    %p51 = por %p49, %p50
    %p53 = scmp.ne.s32.totalorder %s36, %s52
    %p54 = scmp.eq.s32.totalorder %s16, 0
    %p55 = por %p53, %p54
    %s57 = sadd.s32 %s56, 1
    %p60 = scmp.eq.s32.totalorder %s10, 7
    %p61 = scmp.ne.s32.totalorder %s56, %s58
    %p62 = scmp.eq.s32.totalorder %s10, 0
    %p63 = por %p61, %p62
    %p64 = scmp.ne.s32.totalorder %s56, %s58
    %p65 = scmp.eq.s32.totalorder %s15, 7
    %p66 = por %p64, %p65
    %p67 = scmp.ne.s32.totalorder %s58, %s59
    %p68 = scmp.eq.s32.totalorder %s15, 0
    %p69 = por %p67, %p68
    %p70 = scmp.ne.s32.totalorder %s58, %s59
    %p71 = scmp.eq.s32.totalorder %s16, 7
    %p72 = por %p70, %p71
    %p74 = scmp.ne.s32.totalorder %s59, %s73
    %p75 = scmp.eq.s32.totalorder %s16, 0
    %p76 = por %p74, %p75
    %s78 = sadd.s32 %s77, 1
    %p81 = scmp.eq.s32.totalorder %s10, 7
    %p82 = scmp.ne.s32.totalorder %s77, %s79
    %p83 = scmp.eq.s32.totalorder %s10, 0
    %p84 = por %p82, %p83
    %p85 = scmp.ne.s32.totalorder %s77, %s79
    %p86 = scmp.eq.s32.totalorder %s15, 7
    %p87 = por %p85, %p86
    %p88 = scmp.ne.s32.totalorder %s79, %s80
    %p89 = scmp.eq.s32.totalorder %s15, 0
    %p90 = por %p88, %p89
    %p91 = scmp.ne.s32.totalorder %s79, %s80
    %p92 = scmp.eq.s32.totalorder %s16, 7
    %p93 = por %p91, %p92
    %p95 = scmp.ne.s32.totalorder %s80, %s94
    %p96 = scmp.eq.s32.totalorder %s16, 0
    %p97 = por %p95, %p96
    %s99 = sadd.s32 %s98, 1
    %p102 = scmp.eq.s32.totalorder %s10, 7
    %p103 = scmp.ne.s32.totalorder %s98, %s100
    %p104 = scmp.eq.s32.totalorder %s10, 0
    %p105 = por %p103, %p104
    %p106 = scmp.ne.s32.totalorder %s98, %s100
    %p107 = scmp.eq.s32.totalorder %s15, 7
    %p108 = por %p106, %p107
    %p109 = scmp.ne.s32.totalorder %s100, %s101
    %p110 = scmp.eq.s32.totalorder %s15, 0
    %p111 = por %p109, %p110
    %p112 = scmp.ne.s32.totalorder %s100, %s101
    %p113 = scmp.eq.s32.totalorder %s16, 7
    %p114 = por %p112, %p113
    %p116 = scmp.ne.s32.totalorder %s101, %s115
    %p117 = scmp.eq.s32.totalorder %s16, 0
    %p118 = por %p116, %p117
    %s119 = smul.u32 %s17, %s18
    %s120 = smul.u32 %s29, %s25
    %s121 = ssub.s32 %s119, %s120
    %p122 = scmp.eq.s32.totalorder %s121, 0
    %s124 = sadd.s32 %s123, 1
    %s125 = scalar_select %p122, %s123, %s124
    %p128 = pneg %p122
    %p129 = scmp.eq.s32.totalorder %s10, 7
    %p130 = por %p128, %p129
    %p131 = scmp.ne.s32.totalorder %s123, %s126
    %p132 = scmp.eq.s32.totalorder %s10, 0
    %p133 = por %p131, %p132
    %p134 = scmp.ne.s32.totalorder %s123, %s126
    %p135 = scmp.eq.s32.totalorder %s15, 7
    %p136 = por %p134, %p135
    %p137 = scmp.ne.s32.totalorder %s126, %s127
    %p138 = scmp.eq.s32.totalorder %s15, 0
    %p139 = por %p137, %p138
    %p140 = scmp.ne.s32.totalorder %s126, %s127
    %p141 = scmp.eq.s32.totalorder %s16, 7
    %p142 = por %p140, %p141
    %p144 = scmp.ne.s32.totalorder %s127, %s143
    %p145 = scmp.eq.s32.totalorder %s16, 0
    %p146 = por %p144, %p145
    %p147 = scmp.le.s32.totalorder 1, %s10
    %p148 = scmp.lt.s32.totalorder %s10, 9
    %p149 = pnand %p147, %p148
    %p150 = pneg %p149
    // Predicated region
    $region9: #{_lambda_.7} parent=5 // pred_check
      _
    $region10: #{_lambda_.7} parent=5 // pred_check_branch
      %152 = sbr.rel (%p149) target = $region12
    $region11: #{_lambda_.7} parent=5 // pred_region
      %s153 = ssub.s32 %s10, 1
      // Predicated region
      $region13: #{_lambda_.7} parent=11 // pred_check
        %p154 = pneg %p69
      $region14: #{_lambda_.7} parent=11 // pred_check_branch
        %156 = sbr.rel (%p154) target = $region16
      $region15: #{_lambda_.7} parent=11 // pred_region
        _
      $region16: #{_lambda_.7} parent=11 // pred_fallthru
        _
      // Predicated region
      $region17: #{_lambda_.7} parent=11 // pred_check
        %p157 = pneg %p90
      $region18: #{_lambda_.7} parent=11 // pred_check_branch
        %159 = sbr.rel (%p157) target = $region20
      $region19: #{_lambda_.7} parent=11 // pred_region
        _
      $region20: #{_lambda_.7} parent=11 // pred_fallthru
        _
      // Predicated region
      $region21: #{_lambda_.7} parent=11 // pred_check
        %p160 = pneg %p111
      $region22: #{_lambda_.7} parent=11 // pred_check_branch
        %162 = sbr.rel (%p160) target = $region24
      $region23: #{_lambda_.7} parent=11 // pred_region
        _
      $region24: #{_lambda_.7} parent=11 // pred_fallthru
        _
    $region12: #{_lambda_.7} parent=5 // pred_fallthru
      _
    %p163 = scmp.lt.s32.totalorder %s10, 8
    // Predicated region
    $region25: #{_lambda_.7} parent=5 // pred_check
      %p164 = pneg %p163
    $region26: #{_lambda_.7} parent=5 // pred_check_branch
      %166 = sbr.rel (%p164) target = $region28
    $region27: #{_lambda_.7} parent=5 // pred_region
      // Predicated region
      $region29: #{_lambda_.7} parent=27 // pred_check
        %p167 = pneg %p42
      $region30: #{_lambda_.7} parent=27 // pred_check_branch
        %169 = sbr.rel (%p167) target = $region32
      $region31: #{_lambda_.7} parent=27 // pred_region
        %p170 = scmp.lt.s32.totalorder %s18, 3
        %s171 = scalar_select %p170, %s18, 3
        %s172 = smul.addr %s171, 23
        %s173 = smul.addr %s172, 8
        %s174 = scalar_lea.vmem %s0, %s173
      $region32: #{_lambda_.7} parent=27 // pred_fallthru
        _
    $region28: #{_lambda_.7} parent=5 // pred_fallthru
      _
    %p175 = scmp.le.s32.totalorder 1, %s10
    %p176 = scmp.lt.s32.totalorder %s10, 9
    %p177 = pnand %p175, %p176
    %p178 = pneg %p177
    // Predicated region
    $region33: #{_lambda_.7} parent=5 // pred_check
      _
    $region34: #{_lambda_.7} parent=5 // pred_check_branch
      %180 = sbr.rel (%p177) target = $region36
    $region35: #{_lambda_.7} parent=5 // pred_region
      %s181 = ssub.s32 %s10, 1
      %p182 = scmp.lt.s32.totalorder %s20, 3
      %s183 = scalar_select %p182, %s20, 3
      %s184 = smul.addr %s183, 23
      %s185 = smul.addr %s184, 8
      %s186 = scalar_lea.vmem %s0, %s185
      %p187 = pneg %p48
      %p188 = pneg %p45
      %p189 = pneg %p69
      %p190 = pneg %p66
      %p191 = pneg %p90
      %p192 = pneg %p87
      %p193 = pneg %p111
      %p194 = pneg %p108
      %p195 = pneg %p139
      %p196 = pneg %p136
      %s197 = smul.u32 %s19, %s20
      %p198 = scmp.lt.s32.totalorder %s197, 3
      %s199 = scalar_select %p198, %s197, 3
      %s200 = smul.addr %s199, 18
      %s201 = smul.addr %s200, 8
      %s202 = scalar_lea.vmem %s4, %s201
      %p203 = scmp.lt.s32.totalorder %s20, 3
      %s204 = scalar_select %p203, %s20, 3
      %s205 = smul.addr %s204, 23
      %s206 = smul.addr %s205, 8
      %s207 = scalar_lea.vmem %s0, %s206
      %s208 = smul.u32 %s19, %s20
      %p209 = scmp.lt.s32.totalorder %s208, 3
      %s210 = scalar_select %p209, %s208, 3
      %s211 = smul.addr %s210, 18
      %s212 = smul.addr %s211, 8
      %s213 = scalar_lea.vmem %s4, %s212
      %s214 = smul.u32 %s19, %s20
      %v216 = vld [vmem:[%s207] sm:$0xff]
      %v217 = vld [vmem:[%s207 + $0x8] sm:$0xff]
      %v218 = vld [vmem:[%s207 + $0x10] sm:$0xff]
      %v219 = vld [vmem:[%s207 + $0x18] sm:$0xff]
      %v220 = vld [vmem:[%s207 + $0x20] sm:$0xff]
      %v221 = vld [vmem:[%s207 + $0x28] sm:$0xff]
      %v222 = vld [vmem:[%s207 + $0x30] sm:$0xff]
      %v223 = vld [vmem:[%s207 + $0x38] sm:$0xff]
      %v224 = vld [vmem:[%s207 + $0x40] sm:$0xff]
      %v225 = vld [vmem:[%s207 + $0x48] sm:$0xff]
      %v226 = vld [vmem:[%s207 + $0x50] sm:$0xff]
      %v227 = vld [vmem:[%s207 + $0x58] sm:$0xff]
      %v228 = vld [vmem:[%s207 + $0x60] sm:$0xff]
      %v229 = vld [vmem:[%s207 + $0x68] sm:$0xff]
      %v230 = vld [vmem:[%s207 + $0x70] sm:$0xff]
      %v231 = vld [vmem:[%s207 + $0x78] sm:$0xff]
      %v232 = vld [vmem:[%s207 + $0x80] sm:$0xff]
      %v233 = vld [vmem:[%s207 + $0x88] sm:$0xff]
      %v234 = vld [vmem:[%s1] sm:$0xf]
      %v235 = vpack.c.bf16 %v217, %v216
      %v236 = vpack.c.bf16 %v219, %v218
      %v237 = vpack.c.bf16 %v221, %v220
      %v238 = vpack.c.bf16 %v223, %v222
      %v239 = vpack.c.bf16 %v225, %v224
      %v240 = vpack.c.bf16 %v227, %v226
      %v241 = vpack.c.bf16 %v229, %v228
      %v242 = vpack.c.bf16 %v231, %v230
      %v243 = vpack.c.bf16 %v233, %v232
      %v244 = vld [vmem:[%s207 + $0x1] sm:$0xff]
      %v245 = vld [vmem:[%s207 + $0x9] sm:$0xff]
      %v246 = vld [vmem:[%s207 + $0x11] sm:$0xff]
      %v247 = vld [vmem:[%s207 + $0x19] sm:$0xff]
      %v248 = vld [vmem:[%s207 + $0x21] sm:$0xff]
      %v249 = vld [vmem:[%s207 + $0x29] sm:$0xff]
      %v250 = vld [vmem:[%s207 + $0x31] sm:$0xff]
      %v251 = vld [vmem:[%s207 + $0x39] sm:$0xff]
      %v252 = vld [vmem:[%s207 + $0x41] sm:$0xff]
      %v253 = vld [vmem:[%s207 + $0x49] sm:$0xff]
      %v254 = vld [vmem:[%s207 + $0x51] sm:$0xff]
      %v255 = vld [vmem:[%s207 + $0x59] sm:$0xff]
      %v256 = vld [vmem:[%s207 + $0x61] sm:$0xff]
      %v257 = vld [vmem:[%s207 + $0x69] sm:$0xff]
      %v258 = vld [vmem:[%s207 + $0x71] sm:$0xff]
      %v259 = vld [vmem:[%s207 + $0x79] sm:$0xff]
      %v260 = vld [vmem:[%s207 + $0x81] sm:$0xff]
      %v261 = vld [vmem:[%s207 + $0x89] sm:$0xff]
      %v262 = vld [vmem:[%s1 + $0x4] sm:$0xf]
      %v263 = vpack.c.bf16 %v245, %v244
      %v264 = vpack.c.bf16 %v247, %v246
      %v265 = vpack.c.bf16 %v249, %v248
      %v266 = vpack.c.bf16 %v251, %v250
      %v267 = vpack.c.bf16 %v253, %v252
      %v268 = vpack.c.bf16 %v255, %v254
      %v269 = vpack.c.bf16 %v257, %v256
      %v270 = vpack.c.bf16 %v259, %v258
      %v271 = vpack.c.bf16 %v261, %v260
      %vm272 = vcmask 64512
      %v274 = vsel %vm272, %v263, 0
      %v277 = vsel %vm272, %v264, 0
      %v280 = vsel %vm272, %v265, 0
      %v283 = vsel %vm272, %v266, 0
      %v286 = vsel %vm272, %v267, 0
      %v289 = vsel %vm272, %v268, 0
      %v292 = vsel %vm272, %v269, 0
      %v295 = vsel %vm272, %v270, 0
      %v298 = vsel %vm272, %v271, 0
      %vm300 = vcmask 1043456
      %v302 = vsel %vm300, %v262, 0
      %304 = vmatprep.subr.bf16.mxu0 0
      %305 = vmatpush1.bf16.msra.mxu0 0
      %306 = vmatprep.subr.bf16.mxu0 0
      %307 = vmatpush1.bf16.msra.mxu0 0
      %308 = vmatprep.subr.bf16.mxu0 0
      %309 = vmatpush1.bf16.msra.mxu0 0
      %310 = vmatprep.subr.bf16.mxu0 0
      %311 = vmatpush1.bf16.msra.mxu0 0
      %312 = vmatprep.subr.bf16.mxu0 0
      %313 = vmatpush1.bf16.msra.mxu0 0
      %314 = vmatprep.subr.bf16.mxu0 0
      %315 = vmatpush1.bf16.msra.mxu0 0
      %316 = vmatprep.subr.bf16.mxu0 0
      %317 = vmatpush1.bf16.msra.mxu0 0
      %318 = vmatprep.subr.bf16.mxu0 0
      %319 = vmatpush1.bf16.msra.mxu0 %v302
      %320 = vmatprep.subr.bf16.mxu0 0
      %321 = vmatpush2.bf16.msra.mxu0 0
      %322 = vmatprep.subr.bf16.mxu0 0
      %323 = vmatpush2.bf16.msra.mxu0 0
      %324 = vmatprep.subr.bf16.mxu0 0
      %325 = vmatpush2.bf16.msra.mxu0 0
      %326 = vmatprep.subr.bf16.mxu0 0
      %327 = vmatpush2.bf16.msra.mxu0 0
      %328 = vmatprep.subr.bf16.mxu0 0
      %329 = vmatpush2.bf16.msra.mxu0 0
      %330 = vmatprep.subr.bf16.mxu0 0
      %331 = vmatpush2.bf16.msra.mxu0 0
      %332 = vmatprep.subr.bf16.mxu0 0
      %333 = vmatpush2.bf16.msra.mxu0 0
      %334 = vmatprep.subr.bf16.mxu0 0
      %335 = vmatpush2.bf16.msra.mxu0 0
      %336 = vmatprep.mubr.bf16.mxu0 0
      %337 = vmatmul.mubr.bf16.gmra.mxu0 %v274
      %v338 = vpop.f32.mrf.mxu0
      %v339 = vadd.f32 0.0, %v338
      %v340 = vpop.f32.mrf.mxu0
      %v341 = vpop.f32.mrf.mxu0
      %v342 = vadd.f32 0.0, %v341
      %v343 = vpop.f32.mrf.mxu0
      %344 = vmatprep.mubr.bf16.mxu0 0
      %345 = vmatmul.mubr.bf16.gmra.mxu0 %v277
      %v346 = vpop.f32.mrf.mxu0
      %v347 = vadd.f32 0.0, %v346
      %v348 = vpop.f32.mrf.mxu0
      %v349 = vpop.f32.mrf.mxu0
      %v350 = vadd.f32 0.0, %v349
      %v351 = vpop.f32.mrf.mxu0
      %352 = vmatprep.mubr.bf16.mxu0 0
      %353 = vmatmul.mubr.bf16.gmra.mxu0 %v280
      %v354 = vpop.f32.mrf.mxu0
      %v355 = vadd.f32 0.0, %v354
      %v356 = vpop.f32.mrf.mxu0
      %v357 = vpop.f32.mrf.mxu0
      %v358 = vadd.f32 0.0, %v357
      %v359 = vpop.f32.mrf.mxu0
      %360 = vmatprep.mubr.bf16.mxu0 0
      %361 = vmatmul.mubr.bf16.gmra.mxu0 %v283
      %v362 = vpop.f32.mrf.mxu0
      %v363 = vadd.f32 0.0, %v362
      %v364 = vpop.f32.mrf.mxu0
      %v365 = vpop.f32.mrf.mxu0
      %v366 = vadd.f32 0.0, %v365
      %v367 = vpop.f32.mrf.mxu0
      %368 = vmatprep.mubr.bf16.mxu0 0
      %369 = vmatmul.mubr.bf16.gmra.mxu0 %v286
      %v370 = vpop.f32.mrf.mxu0
      %v371 = vadd.f32 0.0, %v370
      %v372 = vpop.f32.mrf.mxu0
      %v373 = vpop.f32.mrf.mxu0
      %v374 = vadd.f32 0.0, %v373
      %v375 = vpop.f32.mrf.mxu0
      %376 = vmatprep.mubr.bf16.mxu0 0
      %377 = vmatmul.mubr.bf16.gmra.mxu0 %v289
      %v378 = vpop.f32.mrf.mxu0
      %v379 = vadd.f32 0.0, %v378
      %v380 = vpop.f32.mrf.mxu0
      %v381 = vpop.f32.mrf.mxu0
      %v382 = vadd.f32 0.0, %v381
      %v383 = vpop.f32.mrf.mxu0
      %384 = vmatprep.mubr.bf16.mxu0 0
      %385 = vmatmul.mubr.bf16.gmra.mxu0 %v292
      %v386 = vpop.f32.mrf.mxu0
      %v387 = vadd.f32 0.0, %v386
      %v388 = vpop.f32.mrf.mxu0
      %v389 = vpop.f32.mrf.mxu0
      %v390 = vadd.f32 0.0, %v389
      %v391 = vpop.f32.mrf.mxu0
      %392 = vmatprep.mubr.bf16.mxu0 0
      %393 = vmatmul.mubr.bf16.gmra.mxu0 %v295
      %v394 = vpop.f32.mrf.mxu0
      %v395 = vadd.f32 0.0, %v394
      %v396 = vpop.f32.mrf.mxu0
      %v397 = vpop.f32.mrf.mxu0
      %v398 = vadd.f32 0.0, %v397
      %v399 = vpop.f32.mrf.mxu0
      %400 = vmatprep.mubr.bf16.mxu0 0
      %401 = vmatmul.mubr.bf16.gmra.mxu0 %v298
      %v402 = vpop.f32.mrf.mxu0
      %v403 = vadd.f32 0.0, %v402
      %v404 = vpop.f32.mrf.mxu0
      %v405 = vpop.f32.mrf.mxu0
      %v406 = vadd.f32 0.0, %v405
      %v407 = vpop.f32.mrf.mxu0
      %408 = vdwg.mxu0
      %v410 = vsel %vm272, %v235, 0
      %v413 = vsel %vm272, %v236, 0
      %v416 = vsel %vm272, %v237, 0
      %v419 = vsel %vm272, %v238, 0
      %v422 = vsel %vm272, %v239, 0
      %v425 = vsel %vm272, %v240, 0
      %v428 = vsel %vm272, %v241, 0
      %v431 = vsel %vm272, %v242, 0
      %v434 = vsel %vm272, %v243, 0
      %v437 = vsel %vm300, %v234, 0
      %439 = vmatprep.subr.bf16.mxu0 0
      %440 = vmatpush1.bf16.msra.mxu0 0
      %441 = vmatprep.subr.bf16.mxu0 0
      %442 = vmatpush1.bf16.msra.mxu0 0
      %443 = vmatprep.subr.bf16.mxu0 0
      %444 = vmatpush1.bf16.msra.mxu0 0
      %445 = vmatprep.subr.bf16.mxu0 0
      %446 = vmatpush1.bf16.msra.mxu0 0
      %447 = vmatprep.subr.bf16.mxu0 0
      %448 = vmatpush1.bf16.msra.mxu0 0
      %449 = vmatprep.subr.bf16.mxu0 0
      %450 = vmatpush1.bf16.msra.mxu0 0
      %451 = vmatprep.subr.bf16.mxu0 0
      %452 = vmatpush1.bf16.msra.mxu0 0
      %453 = vmatprep.subr.bf16.mxu0 0
      %454 = vmatpush1.bf16.msra.mxu0 %v437
      %455 = vmatprep.subr.bf16.mxu0 0
      %456 = vmatpush2.bf16.msra.mxu0 0
      %457 = vmatprep.subr.bf16.mxu0 0
      %458 = vmatpush2.bf16.msra.mxu0 0
      %459 = vmatprep.subr.bf16.mxu0 0
      %460 = vmatpush2.bf16.msra.mxu0 0
      %461 = vmatprep.subr.bf16.mxu0 0
      %462 = vmatpush2.bf16.msra.mxu0 0
      %463 = vmatprep.subr.bf16.mxu0 0
      %464 = vmatpush2.bf16.msra.mxu0 0
      %465 = vmatprep.subr.bf16.mxu0 0
      %466 = vmatpush2.bf16.msra.mxu0 0
      %467 = vmatprep.subr.bf16.mxu0 0
      %468 = vmatpush2.bf16.msra.mxu0 0
      %469 = vmatprep.subr.bf16.mxu0 0
      %470 = vmatpush2.bf16.msra.mxu0 0
      %471 = vmatprep.mubr.bf16.mxu0 0
      %472 = vmatmul.mubr.bf16.gmra.mxu0 %v410
      %v473 = vpop.f32.mrf.mxu0
      %v474 = vadd.f32 %v339, %v473
      %v475 = vpop.f32.mrf.mxu0
      %v476 = vpop.f32.mrf.mxu0
      %v477 = vadd.f32 %v342, %v476
      %v478 = vpop.f32.mrf.mxu0
      %479 = vmatprep.mubr.bf16.mxu0 0
      %480 = vmatmul.mubr.bf16.gmra.mxu0 %v413
      %v481 = vpop.f32.mrf.mxu0
      %v482 = vadd.f32 %v347, %v481
      %v483 = vpop.f32.mrf.mxu0
      %v484 = vpop.f32.mrf.mxu0
      %v485 = vadd.f32 %v350, %v484
      %v486 = vpop.f32.mrf.mxu0
      %487 = vmatprep.mubr.bf16.mxu0 0
      %488 = vmatmul.mubr.bf16.gmra.mxu0 %v416
      %v489 = vpop.f32.mrf.mxu0
      %v490 = vadd.f32 %v355, %v489
      %v491 = vpop.f32.mrf.mxu0
      %v492 = vpop.f32.mrf.mxu0
      %v493 = vadd.f32 %v358, %v492
      %v494 = vpop.f32.mrf.mxu0
      %495 = vmatprep.mubr.bf16.mxu0 0
      %496 = vmatmul.mubr.bf16.gmra.mxu0 %v419
      %v497 = vpop.f32.mrf.mxu0
      %v498 = vadd.f32 %v363, %v497
      %v499 = vpop.f32.mrf.mxu0
      %v500 = vpop.f32.mrf.mxu0
      %v501 = vadd.f32 %v366, %v500
      %v502 = vpop.f32.mrf.mxu0
      %503 = vmatprep.mubr.bf16.mxu0 0
      %504 = vmatmul.mubr.bf16.gmra.mxu0 %v422
      %v505 = vpop.f32.mrf.mxu0
      %v506 = vadd.f32 %v371, %v505
      %v507 = vpop.f32.mrf.mxu0
      %v508 = vpop.f32.mrf.mxu0
      %v509 = vadd.f32 %v374, %v508
      %v510 = vpop.f32.mrf.mxu0
      %511 = vmatprep.mubr.bf16.mxu0 0
      %512 = vmatmul.mubr.bf16.gmra.mxu0 %v425
      %v513 = vpop.f32.mrf.mxu0
      %v514 = vadd.f32 %v379, %v513
      %v515 = vpop.f32.mrf.mxu0
      %v516 = vpop.f32.mrf.mxu0
      %v517 = vadd.f32 %v382, %v516
      %v518 = vpop.f32.mrf.mxu0
      %519 = vmatprep.mubr.bf16.mxu0 0
      %520 = vmatmul.mubr.bf16.gmra.mxu0 %v428
      %v521 = vpop.f32.mrf.mxu0
      %v522 = vadd.f32 %v387, %v521
      %v523 = vpop.f32.mrf.mxu0
      %v524 = vpop.f32.mrf.mxu0
      %v525 = vadd.f32 %v390, %v524
      %v526 = vpop.f32.mrf.mxu0
      %527 = vmatprep.mubr.bf16.mxu0 0
      %528 = vmatmul.mubr.bf16.gmra.mxu0 %v431
      %v529 = vpop.f32.mrf.mxu0
      %v530 = vadd.f32 %v395, %v529
      %v531 = vpop.f32.mrf.mxu0
      %v532 = vpop.f32.mrf.mxu0
      %v533 = vadd.f32 %v398, %v532
      %v534 = vpop.f32.mrf.mxu0
      %535 = vmatprep.mubr.bf16.mxu0 0
      %536 = vmatmul.mubr.bf16.gmra.mxu0 %v434
      %v537 = vpop.f32.mrf.mxu0
      %v538 = vadd.f32 %v403, %v537
      %v539 = vpop.f32.mrf.mxu0
      %v540 = vpop.f32.mrf.mxu0
      %v541 = vadd.f32 %v406, %v540
      %v542 = vpop.f32.mrf.mxu0
      %543 = vdwg.mxu0
      %v544 = vld [vmem:[%s207 + $0x2] sm:$0xff]
      %v545 = vld [vmem:[%s207 + $0xa] sm:$0xff]
      %v546 = vld [vmem:[%s207 + $0x12] sm:$0xff]
      %v547 = vld [vmem:[%s207 + $0x1a] sm:$0xff]
      %v548 = vld [vmem:[%s207 + $0x22] sm:$0xff]
      %v549 = vld [vmem:[%s207 + $0x2a] sm:$0xff]
      %v550 = vld [vmem:[%s207 + $0x32] sm:$0xff]
      %v551 = vld [vmem:[%s207 + $0x3a] sm:$0xff]
      %v552 = vld [vmem:[%s207 + $0x42] sm:$0xff]
      %v553 = vld [vmem:[%s207 + $0x4a] sm:$0xff]
      %v554 = vld [vmem:[%s207 + $0x52] sm:$0xff]
      %v555 = vld [vmem:[%s207 + $0x5a] sm:$0xff]
      %v556 = vld [vmem:[%s207 + $0x62] sm:$0xff]
      %v557 = vld [vmem:[%s207 + $0x6a] sm:$0xff]
      %v558 = vld [vmem:[%s207 + $0x72] sm:$0xff]
      %v559 = vld [vmem:[%s207 + $0x7a] sm:$0xff]
      %v560 = vld [vmem:[%s207 + $0x82] sm:$0xff]
      %v561 = vld [vmem:[%s207 + $0x8a] sm:$0xff]
      %v562 = vld [vmem:[%s1 + $0x8] sm:$0xf]
      %v563 = vpack.c.bf16 %v545, %v544
      %v564 = vpack.c.bf16 %v547, %v546
      %v565 = vpack.c.bf16 %v549, %v548
      %v566 = vpack.c.bf16 %v551, %v550
      %v567 = vpack.c.bf16 %v553, %v552
      %v568 = vpack.c.bf16 %v555, %v554
      %v569 = vpack.c.bf16 %v557, %v556
      %v570 = vpack.c.bf16 %v559, %v558
      %v571 = vpack.c.bf16 %v561, %v560
      %v573 = vsel %vm272, %v563, 0
      %v576 = vsel %vm272, %v564, 0
      %v579 = vsel %vm272, %v565, 0
      %v582 = vsel %vm272, %v566, 0
      %v585 = vsel %vm272, %v567, 0
      %v588 = vsel %vm272, %v568, 0
      %v591 = vsel %vm272, %v569, 0
      %v594 = vsel %vm272, %v570, 0
      %v597 = vsel %vm272, %v571, 0
      %v600 = vsel %vm300, %v562, 0
      %602 = vmatprep.subr.bf16.mxu0 0
      %603 = vmatpush1.bf16.msra.mxu0 0
      %604 = vmatprep.subr.bf16.mxu0 0
      %605 = vmatpush1.bf16.msra.mxu0 0
      %606 = vmatprep.subr.bf16.mxu0 0
      %607 = vmatpush1.bf16.msra.mxu0 0
      %608 = vmatprep.subr.bf16.mxu0 0
      %609 = vmatpush1.bf16.msra.mxu0 0
      %610 = vmatprep.subr.bf16.mxu0 0
      %611 = vmatpush1.bf16.msra.mxu0 0
      %612 = vmatprep.subr.bf16.mxu0 0
      %613 = vmatpush1.bf16.msra.mxu0 0
      %614 = vmatprep.subr.bf16.mxu0 0
      %615 = vmatpush1.bf16.msra.mxu0 0
      %616 = vmatprep.subr.bf16.mxu0 0
      %617 = vmatpush1.bf16.msra.mxu0 %v600
      %618 = vmatprep.subr.bf16.mxu0 0
      %619 = vmatpush2.bf16.msra.mxu0 0
      %620 = vmatprep.subr.bf16.mxu0 0
      %621 = vmatpush2.bf16.msra.mxu0 0
      %622 = vmatprep.subr.bf16.mxu0 0
      %623 = vmatpush2.bf16.msra.mxu0 0
      %624 = vmatprep.subr.bf16.mxu0 0
      %625 = vmatpush2.bf16.msra.mxu0 0
      %626 = vmatprep.subr.bf16.mxu0 0
      %627 = vmatpush2.bf16.msra.mxu0 0
      %628 = vmatprep.subr.bf16.mxu0 0
      %629 = vmatpush2.bf16.msra.mxu0 0
      %630 = vmatprep.subr.bf16.mxu0 0
      %631 = vmatpush2.bf16.msra.mxu0 0
      %632 = vmatprep.subr.bf16.mxu0 0
      %633 = vmatpush2.bf16.msra.mxu0 0
      %634 = vmatprep.mubr.bf16.mxu0 0
      %635 = vmatmul.mubr.bf16.gmra.mxu0 %v573
      %v636 = vpop.f32.mrf.mxu0
      %v637 = vadd.f32 0.0, %v636
      %v638 = vpop.f32.mrf.mxu0
      %v639 = vpop.f32.mrf.mxu0
      %v640 = vadd.f32 0.0, %v639
      %v641 = vpop.f32.mrf.mxu0
      %642 = vmatprep.mubr.bf16.mxu0 0
      %643 = vmatmul.mubr.bf16.gmra.mxu0 %v576
      %v644 = vpop.f32.mrf.mxu0
      %v645 = vadd.f32 0.0, %v644
      %v646 = vpop.f32.mrf.mxu0
      %v647 = vpop.f32.mrf.mxu0
      %v648 = vadd.f32 0.0, %v647
      %v649 = vpop.f32.mrf.mxu0
      %650 = vmatprep.mubr.bf16.mxu0 0
      %651 = vmatmul.mubr.bf16.gmra.mxu0 %v579
      %v652 = vpop.f32.mrf.mxu0
      %v653 = vadd.f32 0.0, %v652
      %v654 = vpop.f32.mrf.mxu0
      %v655 = vpop.f32.mrf.mxu0
      %v656 = vadd.f32 0.0, %v655
      %v657 = vpop.f32.mrf.mxu0
      %658 = vmatprep.mubr.bf16.mxu0 0
      %659 = vmatmul.mubr.bf16.gmra.mxu0 %v582
      %v660 = vpop.f32.mrf.mxu0
      %v661 = vadd.f32 0.0, %v660
      %v662 = vpop.f32.mrf.mxu0
      %v663 = vpop.f32.mrf.mxu0
      %v664 = vadd.f32 0.0, %v663
      %v665 = vpop.f32.mrf.mxu0
      %666 = vmatprep.mubr.bf16.mxu0 0
      %667 = vmatmul.mubr.bf16.gmra.mxu0 %v585
      %v668 = vpop.f32.mrf.mxu0
      %v669 = vadd.f32 0.0, %v668
      %v670 = vpop.f32.mrf.mxu0
      %v671 = vpop.f32.mrf.mxu0
      %v672 = vadd.f32 0.0, %v671
      %v673 = vpop.f32.mrf.mxu0
      %674 = vmatprep.mubr.bf16.mxu0 0
      %675 = vmatmul.mubr.bf16.gmra.mxu0 %v588
      %v676 = vpop.f32.mrf.mxu0
      %v677 = vadd.f32 0.0, %v676
      %v678 = vpop.f32.mrf.mxu0
      %v679 = vpop.f32.mrf.mxu0
      %v680 = vadd.f32 0.0, %v679
      %v681 = vpop.f32.mrf.mxu0
      %682 = vmatprep.mubr.bf16.mxu0 0
      %683 = vmatmul.mubr.bf16.gmra.mxu0 %v591
      %v684 = vpop.f32.mrf.mxu0
      %v685 = vadd.f32 0.0, %v684
      %v686 = vpop.f32.mrf.mxu0
      %v687 = vpop.f32.mrf.mxu0
      %v688 = vadd.f32 0.0, %v687
      %v689 = vpop.f32.mrf.mxu0
      %690 = vmatprep.mubr.bf16.mxu0 0
      %691 = vmatmul.mubr.bf16.gmra.mxu0 %v594
      %v692 = vpop.f32.mrf.mxu0
      %v693 = vadd.f32 0.0, %v692
      %v694 = vpop.f32.mrf.mxu0
      %v695 = vpop.f32.mrf.mxu0
      %v696 = vadd.f32 0.0, %v695
      %v697 = vpop.f32.mrf.mxu0
      %698 = vmatprep.mubr.bf16.mxu0 0
      %699 = vmatmul.mubr.bf16.gmra.mxu0 %v597
      %v700 = vpop.f32.mrf.mxu0
      %v701 = vadd.f32 0.0, %v700
      %v702 = vpop.f32.mrf.mxu0
      %v703 = vpop.f32.mrf.mxu0
      %v704 = vadd.f32 0.0, %v703
      %v705 = vpop.f32.mrf.mxu0
      %706 = vdwg.mxu0
      %v707 = vadd.f32 %v474, %v637
      %v708 = vadd.f32 %v477, %v640
      %v709 = vadd.f32 %v482, %v645
      %v710 = vadd.f32 %v485, %v648
      %v711 = vadd.f32 %v490, %v653
      %v712 = vadd.f32 %v493, %v656
      %v713 = vadd.f32 %v498, %v661
      %v714 = vadd.f32 %v501, %v664
      %v715 = vadd.f32 %v506, %v669
      %v716 = vadd.f32 %v509, %v672
      %v717 = vadd.f32 %v514, %v677
      %v718 = vadd.f32 %v517, %v680
      %v719 = vadd.f32 %v522, %v685
      %v720 = vadd.f32 %v525, %v688
      %v721 = vadd.f32 %v530, %v693
      %v722 = vadd.f32 %v533, %v696
      %v723 = vadd.f32 %v538, %v701
      %v724 = vadd.f32 %v541, %v704
      %v725 = vld [vmem:[%s207 + $0x12] sm:$0xff]
      %v726 = vld [vmem:[%s207 + $0x1a] sm:$0xff]
      %v727 = vld [vmem:[%s207 + $0x22] sm:$0xff]
      %v728 = vld [vmem:[%s207 + $0x2a] sm:$0xff]
      %v729 = vld [vmem:[%s207 + $0x32] sm:$0xff]
      %v730 = vld [vmem:[%s207 + $0x3a] sm:$0xff]
      %v731 = vld [vmem:[%s207 + $0x42] sm:$0xff]
      %v732 = vld [vmem:[%s207 + $0x4a] sm:$0xff]
      %v733 = vld [vmem:[%s207 + $0x52] sm:$0xff]
      %v734 = vld [vmem:[%s207 + $0x5a] sm:$0xff]
      %v735 = vld [vmem:[%s207 + $0x62] sm:$0xff]
      %v736 = vld [vmem:[%s207 + $0x6a] sm:$0xff]
      %v737 = vld [vmem:[%s207 + $0x72] sm:$0xff]
      %v738 = vld [vmem:[%s207 + $0x7a] sm:$0xff]
      %v739 = vld [vmem:[%s207 + $0x82] sm:$0xff]
      %v740 = vld [vmem:[%s207 + $0x8a] sm:$0xff]
      %v741 = vld [vmem:[%s207 + $0x92] sm:$0xff]
      %v742 = vld [vmem:[%s207 + $0x9a] sm:$0xff]
      %v743 = vld [vmem:[%s1 + $0xc] sm:$0xf]
      %v744 = vpack.c.bf16 %v726, %v725
      %v745 = vpack.c.bf16 %v728, %v727
      %v746 = vpack.c.bf16 %v730, %v729
      %v747 = vpack.c.bf16 %v732, %v731
      %v748 = vpack.c.bf16 %v734, %v733
      %v749 = vpack.c.bf16 %v736, %v735
      %v750 = vpack.c.bf16 %v738, %v737
      %v751 = vpack.c.bf16 %v740, %v739
      %v752 = vpack.c.bf16 %v742, %v741
      %v754 = vsel %vm272, %v744, 0
      %v757 = vsel %vm272, %v745, 0
      %v760 = vsel %vm272, %v746, 0
      %v763 = vsel %vm272, %v747, 0
      %v766 = vsel %vm272, %v748, 0
      %v769 = vsel %vm272, %v749, 0
      %v772 = vsel %vm272, %v750, 0
      %v775 = vsel %vm272, %v751, 0
      %v778 = vsel %vm272, %v752, 0
      %v781 = vsel %vm300, %v743, 0
      %783 = vmatprep.subr.bf16.mxu0 0
      %784 = vmatpush1.bf16.msra.mxu0 0
      %785 = vmatprep.subr.bf16.mxu0 0
      %786 = vmatpush1.bf16.msra.mxu0 0
      %787 = vmatprep.subr.bf16.mxu0 0
      %788 = vmatpush1.bf16.msra.mxu0 0
      %789 = vmatprep.subr.bf16.mxu0 0
      %790 = vmatpush1.bf16.msra.mxu0 0
      %791 = vmatprep.subr.bf16.mxu0 0
      %792 = vmatpush1.bf16.msra.mxu0 0
      %793 = vmatprep.subr.bf16.mxu0 0
      %794 = vmatpush1.bf16.msra.mxu0 0
      %795 = vmatprep.subr.bf16.mxu0 0
      %796 = vmatpush1.bf16.msra.mxu0 0
      %797 = vmatprep.subr.bf16.mxu0 0
      %798 = vmatpush1.bf16.msra.mxu0 %v781
      %799 = vmatprep.subr.bf16.mxu0 0
      %800 = vmatpush2.bf16.msra.mxu0 0
      %801 = vmatprep.subr.bf16.mxu0 0
      %802 = vmatpush2.bf16.msra.mxu0 0
      %803 = vmatprep.subr.bf16.mxu0 0
      %804 = vmatpush2.bf16.msra.mxu0 0
      %805 = vmatprep.subr.bf16.mxu0 0
      %806 = vmatpush2.bf16.msra.mxu0 0
      %807 = vmatprep.subr.bf16.mxu0 0
      %808 = vmatpush2.bf16.msra.mxu0 0
      %809 = vmatprep.subr.bf16.mxu0 0
      %810 = vmatpush2.bf16.msra.mxu0 0
      %811 = vmatprep.subr.bf16.mxu0 0
      %812 = vmatpush2.bf16.msra.mxu0 0
      %813 = vmatprep.subr.bf16.mxu0 0
      %814 = vmatpush2.bf16.msra.mxu0 0
      %815 = vmatprep.mubr.bf16.mxu0 0
      %816 = vmatmul.mubr.bf16.gmra.mxu0 %v754
      %v817 = vpop.f32.mrf.mxu0
      %v818 = vadd.f32 0.0, %v817
      %v819 = vpop.f32.mrf.mxu0
      %v820 = vpop.f32.mrf.mxu0
      %v821 = vadd.f32 0.0, %v820
      %v822 = vpop.f32.mrf.mxu0
      %823 = vmatprep.mubr.bf16.mxu0 0
      %824 = vmatmul.mubr.bf16.gmra.mxu0 %v757
      %v825 = vpop.f32.mrf.mxu0
      %v826 = vadd.f32 0.0, %v825
      %v827 = vpop.f32.mrf.mxu0
      %v828 = vpop.f32.mrf.mxu0
      %v829 = vadd.f32 0.0, %v828
      %v830 = vpop.f32.mrf.mxu0
      %831 = vmatprep.mubr.bf16.mxu0 0
      %832 = vmatmul.mubr.bf16.gmra.mxu0 %v760
      %v833 = vpop.f32.mrf.mxu0
      %v834 = vadd.f32 0.0, %v833
      %v835 = vpop.f32.mrf.mxu0
      %v836 = vpop.f32.mrf.mxu0
      %v837 = vadd.f32 0.0, %v836
      %v838 = vpop.f32.mrf.mxu0
      %839 = vmatprep.mubr.bf16.mxu0 0
      %840 = vmatmul.mubr.bf16.gmra.mxu0 %v763
      %v841 = vpop.f32.mrf.mxu0
      %v842 = vadd.f32 0.0, %v841
      %v843 = vpop.f32.mrf.mxu0
      %v844 = vpop.f32.mrf.mxu0
      %v845 = vadd.f32 0.0, %v844
      %v846 = vpop.f32.mrf.mxu0
      %847 = vmatprep.mubr.bf16.mxu0 0
      %848 = vmatmul.mubr.bf16.gmra.mxu0 %v766
      %v849 = vpop.f32.mrf.mxu0
      %v850 = vadd.f32 0.0, %v849
      %v851 = vpop.f32.mrf.mxu0
      %v852 = vpop.f32.mrf.mxu0
      %v853 = vadd.f32 0.0, %v852
      %v854 = vpop.f32.mrf.mxu0
      %855 = vmatprep.mubr.bf16.mxu0 0
      %856 = vmatmul.mubr.bf16.gmra.mxu0 %v769
      %v857 = vpop.f32.mrf.mxu0
      %v858 = vadd.f32 0.0, %v857
      %v859 = vpop.f32.mrf.mxu0
      %v860 = vpop.f32.mrf.mxu0
      %v861 = vadd.f32 0.0, %v860
      %v862 = vpop.f32.mrf.mxu0
      %863 = vmatprep.mubr.bf16.mxu0 0
      %864 = vmatmul.mubr.bf16.gmra.mxu0 %v772
      %v865 = vpop.f32.mrf.mxu0
      %v866 = vadd.f32 0.0, %v865
      %v867 = vpop.f32.mrf.mxu0
      %v868 = vpop.f32.mrf.mxu0
      %v869 = vadd.f32 0.0, %v868
      %v870 = vpop.f32.mrf.mxu0
      %871 = vmatprep.mubr.bf16.mxu0 0
      %872 = vmatmul.mubr.bf16.gmra.mxu0 %v775
      %v873 = vpop.f32.mrf.mxu0
      %v874 = vadd.f32 0.0, %v873
      %v875 = vpop.f32.mrf.mxu0
      %v876 = vpop.f32.mrf.mxu0
      %v877 = vadd.f32 0.0, %v876
      %v878 = vpop.f32.mrf.mxu0
      %879 = vmatprep.mubr.bf16.mxu0 0
      %880 = vmatmul.mubr.bf16.gmra.mxu0 %v778
      %v881 = vpop.f32.mrf.mxu0
      %v882 = vadd.f32 0.0, %v881
      %v883 = vpop.f32.mrf.mxu0
      %v884 = vpop.f32.mrf.mxu0
      %v885 = vadd.f32 0.0, %v884
      %v886 = vpop.f32.mrf.mxu0
      %887 = vdwg.mxu0
      %v888 = vadd.f32 %v707, %v818
      %v889 = vadd.f32 %v708, %v821
      %v890 = vadd.f32 %v709, %v826
      %v891 = vadd.f32 %v710, %v829
      %v892 = vadd.f32 %v711, %v834
      %v893 = vadd.f32 %v712, %v837
      %v894 = vadd.f32 %v713, %v842
      %v895 = vadd.f32 %v714, %v845
      %v896 = vadd.f32 %v715, %v850
      %v897 = vadd.f32 %v716, %v853
      %v898 = vadd.f32 %v717, %v858
      %v899 = vadd.f32 %v718, %v861
      %v900 = vadd.f32 %v719, %v866
      %v901 = vadd.f32 %v720, %v869
      %v902 = vadd.f32 %v721, %v874
      %v903 = vadd.f32 %v722, %v877
      %v904 = vadd.f32 %v723, %v882
      %v905 = vadd.f32 %v724, %v885
      %v906 = vld [vmem:[%s207 + $0x13] sm:$0xff]
      %v907 = vld [vmem:[%s207 + $0x1b] sm:$0xff]
      %v908 = vld [vmem:[%s207 + $0x23] sm:$0xff]
      %v909 = vld [vmem:[%s207 + $0x2b] sm:$0xff]
      %v910 = vld [vmem:[%s207 + $0x33] sm:$0xff]
      %v911 = vld [vmem:[%s207 + $0x3b] sm:$0xff]
      %v912 = vld [vmem:[%s207 + $0x43] sm:$0xff]
      %v913 = vld [vmem:[%s207 + $0x4b] sm:$0xff]
      %v914 = vld [vmem:[%s207 + $0x53] sm:$0xff]
      %v915 = vld [vmem:[%s207 + $0x5b] sm:$0xff]
      %v916 = vld [vmem:[%s207 + $0x63] sm:$0xff]
      %v917 = vld [vmem:[%s207 + $0x6b] sm:$0xff]
      %v918 = vld [vmem:[%s207 + $0x73] sm:$0xff]
      %v919 = vld [vmem:[%s207 + $0x7b] sm:$0xff]
      %v920 = vld [vmem:[%s207 + $0x83] sm:$0xff]
      %v921 = vld [vmem:[%s207 + $0x8b] sm:$0xff]
      %v922 = vld [vmem:[%s207 + $0x93] sm:$0xff]
      %v923 = vld [vmem:[%s207 + $0x9b] sm:$0xff]
      %v924 = vld [vmem:[%s1 + $0x10] sm:$0xf]
      %v925 = vpack.c.bf16 %v907, %v906
      %v926 = vpack.c.bf16 %v909, %v908
      %v927 = vpack.c.bf16 %v911, %v910
      %v928 = vpack.c.bf16 %v913, %v912
      %v929 = vpack.c.bf16 %v915, %v914
      %v930 = vpack.c.bf16 %v917, %v916
      %v931 = vpack.c.bf16 %v919, %v918
      %v932 = vpack.c.bf16 %v921, %v920
      %v933 = vpack.c.bf16 %v923, %v922
      %v935 = vsel %vm272, %v925, 0
      %v938 = vsel %vm272, %v926, 0
      %v941 = vsel %vm272, %v927, 0
      %v944 = vsel %vm272, %v928, 0
      %v947 = vsel %vm272, %v929, 0
      %v950 = vsel %vm272, %v930, 0
      %v953 = vsel %vm272, %v931, 0
      %v956 = vsel %vm272, %v932, 0
      %v959 = vsel %vm272, %v933, 0
      %v962 = vsel %vm300, %v924, 0
      %964 = vmatprep.subr.bf16.mxu0 0
      %965 = vmatpush1.bf16.msra.mxu0 0
      %966 = vmatprep.subr.bf16.mxu0 0
      %967 = vmatpush1.bf16.msra.mxu0 0
      %968 = vmatprep.subr.bf16.mxu0 0
      %969 = vmatpush1.bf16.msra.mxu0 0
      %970 = vmatprep.subr.bf16.mxu0 0
      %971 = vmatpush1.bf16.msra.mxu0 0
      %972 = vmatprep.subr.bf16.mxu0 0
      %973 = vmatpush1.bf16.msra.mxu0 0
      %974 = vmatprep.subr.bf16.mxu0 0
      %975 = vmatpush1.bf16.msra.mxu0 0
      %976 = vmatprep.subr.bf16.mxu0 0
      %977 = vmatpush1.bf16.msra.mxu0 0
      %978 = vmatprep.subr.bf16.mxu0 0
      %979 = vmatpush1.bf16.msra.mxu0 %v962
      %980 = vmatprep.subr.bf16.mxu0 0
      %981 = vmatpush2.bf16.msra.mxu0 0
      %982 = vmatprep.subr.bf16.mxu0 0
      %983 = vmatpush2.bf16.msra.mxu0 0
      %984 = vmatprep.subr.bf16.mxu0 0
      %985 = vmatpush2.bf16.msra.mxu0 0
      %986 = vmatprep.subr.bf16.mxu0 0
      %987 = vmatpush2.bf16.msra.mxu0 0
      %988 = vmatprep.subr.bf16.mxu0 0
      %989 = vmatpush2.bf16.msra.mxu0 0
      %990 = vmatprep.subr.bf16.mxu0 0
      %991 = vmatpush2.bf16.msra.mxu0 0
      %992 = vmatprep.subr.bf16.mxu0 0
      %993 = vmatpush2.bf16.msra.mxu0 0
      %994 = vmatprep.subr.bf16.mxu0 0
      %995 = vmatpush2.bf16.msra.mxu0 0
      %996 = vmatprep.mubr.bf16.mxu0 0
      %997 = vmatmul.mubr.bf16.gmra.mxu0 %v935
      %v998 = vpop.f32.mrf.mxu0
      %v999 = vadd.f32 0.0, %v998
      %v1000 = vpop.f32.mrf.mxu0
      %v1001 = vpop.f32.mrf.mxu0
      %v1002 = vadd.f32 0.0, %v1001
      %v1003 = vpop.f32.mrf.mxu0
      %1004 = vmatprep.mubr.bf16.mxu0 0
      %1005 = vmatmul.mubr.bf16.gmra.mxu0 %v938
      %v1006 = vpop.f32.mrf.mxu0
      %v1007 = vadd.f32 0.0, %v1006
      %v1008 = vpop.f32.mrf.mxu0
      %v1009 = vpop.f32.mrf.mxu0
      %v1010 = vadd.f32 0.0, %v1009
      %v1011 = vpop.f32.mrf.mxu0
      %1012 = vmatprep.mubr.bf16.mxu0 0
      %1013 = vmatmul.mubr.bf16.gmra.mxu0 %v941
      %v1014 = vpop.f32.mrf.mxu0
      %v1015 = vadd.f32 0.0, %v1014
      %v1016 = vpop.f32.mrf.mxu0
      %v1017 = vpop.f32.mrf.mxu0
      %v1018 = vadd.f32 0.0, %v1017
      %v1019 = vpop.f32.mrf.mxu0
      %1020 = vmatprep.mubr.bf16.mxu0 0
      %1021 = vmatmul.mubr.bf16.gmra.mxu0 %v944
      %v1022 = vpop.f32.mrf.mxu0
      %v1023 = vadd.f32 0.0, %v1022
      %v1024 = vpop.f32.mrf.mxu0
      %v1025 = vpop.f32.mrf.mxu0
      %v1026 = vadd.f32 0.0, %v1025
      %v1027 = vpop.f32.mrf.mxu0
      %1028 = vmatprep.mubr.bf16.mxu0 0
      %1029 = vmatmul.mubr.bf16.gmra.mxu0 %v947
      %v1030 = vpop.f32.mrf.mxu0
      %v1031 = vadd.f32 0.0, %v1030
      %v1032 = vpop.f32.mrf.mxu0
      %v1033 = vpop.f32.mrf.mxu0
      %v1034 = vadd.f32 0.0, %v1033
      %v1035 = vpop.f32.mrf.mxu0
      %1036 = vmatprep.mubr.bf16.mxu0 0
      %1037 = vmatmul.mubr.bf16.gmra.mxu0 %v950
      %v1038 = vpop.f32.mrf.mxu0
      %v1039 = vadd.f32 0.0, %v1038
      %v1040 = vpop.f32.mrf.mxu0
      %v1041 = vpop.f32.mrf.mxu0
      %v1042 = vadd.f32 0.0, %v1041
      %v1043 = vpop.f32.mrf.mxu0
      %1044 = vmatprep.mubr.bf16.mxu0 0
      %1045 = vmatmul.mubr.bf16.gmra.mxu0 %v953
      %v1046 = vpop.f32.mrf.mxu0
      %v1047 = vadd.f32 0.0, %v1046
      %v1048 = vpop.f32.mrf.mxu0
      %v1049 = vpop.f32.mrf.mxu0
      %v1050 = vadd.f32 0.0, %v1049
      %v1051 = vpop.f32.mrf.mxu0
      %1052 = vmatprep.mubr.bf16.mxu0 0
      %1053 = vmatmul.mubr.bf16.gmra.mxu0 %v956
      %v1054 = vpop.f32.mrf.mxu0
      %v1055 = vadd.f32 0.0, %v1054
      %v1056 = vpop.f32.mrf.mxu0
      %v1057 = vpop.f32.mrf.mxu0
      %v1058 = vadd.f32 0.0, %v1057
      %v1059 = vpop.f32.mrf.mxu0
      %1060 = vmatprep.mubr.bf16.mxu0 0
      %1061 = vmatmul.mubr.bf16.gmra.mxu0 %v959
      %v1062 = vpop.f32.mrf.mxu0
      %v1063 = vadd.f32 0.0, %v1062
      %v1064 = vpop.f32.mrf.mxu0
      %v1065 = vpop.f32.mrf.mxu0
      %v1066 = vadd.f32 0.0, %v1065
      %v1067 = vpop.f32.mrf.mxu0
      %1068 = vdwg.mxu0
      %v1069 = vadd.f32 %v888, %v999
      %v1070 = vadd.f32 %v889, %v1002
      %v1071 = vadd.f32 %v890, %v1007
      %v1072 = vadd.f32 %v891, %v1010
      %v1073 = vadd.f32 %v892, %v1015
      %v1074 = vadd.f32 %v893, %v1018
      %v1075 = vadd.f32 %v894, %v1023
      %v1076 = vadd.f32 %v895, %v1026
      %v1077 = vadd.f32 %v896, %v1031
      %v1078 = vadd.f32 %v897, %v1034
      %v1079 = vadd.f32 %v898, %v1039
      %v1080 = vadd.f32 %v899, %v1042
      %v1081 = vadd.f32 %v900, %v1047
      %v1082 = vadd.f32 %v901, %v1050
      %v1083 = vadd.f32 %v902, %v1055
      %v1084 = vadd.f32 %v903, %v1058
      %v1085 = vadd.f32 %v904, %v1063
      %v1086 = vadd.f32 %v905, %v1066
      %v1087 = vld [vmem:[%s207 + $0x14] sm:$0xff]
      %v1088 = vld [vmem:[%s207 + $0x1c] sm:$0xff]
      %v1089 = vld [vmem:[%s207 + $0x24] sm:$0xff]
      %v1090 = vld [vmem:[%s207 + $0x2c] sm:$0xff]
      %v1091 = vld [vmem:[%s207 + $0x34] sm:$0xff]
      %v1092 = vld [vmem:[%s207 + $0x3c] sm:$0xff]
      %v1093 = vld [vmem:[%s207 + $0x44] sm:$0xff]
      %v1094 = vld [vmem:[%s207 + $0x4c] sm:$0xff]
      %v1095 = vld [vmem:[%s207 + $0x54] sm:$0xff]
      %v1096 = vld [vmem:[%s207 + $0x5c] sm:$0xff]
      %v1097 = vld [vmem:[%s207 + $0x64] sm:$0xff]
      %v1098 = vld [vmem:[%s207 + $0x6c] sm:$0xff]
      %v1099 = vld [vmem:[%s207 + $0x74] sm:$0xff]
      %v1100 = vld [vmem:[%s207 + $0x7c] sm:$0xff]
      %v1101 = vld [vmem:[%s207 + $0x84] sm:$0xff]
      %v1102 = vld [vmem:[%s207 + $0x8c] sm:$0xff]
      %v1103 = vld [vmem:[%s207 + $0x94] sm:$0xff]
      %v1104 = vld [vmem:[%s207 + $0x9c] sm:$0xff]
      %v1105 = vld [vmem:[%s1 + $0x14] sm:$0xf]
      %v1106 = vpack.c.bf16 %v1088, %v1087
      %v1107 = vpack.c.bf16 %v1090, %v1089
      %v1108 = vpack.c.bf16 %v1092, %v1091
      %v1109 = vpack.c.bf16 %v1094, %v1093
      %v1110 = vpack.c.bf16 %v1096, %v1095
      %v1111 = vpack.c.bf16 %v1098, %v1097
      %v1112 = vpack.c.bf16 %v1100, %v1099
      %v1113 = vpack.c.bf16 %v1102, %v1101
      %v1114 = vpack.c.bf16 %v1104, %v1103
      %v1116 = vsel %vm272, %v1106, 0
      %v1119 = vsel %vm272, %v1107, 0
      %v1122 = vsel %vm272, %v1108, 0
      %v1125 = vsel %vm272, %v1109, 0
      %v1128 = vsel %vm272, %v1110, 0
      %v1131 = vsel %vm272, %v1111, 0
      %v1134 = vsel %vm272, %v1112, 0
      %v1137 = vsel %vm272, %v1113, 0
      %v1140 = vsel %vm272, %v1114, 0
      %v1143 = vsel %vm300, %v1105, 0
      %1145 = vmatprep.subr.bf16.mxu0 0
      %1146 = vmatpush1.bf16.msra.mxu0 0
      %1147 = vmatprep.subr.bf16.mxu0 0
      %1148 = vmatpush1.bf16.msra.mxu0 0
      %1149 = vmatprep.subr.bf16.mxu0 0
      %1150 = vmatpush1.bf16.msra.mxu0 0
      %1151 = vmatprep.subr.bf16.mxu0 0
      %1152 = vmatpush1.bf16.msra.mxu0 0
      %1153 = vmatprep.subr.bf16.mxu0 0
      %1154 = vmatpush1.bf16.msra.mxu0 0
      %1155 = vmatprep.subr.bf16.mxu0 0
      %1156 = vmatpush1.bf16.msra.mxu0 0
      %1157 = vmatprep.subr.bf16.mxu0 0
      %1158 = vmatpush1.bf16.msra.mxu0 0
      %1159 = vmatprep.subr.bf16.mxu0 0
      %1160 = vmatpush1.bf16.msra.mxu0 %v1143
      %1161 = vmatprep.subr.bf16.mxu0 0
      %1162 = vmatpush2.bf16.msra.mxu0 0
      %1163 = vmatprep.subr.bf16.mxu0 0
      %1164 = vmatpush2.bf16.msra.mxu0 0
      %1165 = vmatprep.subr.bf16.mxu0 0
      %1166 = vmatpush2.bf16.msra.mxu0 0
      %1167 = vmatprep.subr.bf16.mxu0 0
      %1168 = vmatpush2.bf16.msra.mxu0 0
      %1169 = vmatprep.subr.bf16.mxu0 0
      %1170 = vmatpush2.bf16.msra.mxu0 0
      %1171 = vmatprep.subr.bf16.mxu0 0
      %1172 = vmatpush2.bf16.msra.mxu0 0
      %1173 = vmatprep.subr.bf16.mxu0 0
      %1174 = vmatpush2.bf16.msra.mxu0 0
      %1175 = vmatprep.subr.bf16.mxu0 0
      %1176 = vmatpush2.bf16.msra.mxu0 0
      %1177 = vmatprep.mubr.bf16.mxu0 0
      %1178 = vmatmul.mubr.bf16.gmra.mxu0 %v1116
      %v1179 = vpop.f32.mrf.mxu0
      %v1180 = vadd.f32 0.0, %v1179
      %v1181 = vpop.f32.mrf.mxu0
      %v1182 = vpop.f32.mrf.mxu0
      %v1183 = vadd.f32 0.0, %v1182
      %v1184 = vpop.f32.mrf.mxu0
      %1185 = vmatprep.mubr.bf16.mxu0 0
      %1186 = vmatmul.mubr.bf16.gmra.mxu0 %v1119
      %v1187 = vpop.f32.mrf.mxu0
      %v1188 = vadd.f32 0.0, %v1187
      %v1189 = vpop.f32.mrf.mxu0
      %v1190 = vpop.f32.mrf.mxu0
      %v1191 = vadd.f32 0.0, %v1190
      %v1192 = vpop.f32.mrf.mxu0
      %1193 = vmatprep.mubr.bf16.mxu0 0
      %1194 = vmatmul.mubr.bf16.gmra.mxu0 %v1122
      %v1195 = vpop.f32.mrf.mxu0
      %v1196 = vadd.f32 0.0, %v1195
      %v1197 = vpop.f32.mrf.mxu0
      %v1198 = vpop.f32.mrf.mxu0
      %v1199 = vadd.f32 0.0, %v1198
      %v1200 = vpop.f32.mrf.mxu0
      %1201 = vmatprep.mubr.bf16.mxu0 0
      %1202 = vmatmul.mubr.bf16.gmra.mxu0 %v1125
      %v1203 = vpop.f32.mrf.mxu0
      %v1204 = vadd.f32 0.0, %v1203
      %v1205 = vpop.f32.mrf.mxu0
      %v1206 = vpop.f32.mrf.mxu0
      %v1207 = vadd.f32 0.0, %v1206
      %v1208 = vpop.f32.mrf.mxu0
      %1209 = vmatprep.mubr.bf16.mxu0 0
      %1210 = vmatmul.mubr.bf16.gmra.mxu0 %v1128
      %v1211 = vpop.f32.mrf.mxu0
      %v1212 = vadd.f32 0.0, %v1211
      %v1213 = vpop.f32.mrf.mxu0
      %v1214 = vpop.f32.mrf.mxu0
      %v1215 = vadd.f32 0.0, %v1214
      %v1216 = vpop.f32.mrf.mxu0
      %1217 = vmatprep.mubr.bf16.mxu0 0
      %1218 = vmatmul.mubr.bf16.gmra.mxu0 %v1131
      %v1219 = vpop.f32.mrf.mxu0
      %v1220 = vadd.f32 0.0, %v1219
      %v1221 = vpop.f32.mrf.mxu0
      %v1222 = vpop.f32.mrf.mxu0
      %v1223 = vadd.f32 0.0, %v1222
      %v1224 = vpop.f32.mrf.mxu0
      %1225 = vmatprep.mubr.bf16.mxu0 0
      %1226 = vmatmul.mubr.bf16.gmra.mxu0 %v1134
      %v1227 = vpop.f32.mrf.mxu0
      %v1228 = vadd.f32 0.0, %v1227
      %v1229 = vpop.f32.mrf.mxu0
      %v1230 = vpop.f32.mrf.mxu0
      %v1231 = vadd.f32 0.0, %v1230
      %v1232 = vpop.f32.mrf.mxu0
      %1233 = vmatprep.mubr.bf16.mxu0 0
      %1234 = vmatmul.mubr.bf16.gmra.mxu0 %v1137
      %v1235 = vpop.f32.mrf.mxu0
      %v1236 = vadd.f32 0.0, %v1235
      %v1237 = vpop.f32.mrf.mxu0
      %v1238 = vpop.f32.mrf.mxu0
      %v1239 = vadd.f32 0.0, %v1238
      %v1240 = vpop.f32.mrf.mxu0
      %1241 = vmatprep.mubr.bf16.mxu0 0
      %1242 = vmatmul.mubr.bf16.gmra.mxu0 %v1140
      %v1243 = vpop.f32.mrf.mxu0
      %v1244 = vadd.f32 0.0, %v1243
      %v1245 = vpop.f32.mrf.mxu0
      %v1246 = vpop.f32.mrf.mxu0
      %v1247 = vadd.f32 0.0, %v1246
      %v1248 = vpop.f32.mrf.mxu0
      %1249 = vdwg.mxu0
      %v1250 = vadd.f32 %v1069, %v1180
      %v1251 = vadd.f32 %v1070, %v1183
      %v1252 = vadd.f32 %v1071, %v1188
      %v1253 = vadd.f32 %v1072, %v1191
      %v1254 = vadd.f32 %v1073, %v1196
      %v1255 = vadd.f32 %v1074, %v1199
      %v1256 = vadd.f32 %v1075, %v1204
      %v1257 = vadd.f32 %v1076, %v1207
      %v1258 = vadd.f32 %v1077, %v1212
      %v1259 = vadd.f32 %v1078, %v1215
      %v1260 = vadd.f32 %v1079, %v1220
      %v1261 = vadd.f32 %v1080, %v1223
      %v1262 = vadd.f32 %v1081, %v1228
      %v1263 = vadd.f32 %v1082, %v1231
      %v1264 = vadd.f32 %v1083, %v1236
      %v1265 = vadd.f32 %v1084, %v1239
      %v1266 = vadd.f32 %v1085, %v1244
      %v1267 = vadd.f32 %v1086, %v1247
      %v1268 = vld [vmem:[%s207 + $0x24] sm:$0xff]
      %v1269 = vld [vmem:[%s207 + $0x2c] sm:$0xff]
      %v1270 = vld [vmem:[%s207 + $0x34] sm:$0xff]
      %v1271 = vld [vmem:[%s207 + $0x3c] sm:$0xff]
      %v1272 = vld [vmem:[%s207 + $0x44] sm:$0xff]
      %v1273 = vld [vmem:[%s207 + $0x4c] sm:$0xff]
      %v1274 = vld [vmem:[%s207 + $0x54] sm:$0xff]
      %v1275 = vld [vmem:[%s207 + $0x5c] sm:$0xff]
      %v1276 = vld [vmem:[%s207 + $0x64] sm:$0xff]
      %v1277 = vld [vmem:[%s207 + $0x6c] sm:$0xff]
      %v1278 = vld [vmem:[%s207 + $0x74] sm:$0xff]
      %v1279 = vld [vmem:[%s207 + $0x7c] sm:$0xff]
      %v1280 = vld [vmem:[%s207 + $0x84] sm:$0xff]
      %v1281 = vld [vmem:[%s207 + $0x8c] sm:$0xff]
      %v1282 = vld [vmem:[%s207 + $0x94] sm:$0xff]
      %v1283 = vld [vmem:[%s207 + $0x9c] sm:$0xff]
      %v1284 = vld [vmem:[%s207 + $0xa4] sm:$0xff]
      %v1285 = vld [vmem:[%s207 + $0xac] sm:$0xff]
      %v1286 = vld [vmem:[%s1 + $0x18] sm:$0xf]
      %v1287 = vpack.c.bf16 %v1269, %v1268
      %v1288 = vpack.c.bf16 %v1271, %v1270
      %v1289 = vpack.c.bf16 %v1273, %v1272
      %v1290 = vpack.c.bf16 %v1275, %v1274
      %v1291 = vpack.c.bf16 %v1277, %v1276
      %v1292 = vpack.c.bf16 %v1279, %v1278
      %v1293 = vpack.c.bf16 %v1281, %v1280
      %v1294 = vpack.c.bf16 %v1283, %v1282
      %v1295 = vpack.c.bf16 %v1285, %v1284
      %v1297 = vsel %vm272, %v1287, 0
      %v1300 = vsel %vm272, %v1288, 0
      %v1303 = vsel %vm272, %v1289, 0
      %v1306 = vsel %vm272, %v1290, 0
      %v1309 = vsel %vm272, %v1291, 0
      %v1312 = vsel %vm272, %v1292, 0
      %v1315 = vsel %vm272, %v1293, 0
      %v1318 = vsel %vm272, %v1294, 0
      %v1321 = vsel %vm272, %v1295, 0
      %v1324 = vsel %vm300, %v1286, 0
      %1326 = vmatprep.subr.bf16.mxu0 0
      %1327 = vmatpush1.bf16.msra.mxu0 0
      %1328 = vmatprep.subr.bf16.mxu0 0
      %1329 = vmatpush1.bf16.msra.mxu0 0
      %1330 = vmatprep.subr.bf16.mxu0 0
      %1331 = vmatpush1.bf16.msra.mxu0 0
      %1332 = vmatprep.subr.bf16.mxu0 0
      %1333 = vmatpush1.bf16.msra.mxu0 0
      %1334 = vmatprep.subr.bf16.mxu0 0
      %1335 = vmatpush1.bf16.msra.mxu0 0
      %1336 = vmatprep.subr.bf16.mxu0 0
      %1337 = vmatpush1.bf16.msra.mxu0 0
      %1338 = vmatprep.subr.bf16.mxu0 0
      %1339 = vmatpush1.bf16.msra.mxu0 0
      %1340 = vmatprep.subr.bf16.mxu0 0
      %1341 = vmatpush1.bf16.msra.mxu0 %v1324
      %1342 = vmatprep.subr.bf16.mxu0 0
      %1343 = vmatpush2.bf16.msra.mxu0 0
      %1344 = vmatprep.subr.bf16.mxu0 0
      %1345 = vmatpush2.bf16.msra.mxu0 0
      %1346 = vmatprep.subr.bf16.mxu0 0
      %1347 = vmatpush2.bf16.msra.mxu0 0
      %1348 = vmatprep.subr.bf16.mxu0 0
      %1349 = vmatpush2.bf16.msra.mxu0 0
      %1350 = vmatprep.subr.bf16.mxu0 0
      %1351 = vmatpush2.bf16.msra.mxu0 0
      %1352 = vmatprep.subr.bf16.mxu0 0
      %1353 = vmatpush2.bf16.msra.mxu0 0
      %1354 = vmatprep.subr.bf16.mxu0 0
      %1355 = vmatpush2.bf16.msra.mxu0 0
      %1356 = vmatprep.subr.bf16.mxu0 0
      %1357 = vmatpush2.bf16.msra.mxu0 0
      %1358 = vmatprep.mubr.bf16.mxu0 0
      %1359 = vmatmul.mubr.bf16.gmra.mxu0 %v1297
      %v1360 = vpop.f32.mrf.mxu0
      %v1361 = vadd.f32 0.0, %v1360
      %v1362 = vpop.f32.mrf.mxu0
      %v1363 = vpop.f32.mrf.mxu0
      %v1364 = vadd.f32 0.0, %v1363
      %v1365 = vpop.f32.mrf.mxu0
      %1366 = vmatprep.mubr.bf16.mxu0 0
      %1367 = vmatmul.mubr.bf16.gmra.mxu0 %v1300
      %v1368 = vpop.f32.mrf.mxu0
      %v1369 = vadd.f32 0.0, %v1368
      %v1370 = vpop.f32.mrf.mxu0
      %v1371 = vpop.f32.mrf.mxu0
      %v1372 = vadd.f32 0.0, %v1371
      %v1373 = vpop.f32.mrf.mxu0
      %1374 = vmatprep.mubr.bf16.mxu0 0
      %1375 = vmatmul.mubr.bf16.gmra.mxu0 %v1303
      %v1376 = vpop.f32.mrf.mxu0
      %v1377 = vadd.f32 0.0, %v1376
      %v1378 = vpop.f32.mrf.mxu0
      %v1379 = vpop.f32.mrf.mxu0
      %v1380 = vadd.f32 0.0, %v1379
      %v1381 = vpop.f32.mrf.mxu0
      %1382 = vmatprep.mubr.bf16.mxu0 0
      %1383 = vmatmul.mubr.bf16.gmra.mxu0 %v1306
      %v1384 = vpop.f32.mrf.mxu0
      %v1385 = vadd.f32 0.0, %v1384
      %v1386 = vpop.f32.mrf.mxu0
      %v1387 = vpop.f32.mrf.mxu0
      %v1388 = vadd.f32 0.0, %v1387
      %v1389 = vpop.f32.mrf.mxu0
      %1390 = vmatprep.mubr.bf16.mxu0 0
      %1391 = vmatmul.mubr.bf16.gmra.mxu0 %v1309
      %v1392 = vpop.f32.mrf.mxu0
      %v1393 = vadd.f32 0.0, %v1392
      %v1394 = vpop.f32.mrf.mxu0
      %v1395 = vpop.f32.mrf.mxu0
      %v1396 = vadd.f32 0.0, %v1395
      %v1397 = vpop.f32.mrf.mxu0
      %1398 = vmatprep.mubr.bf16.mxu0 0
      %1399 = vmatmul.mubr.bf16.gmra.mxu0 %v1312
      %v1400 = vpop.f32.mrf.mxu0
      %v1401 = vadd.f32 0.0, %v1400
      %v1402 = vpop.f32.mrf.mxu0
      %v1403 = vpop.f32.mrf.mxu0
      %v1404 = vadd.f32 0.0, %v1403
      %v1405 = vpop.f32.mrf.mxu0
      %1406 = vmatprep.mubr.bf16.mxu0 0
      %1407 = vmatmul.mubr.bf16.gmra.mxu0 %v1315
      %v1408 = vpop.f32.mrf.mxu0
      %v1409 = vadd.f32 0.0, %v1408
      %v1410 = vpop.f32.mrf.mxu0
      %v1411 = vpop.f32.mrf.mxu0
      %v1412 = vadd.f32 0.0, %v1411
      %v1413 = vpop.f32.mrf.mxu0
      %1414 = vmatprep.mubr.bf16.mxu0 0
      %1415 = vmatmul.mubr.bf16.gmra.mxu0 %v1318
      %v1416 = vpop.f32.mrf.mxu0
      %v1417 = vadd.f32 0.0, %v1416
      %v1418 = vpop.f32.mrf.mxu0
      %v1419 = vpop.f32.mrf.mxu0
      %v1420 = vadd.f32 0.0, %v1419
      %v1421 = vpop.f32.mrf.mxu0
      %1422 = vmatprep.mubr.bf16.mxu0 0
      %1423 = vmatmul.mubr.bf16.gmra.mxu0 %v1321
      %v1424 = vpop.f32.mrf.mxu0
      %v1425 = vadd.f32 0.0, %v1424
      %v1426 = vpop.f32.mrf.mxu0
      %v1427 = vpop.f32.mrf.mxu0
      %v1428 = vadd.f32 0.0, %v1427
      %v1429 = vpop.f32.mrf.mxu0
      %1430 = vdwg.mxu0
      %v1431 = vadd.f32 %v1250, %v1361
      %v1432 = vadd.f32 %v1251, %v1364
      %v1433 = vadd.f32 %v1252, %v1369
      %v1434 = vadd.f32 %v1253, %v1372
      %v1435 = vadd.f32 %v1254, %v1377
      %v1436 = vadd.f32 %v1255, %v1380
      %v1437 = vadd.f32 %v1256, %v1385
      %v1438 = vadd.f32 %v1257, %v1388
      %v1439 = vadd.f32 %v1258, %v1393
      %v1440 = vadd.f32 %v1259, %v1396
      %v1441 = vadd.f32 %v1260, %v1401
      %v1442 = vadd.f32 %v1261, %v1404
      %v1443 = vadd.f32 %v1262, %v1409
      %v1444 = vadd.f32 %v1263, %v1412
      %v1445 = vadd.f32 %v1264, %v1417
      %v1446 = vadd.f32 %v1265, %v1420
      %v1447 = vadd.f32 %v1266, %v1425
      %v1448 = vadd.f32 %v1267, %v1428
      %v1449 = vld [vmem:[%s207 + $0x25] sm:$0xff]
      %v1450 = vld [vmem:[%s207 + $0x2d] sm:$0xff]
      %v1451 = vld [vmem:[%s207 + $0x35] sm:$0xff]
      %v1452 = vld [vmem:[%s207 + $0x3d] sm:$0xff]
      %v1453 = vld [vmem:[%s207 + $0x45] sm:$0xff]
      %v1454 = vld [vmem:[%s207 + $0x4d] sm:$0xff]
      %v1455 = vld [vmem:[%s207 + $0x55] sm:$0xff]
      %v1456 = vld [vmem:[%s207 + $0x5d] sm:$0xff]
      %v1457 = vld [vmem:[%s207 + $0x65] sm:$0xff]
      %v1458 = vld [vmem:[%s207 + $0x6d] sm:$0xff]
      %v1459 = vld [vmem:[%s207 + $0x75] sm:$0xff]
      %v1460 = vld [vmem:[%s207 + $0x7d] sm:$0xff]
      %v1461 = vld [vmem:[%s207 + $0x85] sm:$0xff]
      %v1462 = vld [vmem:[%s207 + $0x8d] sm:$0xff]
      %v1463 = vld [vmem:[%s207 + $0x95] sm:$0xff]
      %v1464 = vld [vmem:[%s207 + $0x9d] sm:$0xff]
      %v1465 = vld [vmem:[%s207 + $0xa5] sm:$0xff]
      %v1466 = vld [vmem:[%s207 + $0xad] sm:$0xff]
      %v1467 = vld [vmem:[%s1 + $0x1c] sm:$0xf]
      %v1468 = vpack.c.bf16 %v1450, %v1449
      %v1469 = vpack.c.bf16 %v1452, %v1451
      %v1470 = vpack.c.bf16 %v1454, %v1453
      %v1471 = vpack.c.bf16 %v1456, %v1455
      %v1472 = vpack.c.bf16 %v1458, %v1457
      %v1473 = vpack.c.bf16 %v1460, %v1459
      %v1474 = vpack.c.bf16 %v1462, %v1461
      %v1475 = vpack.c.bf16 %v1464, %v1463
      %v1476 = vpack.c.bf16 %v1466, %v1465
      %v1478 = vsel %vm272, %v1468, 0
      %v1481 = vsel %vm272, %v1469, 0
      %v1484 = vsel %vm272, %v1470, 0
      %v1487 = vsel %vm272, %v1471, 0
      %v1490 = vsel %vm272, %v1472, 0
      %v1493 = vsel %vm272, %v1473, 0
      %v1496 = vsel %vm272, %v1474, 0
      %v1499 = vsel %vm272, %v1475, 0
      %v1502 = vsel %vm272, %v1476, 0
      %v1505 = vsel %vm300, %v1467, 0
      %1507 = vmatprep.subr.bf16.mxu0 0
      %1508 = vmatpush1.bf16.msra.mxu0 0
      %1509 = vmatprep.subr.bf16.mxu0 0
      %1510 = vmatpush1.bf16.msra.mxu0 0
      %1511 = vmatprep.subr.bf16.mxu0 0
      %1512 = vmatpush1.bf16.msra.mxu0 0
      %1513 = vmatprep.subr.bf16.mxu0 0
      %1514 = vmatpush1.bf16.msra.mxu0 0
      %1515 = vmatprep.subr.bf16.mxu0 0
      %1516 = vmatpush1.bf16.msra.mxu0 0
      %1517 = vmatprep.subr.bf16.mxu0 0
      %1518 = vmatpush1.bf16.msra.mxu0 0
      %1519 = vmatprep.subr.bf16.mxu0 0
      %1520 = vmatpush1.bf16.msra.mxu0 0
      %1521 = vmatprep.subr.bf16.mxu0 0
      %1522 = vmatpush1.bf16.msra.mxu0 %v1505
      %1523 = vmatprep.subr.bf16.mxu0 0
      %1524 = vmatpush2.bf16.msra.mxu0 0
      %1525 = vmatprep.subr.bf16.mxu0 0
      %1526 = vmatpush2.bf16.msra.mxu0 0
      %1527 = vmatprep.subr.bf16.mxu0 0
      %1528 = vmatpush2.bf16.msra.mxu0 0
      %1529 = vmatprep.subr.bf16.mxu0 0
      %1530 = vmatpush2.bf16.msra.mxu0 0
      %1531 = vmatprep.subr.bf16.mxu0 0
      %1532 = vmatpush2.bf16.msra.mxu0 0
      %1533 = vmatprep.subr.bf16.mxu0 0
      %1534 = vmatpush2.bf16.msra.mxu0 0
      %1535 = vmatprep.subr.bf16.mxu0 0
      %1536 = vmatpush2.bf16.msra.mxu0 0
      %1537 = vmatprep.subr.bf16.mxu0 0
      %1538 = vmatpush2.bf16.msra.mxu0 0
      %1539 = vmatprep.mubr.bf16.mxu0 0
      %1540 = vmatmul.mubr.bf16.gmra.mxu0 %v1478
      %v1541 = vpop.f32.mrf.mxu0
      %v1542 = vadd.f32 0.0, %v1541
      %v1543 = vpop.f32.mrf.mxu0
      %v1544 = vpop.f32.mrf.mxu0
      %v1545 = vadd.f32 0.0, %v1544
      %v1546 = vpop.f32.mrf.mxu0
      %1547 = vmatprep.mubr.bf16.mxu0 0
      %1548 = vmatmul.mubr.bf16.gmra.mxu0 %v1481
      %v1549 = vpop.f32.mrf.mxu0
      %v1550 = vadd.f32 0.0, %v1549
      %v1551 = vpop.f32.mrf.mxu0
      %v1552 = vpop.f32.mrf.mxu0
      %v1553 = vadd.f32 0.0, %v1552
      %v1554 = vpop.f32.mrf.mxu0
      %1555 = vmatprep.mubr.bf16.mxu0 0
      %1556 = vmatmul.mubr.bf16.gmra.mxu0 %v1484
      %v1557 = vpop.f32.mrf.mxu0
      %v1558 = vadd.f32 0.0, %v1557
      %v1559 = vpop.f32.mrf.mxu0
      %v1560 = vpop.f32.mrf.mxu0
      %v1561 = vadd.f32 0.0, %v1560
      %v1562 = vpop.f32.mrf.mxu0
      %1563 = vmatprep.mubr.bf16.mxu0 0
      %1564 = vmatmul.mubr.bf16.gmra.mxu0 %v1487
      %v1565 = vpop.f32.mrf.mxu0
      %v1566 = vadd.f32 0.0, %v1565
      %v1567 = vpop.f32.mrf.mxu0
      %v1568 = vpop.f32.mrf.mxu0
      %v1569 = vadd.f32 0.0, %v1568
      %v1570 = vpop.f32.mrf.mxu0
      %1571 = vmatprep.mubr.bf16.mxu0 0
      %1572 = vmatmul.mubr.bf16.gmra.mxu0 %v1490
      %v1573 = vpop.f32.mrf.mxu0
      %v1574 = vadd.f32 0.0, %v1573
      %v1575 = vpop.f32.mrf.mxu0
      %v1576 = vpop.f32.mrf.mxu0
      %v1577 = vadd.f32 0.0, %v1576
      %v1578 = vpop.f32.mrf.mxu0
      %1579 = vmatprep.mubr.bf16.mxu0 0
      %1580 = vmatmul.mubr.bf16.gmra.mxu0 %v1493
      %v1581 = vpop.f32.mrf.mxu0
      %v1582 = vadd.f32 0.0, %v1581
      %v1583 = vpop.f32.mrf.mxu0
      %v1584 = vpop.f32.mrf.mxu0
      %v1585 = vadd.f32 0.0, %v1584
      %v1586 = vpop.f32.mrf.mxu0
      %1587 = vmatprep.mubr.bf16.mxu0 0
      %1588 = vmatmul.mubr.bf16.gmra.mxu0 %v1496
      %v1589 = vpop.f32.mrf.mxu0
      %v1590 = vadd.f32 0.0, %v1589
      %v1591 = vpop.f32.mrf.mxu0
      %v1592 = vpop.f32.mrf.mxu0
      %v1593 = vadd.f32 0.0, %v1592
      %v1594 = vpop.f32.mrf.mxu0
      %1595 = vmatprep.mubr.bf16.mxu0 0
      %1596 = vmatmul.mubr.bf16.gmra.mxu0 %v1499
      %v1597 = vpop.f32.mrf.mxu0
      %v1598 = vadd.f32 0.0, %v1597
      %v1599 = vpop.f32.mrf.mxu0
      %v1600 = vpop.f32.mrf.mxu0
      %v1601 = vadd.f32 0.0, %v1600
      %v1602 = vpop.f32.mrf.mxu0
      %1603 = vmatprep.mubr.bf16.mxu0 0
      %1604 = vmatmul.mubr.bf16.gmra.mxu0 %v1502
      %v1605 = vpop.f32.mrf.mxu0
      %v1606 = vadd.f32 0.0, %v1605
      %v1607 = vpop.f32.mrf.mxu0
      %v1608 = vpop.f32.mrf.mxu0
      %v1609 = vadd.f32 0.0, %v1608
      %v1610 = vpop.f32.mrf.mxu0
      %1611 = vdwg.mxu0
      %v1612 = vadd.f32 %v1431, %v1542
      %v1613 = vadd.f32 %v1432, %v1545
      %v1614 = vadd.f32 %v1433, %v1550
      %v1615 = vadd.f32 %v1434, %v1553
      %v1616 = vadd.f32 %v1435, %v1558
      %v1617 = vadd.f32 %v1436, %v1561
      %v1618 = vadd.f32 %v1437, %v1566
      %v1619 = vadd.f32 %v1438, %v1569
      %v1620 = vadd.f32 %v1439, %v1574
      %v1621 = vadd.f32 %v1440, %v1577
      %v1622 = vadd.f32 %v1441, %v1582
      %v1623 = vadd.f32 %v1442, %v1585
      %v1624 = vadd.f32 %v1443, %v1590
      %v1625 = vadd.f32 %v1444, %v1593
      %v1626 = vadd.f32 %v1445, %v1598
      %v1627 = vadd.f32 %v1446, %v1601
      %v1628 = vadd.f32 %v1447, %v1606
      %v1629 = vadd.f32 %v1448, %v1609
      %v1630 = vld [vmem:[%s207 + $0x26] sm:$0xff]
      %v1631 = vld [vmem:[%s207 + $0x2e] sm:$0xff]
      %v1632 = vld [vmem:[%s207 + $0x36] sm:$0xff]
      %v1633 = vld [vmem:[%s207 + $0x3e] sm:$0xff]
      %v1634 = vld [vmem:[%s207 + $0x46] sm:$0xff]
      %v1635 = vld [vmem:[%s207 + $0x4e] sm:$0xff]
      %v1636 = vld [vmem:[%s207 + $0x56] sm:$0xff]
      %v1637 = vld [vmem:[%s207 + $0x5e] sm:$0xff]
      %v1638 = vld [vmem:[%s207 + $0x66] sm:$0xff]
      %v1639 = vld [vmem:[%s207 + $0x6e] sm:$0xff]
      %v1640 = vld [vmem:[%s207 + $0x76] sm:$0xff]
      %v1641 = vld [vmem:[%s207 + $0x7e] sm:$0xff]
      %v1642 = vld [vmem:[%s207 + $0x86] sm:$0xff]
      %v1643 = vld [vmem:[%s207 + $0x8e] sm:$0xff]
      %v1644 = vld [vmem:[%s207 + $0x96] sm:$0xff]
      %v1645 = vld [vmem:[%s207 + $0x9e] sm:$0xff]
      %v1646 = vld [vmem:[%s207 + $0xa6] sm:$0xff]
      %v1647 = vld [vmem:[%s207 + $0xae] sm:$0xff]
      %v1648 = vld [vmem:[%s1 + $0x20] sm:$0xf]
      %v1649 = vpack.c.bf16 %v1631, %v1630
      %v1650 = vpack.c.bf16 %v1633, %v1632
      %v1651 = vpack.c.bf16 %v1635, %v1634
      %v1652 = vpack.c.bf16 %v1637, %v1636
      %v1653 = vpack.c.bf16 %v1639, %v1638
      %v1654 = vpack.c.bf16 %v1641, %v1640
      %v1655 = vpack.c.bf16 %v1643, %v1642
      %v1656 = vpack.c.bf16 %v1645, %v1644
      %v1657 = vpack.c.bf16 %v1647, %v1646
      %v1659 = vsel %vm272, %v1649, 0
      %v1662 = vsel %vm272, %v1650, 0
      %v1665 = vsel %vm272, %v1651, 0
      %v1668 = vsel %vm272, %v1652, 0
      %v1671 = vsel %vm272, %v1653, 0
      %v1674 = vsel %vm272, %v1654, 0
      %v1677 = vsel %vm272, %v1655, 0
      %v1680 = vsel %vm272, %v1656, 0
      %v1683 = vsel %vm272, %v1657, 0
      %v1686 = vsel %vm300, %v1648, 0
      %1688 = vmatprep.subr.bf16.mxu0 0
      %1689 = vmatpush1.bf16.msra.mxu0 0
      %1690 = vmatprep.subr.bf16.mxu0 0
      %1691 = vmatpush1.bf16.msra.mxu0 0
      %1692 = vmatprep.subr.bf16.mxu0 0
      %1693 = vmatpush1.bf16.msra.mxu0 0
      %1694 = vmatprep.subr.bf16.mxu0 0
      %1695 = vmatpush1.bf16.msra.mxu0 0
      %1696 = vmatprep.subr.bf16.mxu0 0
      %1697 = vmatpush1.bf16.msra.mxu0 0
      %1698 = vmatprep.subr.bf16.mxu0 0
      %1699 = vmatpush1.bf16.msra.mxu0 0
      %1700 = vmatprep.subr.bf16.mxu0 0
      %1701 = vmatpush1.bf16.msra.mxu0 0
      %1702 = vmatprep.subr.bf16.mxu0 0
      %1703 = vmatpush1.bf16.msra.mxu0 %v1686
      %1704 = vmatprep.subr.bf16.mxu0 0
      %1705 = vmatpush2.bf16.msra.mxu0 0
      %1706 = vmatprep.subr.bf16.mxu0 0
      %1707 = vmatpush2.bf16.msra.mxu0 0
      %1708 = vmatprep.subr.bf16.mxu0 0
      %1709 = vmatpush2.bf16.msra.mxu0 0
      %1710 = vmatprep.subr.bf16.mxu0 0
      %1711 = vmatpush2.bf16.msra.mxu0 0
      %1712 = vmatprep.subr.bf16.mxu0 0
      %1713 = vmatpush2.bf16.msra.mxu0 0
      %1714 = vmatprep.subr.bf16.mxu0 0
      %1715 = vmatpush2.bf16.msra.mxu0 0
      %1716 = vmatprep.subr.bf16.mxu0 0
      %1717 = vmatpush2.bf16.msra.mxu0 0
      %1718 = vmatprep.subr.bf16.mxu0 0
      %1719 = vmatpush2.bf16.msra.mxu0 0
      %1720 = vmatprep.mubr.bf16.mxu0 0
      %1721 = vmatmul.mubr.bf16.gmra.mxu0 %v1659
      %v1722 = vpop.f32.mrf.mxu0
      %v1723 = vadd.f32 0.0, %v1722
      %v1724 = vpop.f32.mrf.mxu0
      %v1725 = vpop.f32.mrf.mxu0
      %v1726 = vadd.f32 0.0, %v1725
      %v1727 = vpop.f32.mrf.mxu0
      %1728 = vmatprep.mubr.bf16.mxu0 0
      %1729 = vmatmul.mubr.bf16.gmra.mxu0 %v1662
      %v1730 = vpop.f32.mrf.mxu0
      %v1731 = vadd.f32 0.0, %v1730
      %v1732 = vpop.f32.mrf.mxu0
      %v1733 = vpop.f32.mrf.mxu0
      %v1734 = vadd.f32 0.0, %v1733
      %v1735 = vpop.f32.mrf.mxu0
      %1736 = vmatprep.mubr.bf16.mxu0 0
      %1737 = vmatmul.mubr.bf16.gmra.mxu0 %v1665
      %v1738 = vpop.f32.mrf.mxu0
      %v1739 = vadd.f32 0.0, %v1738
      %v1740 = vpop.f32.mrf.mxu0
      %v1741 = vpop.f32.mrf.mxu0
      %v1742 = vadd.f32 0.0, %v1741
      %v1743 = vpop.f32.mrf.mxu0
      %1744 = vmatprep.mubr.bf16.mxu0 0
      %1745 = vmatmul.mubr.bf16.gmra.mxu0 %v1668
      %v1746 = vpop.f32.mrf.mxu0
      %v1747 = vadd.f32 0.0, %v1746
      %v1748 = vpop.f32.mrf.mxu0
      %v1749 = vpop.f32.mrf.mxu0
      %v1750 = vadd.f32 0.0, %v1749
      %v1751 = vpop.f32.mrf.mxu0
      %1752 = vmatprep.mubr.bf16.mxu0 0
      %1753 = vmatmul.mubr.bf16.gmra.mxu0 %v1671
      %v1754 = vpop.f32.mrf.mxu0
      %v1755 = vadd.f32 0.0, %v1754
      %v1756 = vpop.f32.mrf.mxu0
      %v1757 = vpop.f32.mrf.mxu0
      %v1758 = vadd.f32 0.0, %v1757
      %v1759 = vpop.f32.mrf.mxu0
      %1760 = vmatprep.mubr.bf16.mxu0 0
      %1761 = vmatmul.mubr.bf16.gmra.mxu0 %v1674
      %v1762 = vpop.f32.mrf.mxu0
      %v1763 = vadd.f32 0.0, %v1762
      %v1764 = vpop.f32.mrf.mxu0
      %v1765 = vpop.f32.mrf.mxu0
      %v1766 = vadd.f32 0.0, %v1765
      %v1767 = vpop.f32.mrf.mxu0
      %1768 = vmatprep.mubr.bf16.mxu0 0
      %1769 = vmatmul.mubr.bf16.gmra.mxu0 %v1677
      %v1770 = vpop.f32.mrf.mxu0
      %v1771 = vadd.f32 0.0, %v1770
      %v1772 = vpop.f32.mrf.mxu0
      %v1773 = vpop.f32.mrf.mxu0
      %v1774 = vadd.f32 0.0, %v1773
      %v1775 = vpop.f32.mrf.mxu0
      %1776 = vmatprep.mubr.bf16.mxu0 0
      %1777 = vmatmul.mubr.bf16.gmra.mxu0 %v1680
      %v1778 = vpop.f32.mrf.mxu0
      %v1779 = vadd.f32 0.0, %v1778
      %v1780 = vpop.f32.mrf.mxu0
      %v1781 = vpop.f32.mrf.mxu0
      %v1782 = vadd.f32 0.0, %v1781
      %v1783 = vpop.f32.mrf.mxu0
      %1784 = vmatprep.mubr.bf16.mxu0 0
      %1785 = vmatmul.mubr.bf16.gmra.mxu0 %v1683
      %v1786 = vpop.f32.mrf.mxu0
      %v1787 = vadd.f32 0.0, %v1786
      %v1788 = vpop.f32.mrf.mxu0
      %v1789 = vpop.f32.mrf.mxu0
      %v1790 = vadd.f32 0.0, %v1789
      %v1791 = vpop.f32.mrf.mxu0
      %1792 = vdwg.mxu0
      %v1793 = vadd.f32 %v1612, %v1723
      %v1794 = vadd.f32 %v1613, %v1726
      %v1795 = vadd.f32 %v1614, %v1731
      %v1796 = vadd.f32 %v1615, %v1734
      %v1797 = vadd.f32 %v1616, %v1739
      %v1798 = vadd.f32 %v1617, %v1742
      %v1799 = vadd.f32 %v1618, %v1747
      %v1800 = vadd.f32 %v1619, %v1750
      %v1801 = vadd.f32 %v1620, %v1755
      %v1802 = vadd.f32 %v1621, %v1758
      %v1803 = vadd.f32 %v1622, %v1763
      %v1804 = vadd.f32 %v1623, %v1766
      %v1805 = vadd.f32 %v1624, %v1771
      %v1806 = vadd.f32 %v1625, %v1774
      %v1807 = vadd.f32 %v1626, %v1779
      %v1808 = vadd.f32 %v1627, %v1782
      %v1809 = vadd.f32 %v1628, %v1787
      %v1810 = vadd.f32 %v1629, %v1790
      %p1811 = scmp.eq.s32.totalorder %s19, 0
      %p1812 = scmp.eq.s32.totalorder %s20, 0
      %p1813 = pnand %p1811, %p1812
      %p1814 = pneg %p1813
      // Predicated region
      $region37: #{_lambda_.7} parent=35 // pred_check
        _
      $region38: #{_lambda_.7} parent=35 // pred_check_branch
        %1816 = sbr.rel (%p1813) target = $region40
      $region39: #{_lambda_.7} parent=35 // pred_region
        %vm1817 = vcmask 57344
        %1818 = vst.msk [vmem:[#allocation2] sm:$0x1] %vm1817, 0.0
        %1819 = vst.msk [vmem:[#allocation3] sm:$0x1] %vm1817, 0.0
      $region40: #{_lambda_.7} parent=35 // pred_fallthru
        _
      // Predicated region
      $region41: #{_lambda_.7} parent=35 // pred_check
        %p1820 = pneg %p1811
      $region42: #{_lambda_.7} parent=35 // pred_check_branch
        %1822 = sbr.rel (%p1820) target = $region44
      $region43: #{_lambda_.7} parent=35 // pred_region
        %v1823 = vlaneseq
        %v1824 = vshrl.u32 %v1823, 7
        %v1825 = vadd.s32 %v1824, 8
        %v1826 = vadd.s32 %v1824, 16
        %v1827 = vadd.s32 %v1824, 24
        %v1828 = vadd.s32 %v1824, 32
        %v1829 = vadd.s32 %v1824, 40
        %v1830 = vadd.s32 %v1824, 48
        %v1831 = vadd.s32 %v1824, 56
        %v1832 = vadd.s32 %v1824, 64
        %v1833 = vadd.s32 %v1824, 72
        %v1834 = vadd.s32 %v1824, 80
        %v1835 = vadd.s32 %v1824, 88
        %v1836 = vadd.s32 %v1824, 96
        %v1837 = vadd.s32 %v1824, 104
        %v1838 = vadd.s32 %v1824, 112
        %v1839 = vadd.s32 %v1824, 120
        %v1840 = vadd.s32 %v1824, 128
        %v1841 = vadd.s32 %v1824, 136
        %vm1842 = vcmp.lt.s32.totalorder %v1824, 0
        %v1843 = vsub.s32 0, %v1824
        %v1844 = vsel %vm1842, %v1843, %v1824
        %v1845 = vmul.u32.u64.compose %v1844, 3817748708
        %v1846 = vextract.low.u32 %v1845
        %v1847 = vextract.high.u32 %v1845
        %v1848 = vshrl.u32 %v1847, 4
        %v1849 = vmul.u32 %v1848, 18
        %v1850 = vsub.s32 %v1844, %v1849
        %v1851 = vsub.s32 0, %v1850
        %v1852 = vsel %vm1842, %v1851, %v1850
        %vm1853 = vcmp.lt.s32.totalorder %v1825, 0
        %v1854 = vsub.s32 0, %v1825
        %v1855 = vsel %vm1853, %v1854, %v1825
        %v1856 = vmul.u32.u64.compose %v1855, 3817748708
        %v1857 = vextract.low.u32 %v1856
        %v1858 = vextract.high.u32 %v1856
        %v1859 = vshrl.u32 %v1858, 4
        %v1860 = vmul.u32 %v1859, 18
        %v1861 = vsub.s32 %v1855, %v1860
        %v1862 = vsub.s32 0, %v1861
        %v1863 = vsel %vm1853, %v1862, %v1861
        %vm1864 = vcmp.lt.s32.totalorder %v1826, 0
        %v1865 = vsub.s32 0, %v1826
        %v1866 = vsel %vm1864, %v1865, %v1826
        %v1867 = vmul.u32.u64.compose %v1866, 3817748708
        %v1868 = vextract.low.u32 %v1867
        %v1869 = vextract.high.u32 %v1867
        %v1870 = vshrl.u32 %v1869, 4
        %v1871 = vmul.u32 %v1870, 18
        %v1872 = vsub.s32 %v1866, %v1871
        %v1873 = vsub.s32 0, %v1872
        %v1874 = vsel %vm1864, %v1873, %v1872
        %vm1875 = vcmp.lt.s32.totalorder %v1827, 0
        %v1876 = vsub.s32 0, %v1827
        %v1877 = vsel %vm1875, %v1876, %v1827
        %v1878 = vmul.u32.u64.compose %v1877, 3817748708
        %v1879 = vextract.low.u32 %v1878
        %v1880 = vextract.high.u32 %v1878
        %v1881 = vshrl.u32 %v1880, 4
        %v1882 = vmul.u32 %v1881, 18
        %v1883 = vsub.s32 %v1877, %v1882
        %v1884 = vsub.s32 0, %v1883
        %v1885 = vsel %vm1875, %v1884, %v1883
        %vm1886 = vcmp.lt.s32.totalorder %v1828, 0
        %v1887 = vsub.s32 0, %v1828
        %v1888 = vsel %vm1886, %v1887, %v1828
        %v1889 = vmul.u32.u64.compose %v1888, 3817748708
        %v1890 = vextract.low.u32 %v1889
        %v1891 = vextract.high.u32 %v1889
        %v1892 = vshrl.u32 %v1891, 4
        %v1893 = vmul.u32 %v1892, 18
        %v1894 = vsub.s32 %v1888, %v1893
        %v1895 = vsub.s32 0, %v1894
        %v1896 = vsel %vm1886, %v1895, %v1894
        %vm1897 = vcmp.lt.s32.totalorder %v1829, 0
        %v1898 = vsub.s32 0, %v1829
        %v1899 = vsel %vm1897, %v1898, %v1829
        %v1900 = vmul.u32.u64.compose %v1899, 3817748708
        %v1901 = vextract.low.u32 %v1900
        %v1902 = vextract.high.u32 %v1900
        %v1903 = vshrl.u32 %v1902, 4
        %v1904 = vmul.u32 %v1903, 18
        %v1905 = vsub.s32 %v1899, %v1904
        %v1906 = vsub.s32 0, %v1905
        %v1907 = vsel %vm1897, %v1906, %v1905
        %vm1908 = vcmp.lt.s32.totalorder %v1830, 0
        %v1909 = vsub.s32 0, %v1830
        %v1910 = vsel %vm1908, %v1909, %v1830
        %v1911 = vmul.u32.u64.compose %v1910, 3817748708
        %v1912 = vextract.low.u32 %v1911
        %v1913 = vextract.high.u32 %v1911
        %v1914 = vshrl.u32 %v1913, 4
        %v1915 = vmul.u32 %v1914, 18
        %v1916 = vsub.s32 %v1910, %v1915
        %v1917 = vsub.s32 0, %v1916
        %v1918 = vsel %vm1908, %v1917, %v1916
        %vm1919 = vcmp.lt.s32.totalorder %v1831, 0
        %v1920 = vsub.s32 0, %v1831
        %v1921 = vsel %vm1919, %v1920, %v1831
        %v1922 = vmul.u32.u64.compose %v1921, 3817748708
        %v1923 = vextract.low.u32 %v1922
        %v1924 = vextract.high.u32 %v1922
        %v1925 = vshrl.u32 %v1924, 4
        %v1926 = vmul.u32 %v1925, 18
        %v1927 = vsub.s32 %v1921, %v1926
        %v1928 = vsub.s32 0, %v1927
        %v1929 = vsel %vm1919, %v1928, %v1927
        %vm1930 = vcmp.lt.s32.totalorder %v1832, 0
        %v1931 = vsub.s32 0, %v1832
        %v1932 = vsel %vm1930, %v1931, %v1832
        %v1933 = vmul.u32.u64.compose %v1932, 3817748708
        %v1934 = vextract.low.u32 %v1933
        %v1935 = vextract.high.u32 %v1933
        %v1936 = vshrl.u32 %v1935, 4
        %v1937 = vmul.u32 %v1936, 18
        %v1938 = vsub.s32 %v1932, %v1937
        %v1939 = vsub.s32 0, %v1938
        %v1940 = vsel %vm1930, %v1939, %v1938
        %vm1941 = vcmp.lt.s32.totalorder %v1833, 0
        %v1942 = vsub.s32 0, %v1833
        %v1943 = vsel %vm1941, %v1942, %v1833
        %v1944 = vmul.u32.u64.compose %v1943, 3817748708
        %v1945 = vextract.low.u32 %v1944
        %v1946 = vextract.high.u32 %v1944
        %v1947 = vshrl.u32 %v1946, 4
        %v1948 = vmul.u32 %v1947, 18
        %v1949 = vsub.s32 %v1943, %v1948
        %v1950 = vsub.s32 0, %v1949
        %v1951 = vsel %vm1941, %v1950, %v1949
        %vm1952 = vcmp.lt.s32.totalorder %v1834, 0
        %v1953 = vsub.s32 0, %v1834
        %v1954 = vsel %vm1952, %v1953, %v1834
        %v1955 = vmul.u32.u64.compose %v1954, 3817748708
        %v1956 = vextract.low.u32 %v1955
        %v1957 = vextract.high.u32 %v1955
        %v1958 = vshrl.u32 %v1957, 4
        %v1959 = vmul.u32 %v1958, 18
        %v1960 = vsub.s32 %v1954, %v1959
        %v1961 = vsub.s32 0, %v1960
        %v1962 = vsel %vm1952, %v1961, %v1960
        %vm1963 = vcmp.lt.s32.totalorder %v1835, 0
        %v1964 = vsub.s32 0, %v1835
        %v1965 = vsel %vm1963, %v1964, %v1835
        %v1966 = vmul.u32.u64.compose %v1965, 3817748708
        %v1967 = vextract.low.u32 %v1966
        %v1968 = vextract.high.u32 %v1966
        %v1969 = vshrl.u32 %v1968, 4
        %v1970 = vmul.u32 %v1969, 18
        %v1971 = vsub.s32 %v1965, %v1970
        %v1972 = vsub.s32 0, %v1971
        %v1973 = vsel %vm1963, %v1972, %v1971
        %vm1974 = vcmp.lt.s32.totalorder %v1836, 0
        %v1975 = vsub.s32 0, %v1836
        %v1976 = vsel %vm1974, %v1975, %v1836
        %v1977 = vmul.u32.u64.compose %v1976, 3817748708
        %v1978 = vextract.low.u32 %v1977
        %v1979 = vextract.high.u32 %v1977
        %v1980 = vshrl.u32 %v1979, 4
        %v1981 = vmul.u32 %v1980, 18
        %v1982 = vsub.s32 %v1976, %v1981
        %v1983 = vsub.s32 0, %v1982
        %v1984 = vsel %vm1974, %v1983, %v1982
        %vm1985 = vcmp.lt.s32.totalorder %v1837, 0
        %v1986 = vsub.s32 0, %v1837
        %v1987 = vsel %vm1985, %v1986, %v1837
        %v1988 = vmul.u32.u64.compose %v1987, 3817748708
        %v1989 = vextract.low.u32 %v1988
        %v1990 = vextract.high.u32 %v1988
        %v1991 = vshrl.u32 %v1990, 4
        %v1992 = vmul.u32 %v1991, 18
        %v1993 = vsub.s32 %v1987, %v1992
        %v1994 = vsub.s32 0, %v1993
        %v1995 = vsel %vm1985, %v1994, %v1993
        %vm1996 = vcmp.lt.s32.totalorder %v1838, 0
        %v1997 = vsub.s32 0, %v1838
        %v1998 = vsel %vm1996, %v1997, %v1838
        %v1999 = vmul.u32.u64.compose %v1998, 3817748708
        %v2000 = vextract.low.u32 %v1999
        %v2001 = vextract.high.u32 %v1999
        %v2002 = vshrl.u32 %v2001, 4
        %v2003 = vmul.u32 %v2002, 18
        %v2004 = vsub.s32 %v1998, %v2003
        %v2005 = vsub.s32 0, %v2004
        %v2006 = vsel %vm1996, %v2005, %v2004
        %vm2007 = vcmp.lt.s32.totalorder %v1839, 0
        %v2008 = vsub.s32 0, %v1839
        %v2009 = vsel %vm2007, %v2008, %v1839
        %v2010 = vmul.u32.u64.compose %v2009, 3817748708
        %v2011 = vextract.low.u32 %v2010
        %v2012 = vextract.high.u32 %v2010
        %v2013 = vshrl.u32 %v2012, 4
        %v2014 = vmul.u32 %v2013, 18
        %v2015 = vsub.s32 %v2009, %v2014
        %v2016 = vsub.s32 0, %v2015
        %v2017 = vsel %vm2007, %v2016, %v2015
        %vm2018 = vcmp.lt.s32.totalorder %v1840, 0
        %v2019 = vsub.s32 0, %v1840
        %v2020 = vsel %vm2018, %v2019, %v1840
        %v2021 = vmul.u32.u64.compose %v2020, 3817748708
        %v2022 = vextract.low.u32 %v2021
        %v2023 = vextract.high.u32 %v2021
        %v2024 = vshrl.u32 %v2023, 4
        %v2025 = vmul.u32 %v2024, 18
        %v2026 = vsub.s32 %v2020, %v2025
        %v2027 = vsub.s32 0, %v2026
        %v2028 = vsel %vm2018, %v2027, %v2026
        %vm2029 = vcmp.lt.s32.totalorder %v1841, 0
        %v2030 = vsub.s32 0, %v1841
        %v2031 = vsel %vm2029, %v2030, %v1841
        %v2032 = vmul.u32.u64.compose %v2031, 3817748708
        %v2033 = vextract.low.u32 %v2032
        %v2034 = vextract.high.u32 %v2032
        %v2035 = vshrl.u32 %v2034, 4
        %v2036 = vmul.u32 %v2035, 18
        %v2037 = vsub.s32 %v2031, %v2036
        %v2038 = vsub.s32 0, %v2037
        %v2039 = vsel %vm2029, %v2038, %v2037
        %vm2040 = vcmp.ne.s32.totalorder %v1852, 0
        %vm2041 = vcmp.ne.s32.totalorder %v1863, 0
        %vm2042 = vcmp.ne.s32.totalorder %v1874, 0
        %vm2043 = vcmp.ne.s32.totalorder %v1885, 0
        %vm2044 = vcmp.ne.s32.totalorder %v1896, 0
        %vm2045 = vcmp.ne.s32.totalorder %v1907, 0
        %vm2046 = vcmp.ne.s32.totalorder %v1918, 0
        %vm2047 = vcmp.ne.s32.totalorder %v1929, 0
        %vm2048 = vcmp.ne.s32.totalorder %v1940, 0
        %vm2049 = vcmp.ne.s32.totalorder %v1951, 0
        %vm2050 = vcmp.ne.s32.totalorder %v1962, 0
        %vm2051 = vcmp.ne.s32.totalorder %v1973, 0
        %vm2052 = vcmp.ne.s32.totalorder %v1984, 0
        %vm2053 = vcmp.ne.s32.totalorder %v1995, 0
        %vm2054 = vcmp.ne.s32.totalorder %v2006, 0
        %vm2055 = vcmp.ne.s32.totalorder %v2017, 0
        %vm2056 = vcmp.ne.s32.totalorder %v2028, 0
        %vm2057 = vcmp.ne.s32.totalorder %v2039, 0
        %vm2058 = vcmp.lt.s32.totalorder %v1852, 0
        %vm2059 = vcmp.lt.s32.totalorder %v1863, 0
        %vm2060 = vcmp.lt.s32.totalorder %v1874, 0
        %vm2061 = vcmp.lt.s32.totalorder %v1885, 0
        %vm2062 = vcmp.lt.s32.totalorder %v1896, 0
        %vm2063 = vcmp.lt.s32.totalorder %v1907, 0
        %vm2064 = vcmp.lt.s32.totalorder %v1918, 0
        %vm2065 = vcmp.lt.s32.totalorder %v1929, 0
        %vm2066 = vcmp.lt.s32.totalorder %v1940, 0
        %vm2067 = vcmp.lt.s32.totalorder %v1951, 0
        %vm2068 = vcmp.lt.s32.totalorder %v1962, 0
        %vm2069 = vcmp.lt.s32.totalorder %v1973, 0
        %vm2070 = vcmp.lt.s32.totalorder %v1984, 0
        %vm2071 = vcmp.lt.s32.totalorder %v1995, 0
        %vm2072 = vcmp.lt.s32.totalorder %v2006, 0
        %vm2073 = vcmp.lt.s32.totalorder %v2017, 0
        %vm2074 = vcmp.lt.s32.totalorder %v2028, 0
        %vm2075 = vcmp.lt.s32.totalorder %v2039, 0
        %vm2076 = vmand %vm2058, %vm2040
        %vm2077 = vmand %vm2059, %vm2041
        %vm2078 = vmand %vm2060, %vm2042
        %vm2079 = vmand %vm2061, %vm2043
        %vm2080 = vmand %vm2062, %vm2044
        %vm2081 = vmand %vm2063, %vm2045
        %vm2082 = vmand %vm2064, %vm2046
        %vm2083 = vmand %vm2065, %vm2047
        %vm2084 = vmand %vm2066, %vm2048
        %vm2085 = vmand %vm2067, %vm2049
        %vm2086 = vmand %vm2068, %vm2050
        %vm2087 = vmand %vm2069, %vm2051
        %vm2088 = vmand %vm2070, %vm2052
        %vm2089 = vmand %vm2071, %vm2053
        %vm2090 = vmand %vm2072, %vm2054
        %vm2091 = vmand %vm2073, %vm2055
        %vm2092 = vmand %vm2074, %vm2056
        %vm2093 = vmand %vm2075, %vm2057
        %v2094 = vadd.s32 %v1852, 18
        %v2095 = vadd.s32 %v1863, 18
        %v2096 = vadd.s32 %v1874, 18
        %v2097 = vadd.s32 %v1885, 18
        %v2098 = vadd.s32 %v1896, 18
        %v2099 = vadd.s32 %v1907, 18
        %v2100 = vadd.s32 %v1918, 18
        %v2101 = vadd.s32 %v1929, 18
        %v2102 = vadd.s32 %v1940, 18
        %v2103 = vadd.s32 %v1951, 18
        %v2104 = vadd.s32 %v1962, 18
        %v2105 = vadd.s32 %v1973, 18
        %v2106 = vadd.s32 %v1984, 18
        %v2107 = vadd.s32 %v1995, 18
        %v2108 = vadd.s32 %v2006, 18
        %v2109 = vadd.s32 %v2017, 18
        %v2110 = vadd.s32 %v2028, 18
        %v2111 = vadd.s32 %v2039, 18
        %v2112 = vsel %vm2076, %v2094, %v1852
        %v2113 = vsel %vm2077, %v2095, %v1863
        %v2114 = vsel %vm2078, %v2096, %v1874
        %v2115 = vsel %vm2079, %v2097, %v1885
        %v2116 = vsel %vm2080, %v2098, %v1896
        %v2117 = vsel %vm2081, %v2099, %v1907
        %v2118 = vsel %vm2082, %v2100, %v1918
        %v2119 = vsel %vm2083, %v2101, %v1929
        %v2120 = vsel %vm2084, %v2102, %v1940
        %v2121 = vsel %vm2085, %v2103, %v1951
        %v2122 = vsel %vm2086, %v2104, %v1962
        %v2123 = vsel %vm2087, %v2105, %v1973
        %v2124 = vsel %vm2088, %v2106, %v1984
        %v2125 = vsel %vm2089, %v2107, %v1995
        %v2126 = vsel %vm2090, %v2108, %v2006
        %v2127 = vsel %vm2091, %v2109, %v2017
        %v2128 = vsel %vm2092, %v2110, %v2028
        %v2129 = vsel %vm2093, %v2111, %v2039
        %vm2130 = vcmp.lt.s32.totalorder %v2112, 16
        %vm2131 = vcmp.lt.s32.totalorder %v2113, 16
        %vm2132 = vcmp.lt.s32.totalorder %v2114, 16
        %vm2133 = vcmp.lt.s32.totalorder %v2115, 16
        %vm2134 = vcmp.lt.s32.totalorder %v2116, 16
        %vm2135 = vcmp.lt.s32.totalorder %v2117, 16
        %vm2136 = vcmp.lt.s32.totalorder %v2118, 16
        %vm2137 = vcmp.lt.s32.totalorder %v2119, 16
        %vm2138 = vcmp.lt.s32.totalorder %v2120, 16
        %vm2139 = vcmp.lt.s32.totalorder %v2121, 16
        %vm2140 = vcmp.lt.s32.totalorder %v2122, 16
        %vm2141 = vcmp.lt.s32.totalorder %v2123, 16
        %vm2142 = vcmp.lt.s32.totalorder %v2124, 16
        %vm2143 = vcmp.lt.s32.totalorder %v2125, 16
        %vm2144 = vcmp.lt.s32.totalorder %v2126, 16
        %vm2145 = vcmp.lt.s32.totalorder %v2127, 16
        %vm2146 = vcmp.lt.s32.totalorder %v2128, 16
        %vm2147 = vcmp.lt.s32.totalorder %v2129, 16
        %v2148 = vsel %vm2130, 1, 0
        %v2149 = vsel %vm2131, 1, 0
        %v2150 = vsel %vm2132, 1, 0
        %v2151 = vsel %vm2133, 1, 0
        %v2152 = vsel %vm2134, 1, 0
        %v2153 = vsel %vm2135, 1, 0
        %v2154 = vsel %vm2136, 1, 0
        %v2155 = vsel %vm2137, 1, 0
        %v2156 = vsel %vm2138, 1, 0
        %v2157 = vsel %vm2139, 1, 0
        %v2158 = vsel %vm2140, 1, 0
        %v2159 = vsel %vm2141, 1, 0
        %v2160 = vsel %vm2142, 1, 0
        %v2161 = vsel %vm2143, 1, 0
        %v2162 = vsel %vm2144, 1, 0
        %v2163 = vsel %vm2145, 1, 0
        %v2164 = vsel %vm2146, 1, 0
        %v2165 = vsel %vm2147, 1, 0
        %vm2166 = vcmp.eq.s32.totalorder %v2148, 1
        %vm2167 = vcmp.eq.s32.totalorder %v2149, 1
        %vm2168 = vcmp.eq.s32.totalorder %v2150, 1
        %vm2169 = vcmp.eq.s32.totalorder %v2151, 1
        %vm2170 = vcmp.eq.s32.totalorder %v2152, 1
        %vm2171 = vcmp.eq.s32.totalorder %v2153, 1
        %vm2172 = vcmp.eq.s32.totalorder %v2154, 1
        %vm2173 = vcmp.eq.s32.totalorder %v2155, 1
        %vm2174 = vcmp.eq.s32.totalorder %v2156, 1
        %vm2175 = vcmp.eq.s32.totalorder %v2157, 1
        %vm2176 = vcmp.eq.s32.totalorder %v2158, 1
        %vm2177 = vcmp.eq.s32.totalorder %v2159, 1
        %vm2178 = vcmp.eq.s32.totalorder %v2160, 1
        %vm2179 = vcmp.eq.s32.totalorder %v2161, 1
        %vm2180 = vcmp.eq.s32.totalorder %v2162, 1
        %vm2181 = vcmp.eq.s32.totalorder %v2163, 1
        %vm2182 = vcmp.eq.s32.totalorder %v2164, 1
        %vm2183 = vcmp.eq.s32.totalorder %v2165, 1
        %v2184 = vsel %vm2166, %v1793, 0.0
        %v2185 = vsel %vm2167, %v1794, 0.0
        %v2186 = vsel %vm2168, %v1795, 0.0
        %v2187 = vsel %vm2169, %v1796, 0.0
        %v2188 = vsel %vm2170, %v1797, 0.0
        %v2189 = vsel %vm2171, %v1798, 0.0
        %v2190 = vsel %vm2172, %v1799, 0.0
        %v2191 = vsel %vm2173, %v1800, 0.0
        %v2192 = vsel %vm2174, %v1801, 0.0
        %v2193 = vsel %vm2175, %v1802, 0.0
        %v2194 = vsel %vm2176, %v1803, 0.0
        %v2195 = vsel %vm2177, %v1804, 0.0
        %v2196 = vsel %vm2178, %v1805, 0.0
        %v2197 = vsel %vm2179, %v1806, 0.0
        %v2198 = vsel %vm2180, %v1807, 0.0
        %v2199 = vsel %vm2181, %v1808, 0.0
        %v2200 = vsel %vm2182, %v1809, 0.0
        %v2201 = vsel %vm2183, %v1810, 0.0
        %v2202 = vld [vmem:[#allocation2] sm:$0x1]
        %v2203 = vsel %vm272, %v2184, 0.0
        %v2204 = vsel %vm272, %v2185, 0.0
        %v2205 = vadd.f32 %v2203, %v2204
        %v2206 = vsel %vm272, %v2186, 0.0
        %v2207 = vadd.f32 %v2205, %v2206
        %v2208 = vsel %vm272, %v2187, 0.0
        %v2209 = vadd.f32 %v2207, %v2208
        %v2210 = vsel %vm272, %v2188, 0.0
        %v2211 = vadd.f32 %v2209, %v2210
        %v2212 = vsel %vm272, %v2189, 0.0
        %v2213 = vadd.f32 %v2211, %v2212
        %v2214 = vsel %vm272, %v2190, 0.0
        %v2215 = vadd.f32 %v2213, %v2214
        %v2216 = vsel %vm272, %v2191, 0.0
        %v2217 = vadd.f32 %v2215, %v2216
        %v2218 = vsel %vm272, %v2192, 0.0
        %v2219 = vadd.f32 %v2217, %v2218
        %v2220 = vsel %vm272, %v2193, 0.0
        %v2221 = vadd.f32 %v2219, %v2220
        %v2222 = vsel %vm272, %v2194, 0.0
        %v2223 = vadd.f32 %v2221, %v2222
        %v2224 = vsel %vm272, %v2195, 0.0
        %v2225 = vadd.f32 %v2223, %v2224
        %v2226 = vsel %vm272, %v2196, 0.0
        %v2227 = vadd.f32 %v2225, %v2226
        %v2228 = vsel %vm272, %v2197, 0.0
        %v2229 = vadd.f32 %v2227, %v2228
        %v2230 = vsel %vm272, %v2198, 0.0
        %v2231 = vadd.f32 %v2229, %v2230
        %v2232 = vsel %vm272, %v2199, 0.0
        %v2233 = vadd.f32 %v2231, %v2232
        %v2234 = vsel %vm272, %v2200, 0.0
        %v2235 = vadd.f32 %v2233, %v2234
        %v2236 = vsel %vm272, %v2201, 0.0
        %v2237 = vadd.f32 %v2235, %v2236
        %v2238 = vrot.slane %v2237, 4
        %v2239 = vadd.f32 %v2237, %v2238
        %v2240 = vrot.slane %v2239, 2
        %v2241 = vadd.f32 %v2239, %v2240
        %v2242 = vrot.slane %v2241, 1
        %v2243 = vadd.f32 %v2241, %v2242
        %v2244 = vadd.f32 %v2202, %v2243
        %vm2245 = vcmask 57344
        %2246 = vst.msk [vmem:[#allocation2] sm:$0x1] %vm2245, %v2244
        %v2247 = vld [vmem:[#allocation3] sm:$0x1]
        %v2248 = vmul.f32 %v2184, %v2184
        %v2249 = vmul.f32 %v2185, %v2185
        %v2250 = vmul.f32 %v2186, %v2186
        %v2251 = vmul.f32 %v2187, %v2187
        %v2252 = vmul.f32 %v2188, %v2188
        %v2253 = vmul.f32 %v2189, %v2189
        %v2254 = vmul.f32 %v2190, %v2190
        %v2255 = vmul.f32 %v2191, %v2191
        %v2256 = vmul.f32 %v2192, %v2192
        %v2257 = vmul.f32 %v2193, %v2193
        %v2258 = vmul.f32 %v2194, %v2194
        %v2259 = vmul.f32 %v2195, %v2195
        %v2260 = vmul.f32 %v2196, %v2196
        %v2261 = vmul.f32 %v2197, %v2197
        %v2262 = vmul.f32 %v2198, %v2198
        %v2263 = vmul.f32 %v2199, %v2199
        %v2264 = vmul.f32 %v2200, %v2200
        %v2265 = vmul.f32 %v2201, %v2201
        %v2266 = vsel %vm272, %v2248, 0.0
        %v2267 = vsel %vm272, %v2249, 0.0
        %v2268 = vadd.f32 %v2266, %v2267
        %v2269 = vsel %vm272, %v2250, 0.0
        %v2270 = vadd.f32 %v2268, %v2269
        %v2271 = vsel %vm272, %v2251, 0.0
        %v2272 = vadd.f32 %v2270, %v2271
        %v2273 = vsel %vm272, %v2252, 0.0
        %v2274 = vadd.f32 %v2272, %v2273
        %v2275 = vsel %vm272, %v2253, 0.0
        %v2276 = vadd.f32 %v2274, %v2275
        %v2277 = vsel %vm272, %v2254, 0.0
        %v2278 = vadd.f32 %v2276, %v2277
        %v2279 = vsel %vm272, %v2255, 0.0
        %v2280 = vadd.f32 %v2278, %v2279
        %v2281 = vsel %vm272, %v2256, 0.0
        %v2282 = vadd.f32 %v2280, %v2281
        %v2283 = vsel %vm272, %v2257, 0.0
        %v2284 = vadd.f32 %v2282, %v2283
        %v2285 = vsel %vm272, %v2258, 0.0
        %v2286 = vadd.f32 %v2284, %v2285
        %v2287 = vsel %vm272, %v2259, 0.0
        %v2288 = vadd.f32 %v2286, %v2287
        %v2289 = vsel %vm272, %v2260, 0.0
        %v2290 = vadd.f32 %v2288, %v2289
        %v2291 = vsel %vm272, %v2261, 0.0
        %v2292 = vadd.f32 %v2290, %v2291
        %v2293 = vsel %vm272, %v2262, 0.0
        %v2294 = vadd.f32 %v2292, %v2293
        %v2295 = vsel %vm272, %v2263, 0.0
        %v2296 = vadd.f32 %v2294, %v2295
        %v2297 = vsel %vm272, %v2264, 0.0
        %v2298 = vadd.f32 %v2296, %v2297
        %v2299 = vsel %vm272, %v2265, 0.0
        %v2300 = vadd.f32 %v2298, %v2299
        %v2301 = vrot.slane %v2300, 4
        %v2302 = vadd.f32 %v2300, %v2301
        %v2303 = vrot.slane %v2302, 2
        %v2304 = vadd.f32 %v2302, %v2303
        %v2305 = vrot.slane %v2304, 1
        %v2306 = vadd.f32 %v2304, %v2305
        %v2307 = vadd.f32 %v2247, %v2306
        %2308 = vst.msk [vmem:[#allocation3] sm:$0x1] %vm2245, %v2307
      $region44: #{_lambda_.7} parent=35 // pred_fallthru
        _
      %p2309 = scmp.eq.s32.totalorder %s19, 1
      // Predicated region
      $region45: #{_lambda_.7} parent=35 // pred_check
        %p2310 = pneg %p2309
      $region46: #{_lambda_.7} parent=35 // pred_check_branch
        %2312 = sbr.rel (%p2310) target = $region48
      $region47: #{_lambda_.7} parent=35 // pred_region
        %v2313 = vld [vmem:[#allocation2] sm:$0x1]
        %v2314 = vmul.f32 %v2313, 0.001953125
        %v2315 = vld [vmem:[#allocation3] sm:$0x1]
        %v2316 = vmul.f32 %v2315, 0.001953125
        %v2317 = vmul.f32 %v2314, %v2314
        %v2318 = vsub.f32 %v2316, %v2317
        %v2319 = vmax.f32 %v2318, 0.0
        %v2320 = vadd.f32 %v2319, 1e-05
        %v2321 = vrsqrt.pop %v2320
        %v2322 = vld [vmem:[%s2] sm:$0x1]
        %v2323 = vmul.f32 %v2321, %v2322
        %v2325 = vlaneseq
        %v2326 = vshrl.u32 %v2325, 7
        %v2327 = vsub.s32 0, %v2326
        %v2328 = vrot.slane %v2314, %v2327
        %v2330 = vsub.f32 %v1793, %v2328
        %v2331 = vsub.f32 %v1794, %v2328
        %v2332 = vsub.f32 %v1795, %v2328
        %v2333 = vsub.f32 %v1796, %v2328
        %v2334 = vsub.f32 %v1797, %v2328
        %v2335 = vsub.f32 %v1798, %v2328
        %v2336 = vsub.f32 %v1799, %v2328
        %v2337 = vsub.f32 %v1800, %v2328
        %v2338 = vsub.f32 %v1801, %v2328
        %v2339 = vsub.f32 %v1802, %v2328
        %v2340 = vsub.f32 %v1803, %v2328
        %v2341 = vsub.f32 %v1804, %v2328
        %v2342 = vsub.f32 %v1805, %v2328
        %v2343 = vsub.f32 %v1806, %v2328
        %v2344 = vsub.f32 %v1807, %v2328
        %v2345 = vsub.f32 %v1808, %v2328
        %v2346 = vsub.f32 %v1809, %v2328
        %v2347 = vsub.f32 %v1810, %v2328
        %v2349 = vlaneseq
        %v2350 = vshrl.u32 %v2349, 7
        %v2351 = vsub.s32 0, %v2350
        %v2352 = vrot.slane %v2323, %v2351
        %v2354 = vmul.f32 %v2330, %v2352
        %v2355 = vmul.f32 %v2331, %v2352
        %v2356 = vmul.f32 %v2332, %v2352
        %v2357 = vmul.f32 %v2333, %v2352
        %v2358 = vmul.f32 %v2334, %v2352
        %v2359 = vmul.f32 %v2335, %v2352
        %v2360 = vmul.f32 %v2336, %v2352
        %v2361 = vmul.f32 %v2337, %v2352
        %v2362 = vmul.f32 %v2338, %v2352
        %v2363 = vmul.f32 %v2339, %v2352
        %v2364 = vmul.f32 %v2340, %v2352
        %v2365 = vmul.f32 %v2341, %v2352
        %v2366 = vmul.f32 %v2342, %v2352
        %v2367 = vmul.f32 %v2343, %v2352
        %v2368 = vmul.f32 %v2344, %v2352
        %v2369 = vmul.f32 %v2345, %v2352
        %v2370 = vmul.f32 %v2346, %v2352
        %v2371 = vmul.f32 %v2347, %v2352
        %v2372 = vld [vmem:[%s3] sm:$0x1]
        %v2374 = vlaneseq
        %v2375 = vshrl.u32 %v2374, 7
        %v2376 = vsub.s32 0, %v2375
        %v2377 = vrot.slane %v2372, %v2376
        %v2379 = vadd.f32 %v2354, %v2377
        %v2380 = vadd.f32 %v2355, %v2377
        %v2381 = vadd.f32 %v2356, %v2377
        %v2382 = vadd.f32 %v2357, %v2377
        %v2383 = vadd.f32 %v2358, %v2377
        %v2384 = vadd.f32 %v2359, %v2377
        %v2385 = vadd.f32 %v2360, %v2377
        %v2386 = vadd.f32 %v2361, %v2377
        %v2387 = vadd.f32 %v2362, %v2377
        %v2388 = vadd.f32 %v2363, %v2377
        %v2389 = vadd.f32 %v2364, %v2377
        %v2390 = vadd.f32 %v2365, %v2377
        %v2391 = vadd.f32 %v2366, %v2377
        %v2392 = vadd.f32 %v2367, %v2377
        %v2393 = vadd.f32 %v2368, %v2377
        %v2394 = vadd.f32 %v2369, %v2377
        %v2395 = vadd.f32 %v2370, %v2377
        %v2396 = vadd.f32 %v2371, %v2377
        %v2397 = vmax.f32 %v2379, 0.0
        %v2398 = vmax.f32 %v2380, 0.0
        %v2399 = vmax.f32 %v2381, 0.0
        %v2400 = vmax.f32 %v2382, 0.0
        %v2401 = vmax.f32 %v2383, 0.0
        %v2402 = vmax.f32 %v2384, 0.0
        %v2403 = vmax.f32 %v2385, 0.0
        %v2404 = vmax.f32 %v2386, 0.0
        %v2405 = vmax.f32 %v2387, 0.0
        %v2406 = vmax.f32 %v2388, 0.0
        %v2407 = vmax.f32 %v2389, 0.0
        %v2408 = vmax.f32 %v2390, 0.0
        %v2409 = vmax.f32 %v2391, 0.0
        %v2410 = vmax.f32 %v2392, 0.0
        %v2411 = vmax.f32 %v2393, 0.0
        %v2412 = vmax.f32 %v2394, 0.0
        %v2413 = vmax.f32 %v2395, 0.0
        %v2414 = vmax.f32 %v2396, 0.0
        %v2415 = vadd.f32 %v2397, %v906
        %v2416 = vadd.f32 %v2398, %v907
        %v2417 = vadd.f32 %v2399, %v908
        %v2418 = vadd.f32 %v2400, %v909
        %v2419 = vadd.f32 %v2401, %v910
        %v2420 = vadd.f32 %v2402, %v911
        %v2421 = vadd.f32 %v2403, %v912
        %v2422 = vadd.f32 %v2404, %v913
        %v2423 = vadd.f32 %v2405, %v914
        %v2424 = vadd.f32 %v2406, %v915
        %v2425 = vadd.f32 %v2407, %v916
        %v2426 = vadd.f32 %v2408, %v917
        %v2427 = vadd.f32 %v2409, %v918
        %v2428 = vadd.f32 %v2410, %v919
        %v2429 = vadd.f32 %v2411, %v920
        %v2430 = vadd.f32 %v2412, %v921
        %v2431 = vadd.f32 %v2413, %v922
        %v2432 = vadd.f32 %v2414, %v923
        %2433 = vst.msk [vmem:[%s213] sm:$0xff] %vm272, %v2415
        %2434 = vst.msk [vmem:[%s213 + $0x8] sm:$0xff] %vm272, %v2416
        %2435 = vst.msk [vmem:[%s213 + $0x10] sm:$0xff] %vm272, %v2417
        %2436 = vst.msk [vmem:[%s213 + $0x18] sm:$0xff] %vm272, %v2418
        %2437 = vst.msk [vmem:[%s213 + $0x20] sm:$0xff] %vm272, %v2419
        %2438 = vst.msk [vmem:[%s213 + $0x28] sm:$0xff] %vm272, %v2420
        %2439 = vst.msk [vmem:[%s213 + $0x30] sm:$0xff] %vm272, %v2421
        %2440 = vst.msk [vmem:[%s213 + $0x38] sm:$0xff] %vm272, %v2422
        %2441 = vst.msk [vmem:[%s213 + $0x40] sm:$0xff] %vm272, %v2423
        %2442 = vst.msk [vmem:[%s213 + $0x48] sm:$0xff] %vm272, %v2424
        %2443 = vst.msk [vmem:[%s213 + $0x50] sm:$0xff] %vm272, %v2425
        %2444 = vst.msk [vmem:[%s213 + $0x58] sm:$0xff] %vm272, %v2426
        %2445 = vst.msk [vmem:[%s213 + $0x60] sm:$0xff] %vm272, %v2427
        %2446 = vst.msk [vmem:[%s213 + $0x68] sm:$0xff] %vm272, %v2428
        %2447 = vst.msk [vmem:[%s213 + $0x70] sm:$0xff] %vm272, %v2429
        %2448 = vst.msk [vmem:[%s213 + $0x78] sm:$0xff] %vm272, %v2430
        %2449 = vst.msk [vmem:[%s213 + $0x80] sm:$0xff] %vm272, %v2431
        %2450 = vst.msk [vmem:[%s213 + $0x88] sm:$0xff] %vm272, %v2432
      $region48: #{_lambda_.7} parent=35 // pred_fallthru
        _
      %s2451 = smul.u32 %s19, %s20
      %p2452 = scmp.lt.s32.totalorder %s2451, 3
      %s2453 = scalar_select %p2452, %s2451, 3
      %s2454 = smul.addr %s2453, 18
      %s2455 = smul.addr %s2454, 8
      %s2456 = scalar_lea.vmem %s4, %s2455
      // Predicated region
      $region49: #{_lambda_.7} parent=35 // pred_check
        %p2457 = pneg %p136
      $region50: #{_lambda_.7} parent=35 // pred_check_branch
        %2459 = sbr.rel (%p2457) target = $region52
      $region51: #{_lambda_.7} parent=35 // pred_region
        %s2460 = smul.u32 %s19, %s20
      $region52: #{_lambda_.7} parent=35 // pred_fallthru
        _
    $region36: #{_lambda_.7} parent=5 // pred_fallthru
      _
    %p2461 = scmp.le.s32.totalorder 2, %s10
    // Predicated region
    $region53: #{_lambda_.7} parent=5 // pred_check
      %p2462 = pneg %p2461
    $region54: #{_lambda_.7} parent=5 // pred_check_branch
      %2464 = sbr.rel (%p2462) target = $region56
    $region55: #{_lambda_.7} parent=5 // pred_region
      %s2465 = ssub.s32 %s10, 2
      // Predicated region
      $region57: #{_lambda_.7} parent=55 // pred_check
        %p2466 = pneg %p142
      $region58: #{_lambda_.7} parent=55 // pred_check_branch
        %2468 = sbr.rel (%p2466) target = $region60
      $region59: #{_lambda_.7} parent=55 // pred_region
        %s2469 = smul.u32 %s21, %s22
        %p2470 = scmp.lt.s32.totalorder %s2469, 3
        %s2471 = scalar_select %p2470, %s2469, 3
        %s2472 = smul.addr %s2471, 18
        %s2473 = smul.addr %s2472, 8
        %s2474 = scalar_lea.vmem %s4, %s2473
      $region60: #{_lambda_.7} parent=55 // pred_fallthru
        _
    $region56: #{_lambda_.7} parent=5 // pred_fallthru
      _
  $region6: #{_lambda_.7} parent=0 // loop_footer
    %s14 = sadd.s32 1, %s10
  $region7: #{_lambda_.7} parent=0 // loop_footer_branch
    %9 = sbr.rel target = $region3
  $region8: #{_lambda_.7} parent=0 // loop_exit
    _

// kernel: _lambda_.11
$region0: #{_lambda_.11}
  #allocation0 [shape = 'u32[]', space=smem, size = 0x4, offset = 0x4, fixed_abs, tag = 'smem constant byte address 0x4 - core index']
  #allocation1 [shape = 'u32[144,128]{1,0:T(1,128)}', space=vmem, size = 0x12000, scoped, tag = 'internal scratch']
  %s0 = inlined_call_operand.vmem [shape: f32[16,2,8,16], index: 0, kind: input, shape index: {}]
  %s1 = inlined_call_operand.vmem [shape: f32[16,8,8], index: 1, kind: output, shape index: {}]
  %s2 = sld [smem:[#allocation0]]
  $region14: #{_lambda_.11} parent=0
    _
  %s4 = ssub.s32 1, %s2
  %s5 = scalar_select 0, %s4, %s2
  // Predicated region
  $region2: #{_lambda_.11} parent=0 // pred_check
    _
  $region3: #{_lambda_.11} parent=0 // pred_check_branch
    %7 = sbr.rel (0) target = $region5
  $region4: #{_lambda_.11} parent=0 // pred_region
    _
  $region5: #{_lambda_.11} parent=0 // pred_fallthru
    _
  %v8 = vld [vmem:[%s0] sm:$0xff]
  %v9 = vld [vmem:[%s0 + $0x8] sm:$0xff]
  %v10 = vld [vmem:[%s0 + $0x10] sm:$0xff]
  %v11 = vld [vmem:[%s0 + $0x18] sm:$0xff]
  %v12 = vld [vmem:[%s0 + $0x20] sm:$0xff]
  %v13 = vld [vmem:[%s0 + $0x28] sm:$0xff]
  %v14 = vld [vmem:[%s0 + $0x30] sm:$0xff]
  %v15 = vld [vmem:[%s0 + $0x38] sm:$0xff]
  %v16 = vld [vmem:[%s0 + $0x40] sm:$0xff]
  %v17 = vld [vmem:[%s0 + $0x48] sm:$0xff]
  %v18 = vld [vmem:[%s0 + $0x50] sm:$0xff]
  %v19 = vld [vmem:[%s0 + $0x58] sm:$0xff]
  %v20 = vld [vmem:[%s0 + $0x60] sm:$0xff]
  %v21 = vld [vmem:[%s0 + $0x68] sm:$0xff]
  %v22 = vld [vmem:[%s0 + $0x70] sm:$0xff]
  %v23 = vld [vmem:[%s0 + $0x78] sm:$0xff]
  %v24 = vld [vmem:[%s0 + $0x80] sm:$0xff]
  %v25 = vld [vmem:[%s0 + $0x88] sm:$0xff]
  %v26 = vld [vmem:[%s0 + $0x90] sm:$0xff]
  %v27 = vld [vmem:[%s0 + $0x98] sm:$0xff]
  %v28 = vld [vmem:[%s0 + $0xa0] sm:$0xff]
  %v29 = vld [vmem:[%s0 + $0xa8] sm:$0xff]
  %v30 = vld [vmem:[%s0 + $0xb0] sm:$0xff]
  %v31 = vld [vmem:[%s0 + $0xb8] sm:$0xff]
  %v32 = vld [vmem:[%s0 + $0xc0] sm:$0xff]
  %v33 = vld [vmem:[%s0 + $0xc8] sm:$0xff]
  %v34 = vld [vmem:[%s0 + $0xd0] sm:$0xff]
  %v35 = vld [vmem:[%s0 + $0xd8] sm:$0xff]
  %v36 = vld [vmem:[%s0 + $0xe0] sm:$0xff]
  %v37 = vld [vmem:[%s0 + $0xe8] sm:$0xff]
  %v38 = vld [vmem:[%s0 + $0xf0] sm:$0xff]
  %v39 = vld [vmem:[%s0 + $0xf8] sm:$0xff]
  %v40 = vmax.f32 %v8, %v9
  %v41 = vmax.f32 %v10, %v11
  %v42 = vmax.f32 %v12, %v13
  %v43 = vmax.f32 %v14, %v15
  %v44 = vmax.f32 %v16, %v17
  %v45 = vmax.f32 %v18, %v19
  %v46 = vmax.f32 %v20, %v21
  %v47 = vmax.f32 %v22, %v23
  %v48 = vmax.f32 %v24, %v25
  %v49 = vmax.f32 %v26, %v27
  %v50 = vmax.f32 %v28, %v29
  %v51 = vmax.f32 %v30, %v31
  %v52 = vmax.f32 %v32, %v33
  %v53 = vmax.f32 %v34, %v35
  %v54 = vmax.f32 %v36, %v37
  %v55 = vmax.f32 %v38, %v39
  %72 = vrot.lane.b32.xlu0 %v40, 120
  %v73 = vpop.permute.xlu0 %72
  %74 = vrot.lane.b32.xlu0 %v41, 120
  %v75 = vpop.permute.xlu0 %74
  %76 = vrot.lane.b32.xlu0 %v42, 120
  %v77 = vpop.permute.xlu0 %76
  %78 = vrot.lane.b32.xlu0 %v43, 120
  %v79 = vpop.permute.xlu0 %78
  %80 = vrot.lane.b32.xlu0 %v44, 120
  %v81 = vpop.permute.xlu0 %80
  %82 = vrot.lane.b32.xlu0 %v45, 120
  %v83 = vpop.permute.xlu0 %82
  %84 = vrot.lane.b32.xlu0 %v46, 120
  %v85 = vpop.permute.xlu0 %84
  %86 = vrot.lane.b32.xlu0 %v47, 120
  %v87 = vpop.permute.xlu0 %86
  %88 = vrot.lane.b32.xlu0 %v48, 120
  %v89 = vpop.permute.xlu0 %88
  %90 = vrot.lane.b32.xlu0 %v49, 120
  %v91 = vpop.permute.xlu0 %90
  %92 = vrot.lane.b32.xlu0 %v50, 120
  %v93 = vpop.permute.xlu0 %92
  %94 = vrot.lane.b32.xlu0 %v51, 120
  %v95 = vpop.permute.xlu0 %94
  %96 = vrot.lane.b32.xlu0 %v52, 120
  %v97 = vpop.permute.xlu0 %96
  %98 = vrot.lane.b32.xlu0 %v53, 120
  %v99 = vpop.permute.xlu0 %98
  %100 = vrot.lane.b32.xlu0 %v54, 120
  %v101 = vpop.permute.xlu0 %100
  %102 = vrot.lane.b32.xlu0 %v55, 120
  %v103 = vpop.permute.xlu0 %102
  %v120 = vmax.f32 %v40, %v73
  %v121 = vmax.f32 %v41, %v75
  %v122 = vmax.f32 %v42, %v77
  %v123 = vmax.f32 %v43, %v79
  %v124 = vmax.f32 %v44, %v81
  %v125 = vmax.f32 %v45, %v83
  %v126 = vmax.f32 %v46, %v85
  %v127 = vmax.f32 %v47, %v87
  %v128 = vmax.f32 %v48, %v89
  %v129 = vmax.f32 %v49, %v91
  %v130 = vmax.f32 %v50, %v93
  %v131 = vmax.f32 %v51, %v95
  %v132 = vmax.f32 %v52, %v97
  %v133 = vmax.f32 %v53, %v99
  %v134 = vmax.f32 %v54, %v101
  %v135 = vmax.f32 %v55, %v103
  %vm136 = vcmask 64512
  %137 = vst.msk [vmem:[%s1] sm:$0xff] %vm136, %v120
  %138 = vst.msk [vmem:[%s1 + $0x8] sm:$0xff] %vm136, %v121
  %139 = vst.msk [vmem:[%s1 + $0x10] sm:$0xff] %vm136, %v122
  %140 = vst.msk [vmem:[%s1 + $0x18] sm:$0xff] %vm136, %v123
  %141 = vst.msk [vmem:[%s1 + $0x20] sm:$0xff] %vm136, %v124
  %142 = vst.msk [vmem:[%s1 + $0x28] sm:$0xff] %vm136, %v125
  %143 = vst.msk [vmem:[%s1 + $0x30] sm:$0xff] %vm136, %v126
  %144 = vst.msk [vmem:[%s1 + $0x38] sm:$0xff] %vm136, %v127
  %145 = vst.msk [vmem:[%s1 + $0x40] sm:$0xff] %vm136, %v128
  %146 = vst.msk [vmem:[%s1 + $0x48] sm:$0xff] %vm136, %v129
  %147 = vst.msk [vmem:[%s1 + $0x50] sm:$0xff] %vm136, %v130
  %148 = vst.msk [vmem:[%s1 + $0x58] sm:$0xff] %vm136, %v131
  %149 = vst.msk [vmem:[%s1 + $0x60] sm:$0xff] %vm136, %v132
  %150 = vst.msk [vmem:[%s1 + $0x68] sm:$0xff] %vm136, %v133
  %151 = vst.msk [vmem:[%s1 + $0x70] sm:$0xff] %vm136, %v134
  %152 = vst.msk [vmem:[%s1 + $0x78] sm:$0xff] %vm136, %v135
  // Predicated region
  $region6: #{_lambda_.11} parent=0 // pred_check
    _
  $region7: #{_lambda_.11} parent=0 // pred_check_branch
    %154 = sbr.rel (0) target = $region9
  $region8: #{_lambda_.11} parent=0 // pred_region
    _
  $region9: #{_lambda_.11} parent=0 // pred_fallthru
    _
  // Predicated region
  $region10: #{_lambda_.11} parent=0 // pred_check
    _
  $region11: #{_lambda_.11} parent=0 // pred_check_branch
    %156 = sbr.rel (0) target = $region13
  $region12: #{_lambda_.11} parent=0 // pred_region
    _
  $region13: #{_lambda_.11} parent=0 // pred_fallthru
    _

// kernel: _lambda_.10
$region0: #{_lambda_.10}
  #allocation0 [shape = 'u32[]', space=smem, size = 0x4, offset = 0x4, fixed_abs, tag = 'smem constant byte address 0x4 - core index']
  #allocation1 [shape = 'u32[144,128]{1,0:T(1,128)}', space=vmem, size = 0x12000, scoped, tag = 'internal scratch']
  #allocation2 [shape = 'f32[1,8]{1,0:T(1,128)}', space=vmem, size = 0x200, scoped, tag = 'scratch operand']
  #allocation3 [shape = 'f32[1,8]{1,0:T(1,128)}', space=vmem, size = 0x200, scoped, tag = 'scratch operand']
  %s0 = inlined_call_operand.vmem [shape: f32[4,182,8], index: 0, kind: input, shape index: {}]
  %s1 = inlined_call_operand.vmem [shape: bf16[72,8], index: 1, kind: input, shape index: {}]
  %s2 = inlined_call_operand.vmem [shape: f32[1,8], index: 2, kind: input, shape index: {}]
  %s3 = inlined_call_operand.vmem [shape: f32[1,8], index: 3, kind: input, shape index: {}]
  %s4 = inlined_call_operand.vmem [shape: f32[4,182,8], index: 4, kind: input, shape index: {}]
  %s5 = inlined_call_operand.vmem [shape: f32[4,144,8], index: 5, kind: output, shape index: {}]
  %s6 = sld [smem:[#allocation0]]
  $region65: #{_lambda_.10} parent=0
    _
  %s8 = ssub.s32 1, %s6
  %s9 = scalar_select 0, %s8, %s6
  loop: start=0, step=1, limit=10
  $region2: #{_lambda_.10} parent=0 // loop_pre_header
    _
  $region3: #{_lambda_.10} parent=0 // loop_header
    %s11 = sphi 0, %s15
    %p12 = scmp.ge.s32.totalorder %s11, 10
    %s18 = sphi 0, %s30
    %s19 = sphi 0, %s26
    %s20 = sphi 0, %s18
    %s21 = sphi 0, %s19
    %s22 = sphi 0, %s20
    %s23 = sphi 0, %s21
    %s33 = sphi 0, %s35
    %s36 = sphi 0, %s33
    %s37 = sphi 0, %s36
    %s53 = sphi 0, %s37
    %s57 = sphi 0, %s57
    %s59 = sphi 0, %s57
    %s60 = sphi 0, %s59
    %s74 = sphi 0, %s60
    %s78 = sphi 0, %s78
    %s80 = sphi 0, %s78
    %s81 = sphi 0, %s80
    %s95 = sphi 0, %s81
    %s99 = sphi 0, %s99
    %s101 = sphi 0, %s99
    %s102 = sphi 0, %s101
    %s116 = sphi 0, %s102
    %s124 = sphi 0, %s126
    %s127 = sphi 0, %s124
    %s128 = sphi 0, %s127
    %s144 = sphi 0, %s128
    %s152 = sphi 0, %s154
    %s155 = sphi 0, %s152
    %s156 = sphi 0, %s155
    %s172 = sphi 0, %s156
  $region4: #{_lambda_.10} parent=0 // loop_header_branch
    %14 = sbr.rel (%p12) target = $region8
  $region5: #{_lambda_.10} parent=0 // loop_body
    %s16 = ssub.s32 %s11, 1
    %s17 = ssub.s32 %s11, 2
    %s24 = sadd.s32 1, %s19
    %p25 = scmp.ge.s32.totalorder %s24, 4
    %s26 = scalar_select %p25, 0, %s24
    %s27 = sadd.s32 1, %s18
    %s28 = scalar_select %p25, %s27, %s18
    %p29 = scmp.ge.s32.totalorder %s28, 2
    %s30 = scalar_select %p29, 0, %s28
    %s31 = ssub.s32 %s19, %s26
    %p32 = scmp.eq.s32.totalorder %s31, 0
    %s34 = sadd.s32 %s33, 1
    %s35 = scalar_select %p32, %s33, %s34
    %p38 = pneg %p32
    %p39 = scmp.eq.s32.totalorder %s11, 7
    %p40 = por %p38, %p39
    %p41 = scmp.ne.s32.totalorder %s33, %s36
    %p42 = scmp.eq.s32.totalorder %s11, 0
    %p43 = por %p41, %p42
    %p44 = scmp.ne.s32.totalorder %s33, %s36
    %p45 = scmp.eq.s32.totalorder %s16, 7
    %p46 = por %p44, %p45
    %p47 = scmp.ne.s32.totalorder %s36, %s37
    %p48 = scmp.eq.s32.totalorder %s16, 0
    %p49 = por %p47, %p48
    %p50 = scmp.ne.s32.totalorder %s36, %s37
    %p51 = scmp.eq.s32.totalorder %s17, 7
    %p52 = por %p50, %p51
    %p54 = scmp.ne.s32.totalorder %s37, %s53
    %p55 = scmp.eq.s32.totalorder %s17, 0
    %p56 = por %p54, %p55
    %s58 = sadd.s32 %s57, 1
    %p61 = scmp.eq.s32.totalorder %s11, 7
    %p62 = scmp.ne.s32.totalorder %s57, %s59
    %p63 = scmp.eq.s32.totalorder %s11, 0
    %p64 = por %p62, %p63
    %p65 = scmp.ne.s32.totalorder %s57, %s59
    %p66 = scmp.eq.s32.totalorder %s16, 7
    %p67 = por %p65, %p66
    %p68 = scmp.ne.s32.totalorder %s59, %s60
    %p69 = scmp.eq.s32.totalorder %s16, 0
    %p70 = por %p68, %p69
    %p71 = scmp.ne.s32.totalorder %s59, %s60
    %p72 = scmp.eq.s32.totalorder %s17, 7
    %p73 = por %p71, %p72
    %p75 = scmp.ne.s32.totalorder %s60, %s74
    %p76 = scmp.eq.s32.totalorder %s17, 0
    %p77 = por %p75, %p76
    %s79 = sadd.s32 %s78, 1
    %p82 = scmp.eq.s32.totalorder %s11, 7
    %p83 = scmp.ne.s32.totalorder %s78, %s80
    %p84 = scmp.eq.s32.totalorder %s11, 0
    %p85 = por %p83, %p84
    %p86 = scmp.ne.s32.totalorder %s78, %s80
    %p87 = scmp.eq.s32.totalorder %s16, 7
    %p88 = por %p86, %p87
    %p89 = scmp.ne.s32.totalorder %s80, %s81
    %p90 = scmp.eq.s32.totalorder %s16, 0
    %p91 = por %p89, %p90
    %p92 = scmp.ne.s32.totalorder %s80, %s81
    %p93 = scmp.eq.s32.totalorder %s17, 7
    %p94 = por %p92, %p93
    %p96 = scmp.ne.s32.totalorder %s81, %s95
    %p97 = scmp.eq.s32.totalorder %s17, 0
    %p98 = por %p96, %p97
    %s100 = sadd.s32 %s99, 1
    %p103 = scmp.eq.s32.totalorder %s11, 7
    %p104 = scmp.ne.s32.totalorder %s99, %s101
    %p105 = scmp.eq.s32.totalorder %s11, 0
    %p106 = por %p104, %p105
    %p107 = scmp.ne.s32.totalorder %s99, %s101
    %p108 = scmp.eq.s32.totalorder %s16, 7
    %p109 = por %p107, %p108
    %p110 = scmp.ne.s32.totalorder %s101, %s102
    %p111 = scmp.eq.s32.totalorder %s16, 0
    %p112 = por %p110, %p111
    %p113 = scmp.ne.s32.totalorder %s101, %s102
    %p114 = scmp.eq.s32.totalorder %s17, 7
    %p115 = por %p113, %p114
    %p117 = scmp.ne.s32.totalorder %s102, %s116
    %p118 = scmp.eq.s32.totalorder %s17, 0
    %p119 = por %p117, %p118
    %s120 = smul.u32 %s18, %s19
    %s121 = smul.u32 %s30, %s26
    %s122 = ssub.s32 %s120, %s121
    %p123 = scmp.eq.s32.totalorder %s122, 0
    %s125 = sadd.s32 %s124, 1
    %s126 = scalar_select %p123, %s124, %s125
    %p129 = pneg %p123
    %p130 = scmp.eq.s32.totalorder %s11, 7
    %p131 = por %p129, %p130
    %p132 = scmp.ne.s32.totalorder %s124, %s127
    %p133 = scmp.eq.s32.totalorder %s11, 0
    %p134 = por %p132, %p133
    %p135 = scmp.ne.s32.totalorder %s124, %s127
    %p136 = scmp.eq.s32.totalorder %s16, 7
    %p137 = por %p135, %p136
    %p138 = scmp.ne.s32.totalorder %s127, %s128
    %p139 = scmp.eq.s32.totalorder %s16, 0
    %p140 = por %p138, %p139
    %p141 = scmp.ne.s32.totalorder %s127, %s128
    %p142 = scmp.eq.s32.totalorder %s17, 7
    %p143 = por %p141, %p142
    %p145 = scmp.ne.s32.totalorder %s128, %s144
    %p146 = scmp.eq.s32.totalorder %s17, 0
    %p147 = por %p145, %p146
    %s148 = smul.u32 %s18, %s19
    %s149 = smul.u32 %s30, %s26
    %s150 = ssub.s32 %s148, %s149
    %p151 = scmp.eq.s32.totalorder %s150, 0
    %s153 = sadd.s32 %s152, 1
    %s154 = scalar_select %p151, %s152, %s153
    %p157 = pneg %p151
    %p158 = scmp.eq.s32.totalorder %s11, 7
    %p159 = por %p157, %p158
    %p160 = scmp.ne.s32.totalorder %s152, %s155
    %p161 = scmp.eq.s32.totalorder %s11, 0
    %p162 = por %p160, %p161
    %p163 = scmp.ne.s32.totalorder %s152, %s155
    %p164 = scmp.eq.s32.totalorder %s16, 7
    %p165 = por %p163, %p164
    %p166 = scmp.ne.s32.totalorder %s155, %s156
    %p167 = scmp.eq.s32.totalorder %s16, 0
    %p168 = por %p166, %p167
    %p169 = scmp.ne.s32.totalorder %s155, %s156
    %p170 = scmp.eq.s32.totalorder %s17, 7
    %p171 = por %p169, %p170
    %p173 = scmp.ne.s32.totalorder %s156, %s172
    %p174 = scmp.eq.s32.totalorder %s17, 0
    %p175 = por %p173, %p174
    %p176 = scmp.le.s32.totalorder 1, %s11
    %p177 = scmp.lt.s32.totalorder %s11, 9
    %p178 = pnand %p176, %p177
    %p179 = pneg %p178
    // Predicated region
    $region9: #{_lambda_.10} parent=5 // pred_check
      _
    $region10: #{_lambda_.10} parent=5 // pred_check_branch
      %181 = sbr.rel (%p178) target = $region12
    $region11: #{_lambda_.10} parent=5 // pred_region
      %s182 = ssub.s32 %s11, 1
      // Predicated region
      $region13: #{_lambda_.10} parent=11 // pred_check
        %p183 = pneg %p70
      $region14: #{_lambda_.10} parent=11 // pred_check_branch
        %185 = sbr.rel (%p183) target = $region16
      $region15: #{_lambda_.10} parent=11 // pred_region
        _
      $region16: #{_lambda_.10} parent=11 // pred_fallthru
        _
      // Predicated region
      $region17: #{_lambda_.10} parent=11 // pred_check
        %p186 = pneg %p91
      $region18: #{_lambda_.10} parent=11 // pred_check_branch
        %188 = sbr.rel (%p186) target = $region20
      $region19: #{_lambda_.10} parent=11 // pred_region
        _
      $region20: #{_lambda_.10} parent=11 // pred_fallthru
        _
      // Predicated region
      $region21: #{_lambda_.10} parent=11 // pred_check
        %p189 = pneg %p112
      $region22: #{_lambda_.10} parent=11 // pred_check_branch
        %191 = sbr.rel (%p189) target = $region24
      $region23: #{_lambda_.10} parent=11 // pred_region
        _
      $region24: #{_lambda_.10} parent=11 // pred_fallthru
        _
    $region12: #{_lambda_.10} parent=5 // pred_fallthru
      _
    %p192 = scmp.lt.s32.totalorder %s11, 8
    // Predicated region
    $region25: #{_lambda_.10} parent=5 // pred_check
      %p193 = pneg %p192
    $region26: #{_lambda_.10} parent=5 // pred_check_branch
      %195 = sbr.rel (%p193) target = $region28
    $region27: #{_lambda_.10} parent=5 // pred_region
      // Predicated region
      $region29: #{_lambda_.10} parent=27 // pred_check
        %p196 = pneg %p43
      $region30: #{_lambda_.10} parent=27 // pred_check_branch
        %198 = sbr.rel (%p196) target = $region32
      $region31: #{_lambda_.10} parent=27 // pred_region
        %p199 = scmp.lt.s32.totalorder %s19, 3
        %s200 = scalar_select %p199, %s19, 3
        %s201 = smul.addr %s200, 23
        %s202 = smul.addr %s201, 8
        %s203 = scalar_lea.vmem %s0, %s202
      $region32: #{_lambda_.10} parent=27 // pred_fallthru
        _
      // Predicated region
      $region33: #{_lambda_.10} parent=27 // pred_check
        %p204 = pneg %p134
      $region34: #{_lambda_.10} parent=27 // pred_check_branch
        %206 = sbr.rel (%p204) target = $region36
      $region35: #{_lambda_.10} parent=27 // pred_region
        %s207 = smul.u32 %s18, %s19
        %p208 = scmp.lt.s32.totalorder %s207, 3
        %s209 = scalar_select %p208, %s207, 3
        %s210 = smul.addr %s209, 23
        %s211 = smul.addr %s210, 8
        %s212 = scalar_lea.vmem %s4, %s211
        %s213 = smul.u32 %s18, %s19
      $region36: #{_lambda_.10} parent=27 // pred_fallthru
        _
    $region28: #{_lambda_.10} parent=5 // pred_fallthru
      _
    %p214 = scmp.le.s32.totalorder 1, %s11
    %p215 = scmp.lt.s32.totalorder %s11, 9
    %p216 = pnand %p214, %p215
    %p217 = pneg %p216
    // Predicated region
    $region37: #{_lambda_.10} parent=5 // pred_check
      _
    $region38: #{_lambda_.10} parent=5 // pred_check_branch
      %219 = sbr.rel (%p216) target = $region40
    $region39: #{_lambda_.10} parent=5 // pred_region
      %s220 = ssub.s32 %s11, 1
      %p221 = scmp.lt.s32.totalorder %s21, 3
      %s222 = scalar_select %p221, %s21, 3
      %s223 = smul.addr %s222, 23
      %s224 = smul.addr %s223, 8
      %s225 = scalar_lea.vmem %s0, %s224
      %p226 = pneg %p49
      %p227 = pneg %p46
      %p228 = pneg %p70
      %p229 = pneg %p67
      %p230 = pneg %p91
      %p231 = pneg %p88
      %p232 = pneg %p112
      %p233 = pneg %p109
      %s234 = smul.u32 %s20, %s21
      %p235 = scmp.lt.s32.totalorder %s234, 3
      %s236 = scalar_select %p235, %s234, 3
      %s237 = smul.addr %s236, 23
      %s238 = smul.addr %s237, 8
      %s239 = scalar_lea.vmem %s4, %s238
      %p240 = pneg %p140
      %p241 = pneg %p137
      %p242 = pneg %p168
      %p243 = pneg %p165
      %s244 = smul.u32 %s20, %s21
      %p245 = scmp.lt.s32.totalorder %s244, 3
      %s246 = scalar_select %p245, %s244, 3
      %s247 = smul.addr %s246, 18
      %s248 = smul.addr %s247, 8
      %s249 = scalar_lea.vmem %s5, %s248
      %p250 = scmp.lt.s32.totalorder %s21, 3
      %s251 = scalar_select %p250, %s21, 3
      %s252 = smul.addr %s251, 23
      %s253 = smul.addr %s252, 8
      %s254 = scalar_lea.vmem %s0, %s253
      %s255 = smul.u32 %s20, %s21
      %p256 = scmp.lt.s32.totalorder %s255, 3
      %s257 = scalar_select %p256, %s255, 3
      %s258 = smul.addr %s257, 23
      %s259 = smul.addr %s258, 8
      %s260 = scalar_lea.vmem %s4, %s259
      %s261 = smul.u32 %s20, %s21
      %s262 = smul.u32 %s20, %s21
      %p263 = scmp.lt.s32.totalorder %s262, 3
      %s264 = scalar_select %p263, %s262, 3
      %s265 = smul.addr %s264, 18
      %s266 = smul.addr %s265, 8
      %s267 = scalar_lea.vmem %s5, %s266
      %s268 = smul.u32 %s20, %s21
      %v270 = vld [vmem:[%s254] sm:$0xff]
      %v271 = vld [vmem:[%s254 + $0x8] sm:$0xff]
      %v272 = vld [vmem:[%s254 + $0x10] sm:$0xff]
      %v273 = vld [vmem:[%s254 + $0x18] sm:$0xff]
      %v274 = vld [vmem:[%s254 + $0x20] sm:$0xff]
      %v275 = vld [vmem:[%s254 + $0x28] sm:$0xff]
      %v276 = vld [vmem:[%s254 + $0x30] sm:$0xff]
      %v277 = vld [vmem:[%s254 + $0x38] sm:$0xff]
      %v278 = vld [vmem:[%s254 + $0x40] sm:$0xff]
      %v279 = vld [vmem:[%s254 + $0x48] sm:$0xff]
      %v280 = vld [vmem:[%s254 + $0x50] sm:$0xff]
      %v281 = vld [vmem:[%s254 + $0x58] sm:$0xff]
      %v282 = vld [vmem:[%s254 + $0x60] sm:$0xff]
      %v283 = vld [vmem:[%s254 + $0x68] sm:$0xff]
      %v284 = vld [vmem:[%s254 + $0x70] sm:$0xff]
      %v285 = vld [vmem:[%s254 + $0x78] sm:$0xff]
      %v286 = vld [vmem:[%s254 + $0x80] sm:$0xff]
      %v287 = vld [vmem:[%s254 + $0x88] sm:$0xff]
      %v288 = vld [vmem:[%s1] sm:$0xf]
      %v289 = vpack.c.bf16 %v271, %v270
      %v290 = vpack.c.bf16 %v273, %v272
      %v291 = vpack.c.bf16 %v275, %v274
      %v292 = vpack.c.bf16 %v277, %v276
      %v293 = vpack.c.bf16 %v279, %v278
      %v294 = vpack.c.bf16 %v281, %v280
      %v295 = vpack.c.bf16 %v283, %v282
      %v296 = vpack.c.bf16 %v285, %v284
      %v297 = vpack.c.bf16 %v287, %v286
      %v298 = vld [vmem:[%s254 + $0x1] sm:$0xff]
      %v299 = vld [vmem:[%s254 + $0x9] sm:$0xff]
      %v300 = vld [vmem:[%s254 + $0x11] sm:$0xff]
      %v301 = vld [vmem:[%s254 + $0x19] sm:$0xff]
      %v302 = vld [vmem:[%s254 + $0x21] sm:$0xff]
      %v303 = vld [vmem:[%s254 + $0x29] sm:$0xff]
      %v304 = vld [vmem:[%s254 + $0x31] sm:$0xff]
      %v305 = vld [vmem:[%s254 + $0x39] sm:$0xff]
      %v306 = vld [vmem:[%s254 + $0x41] sm:$0xff]
      %v307 = vld [vmem:[%s254 + $0x49] sm:$0xff]
      %v308 = vld [vmem:[%s254 + $0x51] sm:$0xff]
      %v309 = vld [vmem:[%s254 + $0x59] sm:$0xff]
      %v310 = vld [vmem:[%s254 + $0x61] sm:$0xff]
      %v311 = vld [vmem:[%s254 + $0x69] sm:$0xff]
      %v312 = vld [vmem:[%s254 + $0x71] sm:$0xff]
      %v313 = vld [vmem:[%s254 + $0x79] sm:$0xff]
      %v314 = vld [vmem:[%s254 + $0x81] sm:$0xff]
      %v315 = vld [vmem:[%s254 + $0x89] sm:$0xff]
      %v316 = vld [vmem:[%s1 + $0x4] sm:$0xf]
      %v317 = vpack.c.bf16 %v299, %v298
      %v318 = vpack.c.bf16 %v301, %v300
      %v319 = vpack.c.bf16 %v303, %v302
      %v320 = vpack.c.bf16 %v305, %v304
      %v321 = vpack.c.bf16 %v307, %v306
      %v322 = vpack.c.bf16 %v309, %v308
      %v323 = vpack.c.bf16 %v311, %v310
      %v324 = vpack.c.bf16 %v313, %v312
      %v325 = vpack.c.bf16 %v315, %v314
      %vm326 = vcmask 64512
      %v328 = vsel %vm326, %v317, 0
      %v331 = vsel %vm326, %v318, 0
      %v334 = vsel %vm326, %v319, 0
      %v337 = vsel %vm326, %v320, 0
      %v340 = vsel %vm326, %v321, 0
      %v343 = vsel %vm326, %v322, 0
      %v346 = vsel %vm326, %v323, 0
      %v349 = vsel %vm326, %v324, 0
      %v352 = vsel %vm326, %v325, 0
      %vm354 = vcmask 1043456
      %v356 = vsel %vm354, %v316, 0
      %358 = vmatprep.subr.bf16.mxu0 0
      %359 = vmatpush1.bf16.msra.mxu0 0
      %360 = vmatprep.subr.bf16.mxu0 0
      %361 = vmatpush1.bf16.msra.mxu0 0
      %362 = vmatprep.subr.bf16.mxu0 0
      %363 = vmatpush1.bf16.msra.mxu0 0
      %364 = vmatprep.subr.bf16.mxu0 0
      %365 = vmatpush1.bf16.msra.mxu0 0
      %366 = vmatprep.subr.bf16.mxu0 0
      %367 = vmatpush1.bf16.msra.mxu0 0
      %368 = vmatprep.subr.bf16.mxu0 0
      %369 = vmatpush1.bf16.msra.mxu0 0
      %370 = vmatprep.subr.bf16.mxu0 0
      %371 = vmatpush1.bf16.msra.mxu0 0
      %372 = vmatprep.subr.bf16.mxu0 0
      %373 = vmatpush1.bf16.msra.mxu0 %v356
      %374 = vmatprep.subr.bf16.mxu0 0
      %375 = vmatpush2.bf16.msra.mxu0 0
      %376 = vmatprep.subr.bf16.mxu0 0
      %377 = vmatpush2.bf16.msra.mxu0 0
      %378 = vmatprep.subr.bf16.mxu0 0
      %379 = vmatpush2.bf16.msra.mxu0 0
      %380 = vmatprep.subr.bf16.mxu0 0
      %381 = vmatpush2.bf16.msra.mxu0 0
      %382 = vmatprep.subr.bf16.mxu0 0
      %383 = vmatpush2.bf16.msra.mxu0 0
      %384 = vmatprep.subr.bf16.mxu0 0
      %385 = vmatpush2.bf16.msra.mxu0 0
      %386 = vmatprep.subr.bf16.mxu0 0
      %387 = vmatpush2.bf16.msra.mxu0 0
      %388 = vmatprep.subr.bf16.mxu0 0
      %389 = vmatpush2.bf16.msra.mxu0 0
      %390 = vmatprep.mubr.bf16.mxu0 0
      %391 = vmatmul.mubr.bf16.gmra.mxu0 %v328
      %v392 = vpop.f32.mrf.mxu0
      %v393 = vadd.f32 0.0, %v392
      %v394 = vpop.f32.mrf.mxu0
      %v395 = vpop.f32.mrf.mxu0
      %v396 = vadd.f32 0.0, %v395
      %v397 = vpop.f32.mrf.mxu0
      %398 = vmatprep.mubr.bf16.mxu0 0
      %399 = vmatmul.mubr.bf16.gmra.mxu0 %v331
      %v400 = vpop.f32.mrf.mxu0
      %v401 = vadd.f32 0.0, %v400
      %v402 = vpop.f32.mrf.mxu0
      %v403 = vpop.f32.mrf.mxu0
      %v404 = vadd.f32 0.0, %v403
      %v405 = vpop.f32.mrf.mxu0
      %406 = vmatprep.mubr.bf16.mxu0 0
      %407 = vmatmul.mubr.bf16.gmra.mxu0 %v334
      %v408 = vpop.f32.mrf.mxu0
      %v409 = vadd.f32 0.0, %v408
      %v410 = vpop.f32.mrf.mxu0
      %v411 = vpop.f32.mrf.mxu0
      %v412 = vadd.f32 0.0, %v411
      %v413 = vpop.f32.mrf.mxu0
      %414 = vmatprep.mubr.bf16.mxu0 0
      %415 = vmatmul.mubr.bf16.gmra.mxu0 %v337
      %v416 = vpop.f32.mrf.mxu0
      %v417 = vadd.f32 0.0, %v416
      %v418 = vpop.f32.mrf.mxu0
      %v419 = vpop.f32.mrf.mxu0
      %v420 = vadd.f32 0.0, %v419
      %v421 = vpop.f32.mrf.mxu0
      %422 = vmatprep.mubr.bf16.mxu0 0
      %423 = vmatmul.mubr.bf16.gmra.mxu0 %v340
      %v424 = vpop.f32.mrf.mxu0
      %v425 = vadd.f32 0.0, %v424
      %v426 = vpop.f32.mrf.mxu0
      %v427 = vpop.f32.mrf.mxu0
      %v428 = vadd.f32 0.0, %v427
      %v429 = vpop.f32.mrf.mxu0
      %430 = vmatprep.mubr.bf16.mxu0 0
      %431 = vmatmul.mubr.bf16.gmra.mxu0 %v343
      %v432 = vpop.f32.mrf.mxu0
      %v433 = vadd.f32 0.0, %v432
      %v434 = vpop.f32.mrf.mxu0
      %v435 = vpop.f32.mrf.mxu0
      %v436 = vadd.f32 0.0, %v435
      %v437 = vpop.f32.mrf.mxu0
      %438 = vmatprep.mubr.bf16.mxu0 0
      %439 = vmatmul.mubr.bf16.gmra.mxu0 %v346
      %v440 = vpop.f32.mrf.mxu0
      %v441 = vadd.f32 0.0, %v440
      %v442 = vpop.f32.mrf.mxu0
      %v443 = vpop.f32.mrf.mxu0
      %v444 = vadd.f32 0.0, %v443
      %v445 = vpop.f32.mrf.mxu0
      %446 = vmatprep.mubr.bf16.mxu0 0
      %447 = vmatmul.mubr.bf16.gmra.mxu0 %v349
      %v448 = vpop.f32.mrf.mxu0
      %v449 = vadd.f32 0.0, %v448
      %v450 = vpop.f32.mrf.mxu0
      %v451 = vpop.f32.mrf.mxu0
      %v452 = vadd.f32 0.0, %v451
      %v453 = vpop.f32.mrf.mxu0
      %454 = vmatprep.mubr.bf16.mxu0 0
      %455 = vmatmul.mubr.bf16.gmra.mxu0 %v352
      %v456 = vpop.f32.mrf.mxu0
      %v457 = vadd.f32 0.0, %v456
      %v458 = vpop.f32.mrf.mxu0
      %v459 = vpop.f32.mrf.mxu0
      %v460 = vadd.f32 0.0, %v459
      %v461 = vpop.f32.mrf.mxu0
      %462 = vdwg.mxu0
      %v464 = vsel %vm326, %v289, 0
      %v467 = vsel %vm326, %v290, 0
      %v470 = vsel %vm326, %v291, 0
      %v473 = vsel %vm326, %v292, 0
      %v476 = vsel %vm326, %v293, 0
      %v479 = vsel %vm326, %v294, 0
      %v482 = vsel %vm326, %v295, 0
      %v485 = vsel %vm326, %v296, 0
      %v488 = vsel %vm326, %v297, 0
      %v491 = vsel %vm354, %v288, 0
      %493 = vmatprep.subr.bf16.mxu0 0
      %494 = vmatpush1.bf16.msra.mxu0 0
      %495 = vmatprep.subr.bf16.mxu0 0
      %496 = vmatpush1.bf16.msra.mxu0 0
      %497 = vmatprep.subr.bf16.mxu0 0
      %498 = vmatpush1.bf16.msra.mxu0 0
      %499 = vmatprep.subr.bf16.mxu0 0
      %500 = vmatpush1.bf16.msra.mxu0 0
      %501 = vmatprep.subr.bf16.mxu0 0
      %502 = vmatpush1.bf16.msra.mxu0 0
      %503 = vmatprep.subr.bf16.mxu0 0
      %504 = vmatpush1.bf16.msra.mxu0 0
      %505 = vmatprep.subr.bf16.mxu0 0
      %506 = vmatpush1.bf16.msra.mxu0 0
      %507 = vmatprep.subr.bf16.mxu0 0
      %508 = vmatpush1.bf16.msra.mxu0 %v491
      %509 = vmatprep.subr.bf16.mxu0 0
      %510 = vmatpush2.bf16.msra.mxu0 0
      %511 = vmatprep.subr.bf16.mxu0 0
      %512 = vmatpush2.bf16.msra.mxu0 0
      %513 = vmatprep.subr.bf16.mxu0 0
      %514 = vmatpush2.bf16.msra.mxu0 0
      %515 = vmatprep.subr.bf16.mxu0 0
      %516 = vmatpush2.bf16.msra.mxu0 0
      %517 = vmatprep.subr.bf16.mxu0 0
      %518 = vmatpush2.bf16.msra.mxu0 0
      %519 = vmatprep.subr.bf16.mxu0 0
      %520 = vmatpush2.bf16.msra.mxu0 0
      %521 = vmatprep.subr.bf16.mxu0 0
      %522 = vmatpush2.bf16.msra.mxu0 0
      %523 = vmatprep.subr.bf16.mxu0 0
      %524 = vmatpush2.bf16.msra.mxu0 0
      %525 = vmatprep.mubr.bf16.mxu0 0
      %526 = vmatmul.mubr.bf16.gmra.mxu0 %v464
      %v527 = vpop.f32.mrf.mxu0
      %v528 = vadd.f32 %v393, %v527
      %v529 = vpop.f32.mrf.mxu0
      %v530 = vpop.f32.mrf.mxu0
      %v531 = vadd.f32 %v396, %v530
      %v532 = vpop.f32.mrf.mxu0
      %533 = vmatprep.mubr.bf16.mxu0 0
      %534 = vmatmul.mubr.bf16.gmra.mxu0 %v467
      %v535 = vpop.f32.mrf.mxu0
      %v536 = vadd.f32 %v401, %v535
      %v537 = vpop.f32.mrf.mxu0
      %v538 = vpop.f32.mrf.mxu0
      %v539 = vadd.f32 %v404, %v538
      %v540 = vpop.f32.mrf.mxu0
      %541 = vmatprep.mubr.bf16.mxu0 0
      %542 = vmatmul.mubr.bf16.gmra.mxu0 %v470
      %v543 = vpop.f32.mrf.mxu0
      %v544 = vadd.f32 %v409, %v543
      %v545 = vpop.f32.mrf.mxu0
      %v546 = vpop.f32.mrf.mxu0
      %v547 = vadd.f32 %v412, %v546
      %v548 = vpop.f32.mrf.mxu0
      %549 = vmatprep.mubr.bf16.mxu0 0
      %550 = vmatmul.mubr.bf16.gmra.mxu0 %v473
      %v551 = vpop.f32.mrf.mxu0
      %v552 = vadd.f32 %v417, %v551
      %v553 = vpop.f32.mrf.mxu0
      %v554 = vpop.f32.mrf.mxu0
      %v555 = vadd.f32 %v420, %v554
      %v556 = vpop.f32.mrf.mxu0
      %557 = vmatprep.mubr.bf16.mxu0 0
      %558 = vmatmul.mubr.bf16.gmra.mxu0 %v476
      %v559 = vpop.f32.mrf.mxu0
      %v560 = vadd.f32 %v425, %v559
      %v561 = vpop.f32.mrf.mxu0
      %v562 = vpop.f32.mrf.mxu0
      %v563 = vadd.f32 %v428, %v562
      %v564 = vpop.f32.mrf.mxu0
      %565 = vmatprep.mubr.bf16.mxu0 0
      %566 = vmatmul.mubr.bf16.gmra.mxu0 %v479
      %v567 = vpop.f32.mrf.mxu0
      %v568 = vadd.f32 %v433, %v567
      %v569 = vpop.f32.mrf.mxu0
      %v570 = vpop.f32.mrf.mxu0
      %v571 = vadd.f32 %v436, %v570
      %v572 = vpop.f32.mrf.mxu0
      %573 = vmatprep.mubr.bf16.mxu0 0
      %574 = vmatmul.mubr.bf16.gmra.mxu0 %v482
      %v575 = vpop.f32.mrf.mxu0
      %v576 = vadd.f32 %v441, %v575
      %v577 = vpop.f32.mrf.mxu0
      %v578 = vpop.f32.mrf.mxu0
      %v579 = vadd.f32 %v444, %v578
      %v580 = vpop.f32.mrf.mxu0
      %581 = vmatprep.mubr.bf16.mxu0 0
      %582 = vmatmul.mubr.bf16.gmra.mxu0 %v485
      %v583 = vpop.f32.mrf.mxu0
      %v584 = vadd.f32 %v449, %v583
      %v585 = vpop.f32.mrf.mxu0
      %v586 = vpop.f32.mrf.mxu0
      %v587 = vadd.f32 %v452, %v586
      %v588 = vpop.f32.mrf.mxu0
      %589 = vmatprep.mubr.bf16.mxu0 0
      %590 = vmatmul.mubr.bf16.gmra.mxu0 %v488
      %v591 = vpop.f32.mrf.mxu0
      %v592 = vadd.f32 %v457, %v591
      %v593 = vpop.f32.mrf.mxu0
      %v594 = vpop.f32.mrf.mxu0
      %v595 = vadd.f32 %v460, %v594
      %v596 = vpop.f32.mrf.mxu0
      %597 = vdwg.mxu0
      %v598 = vld [vmem:[%s254 + $0x2] sm:$0xff]
      %v599 = vld [vmem:[%s254 + $0xa] sm:$0xff]
      %v600 = vld [vmem:[%s254 + $0x12] sm:$0xff]
      %v601 = vld [vmem:[%s254 + $0x1a] sm:$0xff]
      %v602 = vld [vmem:[%s254 + $0x22] sm:$0xff]
      %v603 = vld [vmem:[%s254 + $0x2a] sm:$0xff]
      %v604 = vld [vmem:[%s254 + $0x32] sm:$0xff]
      %v605 = vld [vmem:[%s254 + $0x3a] sm:$0xff]
      %v606 = vld [vmem:[%s254 + $0x42] sm:$0xff]
      %v607 = vld [vmem:[%s254 + $0x4a] sm:$0xff]
      %v608 = vld [vmem:[%s254 + $0x52] sm:$0xff]
      %v609 = vld [vmem:[%s254 + $0x5a] sm:$0xff]
      %v610 = vld [vmem:[%s254 + $0x62] sm:$0xff]
      %v611 = vld [vmem:[%s254 + $0x6a] sm:$0xff]
      %v612 = vld [vmem:[%s254 + $0x72] sm:$0xff]
      %v613 = vld [vmem:[%s254 + $0x7a] sm:$0xff]
      %v614 = vld [vmem:[%s254 + $0x82] sm:$0xff]
      %v615 = vld [vmem:[%s254 + $0x8a] sm:$0xff]
      %v616 = vld [vmem:[%s1 + $0x8] sm:$0xf]
      %v617 = vpack.c.bf16 %v599, %v598
      %v618 = vpack.c.bf16 %v601, %v600
      %v619 = vpack.c.bf16 %v603, %v602
      %v620 = vpack.c.bf16 %v605, %v604
      %v621 = vpack.c.bf16 %v607, %v606
      %v622 = vpack.c.bf16 %v609, %v608
      %v623 = vpack.c.bf16 %v611, %v610
      %v624 = vpack.c.bf16 %v613, %v612
      %v625 = vpack.c.bf16 %v615, %v614
      %v627 = vsel %vm326, %v617, 0
      %v630 = vsel %vm326, %v618, 0
      %v633 = vsel %vm326, %v619, 0
      %v636 = vsel %vm326, %v620, 0
      %v639 = vsel %vm326, %v621, 0
      %v642 = vsel %vm326, %v622, 0
      %v645 = vsel %vm326, %v623, 0
      %v648 = vsel %vm326, %v624, 0
      %v651 = vsel %vm326, %v625, 0
      %v654 = vsel %vm354, %v616, 0
      %656 = vmatprep.subr.bf16.mxu0 0
      %657 = vmatpush1.bf16.msra.mxu0 0
      %658 = vmatprep.subr.bf16.mxu0 0
      %659 = vmatpush1.bf16.msra.mxu0 0
      %660 = vmatprep.subr.bf16.mxu0 0
      %661 = vmatpush1.bf16.msra.mxu0 0
      %662 = vmatprep.subr.bf16.mxu0 0
      %663 = vmatpush1.bf16.msra.mxu0 0
      %664 = vmatprep.subr.bf16.mxu0 0
      %665 = vmatpush1.bf16.msra.mxu0 0
      %666 = vmatprep.subr.bf16.mxu0 0
      %667 = vmatpush1.bf16.msra.mxu0 0
      %668 = vmatprep.subr.bf16.mxu0 0
      %669 = vmatpush1.bf16.msra.mxu0 0
      %670 = vmatprep.subr.bf16.mxu0 0
      %671 = vmatpush1.bf16.msra.mxu0 %v654
      %672 = vmatprep.subr.bf16.mxu0 0
      %673 = vmatpush2.bf16.msra.mxu0 0
      %674 = vmatprep.subr.bf16.mxu0 0
      %675 = vmatpush2.bf16.msra.mxu0 0
      %676 = vmatprep.subr.bf16.mxu0 0
      %677 = vmatpush2.bf16.msra.mxu0 0
      %678 = vmatprep.subr.bf16.mxu0 0
      %679 = vmatpush2.bf16.msra.mxu0 0
      %680 = vmatprep.subr.bf16.mxu0 0
      %681 = vmatpush2.bf16.msra.mxu0 0
      %682 = vmatprep.subr.bf16.mxu0 0
      %683 = vmatpush2.bf16.msra.mxu0 0
      %684 = vmatprep.subr.bf16.mxu0 0
      %685 = vmatpush2.bf16.msra.mxu0 0
      %686 = vmatprep.subr.bf16.mxu0 0
      %687 = vmatpush2.bf16.msra.mxu0 0
      %688 = vmatprep.mubr.bf16.mxu0 0
      %689 = vmatmul.mubr.bf16.gmra.mxu0 %v627
      %v690 = vpop.f32.mrf.mxu0
      %v691 = vadd.f32 0.0, %v690
      %v692 = vpop.f32.mrf.mxu0
      %v693 = vpop.f32.mrf.mxu0
      %v694 = vadd.f32 0.0, %v693
      %v695 = vpop.f32.mrf.mxu0
      %696 = vmatprep.mubr.bf16.mxu0 0
      %697 = vmatmul.mubr.bf16.gmra.mxu0 %v630
      %v698 = vpop.f32.mrf.mxu0
      %v699 = vadd.f32 0.0, %v698
      %v700 = vpop.f32.mrf.mxu0
      %v701 = vpop.f32.mrf.mxu0
      %v702 = vadd.f32 0.0, %v701
      %v703 = vpop.f32.mrf.mxu0
      %704 = vmatprep.mubr.bf16.mxu0 0
      %705 = vmatmul.mubr.bf16.gmra.mxu0 %v633
      %v706 = vpop.f32.mrf.mxu0
      %v707 = vadd.f32 0.0, %v706
      %v708 = vpop.f32.mrf.mxu0
      %v709 = vpop.f32.mrf.mxu0
      %v710 = vadd.f32 0.0, %v709
      %v711 = vpop.f32.mrf.mxu0
      %712 = vmatprep.mubr.bf16.mxu0 0
      %713 = vmatmul.mubr.bf16.gmra.mxu0 %v636
      %v714 = vpop.f32.mrf.mxu0
      %v715 = vadd.f32 0.0, %v714
      %v716 = vpop.f32.mrf.mxu0
      %v717 = vpop.f32.mrf.mxu0
      %v718 = vadd.f32 0.0, %v717
      %v719 = vpop.f32.mrf.mxu0
      %720 = vmatprep.mubr.bf16.mxu0 0
      %721 = vmatmul.mubr.bf16.gmra.mxu0 %v639
      %v722 = vpop.f32.mrf.mxu0
      %v723 = vadd.f32 0.0, %v722
      %v724 = vpop.f32.mrf.mxu0
      %v725 = vpop.f32.mrf.mxu0
      %v726 = vadd.f32 0.0, %v725
      %v727 = vpop.f32.mrf.mxu0
      %728 = vmatprep.mubr.bf16.mxu0 0
      %729 = vmatmul.mubr.bf16.gmra.mxu0 %v642
      %v730 = vpop.f32.mrf.mxu0
      %v731 = vadd.f32 0.0, %v730
      %v732 = vpop.f32.mrf.mxu0
      %v733 = vpop.f32.mrf.mxu0
      %v734 = vadd.f32 0.0, %v733
      %v735 = vpop.f32.mrf.mxu0
      %736 = vmatprep.mubr.bf16.mxu0 0
      %737 = vmatmul.mubr.bf16.gmra.mxu0 %v645
      %v738 = vpop.f32.mrf.mxu0
      %v739 = vadd.f32 0.0, %v738
      %v740 = vpop.f32.mrf.mxu0
      %v741 = vpop.f32.mrf.mxu0
      %v742 = vadd.f32 0.0, %v741
      %v743 = vpop.f32.mrf.mxu0
      %744 = vmatprep.mubr.bf16.mxu0 0
      %745 = vmatmul.mubr.bf16.gmra.mxu0 %v648
      %v746 = vpop.f32.mrf.mxu0
      %v747 = vadd.f32 0.0, %v746
      %v748 = vpop.f32.mrf.mxu0
      %v749 = vpop.f32.mrf.mxu0
      %v750 = vadd.f32 0.0, %v749
      %v751 = vpop.f32.mrf.mxu0
      %752 = vmatprep.mubr.bf16.mxu0 0
      %753 = vmatmul.mubr.bf16.gmra.mxu0 %v651
      %v754 = vpop.f32.mrf.mxu0
      %v755 = vadd.f32 0.0, %v754
      %v756 = vpop.f32.mrf.mxu0
      %v757 = vpop.f32.mrf.mxu0
      %v758 = vadd.f32 0.0, %v757
      %v759 = vpop.f32.mrf.mxu0
      %760 = vdwg.mxu0
      %v761 = vadd.f32 %v528, %v691
      %v762 = vadd.f32 %v531, %v694
      %v763 = vadd.f32 %v536, %v699
      %v764 = vadd.f32 %v539, %v702
      %v765 = vadd.f32 %v544, %v707
      %v766 = vadd.f32 %v547, %v710
      %v767 = vadd.f32 %v552, %v715
      %v768 = vadd.f32 %v555, %v718
      %v769 = vadd.f32 %v560, %v723
      %v770 = vadd.f32 %v563, %v726
      %v771 = vadd.f32 %v568, %v731
      %v772 = vadd.f32 %v571, %v734
      %v773 = vadd.f32 %v576, %v739
      %v774 = vadd.f32 %v579, %v742
      %v775 = vadd.f32 %v584, %v747
      %v776 = vadd.f32 %v587, %v750
      %v777 = vadd.f32 %v592, %v755
      %v778 = vadd.f32 %v595, %v758
      %v779 = vld [vmem:[%s254 + $0x12] sm:$0xff]
      %v780 = vld [vmem:[%s254 + $0x1a] sm:$0xff]
      %v781 = vld [vmem:[%s254 + $0x22] sm:$0xff]
      %v782 = vld [vmem:[%s254 + $0x2a] sm:$0xff]
      %v783 = vld [vmem:[%s254 + $0x32] sm:$0xff]
      %v784 = vld [vmem:[%s254 + $0x3a] sm:$0xff]
      %v785 = vld [vmem:[%s254 + $0x42] sm:$0xff]
      %v786 = vld [vmem:[%s254 + $0x4a] sm:$0xff]
      %v787 = vld [vmem:[%s254 + $0x52] sm:$0xff]
      %v788 = vld [vmem:[%s254 + $0x5a] sm:$0xff]
      %v789 = vld [vmem:[%s254 + $0x62] sm:$0xff]
      %v790 = vld [vmem:[%s254 + $0x6a] sm:$0xff]
      %v791 = vld [vmem:[%s254 + $0x72] sm:$0xff]
      %v792 = vld [vmem:[%s254 + $0x7a] sm:$0xff]
      %v793 = vld [vmem:[%s254 + $0x82] sm:$0xff]
      %v794 = vld [vmem:[%s254 + $0x8a] sm:$0xff]
      %v795 = vld [vmem:[%s254 + $0x92] sm:$0xff]
      %v796 = vld [vmem:[%s254 + $0x9a] sm:$0xff]
      %v797 = vld [vmem:[%s1 + $0xc] sm:$0xf]
      %v798 = vpack.c.bf16 %v780, %v779
      %v799 = vpack.c.bf16 %v782, %v781
      %v800 = vpack.c.bf16 %v784, %v783
      %v801 = vpack.c.bf16 %v786, %v785
      %v802 = vpack.c.bf16 %v788, %v787
      %v803 = vpack.c.bf16 %v790, %v789
      %v804 = vpack.c.bf16 %v792, %v791
      %v805 = vpack.c.bf16 %v794, %v793
      %v806 = vpack.c.bf16 %v796, %v795
      %v808 = vsel %vm326, %v798, 0
      %v811 = vsel %vm326, %v799, 0
      %v814 = vsel %vm326, %v800, 0
      %v817 = vsel %vm326, %v801, 0
      %v820 = vsel %vm326, %v802, 0
      %v823 = vsel %vm326, %v803, 0
      %v826 = vsel %vm326, %v804, 0
      %v829 = vsel %vm326, %v805, 0
      %v832 = vsel %vm326, %v806, 0
      %v835 = vsel %vm354, %v797, 0
      %837 = vmatprep.subr.bf16.mxu0 0
      %838 = vmatpush1.bf16.msra.mxu0 0
      %839 = vmatprep.subr.bf16.mxu0 0
      %840 = vmatpush1.bf16.msra.mxu0 0
      %841 = vmatprep.subr.bf16.mxu0 0
      %842 = vmatpush1.bf16.msra.mxu0 0
      %843 = vmatprep.subr.bf16.mxu0 0
      %844 = vmatpush1.bf16.msra.mxu0 0
      %845 = vmatprep.subr.bf16.mxu0 0
      %846 = vmatpush1.bf16.msra.mxu0 0
      %847 = vmatprep.subr.bf16.mxu0 0
      %848 = vmatpush1.bf16.msra.mxu0 0
      %849 = vmatprep.subr.bf16.mxu0 0
      %850 = vmatpush1.bf16.msra.mxu0 0
      %851 = vmatprep.subr.bf16.mxu0 0
      %852 = vmatpush1.bf16.msra.mxu0 %v835
      %853 = vmatprep.subr.bf16.mxu0 0
      %854 = vmatpush2.bf16.msra.mxu0 0
      %855 = vmatprep.subr.bf16.mxu0 0
      %856 = vmatpush2.bf16.msra.mxu0 0
      %857 = vmatprep.subr.bf16.mxu0 0
      %858 = vmatpush2.bf16.msra.mxu0 0
      %859 = vmatprep.subr.bf16.mxu0 0
      %860 = vmatpush2.bf16.msra.mxu0 0
      %861 = vmatprep.subr.bf16.mxu0 0
      %862 = vmatpush2.bf16.msra.mxu0 0
      %863 = vmatprep.subr.bf16.mxu0 0
      %864 = vmatpush2.bf16.msra.mxu0 0
      %865 = vmatprep.subr.bf16.mxu0 0
      %866 = vmatpush2.bf16.msra.mxu0 0
      %867 = vmatprep.subr.bf16.mxu0 0
      %868 = vmatpush2.bf16.msra.mxu0 0
      %869 = vmatprep.mubr.bf16.mxu0 0
      %870 = vmatmul.mubr.bf16.gmra.mxu0 %v808
      %v871 = vpop.f32.mrf.mxu0
      %v872 = vadd.f32 0.0, %v871
      %v873 = vpop.f32.mrf.mxu0
      %v874 = vpop.f32.mrf.mxu0
      %v875 = vadd.f32 0.0, %v874
      %v876 = vpop.f32.mrf.mxu0
      %877 = vmatprep.mubr.bf16.mxu0 0
      %878 = vmatmul.mubr.bf16.gmra.mxu0 %v811
      %v879 = vpop.f32.mrf.mxu0
      %v880 = vadd.f32 0.0, %v879
      %v881 = vpop.f32.mrf.mxu0
      %v882 = vpop.f32.mrf.mxu0
      %v883 = vadd.f32 0.0, %v882
      %v884 = vpop.f32.mrf.mxu0
      %885 = vmatprep.mubr.bf16.mxu0 0
      %886 = vmatmul.mubr.bf16.gmra.mxu0 %v814
      %v887 = vpop.f32.mrf.mxu0
      %v888 = vadd.f32 0.0, %v887
      %v889 = vpop.f32.mrf.mxu0
      %v890 = vpop.f32.mrf.mxu0
      %v891 = vadd.f32 0.0, %v890
      %v892 = vpop.f32.mrf.mxu0
      %893 = vmatprep.mubr.bf16.mxu0 0
      %894 = vmatmul.mubr.bf16.gmra.mxu0 %v817
      %v895 = vpop.f32.mrf.mxu0
      %v896 = vadd.f32 0.0, %v895
      %v897 = vpop.f32.mrf.mxu0
      %v898 = vpop.f32.mrf.mxu0
      %v899 = vadd.f32 0.0, %v898
      %v900 = vpop.f32.mrf.mxu0
      %901 = vmatprep.mubr.bf16.mxu0 0
      %902 = vmatmul.mubr.bf16.gmra.mxu0 %v820
      %v903 = vpop.f32.mrf.mxu0
      %v904 = vadd.f32 0.0, %v903
      %v905 = vpop.f32.mrf.mxu0
      %v906 = vpop.f32.mrf.mxu0
      %v907 = vadd.f32 0.0, %v906
      %v908 = vpop.f32.mrf.mxu0
      %909 = vmatprep.mubr.bf16.mxu0 0
      %910 = vmatmul.mubr.bf16.gmra.mxu0 %v823
      %v911 = vpop.f32.mrf.mxu0
      %v912 = vadd.f32 0.0, %v911
      %v913 = vpop.f32.mrf.mxu0
      %v914 = vpop.f32.mrf.mxu0
      %v915 = vadd.f32 0.0, %v914
      %v916 = vpop.f32.mrf.mxu0
      %917 = vmatprep.mubr.bf16.mxu0 0
      %918 = vmatmul.mubr.bf16.gmra.mxu0 %v826
      %v919 = vpop.f32.mrf.mxu0
      %v920 = vadd.f32 0.0, %v919
      %v921 = vpop.f32.mrf.mxu0
      %v922 = vpop.f32.mrf.mxu0
      %v923 = vadd.f32 0.0, %v922
      %v924 = vpop.f32.mrf.mxu0
      %925 = vmatprep.mubr.bf16.mxu0 0
      %926 = vmatmul.mubr.bf16.gmra.mxu0 %v829
      %v927 = vpop.f32.mrf.mxu0
      %v928 = vadd.f32 0.0, %v927
      %v929 = vpop.f32.mrf.mxu0
      %v930 = vpop.f32.mrf.mxu0
      %v931 = vadd.f32 0.0, %v930
      %v932 = vpop.f32.mrf.mxu0
      %933 = vmatprep.mubr.bf16.mxu0 0
      %934 = vmatmul.mubr.bf16.gmra.mxu0 %v832
      %v935 = vpop.f32.mrf.mxu0
      %v936 = vadd.f32 0.0, %v935
      %v937 = vpop.f32.mrf.mxu0
      %v938 = vpop.f32.mrf.mxu0
      %v939 = vadd.f32 0.0, %v938
      %v940 = vpop.f32.mrf.mxu0
      %941 = vdwg.mxu0
      %v942 = vadd.f32 %v761, %v872
      %v943 = vadd.f32 %v762, %v875
      %v944 = vadd.f32 %v763, %v880
      %v945 = vadd.f32 %v764, %v883
      %v946 = vadd.f32 %v765, %v888
      %v947 = vadd.f32 %v766, %v891
      %v948 = vadd.f32 %v767, %v896
      %v949 = vadd.f32 %v768, %v899
      %v950 = vadd.f32 %v769, %v904
      %v951 = vadd.f32 %v770, %v907
      %v952 = vadd.f32 %v771, %v912
      %v953 = vadd.f32 %v772, %v915
      %v954 = vadd.f32 %v773, %v920
      %v955 = vadd.f32 %v774, %v923
      %v956 = vadd.f32 %v775, %v928
      %v957 = vadd.f32 %v776, %v931
      %v958 = vadd.f32 %v777, %v936
      %v959 = vadd.f32 %v778, %v939
      %v960 = vld [vmem:[%s254 + $0x13] sm:$0xff]
      %v961 = vld [vmem:[%s254 + $0x1b] sm:$0xff]
      %v962 = vld [vmem:[%s254 + $0x23] sm:$0xff]
      %v963 = vld [vmem:[%s254 + $0x2b] sm:$0xff]
      %v964 = vld [vmem:[%s254 + $0x33] sm:$0xff]
      %v965 = vld [vmem:[%s254 + $0x3b] sm:$0xff]
      %v966 = vld [vmem:[%s254 + $0x43] sm:$0xff]
      %v967 = vld [vmem:[%s254 + $0x4b] sm:$0xff]
      %v968 = vld [vmem:[%s254 + $0x53] sm:$0xff]
      %v969 = vld [vmem:[%s254 + $0x5b] sm:$0xff]
      %v970 = vld [vmem:[%s254 + $0x63] sm:$0xff]
      %v971 = vld [vmem:[%s254 + $0x6b] sm:$0xff]
      %v972 = vld [vmem:[%s254 + $0x73] sm:$0xff]
      %v973 = vld [vmem:[%s254 + $0x7b] sm:$0xff]
      %v974 = vld [vmem:[%s254 + $0x83] sm:$0xff]
      %v975 = vld [vmem:[%s254 + $0x8b] sm:$0xff]
      %v976 = vld [vmem:[%s254 + $0x93] sm:$0xff]
      %v977 = vld [vmem:[%s254 + $0x9b] sm:$0xff]
      %v978 = vld [vmem:[%s1 + $0x10] sm:$0xf]
      %v979 = vpack.c.bf16 %v961, %v960
      %v980 = vpack.c.bf16 %v963, %v962
      %v981 = vpack.c.bf16 %v965, %v964
      %v982 = vpack.c.bf16 %v967, %v966
      %v983 = vpack.c.bf16 %v969, %v968
      %v984 = vpack.c.bf16 %v971, %v970
      %v985 = vpack.c.bf16 %v973, %v972
      %v986 = vpack.c.bf16 %v975, %v974
      %v987 = vpack.c.bf16 %v977, %v976
      %v989 = vsel %vm326, %v979, 0
      %v992 = vsel %vm326, %v980, 0
      %v995 = vsel %vm326, %v981, 0
      %v998 = vsel %vm326, %v982, 0
      %v1001 = vsel %vm326, %v983, 0
      %v1004 = vsel %vm326, %v984, 0
      %v1007 = vsel %vm326, %v985, 0
      %v1010 = vsel %vm326, %v986, 0
      %v1013 = vsel %vm326, %v987, 0
      %v1016 = vsel %vm354, %v978, 0
      %1018 = vmatprep.subr.bf16.mxu0 0
      %1019 = vmatpush1.bf16.msra.mxu0 0
      %1020 = vmatprep.subr.bf16.mxu0 0
      %1021 = vmatpush1.bf16.msra.mxu0 0
      %1022 = vmatprep.subr.bf16.mxu0 0
      %1023 = vmatpush1.bf16.msra.mxu0 0
      %1024 = vmatprep.subr.bf16.mxu0 0
      %1025 = vmatpush1.bf16.msra.mxu0 0
      %1026 = vmatprep.subr.bf16.mxu0 0
      %1027 = vmatpush1.bf16.msra.mxu0 0
      %1028 = vmatprep.subr.bf16.mxu0 0
      %1029 = vmatpush1.bf16.msra.mxu0 0
      %1030 = vmatprep.subr.bf16.mxu0 0
      %1031 = vmatpush1.bf16.msra.mxu0 0
      %1032 = vmatprep.subr.bf16.mxu0 0
      %1033 = vmatpush1.bf16.msra.mxu0 %v1016
      %1034 = vmatprep.subr.bf16.mxu0 0
      %1035 = vmatpush2.bf16.msra.mxu0 0
      %1036 = vmatprep.subr.bf16.mxu0 0
      %1037 = vmatpush2.bf16.msra.mxu0 0
      %1038 = vmatprep.subr.bf16.mxu0 0
      %1039 = vmatpush2.bf16.msra.mxu0 0
      %1040 = vmatprep.subr.bf16.mxu0 0
      %1041 = vmatpush2.bf16.msra.mxu0 0
      %1042 = vmatprep.subr.bf16.mxu0 0
      %1043 = vmatpush2.bf16.msra.mxu0 0
      %1044 = vmatprep.subr.bf16.mxu0 0
      %1045 = vmatpush2.bf16.msra.mxu0 0
      %1046 = vmatprep.subr.bf16.mxu0 0
      %1047 = vmatpush2.bf16.msra.mxu0 0
      %1048 = vmatprep.subr.bf16.mxu0 0
      %1049 = vmatpush2.bf16.msra.mxu0 0
      %1050 = vmatprep.mubr.bf16.mxu0 0
      %1051 = vmatmul.mubr.bf16.gmra.mxu0 %v989
      %v1052 = vpop.f32.mrf.mxu0
      %v1053 = vadd.f32 0.0, %v1052
      %v1054 = vpop.f32.mrf.mxu0
      %v1055 = vpop.f32.mrf.mxu0
      %v1056 = vadd.f32 0.0, %v1055
      %v1057 = vpop.f32.mrf.mxu0
      %1058 = vmatprep.mubr.bf16.mxu0 0
      %1059 = vmatmul.mubr.bf16.gmra.mxu0 %v992
      %v1060 = vpop.f32.mrf.mxu0
      %v1061 = vadd.f32 0.0, %v1060
      %v1062 = vpop.f32.mrf.mxu0
      %v1063 = vpop.f32.mrf.mxu0
      %v1064 = vadd.f32 0.0, %v1063
      %v1065 = vpop.f32.mrf.mxu0
      %1066 = vmatprep.mubr.bf16.mxu0 0
      %1067 = vmatmul.mubr.bf16.gmra.mxu0 %v995
      %v1068 = vpop.f32.mrf.mxu0
      %v1069 = vadd.f32 0.0, %v1068
      %v1070 = vpop.f32.mrf.mxu0
      %v1071 = vpop.f32.mrf.mxu0
      %v1072 = vadd.f32 0.0, %v1071
      %v1073 = vpop.f32.mrf.mxu0
      %1074 = vmatprep.mubr.bf16.mxu0 0
      %1075 = vmatmul.mubr.bf16.gmra.mxu0 %v998
      %v1076 = vpop.f32.mrf.mxu0
      %v1077 = vadd.f32 0.0, %v1076
      %v1078 = vpop.f32.mrf.mxu0
      %v1079 = vpop.f32.mrf.mxu0
      %v1080 = vadd.f32 0.0, %v1079
      %v1081 = vpop.f32.mrf.mxu0
      %1082 = vmatprep.mubr.bf16.mxu0 0
      %1083 = vmatmul.mubr.bf16.gmra.mxu0 %v1001
      %v1084 = vpop.f32.mrf.mxu0
      %v1085 = vadd.f32 0.0, %v1084
      %v1086 = vpop.f32.mrf.mxu0
      %v1087 = vpop.f32.mrf.mxu0
      %v1088 = vadd.f32 0.0, %v1087
      %v1089 = vpop.f32.mrf.mxu0
      %1090 = vmatprep.mubr.bf16.mxu0 0
      %1091 = vmatmul.mubr.bf16.gmra.mxu0 %v1004
      %v1092 = vpop.f32.mrf.mxu0
      %v1093 = vadd.f32 0.0, %v1092
      %v1094 = vpop.f32.mrf.mxu0
      %v1095 = vpop.f32.mrf.mxu0
      %v1096 = vadd.f32 0.0, %v1095
      %v1097 = vpop.f32.mrf.mxu0
      %1098 = vmatprep.mubr.bf16.mxu0 0
      %1099 = vmatmul.mubr.bf16.gmra.mxu0 %v1007
      %v1100 = vpop.f32.mrf.mxu0
      %v1101 = vadd.f32 0.0, %v1100
      %v1102 = vpop.f32.mrf.mxu0
      %v1103 = vpop.f32.mrf.mxu0
      %v1104 = vadd.f32 0.0, %v1103
      %v1105 = vpop.f32.mrf.mxu0
      %1106 = vmatprep.mubr.bf16.mxu0 0
      %1107 = vmatmul.mubr.bf16.gmra.mxu0 %v1010
      %v1108 = vpop.f32.mrf.mxu0
      %v1109 = vadd.f32 0.0, %v1108
      %v1110 = vpop.f32.mrf.mxu0
      %v1111 = vpop.f32.mrf.mxu0
      %v1112 = vadd.f32 0.0, %v1111
      %v1113 = vpop.f32.mrf.mxu0
      %1114 = vmatprep.mubr.bf16.mxu0 0
      %1115 = vmatmul.mubr.bf16.gmra.mxu0 %v1013
      %v1116 = vpop.f32.mrf.mxu0
      %v1117 = vadd.f32 0.0, %v1116
      %v1118 = vpop.f32.mrf.mxu0
      %v1119 = vpop.f32.mrf.mxu0
      %v1120 = vadd.f32 0.0, %v1119
      %v1121 = vpop.f32.mrf.mxu0
      %1122 = vdwg.mxu0
      %v1123 = vadd.f32 %v942, %v1053
      %v1124 = vadd.f32 %v943, %v1056
      %v1125 = vadd.f32 %v944, %v1061
      %v1126 = vadd.f32 %v945, %v1064
      %v1127 = vadd.f32 %v946, %v1069
      %v1128 = vadd.f32 %v947, %v1072
      %v1129 = vadd.f32 %v948, %v1077
      %v1130 = vadd.f32 %v949, %v1080
      %v1131 = vadd.f32 %v950, %v1085
      %v1132 = vadd.f32 %v951, %v1088
      %v1133 = vadd.f32 %v952, %v1093
      %v1134 = vadd.f32 %v953, %v1096
      %v1135 = vadd.f32 %v954, %v1101
      %v1136 = vadd.f32 %v955, %v1104
      %v1137 = vadd.f32 %v956, %v1109
      %v1138 = vadd.f32 %v957, %v1112
      %v1139 = vadd.f32 %v958, %v1117
      %v1140 = vadd.f32 %v959, %v1120
      %v1141 = vld [vmem:[%s254 + $0x14] sm:$0xff]
      %v1142 = vld [vmem:[%s254 + $0x1c] sm:$0xff]
      %v1143 = vld [vmem:[%s254 + $0x24] sm:$0xff]
      %v1144 = vld [vmem:[%s254 + $0x2c] sm:$0xff]
      %v1145 = vld [vmem:[%s254 + $0x34] sm:$0xff]
      %v1146 = vld [vmem:[%s254 + $0x3c] sm:$0xff]
      %v1147 = vld [vmem:[%s254 + $0x44] sm:$0xff]
      %v1148 = vld [vmem:[%s254 + $0x4c] sm:$0xff]
      %v1149 = vld [vmem:[%s254 + $0x54] sm:$0xff]
      %v1150 = vld [vmem:[%s254 + $0x5c] sm:$0xff]
      %v1151 = vld [vmem:[%s254 + $0x64] sm:$0xff]
      %v1152 = vld [vmem:[%s254 + $0x6c] sm:$0xff]
      %v1153 = vld [vmem:[%s254 + $0x74] sm:$0xff]
      %v1154 = vld [vmem:[%s254 + $0x7c] sm:$0xff]
      %v1155 = vld [vmem:[%s254 + $0x84] sm:$0xff]
      %v1156 = vld [vmem:[%s254 + $0x8c] sm:$0xff]
      %v1157 = vld [vmem:[%s254 + $0x94] sm:$0xff]
      %v1158 = vld [vmem:[%s254 + $0x9c] sm:$0xff]
      %v1159 = vld [vmem:[%s1 + $0x14] sm:$0xf]
      %v1160 = vpack.c.bf16 %v1142, %v1141
      %v1161 = vpack.c.bf16 %v1144, %v1143
      %v1162 = vpack.c.bf16 %v1146, %v1145
      %v1163 = vpack.c.bf16 %v1148, %v1147
      %v1164 = vpack.c.bf16 %v1150, %v1149
      %v1165 = vpack.c.bf16 %v1152, %v1151
      %v1166 = vpack.c.bf16 %v1154, %v1153
      %v1167 = vpack.c.bf16 %v1156, %v1155
      %v1168 = vpack.c.bf16 %v1158, %v1157
      %v1170 = vsel %vm326, %v1160, 0
      %v1173 = vsel %vm326, %v1161, 0
      %v1176 = vsel %vm326, %v1162, 0
      %v1179 = vsel %vm326, %v1163, 0
      %v1182 = vsel %vm326, %v1164, 0
      %v1185 = vsel %vm326, %v1165, 0
      %v1188 = vsel %vm326, %v1166, 0
      %v1191 = vsel %vm326, %v1167, 0
      %v1194 = vsel %vm326, %v1168, 0
      %v1197 = vsel %vm354, %v1159, 0
      %1199 = vmatprep.subr.bf16.mxu0 0
      %1200 = vmatpush1.bf16.msra.mxu0 0
      %1201 = vmatprep.subr.bf16.mxu0 0
      %1202 = vmatpush1.bf16.msra.mxu0 0
      %1203 = vmatprep.subr.bf16.mxu0 0
      %1204 = vmatpush1.bf16.msra.mxu0 0
      %1205 = vmatprep.subr.bf16.mxu0 0
      %1206 = vmatpush1.bf16.msra.mxu0 0
      %1207 = vmatprep.subr.bf16.mxu0 0
      %1208 = vmatpush1.bf16.msra.mxu0 0
      %1209 = vmatprep.subr.bf16.mxu0 0
      %1210 = vmatpush1.bf16.msra.mxu0 0
      %1211 = vmatprep.subr.bf16.mxu0 0
      %1212 = vmatpush1.bf16.msra.mxu0 0
      %1213 = vmatprep.subr.bf16.mxu0 0
      %1214 = vmatpush1.bf16.msra.mxu0 %v1197
      %1215 = vmatprep.subr.bf16.mxu0 0
      %1216 = vmatpush2.bf16.msra.mxu0 0
      %1217 = vmatprep.subr.bf16.mxu0 0
      %1218 = vmatpush2.bf16.msra.mxu0 0
      %1219 = vmatprep.subr.bf16.mxu0 0
      %1220 = vmatpush2.bf16.msra.mxu0 0
      %1221 = vmatprep.subr.bf16.mxu0 0
      %1222 = vmatpush2.bf16.msra.mxu0 0
      %1223 = vmatprep.subr.bf16.mxu0 0
      %1224 = vmatpush2.bf16.msra.mxu0 0
      %1225 = vmatprep.subr.bf16.mxu0 0
      %1226 = vmatpush2.bf16.msra.mxu0 0
      %1227 = vmatprep.subr.bf16.mxu0 0
      %1228 = vmatpush2.bf16.msra.mxu0 0
      %1229 = vmatprep.subr.bf16.mxu0 0
      %1230 = vmatpush2.bf16.msra.mxu0 0
      %1231 = vmatprep.mubr.bf16.mxu0 0
      %1232 = vmatmul.mubr.bf16.gmra.mxu0 %v1170
      %v1233 = vpop.f32.mrf.mxu0
      %v1234 = vadd.f32 0.0, %v1233
      %v1235 = vpop.f32.mrf.mxu0
      %v1236 = vpop.f32.mrf.mxu0
      %v1237 = vadd.f32 0.0, %v1236
      %v1238 = vpop.f32.mrf.mxu0
      %1239 = vmatprep.mubr.bf16.mxu0 0
      %1240 = vmatmul.mubr.bf16.gmra.mxu0 %v1173
      %v1241 = vpop.f32.mrf.mxu0
      %v1242 = vadd.f32 0.0, %v1241
      %v1243 = vpop.f32.mrf.mxu0
      %v1244 = vpop.f32.mrf.mxu0
      %v1245 = vadd.f32 0.0, %v1244
      %v1246 = vpop.f32.mrf.mxu0
      %1247 = vmatprep.mubr.bf16.mxu0 0
      %1248 = vmatmul.mubr.bf16.gmra.mxu0 %v1176
      %v1249 = vpop.f32.mrf.mxu0
      %v1250 = vadd.f32 0.0, %v1249
      %v1251 = vpop.f32.mrf.mxu0
      %v1252 = vpop.f32.mrf.mxu0
      %v1253 = vadd.f32 0.0, %v1252
      %v1254 = vpop.f32.mrf.mxu0
      %1255 = vmatprep.mubr.bf16.mxu0 0
      %1256 = vmatmul.mubr.bf16.gmra.mxu0 %v1179
      %v1257 = vpop.f32.mrf.mxu0
      %v1258 = vadd.f32 0.0, %v1257
      %v1259 = vpop.f32.mrf.mxu0
      %v1260 = vpop.f32.mrf.mxu0
      %v1261 = vadd.f32 0.0, %v1260
      %v1262 = vpop.f32.mrf.mxu0
      %1263 = vmatprep.mubr.bf16.mxu0 0
      %1264 = vmatmul.mubr.bf16.gmra.mxu0 %v1182
      %v1265 = vpop.f32.mrf.mxu0
      %v1266 = vadd.f32 0.0, %v1265
      %v1267 = vpop.f32.mrf.mxu0
      %v1268 = vpop.f32.mrf.mxu0
      %v1269 = vadd.f32 0.0, %v1268
      %v1270 = vpop.f32.mrf.mxu0
      %1271 = vmatprep.mubr.bf16.mxu0 0
      %1272 = vmatmul.mubr.bf16.gmra.mxu0 %v1185
      %v1273 = vpop.f32.mrf.mxu0
      %v1274 = vadd.f32 0.0, %v1273
      %v1275 = vpop.f32.mrf.mxu0
      %v1276 = vpop.f32.mrf.mxu0
      %v1277 = vadd.f32 0.0, %v1276
      %v1278 = vpop.f32.mrf.mxu0
      %1279 = vmatprep.mubr.bf16.mxu0 0
      %1280 = vmatmul.mubr.bf16.gmra.mxu0 %v1188
      %v1281 = vpop.f32.mrf.mxu0
      %v1282 = vadd.f32 0.0, %v1281
      %v1283 = vpop.f32.mrf.mxu0
      %v1284 = vpop.f32.mrf.mxu0
      %v1285 = vadd.f32 0.0, %v1284
      %v1286 = vpop.f32.mrf.mxu0
      %1287 = vmatprep.mubr.bf16.mxu0 0
      %1288 = vmatmul.mubr.bf16.gmra.mxu0 %v1191
      %v1289 = vpop.f32.mrf.mxu0
      %v1290 = vadd.f32 0.0, %v1289
      %v1291 = vpop.f32.mrf.mxu0
      %v1292 = vpop.f32.mrf.mxu0
      %v1293 = vadd.f32 0.0, %v1292
      %v1294 = vpop.f32.mrf.mxu0
      %1295 = vmatprep.mubr.bf16.mxu0 0
      %1296 = vmatmul.mubr.bf16.gmra.mxu0 %v1194
      %v1297 = vpop.f32.mrf.mxu0
      %v1298 = vadd.f32 0.0, %v1297
      %v1299 = vpop.f32.mrf.mxu0
      %v1300 = vpop.f32.mrf.mxu0
      %v1301 = vadd.f32 0.0, %v1300
      %v1302 = vpop.f32.mrf.mxu0
      %1303 = vdwg.mxu0
      %v1304 = vadd.f32 %v1123, %v1234
      %v1305 = vadd.f32 %v1124, %v1237
      %v1306 = vadd.f32 %v1125, %v1242
      %v1307 = vadd.f32 %v1126, %v1245
      %v1308 = vadd.f32 %v1127, %v1250
      %v1309 = vadd.f32 %v1128, %v1253
      %v1310 = vadd.f32 %v1129, %v1258
      %v1311 = vadd.f32 %v1130, %v1261
      %v1312 = vadd.f32 %v1131, %v1266
      %v1313 = vadd.f32 %v1132, %v1269
      %v1314 = vadd.f32 %v1133, %v1274
      %v1315 = vadd.f32 %v1134, %v1277
      %v1316 = vadd.f32 %v1135, %v1282
      %v1317 = vadd.f32 %v1136, %v1285
      %v1318 = vadd.f32 %v1137, %v1290
      %v1319 = vadd.f32 %v1138, %v1293
      %v1320 = vadd.f32 %v1139, %v1298
      %v1321 = vadd.f32 %v1140, %v1301
      %v1322 = vld [vmem:[%s254 + $0x24] sm:$0xff]
      %v1323 = vld [vmem:[%s254 + $0x2c] sm:$0xff]
      %v1324 = vld [vmem:[%s254 + $0x34] sm:$0xff]
      %v1325 = vld [vmem:[%s254 + $0x3c] sm:$0xff]
      %v1326 = vld [vmem:[%s254 + $0x44] sm:$0xff]
      %v1327 = vld [vmem:[%s254 + $0x4c] sm:$0xff]
      %v1328 = vld [vmem:[%s254 + $0x54] sm:$0xff]
      %v1329 = vld [vmem:[%s254 + $0x5c] sm:$0xff]
      %v1330 = vld [vmem:[%s254 + $0x64] sm:$0xff]
      %v1331 = vld [vmem:[%s254 + $0x6c] sm:$0xff]
      %v1332 = vld [vmem:[%s254 + $0x74] sm:$0xff]
      %v1333 = vld [vmem:[%s254 + $0x7c] sm:$0xff]
      %v1334 = vld [vmem:[%s254 + $0x84] sm:$0xff]
      %v1335 = vld [vmem:[%s254 + $0x8c] sm:$0xff]
      %v1336 = vld [vmem:[%s254 + $0x94] sm:$0xff]
      %v1337 = vld [vmem:[%s254 + $0x9c] sm:$0xff]
      %v1338 = vld [vmem:[%s254 + $0xa4] sm:$0xff]
      %v1339 = vld [vmem:[%s254 + $0xac] sm:$0xff]
      %v1340 = vld [vmem:[%s1 + $0x18] sm:$0xf]
      %v1341 = vpack.c.bf16 %v1323, %v1322
      %v1342 = vpack.c.bf16 %v1325, %v1324
      %v1343 = vpack.c.bf16 %v1327, %v1326
      %v1344 = vpack.c.bf16 %v1329, %v1328
      %v1345 = vpack.c.bf16 %v1331, %v1330
      %v1346 = vpack.c.bf16 %v1333, %v1332
      %v1347 = vpack.c.bf16 %v1335, %v1334
      %v1348 = vpack.c.bf16 %v1337, %v1336
      %v1349 = vpack.c.bf16 %v1339, %v1338
      %v1351 = vsel %vm326, %v1341, 0
      %v1354 = vsel %vm326, %v1342, 0
      %v1357 = vsel %vm326, %v1343, 0
      %v1360 = vsel %vm326, %v1344, 0
      %v1363 = vsel %vm326, %v1345, 0
      %v1366 = vsel %vm326, %v1346, 0
      %v1369 = vsel %vm326, %v1347, 0
      %v1372 = vsel %vm326, %v1348, 0
      %v1375 = vsel %vm326, %v1349, 0
      %v1378 = vsel %vm354, %v1340, 0
      %1380 = vmatprep.subr.bf16.mxu0 0
      %1381 = vmatpush1.bf16.msra.mxu0 0
      %1382 = vmatprep.subr.bf16.mxu0 0
      %1383 = vmatpush1.bf16.msra.mxu0 0
      %1384 = vmatprep.subr.bf16.mxu0 0
      %1385 = vmatpush1.bf16.msra.mxu0 0
      %1386 = vmatprep.subr.bf16.mxu0 0
      %1387 = vmatpush1.bf16.msra.mxu0 0
      %1388 = vmatprep.subr.bf16.mxu0 0
      %1389 = vmatpush1.bf16.msra.mxu0 0
      %1390 = vmatprep.subr.bf16.mxu0 0
      %1391 = vmatpush1.bf16.msra.mxu0 0
      %1392 = vmatprep.subr.bf16.mxu0 0
      %1393 = vmatpush1.bf16.msra.mxu0 0
      %1394 = vmatprep.subr.bf16.mxu0 0
      %1395 = vmatpush1.bf16.msra.mxu0 %v1378
      %1396 = vmatprep.subr.bf16.mxu0 0
      %1397 = vmatpush2.bf16.msra.mxu0 0
      %1398 = vmatprep.subr.bf16.mxu0 0
      %1399 = vmatpush2.bf16.msra.mxu0 0
      %1400 = vmatprep.subr.bf16.mxu0 0
      %1401 = vmatpush2.bf16.msra.mxu0 0
      %1402 = vmatprep.subr.bf16.mxu0 0
      %1403 = vmatpush2.bf16.msra.mxu0 0
      %1404 = vmatprep.subr.bf16.mxu0 0
      %1405 = vmatpush2.bf16.msra.mxu0 0
      %1406 = vmatprep.subr.bf16.mxu0 0
      %1407 = vmatpush2.bf16.msra.mxu0 0
      %1408 = vmatprep.subr.bf16.mxu0 0
      %1409 = vmatpush2.bf16.msra.mxu0 0
      %1410 = vmatprep.subr.bf16.mxu0 0
      %1411 = vmatpush2.bf16.msra.mxu0 0
      %1412 = vmatprep.mubr.bf16.mxu0 0
      %1413 = vmatmul.mubr.bf16.gmra.mxu0 %v1351
      %v1414 = vpop.f32.mrf.mxu0
      %v1415 = vadd.f32 0.0, %v1414
      %v1416 = vpop.f32.mrf.mxu0
      %v1417 = vpop.f32.mrf.mxu0
      %v1418 = vadd.f32 0.0, %v1417
      %v1419 = vpop.f32.mrf.mxu0
      %1420 = vmatprep.mubr.bf16.mxu0 0
      %1421 = vmatmul.mubr.bf16.gmra.mxu0 %v1354
      %v1422 = vpop.f32.mrf.mxu0
      %v1423 = vadd.f32 0.0, %v1422
      %v1424 = vpop.f32.mrf.mxu0
      %v1425 = vpop.f32.mrf.mxu0
      %v1426 = vadd.f32 0.0, %v1425
      %v1427 = vpop.f32.mrf.mxu0
      %1428 = vmatprep.mubr.bf16.mxu0 0
      %1429 = vmatmul.mubr.bf16.gmra.mxu0 %v1357
      %v1430 = vpop.f32.mrf.mxu0
      %v1431 = vadd.f32 0.0, %v1430
      %v1432 = vpop.f32.mrf.mxu0
      %v1433 = vpop.f32.mrf.mxu0
      %v1434 = vadd.f32 0.0, %v1433
      %v1435 = vpop.f32.mrf.mxu0
      %1436 = vmatprep.mubr.bf16.mxu0 0
      %1437 = vmatmul.mubr.bf16.gmra.mxu0 %v1360
      %v1438 = vpop.f32.mrf.mxu0
      %v1439 = vadd.f32 0.0, %v1438
      %v1440 = vpop.f32.mrf.mxu0
      %v1441 = vpop.f32.mrf.mxu0
      %v1442 = vadd.f32 0.0, %v1441
      %v1443 = vpop.f32.mrf.mxu0
      %1444 = vmatprep.mubr.bf16.mxu0 0
      %1445 = vmatmul.mubr.bf16.gmra.mxu0 %v1363
      %v1446 = vpop.f32.mrf.mxu0
      %v1447 = vadd.f32 0.0, %v1446
      %v1448 = vpop.f32.mrf.mxu0
      %v1449 = vpop.f32.mrf.mxu0
      %v1450 = vadd.f32 0.0, %v1449
      %v1451 = vpop.f32.mrf.mxu0
      %1452 = vmatprep.mubr.bf16.mxu0 0
      %1453 = vmatmul.mubr.bf16.gmra.mxu0 %v1366
      %v1454 = vpop.f32.mrf.mxu0
      %v1455 = vadd.f32 0.0, %v1454
      %v1456 = vpop.f32.mrf.mxu0
      %v1457 = vpop.f32.mrf.mxu0
      %v1458 = vadd.f32 0.0, %v1457
      %v1459 = vpop.f32.mrf.mxu0
      %1460 = vmatprep.mubr.bf16.mxu0 0
      %1461 = vmatmul.mubr.bf16.gmra.mxu0 %v1369
      %v1462 = vpop.f32.mrf.mxu0
      %v1463 = vadd.f32 0.0, %v1462
      %v1464 = vpop.f32.mrf.mxu0
      %v1465 = vpop.f32.mrf.mxu0
      %v1466 = vadd.f32 0.0, %v1465
      %v1467 = vpop.f32.mrf.mxu0
      %1468 = vmatprep.mubr.bf16.mxu0 0
      %1469 = vmatmul.mubr.bf16.gmra.mxu0 %v1372
      %v1470 = vpop.f32.mrf.mxu0
      %v1471 = vadd.f32 0.0, %v1470
      %v1472 = vpop.f32.mrf.mxu0
      %v1473 = vpop.f32.mrf.mxu0
      %v1474 = vadd.f32 0.0, %v1473
      %v1475 = vpop.f32.mrf.mxu0
      %1476 = vmatprep.mubr.bf16.mxu0 0
      %1477 = vmatmul.mubr.bf16.gmra.mxu0 %v1375
      %v1478 = vpop.f32.mrf.mxu0
      %v1479 = vadd.f32 0.0, %v1478
      %v1480 = vpop.f32.mrf.mxu0
      %v1481 = vpop.f32.mrf.mxu0
      %v1482 = vadd.f32 0.0, %v1481
      %v1483 = vpop.f32.mrf.mxu0
      %1484 = vdwg.mxu0
      %v1485 = vadd.f32 %v1304, %v1415
      %v1486 = vadd.f32 %v1305, %v1418
      %v1487 = vadd.f32 %v1306, %v1423
      %v1488 = vadd.f32 %v1307, %v1426
      %v1489 = vadd.f32 %v1308, %v1431
      %v1490 = vadd.f32 %v1309, %v1434
      %v1491 = vadd.f32 %v1310, %v1439
      %v1492 = vadd.f32 %v1311, %v1442
      %v1493 = vadd.f32 %v1312, %v1447
      %v1494 = vadd.f32 %v1313, %v1450
      %v1495 = vadd.f32 %v1314, %v1455
      %v1496 = vadd.f32 %v1315, %v1458
      %v1497 = vadd.f32 %v1316, %v1463
      %v1498 = vadd.f32 %v1317, %v1466
      %v1499 = vadd.f32 %v1318, %v1471
      %v1500 = vadd.f32 %v1319, %v1474
      %v1501 = vadd.f32 %v1320, %v1479
      %v1502 = vadd.f32 %v1321, %v1482
      %v1503 = vld [vmem:[%s254 + $0x25] sm:$0xff]
      %v1504 = vld [vmem:[%s254 + $0x2d] sm:$0xff]
      %v1505 = vld [vmem:[%s254 + $0x35] sm:$0xff]
      %v1506 = vld [vmem:[%s254 + $0x3d] sm:$0xff]
      %v1507 = vld [vmem:[%s254 + $0x45] sm:$0xff]
      %v1508 = vld [vmem:[%s254 + $0x4d] sm:$0xff]
      %v1509 = vld [vmem:[%s254 + $0x55] sm:$0xff]
      %v1510 = vld [vmem:[%s254 + $0x5d] sm:$0xff]
      %v1511 = vld [vmem:[%s254 + $0x65] sm:$0xff]
      %v1512 = vld [vmem:[%s254 + $0x6d] sm:$0xff]
      %v1513 = vld [vmem:[%s254 + $0x75] sm:$0xff]
      %v1514 = vld [vmem:[%s254 + $0x7d] sm:$0xff]
      %v1515 = vld [vmem:[%s254 + $0x85] sm:$0xff]
      %v1516 = vld [vmem:[%s254 + $0x8d] sm:$0xff]
      %v1517 = vld [vmem:[%s254 + $0x95] sm:$0xff]
      %v1518 = vld [vmem:[%s254 + $0x9d] sm:$0xff]
      %v1519 = vld [vmem:[%s254 + $0xa5] sm:$0xff]
      %v1520 = vld [vmem:[%s254 + $0xad] sm:$0xff]
      %v1521 = vld [vmem:[%s1 + $0x1c] sm:$0xf]
      %v1522 = vpack.c.bf16 %v1504, %v1503
      %v1523 = vpack.c.bf16 %v1506, %v1505
      %v1524 = vpack.c.bf16 %v1508, %v1507
      %v1525 = vpack.c.bf16 %v1510, %v1509
      %v1526 = vpack.c.bf16 %v1512, %v1511
      %v1527 = vpack.c.bf16 %v1514, %v1513
      %v1528 = vpack.c.bf16 %v1516, %v1515
      %v1529 = vpack.c.bf16 %v1518, %v1517
      %v1530 = vpack.c.bf16 %v1520, %v1519
      %v1532 = vsel %vm326, %v1522, 0
      %v1535 = vsel %vm326, %v1523, 0
      %v1538 = vsel %vm326, %v1524, 0
      %v1541 = vsel %vm326, %v1525, 0
      %v1544 = vsel %vm326, %v1526, 0
      %v1547 = vsel %vm326, %v1527, 0
      %v1550 = vsel %vm326, %v1528, 0
      %v1553 = vsel %vm326, %v1529, 0
      %v1556 = vsel %vm326, %v1530, 0
      %v1559 = vsel %vm354, %v1521, 0
      %1561 = vmatprep.subr.bf16.mxu0 0
      %1562 = vmatpush1.bf16.msra.mxu0 0
      %1563 = vmatprep.subr.bf16.mxu0 0
      %1564 = vmatpush1.bf16.msra.mxu0 0
      %1565 = vmatprep.subr.bf16.mxu0 0
      %1566 = vmatpush1.bf16.msra.mxu0 0
      %1567 = vmatprep.subr.bf16.mxu0 0
      %1568 = vmatpush1.bf16.msra.mxu0 0
      %1569 = vmatprep.subr.bf16.mxu0 0
      %1570 = vmatpush1.bf16.msra.mxu0 0
      %1571 = vmatprep.subr.bf16.mxu0 0
      %1572 = vmatpush1.bf16.msra.mxu0 0
      %1573 = vmatprep.subr.bf16.mxu0 0
      %1574 = vmatpush1.bf16.msra.mxu0 0
      %1575 = vmatprep.subr.bf16.mxu0 0
      %1576 = vmatpush1.bf16.msra.mxu0 %v1559
      %1577 = vmatprep.subr.bf16.mxu0 0
      %1578 = vmatpush2.bf16.msra.mxu0 0
      %1579 = vmatprep.subr.bf16.mxu0 0
      %1580 = vmatpush2.bf16.msra.mxu0 0
      %1581 = vmatprep.subr.bf16.mxu0 0
      %1582 = vmatpush2.bf16.msra.mxu0 0
      %1583 = vmatprep.subr.bf16.mxu0 0
      %1584 = vmatpush2.bf16.msra.mxu0 0
      %1585 = vmatprep.subr.bf16.mxu0 0
      %1586 = vmatpush2.bf16.msra.mxu0 0
      %1587 = vmatprep.subr.bf16.mxu0 0
      %1588 = vmatpush2.bf16.msra.mxu0 0
      %1589 = vmatprep.subr.bf16.mxu0 0
      %1590 = vmatpush2.bf16.msra.mxu0 0
      %1591 = vmatprep.subr.bf16.mxu0 0
      %1592 = vmatpush2.bf16.msra.mxu0 0
      %1593 = vmatprep.mubr.bf16.mxu0 0
      %1594 = vmatmul.mubr.bf16.gmra.mxu0 %v1532
      %v1595 = vpop.f32.mrf.mxu0
      %v1596 = vadd.f32 0.0, %v1595
      %v1597 = vpop.f32.mrf.mxu0
      %v1598 = vpop.f32.mrf.mxu0
      %v1599 = vadd.f32 0.0, %v1598
      %v1600 = vpop.f32.mrf.mxu0
      %1601 = vmatprep.mubr.bf16.mxu0 0
      %1602 = vmatmul.mubr.bf16.gmra.mxu0 %v1535
      %v1603 = vpop.f32.mrf.mxu0
      %v1604 = vadd.f32 0.0, %v1603
      %v1605 = vpop.f32.mrf.mxu0
      %v1606 = vpop.f32.mrf.mxu0
      %v1607 = vadd.f32 0.0, %v1606
      %v1608 = vpop.f32.mrf.mxu0
      %1609 = vmatprep.mubr.bf16.mxu0 0
      %1610 = vmatmul.mubr.bf16.gmra.mxu0 %v1538
      %v1611 = vpop.f32.mrf.mxu0
      %v1612 = vadd.f32 0.0, %v1611
      %v1613 = vpop.f32.mrf.mxu0
      %v1614 = vpop.f32.mrf.mxu0
      %v1615 = vadd.f32 0.0, %v1614
      %v1616 = vpop.f32.mrf.mxu0
      %1617 = vmatprep.mubr.bf16.mxu0 0
      %1618 = vmatmul.mubr.bf16.gmra.mxu0 %v1541
      %v1619 = vpop.f32.mrf.mxu0
      %v1620 = vadd.f32 0.0, %v1619
      %v1621 = vpop.f32.mrf.mxu0
      %v1622 = vpop.f32.mrf.mxu0
      %v1623 = vadd.f32 0.0, %v1622
      %v1624 = vpop.f32.mrf.mxu0
      %1625 = vmatprep.mubr.bf16.mxu0 0
      %1626 = vmatmul.mubr.bf16.gmra.mxu0 %v1544
      %v1627 = vpop.f32.mrf.mxu0
      %v1628 = vadd.f32 0.0, %v1627
      %v1629 = vpop.f32.mrf.mxu0
      %v1630 = vpop.f32.mrf.mxu0
      %v1631 = vadd.f32 0.0, %v1630
      %v1632 = vpop.f32.mrf.mxu0
      %1633 = vmatprep.mubr.bf16.mxu0 0
      %1634 = vmatmul.mubr.bf16.gmra.mxu0 %v1547
      %v1635 = vpop.f32.mrf.mxu0
      %v1636 = vadd.f32 0.0, %v1635
      %v1637 = vpop.f32.mrf.mxu0
      %v1638 = vpop.f32.mrf.mxu0
      %v1639 = vadd.f32 0.0, %v1638
      %v1640 = vpop.f32.mrf.mxu0
      %1641 = vmatprep.mubr.bf16.mxu0 0
      %1642 = vmatmul.mubr.bf16.gmra.mxu0 %v1550
      %v1643 = vpop.f32.mrf.mxu0
      %v1644 = vadd.f32 0.0, %v1643
      %v1645 = vpop.f32.mrf.mxu0
      %v1646 = vpop.f32.mrf.mxu0
      %v1647 = vadd.f32 0.0, %v1646
      %v1648 = vpop.f32.mrf.mxu0
      %1649 = vmatprep.mubr.bf16.mxu0 0
      %1650 = vmatmul.mubr.bf16.gmra.mxu0 %v1553
      %v1651 = vpop.f32.mrf.mxu0
      %v1652 = vadd.f32 0.0, %v1651
      %v1653 = vpop.f32.mrf.mxu0
      %v1654 = vpop.f32.mrf.mxu0
      %v1655 = vadd.f32 0.0, %v1654
      %v1656 = vpop.f32.mrf.mxu0
      %1657 = vmatprep.mubr.bf16.mxu0 0
      %1658 = vmatmul.mubr.bf16.gmra.mxu0 %v1556
      %v1659 = vpop.f32.mrf.mxu0
      %v1660 = vadd.f32 0.0, %v1659
      %v1661 = vpop.f32.mrf.mxu0
      %v1662 = vpop.f32.mrf.mxu0
      %v1663 = vadd.f32 0.0, %v1662
      %v1664 = vpop.f32.mrf.mxu0
      %1665 = vdwg.mxu0
      %v1666 = vadd.f32 %v1485, %v1596
      %v1667 = vadd.f32 %v1486, %v1599
      %v1668 = vadd.f32 %v1487, %v1604
      %v1669 = vadd.f32 %v1488, %v1607
      %v1670 = vadd.f32 %v1489, %v1612
      %v1671 = vadd.f32 %v1490, %v1615
      %v1672 = vadd.f32 %v1491, %v1620
      %v1673 = vadd.f32 %v1492, %v1623
      %v1674 = vadd.f32 %v1493, %v1628
      %v1675 = vadd.f32 %v1494, %v1631
      %v1676 = vadd.f32 %v1495, %v1636
      %v1677 = vadd.f32 %v1496, %v1639
      %v1678 = vadd.f32 %v1497, %v1644
      %v1679 = vadd.f32 %v1498, %v1647
      %v1680 = vadd.f32 %v1499, %v1652
      %v1681 = vadd.f32 %v1500, %v1655
      %v1682 = vadd.f32 %v1501, %v1660
      %v1683 = vadd.f32 %v1502, %v1663
      %v1684 = vld [vmem:[%s254 + $0x26] sm:$0xff]
      %v1685 = vld [vmem:[%s254 + $0x2e] sm:$0xff]
      %v1686 = vld [vmem:[%s254 + $0x36] sm:$0xff]
      %v1687 = vld [vmem:[%s254 + $0x3e] sm:$0xff]
      %v1688 = vld [vmem:[%s254 + $0x46] sm:$0xff]
      %v1689 = vld [vmem:[%s254 + $0x4e] sm:$0xff]
      %v1690 = vld [vmem:[%s254 + $0x56] sm:$0xff]
      %v1691 = vld [vmem:[%s254 + $0x5e] sm:$0xff]
      %v1692 = vld [vmem:[%s254 + $0x66] sm:$0xff]
      %v1693 = vld [vmem:[%s254 + $0x6e] sm:$0xff]
      %v1694 = vld [vmem:[%s254 + $0x76] sm:$0xff]
      %v1695 = vld [vmem:[%s254 + $0x7e] sm:$0xff]
      %v1696 = vld [vmem:[%s254 + $0x86] sm:$0xff]
      %v1697 = vld [vmem:[%s254 + $0x8e] sm:$0xff]
      %v1698 = vld [vmem:[%s254 + $0x96] sm:$0xff]
      %v1699 = vld [vmem:[%s254 + $0x9e] sm:$0xff]
      %v1700 = vld [vmem:[%s254 + $0xa6] sm:$0xff]
      %v1701 = vld [vmem:[%s254 + $0xae] sm:$0xff]
      %v1702 = vld [vmem:[%s1 + $0x20] sm:$0xf]
      %v1703 = vpack.c.bf16 %v1685, %v1684
      %v1704 = vpack.c.bf16 %v1687, %v1686
      %v1705 = vpack.c.bf16 %v1689, %v1688
      %v1706 = vpack.c.bf16 %v1691, %v1690
      %v1707 = vpack.c.bf16 %v1693, %v1692
      %v1708 = vpack.c.bf16 %v1695, %v1694
      %v1709 = vpack.c.bf16 %v1697, %v1696
      %v1710 = vpack.c.bf16 %v1699, %v1698
      %v1711 = vpack.c.bf16 %v1701, %v1700
      %v1713 = vsel %vm326, %v1703, 0
      %v1716 = vsel %vm326, %v1704, 0
      %v1719 = vsel %vm326, %v1705, 0
      %v1722 = vsel %vm326, %v1706, 0
      %v1725 = vsel %vm326, %v1707, 0
      %v1728 = vsel %vm326, %v1708, 0
      %v1731 = vsel %vm326, %v1709, 0
      %v1734 = vsel %vm326, %v1710, 0
      %v1737 = vsel %vm326, %v1711, 0
      %v1740 = vsel %vm354, %v1702, 0
      %1742 = vmatprep.subr.bf16.mxu0 0
      %1743 = vmatpush1.bf16.msra.mxu0 0
      %1744 = vmatprep.subr.bf16.mxu0 0
      %1745 = vmatpush1.bf16.msra.mxu0 0
      %1746 = vmatprep.subr.bf16.mxu0 0
      %1747 = vmatpush1.bf16.msra.mxu0 0
      %1748 = vmatprep.subr.bf16.mxu0 0
      %1749 = vmatpush1.bf16.msra.mxu0 0
      %1750 = vmatprep.subr.bf16.mxu0 0
      %1751 = vmatpush1.bf16.msra.mxu0 0
      %1752 = vmatprep.subr.bf16.mxu0 0
      %1753 = vmatpush1.bf16.msra.mxu0 0
      %1754 = vmatprep.subr.bf16.mxu0 0
      %1755 = vmatpush1.bf16.msra.mxu0 0
      %1756 = vmatprep.subr.bf16.mxu0 0
      %1757 = vmatpush1.bf16.msra.mxu0 %v1740
      %1758 = vmatprep.subr.bf16.mxu0 0
      %1759 = vmatpush2.bf16.msra.mxu0 0
      %1760 = vmatprep.subr.bf16.mxu0 0
      %1761 = vmatpush2.bf16.msra.mxu0 0
      %1762 = vmatprep.subr.bf16.mxu0 0
      %1763 = vmatpush2.bf16.msra.mxu0 0
      %1764 = vmatprep.subr.bf16.mxu0 0
      %1765 = vmatpush2.bf16.msra.mxu0 0
      %1766 = vmatprep.subr.bf16.mxu0 0
      %1767 = vmatpush2.bf16.msra.mxu0 0
      %1768 = vmatprep.subr.bf16.mxu0 0
      %1769 = vmatpush2.bf16.msra.mxu0 0
      %1770 = vmatprep.subr.bf16.mxu0 0
      %1771 = vmatpush2.bf16.msra.mxu0 0
      %1772 = vmatprep.subr.bf16.mxu0 0
      %1773 = vmatpush2.bf16.msra.mxu0 0
      %1774 = vmatprep.mubr.bf16.mxu0 0
      %1775 = vmatmul.mubr.bf16.gmra.mxu0 %v1713
      %v1776 = vpop.f32.mrf.mxu0
      %v1777 = vadd.f32 0.0, %v1776
      %v1778 = vpop.f32.mrf.mxu0
      %v1779 = vpop.f32.mrf.mxu0
      %v1780 = vadd.f32 0.0, %v1779
      %v1781 = vpop.f32.mrf.mxu0
      %1782 = vmatprep.mubr.bf16.mxu0 0
      %1783 = vmatmul.mubr.bf16.gmra.mxu0 %v1716
      %v1784 = vpop.f32.mrf.mxu0
      %v1785 = vadd.f32 0.0, %v1784
      %v1786 = vpop.f32.mrf.mxu0
      %v1787 = vpop.f32.mrf.mxu0
      %v1788 = vadd.f32 0.0, %v1787
      %v1789 = vpop.f32.mrf.mxu0
      %1790 = vmatprep.mubr.bf16.mxu0 0
      %1791 = vmatmul.mubr.bf16.gmra.mxu0 %v1719
      %v1792 = vpop.f32.mrf.mxu0
      %v1793 = vadd.f32 0.0, %v1792
      %v1794 = vpop.f32.mrf.mxu0
      %v1795 = vpop.f32.mrf.mxu0
      %v1796 = vadd.f32 0.0, %v1795
      %v1797 = vpop.f32.mrf.mxu0
      %1798 = vmatprep.mubr.bf16.mxu0 0
      %1799 = vmatmul.mubr.bf16.gmra.mxu0 %v1722
      %v1800 = vpop.f32.mrf.mxu0
      %v1801 = vadd.f32 0.0, %v1800
      %v1802 = vpop.f32.mrf.mxu0
      %v1803 = vpop.f32.mrf.mxu0
      %v1804 = vadd.f32 0.0, %v1803
      %v1805 = vpop.f32.mrf.mxu0
      %1806 = vmatprep.mubr.bf16.mxu0 0
      %1807 = vmatmul.mubr.bf16.gmra.mxu0 %v1725
      %v1808 = vpop.f32.mrf.mxu0
      %v1809 = vadd.f32 0.0, %v1808
      %v1810 = vpop.f32.mrf.mxu0
      %v1811 = vpop.f32.mrf.mxu0
      %v1812 = vadd.f32 0.0, %v1811
      %v1813 = vpop.f32.mrf.mxu0
      %1814 = vmatprep.mubr.bf16.mxu0 0
      %1815 = vmatmul.mubr.bf16.gmra.mxu0 %v1728
      %v1816 = vpop.f32.mrf.mxu0
      %v1817 = vadd.f32 0.0, %v1816
      %v1818 = vpop.f32.mrf.mxu0
      %v1819 = vpop.f32.mrf.mxu0
      %v1820 = vadd.f32 0.0, %v1819
      %v1821 = vpop.f32.mrf.mxu0
      %1822 = vmatprep.mubr.bf16.mxu0 0
      %1823 = vmatmul.mubr.bf16.gmra.mxu0 %v1731
      %v1824 = vpop.f32.mrf.mxu0
      %v1825 = vadd.f32 0.0, %v1824
      %v1826 = vpop.f32.mrf.mxu0
      %v1827 = vpop.f32.mrf.mxu0
      %v1828 = vadd.f32 0.0, %v1827
      %v1829 = vpop.f32.mrf.mxu0
      %1830 = vmatprep.mubr.bf16.mxu0 0
      %1831 = vmatmul.mubr.bf16.gmra.mxu0 %v1734
      %v1832 = vpop.f32.mrf.mxu0
      %v1833 = vadd.f32 0.0, %v1832
      %v1834 = vpop.f32.mrf.mxu0
      %v1835 = vpop.f32.mrf.mxu0
      %v1836 = vadd.f32 0.0, %v1835
      %v1837 = vpop.f32.mrf.mxu0
      %1838 = vmatprep.mubr.bf16.mxu0 0
      %1839 = vmatmul.mubr.bf16.gmra.mxu0 %v1737
      %v1840 = vpop.f32.mrf.mxu0
      %v1841 = vadd.f32 0.0, %v1840
      %v1842 = vpop.f32.mrf.mxu0
      %v1843 = vpop.f32.mrf.mxu0
      %v1844 = vadd.f32 0.0, %v1843
      %v1845 = vpop.f32.mrf.mxu0
      %1846 = vdwg.mxu0
      %v1847 = vadd.f32 %v1666, %v1777
      %v1848 = vadd.f32 %v1667, %v1780
      %v1849 = vadd.f32 %v1668, %v1785
      %v1850 = vadd.f32 %v1669, %v1788
      %v1851 = vadd.f32 %v1670, %v1793
      %v1852 = vadd.f32 %v1671, %v1796
      %v1853 = vadd.f32 %v1672, %v1801
      %v1854 = vadd.f32 %v1673, %v1804
      %v1855 = vadd.f32 %v1674, %v1809
      %v1856 = vadd.f32 %v1675, %v1812
      %v1857 = vadd.f32 %v1676, %v1817
      %v1858 = vadd.f32 %v1677, %v1820
      %v1859 = vadd.f32 %v1678, %v1825
      %v1860 = vadd.f32 %v1679, %v1828
      %v1861 = vadd.f32 %v1680, %v1833
      %v1862 = vadd.f32 %v1681, %v1836
      %v1863 = vadd.f32 %v1682, %v1841
      %v1864 = vadd.f32 %v1683, %v1844
      %p1865 = scmp.eq.s32.totalorder %s20, 0
      %p1866 = scmp.eq.s32.totalorder %s21, 0
      %p1867 = pnand %p1865, %p1866
      %p1868 = pneg %p1867
      // Predicated region
      $region41: #{_lambda_.10} parent=39 // pred_check
        _
      $region42: #{_lambda_.10} parent=39 // pred_check_branch
        %1870 = sbr.rel (%p1867) target = $region44
      $region43: #{_lambda_.10} parent=39 // pred_region
        %vm1871 = vcmask 57344
        %1872 = vst.msk [vmem:[#allocation2] sm:$0x1] %vm1871, 0.0
        %1873 = vst.msk [vmem:[#allocation3] sm:$0x1] %vm1871, 0.0
      $region44: #{_lambda_.10} parent=39 // pred_fallthru
        _
      // Predicated region
      $region45: #{_lambda_.10} parent=39 // pred_check
        %p1874 = pneg %p1865
      $region46: #{_lambda_.10} parent=39 // pred_check_branch
        %1876 = sbr.rel (%p1874) target = $region48
      $region47: #{_lambda_.10} parent=39 // pred_region
        %v1877 = vlaneseq
        %v1878 = vshrl.u32 %v1877, 7
        %v1879 = vadd.s32 %v1878, 8
        %v1880 = vadd.s32 %v1878, 16
        %v1881 = vadd.s32 %v1878, 24
        %v1882 = vadd.s32 %v1878, 32
        %v1883 = vadd.s32 %v1878, 40
        %v1884 = vadd.s32 %v1878, 48
        %v1885 = vadd.s32 %v1878, 56
        %v1886 = vadd.s32 %v1878, 64
        %v1887 = vadd.s32 %v1878, 72
        %v1888 = vadd.s32 %v1878, 80
        %v1889 = vadd.s32 %v1878, 88
        %v1890 = vadd.s32 %v1878, 96
        %v1891 = vadd.s32 %v1878, 104
        %v1892 = vadd.s32 %v1878, 112
        %v1893 = vadd.s32 %v1878, 120
        %v1894 = vadd.s32 %v1878, 128
        %v1895 = vadd.s32 %v1878, 136
        %vm1896 = vcmp.lt.s32.totalorder %v1878, 0
        %v1897 = vsub.s32 0, %v1878
        %v1898 = vsel %vm1896, %v1897, %v1878
        %v1899 = vmul.u32.u64.compose %v1898, 3817748708
        %v1900 = vextract.low.u32 %v1899
        %v1901 = vextract.high.u32 %v1899
        %v1902 = vshrl.u32 %v1901, 4
        %v1903 = vmul.u32 %v1902, 18
        %v1904 = vsub.s32 %v1898, %v1903
        %v1905 = vsub.s32 0, %v1904
        %v1906 = vsel %vm1896, %v1905, %v1904
        %vm1907 = vcmp.lt.s32.totalorder %v1879, 0
        %v1908 = vsub.s32 0, %v1879
        %v1909 = vsel %vm1907, %v1908, %v1879
        %v1910 = vmul.u32.u64.compose %v1909, 3817748708
        %v1911 = vextract.low.u32 %v1910
        %v1912 = vextract.high.u32 %v1910
        %v1913 = vshrl.u32 %v1912, 4
        %v1914 = vmul.u32 %v1913, 18
        %v1915 = vsub.s32 %v1909, %v1914
        %v1916 = vsub.s32 0, %v1915
        %v1917 = vsel %vm1907, %v1916, %v1915
        %vm1918 = vcmp.lt.s32.totalorder %v1880, 0
        %v1919 = vsub.s32 0, %v1880
        %v1920 = vsel %vm1918, %v1919, %v1880
        %v1921 = vmul.u32.u64.compose %v1920, 3817748708
        %v1922 = vextract.low.u32 %v1921
        %v1923 = vextract.high.u32 %v1921
        %v1924 = vshrl.u32 %v1923, 4
        %v1925 = vmul.u32 %v1924, 18
        %v1926 = vsub.s32 %v1920, %v1925
        %v1927 = vsub.s32 0, %v1926
        %v1928 = vsel %vm1918, %v1927, %v1926
        %vm1929 = vcmp.lt.s32.totalorder %v1881, 0
        %v1930 = vsub.s32 0, %v1881
        %v1931 = vsel %vm1929, %v1930, %v1881
        %v1932 = vmul.u32.u64.compose %v1931, 3817748708
        %v1933 = vextract.low.u32 %v1932
        %v1934 = vextract.high.u32 %v1932
        %v1935 = vshrl.u32 %v1934, 4
        %v1936 = vmul.u32 %v1935, 18
        %v1937 = vsub.s32 %v1931, %v1936
        %v1938 = vsub.s32 0, %v1937
        %v1939 = vsel %vm1929, %v1938, %v1937
        %vm1940 = vcmp.lt.s32.totalorder %v1882, 0
        %v1941 = vsub.s32 0, %v1882
        %v1942 = vsel %vm1940, %v1941, %v1882
        %v1943 = vmul.u32.u64.compose %v1942, 3817748708
        %v1944 = vextract.low.u32 %v1943
        %v1945 = vextract.high.u32 %v1943
        %v1946 = vshrl.u32 %v1945, 4
        %v1947 = vmul.u32 %v1946, 18
        %v1948 = vsub.s32 %v1942, %v1947
        %v1949 = vsub.s32 0, %v1948
        %v1950 = vsel %vm1940, %v1949, %v1948
        %vm1951 = vcmp.lt.s32.totalorder %v1883, 0
        %v1952 = vsub.s32 0, %v1883
        %v1953 = vsel %vm1951, %v1952, %v1883
        %v1954 = vmul.u32.u64.compose %v1953, 3817748708
        %v1955 = vextract.low.u32 %v1954
        %v1956 = vextract.high.u32 %v1954
        %v1957 = vshrl.u32 %v1956, 4
        %v1958 = vmul.u32 %v1957, 18
        %v1959 = vsub.s32 %v1953, %v1958
        %v1960 = vsub.s32 0, %v1959
        %v1961 = vsel %vm1951, %v1960, %v1959
        %vm1962 = vcmp.lt.s32.totalorder %v1884, 0
        %v1963 = vsub.s32 0, %v1884
        %v1964 = vsel %vm1962, %v1963, %v1884
        %v1965 = vmul.u32.u64.compose %v1964, 3817748708
        %v1966 = vextract.low.u32 %v1965
        %v1967 = vextract.high.u32 %v1965
        %v1968 = vshrl.u32 %v1967, 4
        %v1969 = vmul.u32 %v1968, 18
        %v1970 = vsub.s32 %v1964, %v1969
        %v1971 = vsub.s32 0, %v1970
        %v1972 = vsel %vm1962, %v1971, %v1970
        %vm1973 = vcmp.lt.s32.totalorder %v1885, 0
        %v1974 = vsub.s32 0, %v1885
        %v1975 = vsel %vm1973, %v1974, %v1885
        %v1976 = vmul.u32.u64.compose %v1975, 3817748708
        %v1977 = vextract.low.u32 %v1976
        %v1978 = vextract.high.u32 %v1976
        %v1979 = vshrl.u32 %v1978, 4
        %v1980 = vmul.u32 %v1979, 18
        %v1981 = vsub.s32 %v1975, %v1980
        %v1982 = vsub.s32 0, %v1981
        %v1983 = vsel %vm1973, %v1982, %v1981
        %vm1984 = vcmp.lt.s32.totalorder %v1886, 0
        %v1985 = vsub.s32 0, %v1886
        %v1986 = vsel %vm1984, %v1985, %v1886
        %v1987 = vmul.u32.u64.compose %v1986, 3817748708
        %v1988 = vextract.low.u32 %v1987
        %v1989 = vextract.high.u32 %v1987
        %v1990 = vshrl.u32 %v1989, 4
        %v1991 = vmul.u32 %v1990, 18
        %v1992 = vsub.s32 %v1986, %v1991
        %v1993 = vsub.s32 0, %v1992
        %v1994 = vsel %vm1984, %v1993, %v1992
        %vm1995 = vcmp.lt.s32.totalorder %v1887, 0
        %v1996 = vsub.s32 0, %v1887
        %v1997 = vsel %vm1995, %v1996, %v1887
        %v1998 = vmul.u32.u64.compose %v1997, 3817748708
        %v1999 = vextract.low.u32 %v1998
        %v2000 = vextract.high.u32 %v1998
        %v2001 = vshrl.u32 %v2000, 4
        %v2002 = vmul.u32 %v2001, 18
        %v2003 = vsub.s32 %v1997, %v2002
        %v2004 = vsub.s32 0, %v2003
        %v2005 = vsel %vm1995, %v2004, %v2003
        %vm2006 = vcmp.lt.s32.totalorder %v1888, 0
        %v2007 = vsub.s32 0, %v1888
        %v2008 = vsel %vm2006, %v2007, %v1888
        %v2009 = vmul.u32.u64.compose %v2008, 3817748708
        %v2010 = vextract.low.u32 %v2009
        %v2011 = vextract.high.u32 %v2009
        %v2012 = vshrl.u32 %v2011, 4
        %v2013 = vmul.u32 %v2012, 18
        %v2014 = vsub.s32 %v2008, %v2013
        %v2015 = vsub.s32 0, %v2014
        %v2016 = vsel %vm2006, %v2015, %v2014
        %vm2017 = vcmp.lt.s32.totalorder %v1889, 0
        %v2018 = vsub.s32 0, %v1889
        %v2019 = vsel %vm2017, %v2018, %v1889
        %v2020 = vmul.u32.u64.compose %v2019, 3817748708
        %v2021 = vextract.low.u32 %v2020
        %v2022 = vextract.high.u32 %v2020
        %v2023 = vshrl.u32 %v2022, 4
        %v2024 = vmul.u32 %v2023, 18
        %v2025 = vsub.s32 %v2019, %v2024
        %v2026 = vsub.s32 0, %v2025
        %v2027 = vsel %vm2017, %v2026, %v2025
        %vm2028 = vcmp.lt.s32.totalorder %v1890, 0
        %v2029 = vsub.s32 0, %v1890
        %v2030 = vsel %vm2028, %v2029, %v1890
        %v2031 = vmul.u32.u64.compose %v2030, 3817748708
        %v2032 = vextract.low.u32 %v2031
        %v2033 = vextract.high.u32 %v2031
        %v2034 = vshrl.u32 %v2033, 4
        %v2035 = vmul.u32 %v2034, 18
        %v2036 = vsub.s32 %v2030, %v2035
        %v2037 = vsub.s32 0, %v2036
        %v2038 = vsel %vm2028, %v2037, %v2036
        %vm2039 = vcmp.lt.s32.totalorder %v1891, 0
        %v2040 = vsub.s32 0, %v1891
        %v2041 = vsel %vm2039, %v2040, %v1891
        %v2042 = vmul.u32.u64.compose %v2041, 3817748708
        %v2043 = vextract.low.u32 %v2042
        %v2044 = vextract.high.u32 %v2042
        %v2045 = vshrl.u32 %v2044, 4
        %v2046 = vmul.u32 %v2045, 18
        %v2047 = vsub.s32 %v2041, %v2046
        %v2048 = vsub.s32 0, %v2047
        %v2049 = vsel %vm2039, %v2048, %v2047
        %vm2050 = vcmp.lt.s32.totalorder %v1892, 0
        %v2051 = vsub.s32 0, %v1892
        %v2052 = vsel %vm2050, %v2051, %v1892
        %v2053 = vmul.u32.u64.compose %v2052, 3817748708
        %v2054 = vextract.low.u32 %v2053
        %v2055 = vextract.high.u32 %v2053
        %v2056 = vshrl.u32 %v2055, 4
        %v2057 = vmul.u32 %v2056, 18
        %v2058 = vsub.s32 %v2052, %v2057
        %v2059 = vsub.s32 0, %v2058
        %v2060 = vsel %vm2050, %v2059, %v2058
        %vm2061 = vcmp.lt.s32.totalorder %v1893, 0
        %v2062 = vsub.s32 0, %v1893
        %v2063 = vsel %vm2061, %v2062, %v1893
        %v2064 = vmul.u32.u64.compose %v2063, 3817748708
        %v2065 = vextract.low.u32 %v2064
        %v2066 = vextract.high.u32 %v2064
        %v2067 = vshrl.u32 %v2066, 4
        %v2068 = vmul.u32 %v2067, 18
        %v2069 = vsub.s32 %v2063, %v2068
        %v2070 = vsub.s32 0, %v2069
        %v2071 = vsel %vm2061, %v2070, %v2069
        %vm2072 = vcmp.lt.s32.totalorder %v1894, 0
        %v2073 = vsub.s32 0, %v1894
        %v2074 = vsel %vm2072, %v2073, %v1894
        %v2075 = vmul.u32.u64.compose %v2074, 3817748708
        %v2076 = vextract.low.u32 %v2075
        %v2077 = vextract.high.u32 %v2075
        %v2078 = vshrl.u32 %v2077, 4
        %v2079 = vmul.u32 %v2078, 18
        %v2080 = vsub.s32 %v2074, %v2079
        %v2081 = vsub.s32 0, %v2080
        %v2082 = vsel %vm2072, %v2081, %v2080
        %vm2083 = vcmp.lt.s32.totalorder %v1895, 0
        %v2084 = vsub.s32 0, %v1895
        %v2085 = vsel %vm2083, %v2084, %v1895
        %v2086 = vmul.u32.u64.compose %v2085, 3817748708
        %v2087 = vextract.low.u32 %v2086
        %v2088 = vextract.high.u32 %v2086
        %v2089 = vshrl.u32 %v2088, 4
        %v2090 = vmul.u32 %v2089, 18
        %v2091 = vsub.s32 %v2085, %v2090
        %v2092 = vsub.s32 0, %v2091
        %v2093 = vsel %vm2083, %v2092, %v2091
        %vm2094 = vcmp.ne.s32.totalorder %v1906, 0
        %vm2095 = vcmp.ne.s32.totalorder %v1917, 0
        %vm2096 = vcmp.ne.s32.totalorder %v1928, 0
        %vm2097 = vcmp.ne.s32.totalorder %v1939, 0
        %vm2098 = vcmp.ne.s32.totalorder %v1950, 0
        %vm2099 = vcmp.ne.s32.totalorder %v1961, 0
        %vm2100 = vcmp.ne.s32.totalorder %v1972, 0
        %vm2101 = vcmp.ne.s32.totalorder %v1983, 0
        %vm2102 = vcmp.ne.s32.totalorder %v1994, 0
        %vm2103 = vcmp.ne.s32.totalorder %v2005, 0
        %vm2104 = vcmp.ne.s32.totalorder %v2016, 0
        %vm2105 = vcmp.ne.s32.totalorder %v2027, 0
        %vm2106 = vcmp.ne.s32.totalorder %v2038, 0
        %vm2107 = vcmp.ne.s32.totalorder %v2049, 0
        %vm2108 = vcmp.ne.s32.totalorder %v2060, 0
        %vm2109 = vcmp.ne.s32.totalorder %v2071, 0
        %vm2110 = vcmp.ne.s32.totalorder %v2082, 0
        %vm2111 = vcmp.ne.s32.totalorder %v2093, 0
        %vm2112 = vcmp.lt.s32.totalorder %v1906, 0
        %vm2113 = vcmp.lt.s32.totalorder %v1917, 0
        %vm2114 = vcmp.lt.s32.totalorder %v1928, 0
        %vm2115 = vcmp.lt.s32.totalorder %v1939, 0
        %vm2116 = vcmp.lt.s32.totalorder %v1950, 0
        %vm2117 = vcmp.lt.s32.totalorder %v1961, 0
        %vm2118 = vcmp.lt.s32.totalorder %v1972, 0
        %vm2119 = vcmp.lt.s32.totalorder %v1983, 0
        %vm2120 = vcmp.lt.s32.totalorder %v1994, 0
        %vm2121 = vcmp.lt.s32.totalorder %v2005, 0
        %vm2122 = vcmp.lt.s32.totalorder %v2016, 0
        %vm2123 = vcmp.lt.s32.totalorder %v2027, 0
        %vm2124 = vcmp.lt.s32.totalorder %v2038, 0
        %vm2125 = vcmp.lt.s32.totalorder %v2049, 0
        %vm2126 = vcmp.lt.s32.totalorder %v2060, 0
        %vm2127 = vcmp.lt.s32.totalorder %v2071, 0
        %vm2128 = vcmp.lt.s32.totalorder %v2082, 0
        %vm2129 = vcmp.lt.s32.totalorder %v2093, 0
        %vm2130 = vmand %vm2112, %vm2094
        %vm2131 = vmand %vm2113, %vm2095
        %vm2132 = vmand %vm2114, %vm2096
        %vm2133 = vmand %vm2115, %vm2097
        %vm2134 = vmand %vm2116, %vm2098
        %vm2135 = vmand %vm2117, %vm2099
        %vm2136 = vmand %vm2118, %vm2100
        %vm2137 = vmand %vm2119, %vm2101
        %vm2138 = vmand %vm2120, %vm2102
        %vm2139 = vmand %vm2121, %vm2103
        %vm2140 = vmand %vm2122, %vm2104
        %vm2141 = vmand %vm2123, %vm2105
        %vm2142 = vmand %vm2124, %vm2106
        %vm2143 = vmand %vm2125, %vm2107
        %vm2144 = vmand %vm2126, %vm2108
        %vm2145 = vmand %vm2127, %vm2109
        %vm2146 = vmand %vm2128, %vm2110
        %vm2147 = vmand %vm2129, %vm2111
        %v2148 = vadd.s32 %v1906, 18
        %v2149 = vadd.s32 %v1917, 18
        %v2150 = vadd.s32 %v1928, 18
        %v2151 = vadd.s32 %v1939, 18
        %v2152 = vadd.s32 %v1950, 18
        %v2153 = vadd.s32 %v1961, 18
        %v2154 = vadd.s32 %v1972, 18
        %v2155 = vadd.s32 %v1983, 18
        %v2156 = vadd.s32 %v1994, 18
        %v2157 = vadd.s32 %v2005, 18
        %v2158 = vadd.s32 %v2016, 18
        %v2159 = vadd.s32 %v2027, 18
        %v2160 = vadd.s32 %v2038, 18
        %v2161 = vadd.s32 %v2049, 18
        %v2162 = vadd.s32 %v2060, 18
        %v2163 = vadd.s32 %v2071, 18
        %v2164 = vadd.s32 %v2082, 18
        %v2165 = vadd.s32 %v2093, 18
        %v2166 = vsel %vm2130, %v2148, %v1906
        %v2167 = vsel %vm2131, %v2149, %v1917
        %v2168 = vsel %vm2132, %v2150, %v1928
        %v2169 = vsel %vm2133, %v2151, %v1939
        %v2170 = vsel %vm2134, %v2152, %v1950
        %v2171 = vsel %vm2135, %v2153, %v1961
        %v2172 = vsel %vm2136, %v2154, %v1972
        %v2173 = vsel %vm2137, %v2155, %v1983
        %v2174 = vsel %vm2138, %v2156, %v1994
        %v2175 = vsel %vm2139, %v2157, %v2005
        %v2176 = vsel %vm2140, %v2158, %v2016
        %v2177 = vsel %vm2141, %v2159, %v2027
        %v2178 = vsel %vm2142, %v2160, %v2038
        %v2179 = vsel %vm2143, %v2161, %v2049
        %v2180 = vsel %vm2144, %v2162, %v2060
        %v2181 = vsel %vm2145, %v2163, %v2071
        %v2182 = vsel %vm2146, %v2164, %v2082
        %v2183 = vsel %vm2147, %v2165, %v2093
        %vm2184 = vcmp.lt.s32.totalorder %v2166, 16
        %vm2185 = vcmp.lt.s32.totalorder %v2167, 16
        %vm2186 = vcmp.lt.s32.totalorder %v2168, 16
        %vm2187 = vcmp.lt.s32.totalorder %v2169, 16
        %vm2188 = vcmp.lt.s32.totalorder %v2170, 16
        %vm2189 = vcmp.lt.s32.totalorder %v2171, 16
        %vm2190 = vcmp.lt.s32.totalorder %v2172, 16
        %vm2191 = vcmp.lt.s32.totalorder %v2173, 16
        %vm2192 = vcmp.lt.s32.totalorder %v2174, 16
        %vm2193 = vcmp.lt.s32.totalorder %v2175, 16
        %vm2194 = vcmp.lt.s32.totalorder %v2176, 16
        %vm2195 = vcmp.lt.s32.totalorder %v2177, 16
        %vm2196 = vcmp.lt.s32.totalorder %v2178, 16
        %vm2197 = vcmp.lt.s32.totalorder %v2179, 16
        %vm2198 = vcmp.lt.s32.totalorder %v2180, 16
        %vm2199 = vcmp.lt.s32.totalorder %v2181, 16
        %vm2200 = vcmp.lt.s32.totalorder %v2182, 16
        %vm2201 = vcmp.lt.s32.totalorder %v2183, 16
        %v2202 = vsel %vm2184, 1, 0
        %v2203 = vsel %vm2185, 1, 0
        %v2204 = vsel %vm2186, 1, 0
        %v2205 = vsel %vm2187, 1, 0
        %v2206 = vsel %vm2188, 1, 0
        %v2207 = vsel %vm2189, 1, 0
        %v2208 = vsel %vm2190, 1, 0
        %v2209 = vsel %vm2191, 1, 0
        %v2210 = vsel %vm2192, 1, 0
        %v2211 = vsel %vm2193, 1, 0
        %v2212 = vsel %vm2194, 1, 0
        %v2213 = vsel %vm2195, 1, 0
        %v2214 = vsel %vm2196, 1, 0
        %v2215 = vsel %vm2197, 1, 0
        %v2216 = vsel %vm2198, 1, 0
        %v2217 = vsel %vm2199, 1, 0
        %v2218 = vsel %vm2200, 1, 0
        %v2219 = vsel %vm2201, 1, 0
        %vm2220 = vcmp.eq.s32.totalorder %v2202, 1
        %vm2221 = vcmp.eq.s32.totalorder %v2203, 1
        %vm2222 = vcmp.eq.s32.totalorder %v2204, 1
        %vm2223 = vcmp.eq.s32.totalorder %v2205, 1
        %vm2224 = vcmp.eq.s32.totalorder %v2206, 1
        %vm2225 = vcmp.eq.s32.totalorder %v2207, 1
        %vm2226 = vcmp.eq.s32.totalorder %v2208, 1
        %vm2227 = vcmp.eq.s32.totalorder %v2209, 1
        %vm2228 = vcmp.eq.s32.totalorder %v2210, 1
        %vm2229 = vcmp.eq.s32.totalorder %v2211, 1
        %vm2230 = vcmp.eq.s32.totalorder %v2212, 1
        %vm2231 = vcmp.eq.s32.totalorder %v2213, 1
        %vm2232 = vcmp.eq.s32.totalorder %v2214, 1
        %vm2233 = vcmp.eq.s32.totalorder %v2215, 1
        %vm2234 = vcmp.eq.s32.totalorder %v2216, 1
        %vm2235 = vcmp.eq.s32.totalorder %v2217, 1
        %vm2236 = vcmp.eq.s32.totalorder %v2218, 1
        %vm2237 = vcmp.eq.s32.totalorder %v2219, 1
        %v2238 = vsel %vm2220, %v1847, 0.0
        %v2239 = vsel %vm2221, %v1848, 0.0
        %v2240 = vsel %vm2222, %v1849, 0.0
        %v2241 = vsel %vm2223, %v1850, 0.0
        %v2242 = vsel %vm2224, %v1851, 0.0
        %v2243 = vsel %vm2225, %v1852, 0.0
        %v2244 = vsel %vm2226, %v1853, 0.0
        %v2245 = vsel %vm2227, %v1854, 0.0
        %v2246 = vsel %vm2228, %v1855, 0.0
        %v2247 = vsel %vm2229, %v1856, 0.0
        %v2248 = vsel %vm2230, %v1857, 0.0
        %v2249 = vsel %vm2231, %v1858, 0.0
        %v2250 = vsel %vm2232, %v1859, 0.0
        %v2251 = vsel %vm2233, %v1860, 0.0
        %v2252 = vsel %vm2234, %v1861, 0.0
        %v2253 = vsel %vm2235, %v1862, 0.0
        %v2254 = vsel %vm2236, %v1863, 0.0
        %v2255 = vsel %vm2237, %v1864, 0.0
        %v2256 = vld [vmem:[#allocation2] sm:$0x1]
        %v2257 = vsel %vm326, %v2238, 0.0
        %v2258 = vsel %vm326, %v2239, 0.0
        %v2259 = vadd.f32 %v2257, %v2258
        %v2260 = vsel %vm326, %v2240, 0.0
        %v2261 = vadd.f32 %v2259, %v2260
        %v2262 = vsel %vm326, %v2241, 0.0
        %v2263 = vadd.f32 %v2261, %v2262
        %v2264 = vsel %vm326, %v2242, 0.0
        %v2265 = vadd.f32 %v2263, %v2264
        %v2266 = vsel %vm326, %v2243, 0.0
        %v2267 = vadd.f32 %v2265, %v2266
        %v2268 = vsel %vm326, %v2244, 0.0
        %v2269 = vadd.f32 %v2267, %v2268
        %v2270 = vsel %vm326, %v2245, 0.0
        %v2271 = vadd.f32 %v2269, %v2270
        %v2272 = vsel %vm326, %v2246, 0.0
        %v2273 = vadd.f32 %v2271, %v2272
        %v2274 = vsel %vm326, %v2247, 0.0
        %v2275 = vadd.f32 %v2273, %v2274
        %v2276 = vsel %vm326, %v2248, 0.0
        %v2277 = vadd.f32 %v2275, %v2276
        %v2278 = vsel %vm326, %v2249, 0.0
        %v2279 = vadd.f32 %v2277, %v2278
        %v2280 = vsel %vm326, %v2250, 0.0
        %v2281 = vadd.f32 %v2279, %v2280
        %v2282 = vsel %vm326, %v2251, 0.0
        %v2283 = vadd.f32 %v2281, %v2282
        %v2284 = vsel %vm326, %v2252, 0.0
        %v2285 = vadd.f32 %v2283, %v2284
        %v2286 = vsel %vm326, %v2253, 0.0
        %v2287 = vadd.f32 %v2285, %v2286
        %v2288 = vsel %vm326, %v2254, 0.0
        %v2289 = vadd.f32 %v2287, %v2288
        %v2290 = vsel %vm326, %v2255, 0.0
        %v2291 = vadd.f32 %v2289, %v2290
        %v2292 = vrot.slane %v2291, 4
        %v2293 = vadd.f32 %v2291, %v2292
        %v2294 = vrot.slane %v2293, 2
        %v2295 = vadd.f32 %v2293, %v2294
        %v2296 = vrot.slane %v2295, 1
        %v2297 = vadd.f32 %v2295, %v2296
        %v2298 = vadd.f32 %v2256, %v2297
        %vm2299 = vcmask 57344
        %2300 = vst.msk [vmem:[#allocation2] sm:$0x1] %vm2299, %v2298
        %v2301 = vld [vmem:[#allocation3] sm:$0x1]
        %v2302 = vmul.f32 %v2238, %v2238
        %v2303 = vmul.f32 %v2239, %v2239
        %v2304 = vmul.f32 %v2240, %v2240
        %v2305 = vmul.f32 %v2241, %v2241
        %v2306 = vmul.f32 %v2242, %v2242
        %v2307 = vmul.f32 %v2243, %v2243
        %v2308 = vmul.f32 %v2244, %v2244
        %v2309 = vmul.f32 %v2245, %v2245
        %v2310 = vmul.f32 %v2246, %v2246
        %v2311 = vmul.f32 %v2247, %v2247
        %v2312 = vmul.f32 %v2248, %v2248
        %v2313 = vmul.f32 %v2249, %v2249
        %v2314 = vmul.f32 %v2250, %v2250
        %v2315 = vmul.f32 %v2251, %v2251
        %v2316 = vmul.f32 %v2252, %v2252
        %v2317 = vmul.f32 %v2253, %v2253
        %v2318 = vmul.f32 %v2254, %v2254
        %v2319 = vmul.f32 %v2255, %v2255
        %v2320 = vsel %vm326, %v2302, 0.0
        %v2321 = vsel %vm326, %v2303, 0.0
        %v2322 = vadd.f32 %v2320, %v2321
        %v2323 = vsel %vm326, %v2304, 0.0
        %v2324 = vadd.f32 %v2322, %v2323
        %v2325 = vsel %vm326, %v2305, 0.0
        %v2326 = vadd.f32 %v2324, %v2325
        %v2327 = vsel %vm326, %v2306, 0.0
        %v2328 = vadd.f32 %v2326, %v2327
        %v2329 = vsel %vm326, %v2307, 0.0
        %v2330 = vadd.f32 %v2328, %v2329
        %v2331 = vsel %vm326, %v2308, 0.0
        %v2332 = vadd.f32 %v2330, %v2331
        %v2333 = vsel %vm326, %v2309, 0.0
        %v2334 = vadd.f32 %v2332, %v2333
        %v2335 = vsel %vm326, %v2310, 0.0
        %v2336 = vadd.f32 %v2334, %v2335
        %v2337 = vsel %vm326, %v2311, 0.0
        %v2338 = vadd.f32 %v2336, %v2337
        %v2339 = vsel %vm326, %v2312, 0.0
        %v2340 = vadd.f32 %v2338, %v2339
        %v2341 = vsel %vm326, %v2313, 0.0
        %v2342 = vadd.f32 %v2340, %v2341
        %v2343 = vsel %vm326, %v2314, 0.0
        %v2344 = vadd.f32 %v2342, %v2343
        %v2345 = vsel %vm326, %v2315, 0.0
        %v2346 = vadd.f32 %v2344, %v2345
        %v2347 = vsel %vm326, %v2316, 0.0
        %v2348 = vadd.f32 %v2346, %v2347
        %v2349 = vsel %vm326, %v2317, 0.0
        %v2350 = vadd.f32 %v2348, %v2349
        %v2351 = vsel %vm326, %v2318, 0.0
        %v2352 = vadd.f32 %v2350, %v2351
        %v2353 = vsel %vm326, %v2319, 0.0
        %v2354 = vadd.f32 %v2352, %v2353
        %v2355 = vrot.slane %v2354, 4
        %v2356 = vadd.f32 %v2354, %v2355
        %v2357 = vrot.slane %v2356, 2
        %v2358 = vadd.f32 %v2356, %v2357
        %v2359 = vrot.slane %v2358, 1
        %v2360 = vadd.f32 %v2358, %v2359
        %v2361 = vadd.f32 %v2301, %v2360
        %2362 = vst.msk [vmem:[#allocation3] sm:$0x1] %vm2299, %v2361
      $region48: #{_lambda_.10} parent=39 // pred_fallthru
        _
      %p2363 = scmp.eq.s32.totalorder %s20, 1
      // Predicated region
      $region49: #{_lambda_.10} parent=39 // pred_check
        %p2364 = pneg %p2363
      $region50: #{_lambda_.10} parent=39 // pred_check_branch
        %2366 = sbr.rel (%p2364) target = $region52
      $region51: #{_lambda_.10} parent=39 // pred_region
        %v2367 = vld [vmem:[#allocation2] sm:$0x1]
        %v2368 = vmul.f32 %v2367, 0.001953125
        %v2369 = vld [vmem:[#allocation3] sm:$0x1]
        %v2370 = vmul.f32 %v2369, 0.001953125
        %v2371 = vmul.f32 %v2368, %v2368
        %v2372 = vsub.f32 %v2370, %v2371
        %v2373 = vmax.f32 %v2372, 0.0
        %v2374 = vadd.f32 %v2373, 1e-05
        %v2375 = vrsqrt.pop %v2374
        %v2376 = vld [vmem:[%s2] sm:$0x1]
        %v2377 = vmul.f32 %v2375, %v2376
        %v2379 = vlaneseq
        %v2380 = vshrl.u32 %v2379, 7
        %v2381 = vsub.s32 0, %v2380
        %v2382 = vrot.slane %v2368, %v2381
        %v2384 = vsub.f32 %v1847, %v2382
        %v2385 = vsub.f32 %v1848, %v2382
        %v2386 = vsub.f32 %v1849, %v2382
        %v2387 = vsub.f32 %v1850, %v2382
        %v2388 = vsub.f32 %v1851, %v2382
        %v2389 = vsub.f32 %v1852, %v2382
        %v2390 = vsub.f32 %v1853, %v2382
        %v2391 = vsub.f32 %v1854, %v2382
        %v2392 = vsub.f32 %v1855, %v2382
        %v2393 = vsub.f32 %v1856, %v2382
        %v2394 = vsub.f32 %v1857, %v2382
        %v2395 = vsub.f32 %v1858, %v2382
        %v2396 = vsub.f32 %v1859, %v2382
        %v2397 = vsub.f32 %v1860, %v2382
        %v2398 = vsub.f32 %v1861, %v2382
        %v2399 = vsub.f32 %v1862, %v2382
        %v2400 = vsub.f32 %v1863, %v2382
        %v2401 = vsub.f32 %v1864, %v2382
        %v2403 = vlaneseq
        %v2404 = vshrl.u32 %v2403, 7
        %v2405 = vsub.s32 0, %v2404
        %v2406 = vrot.slane %v2377, %v2405
        %v2408 = vmul.f32 %v2384, %v2406
        %v2409 = vmul.f32 %v2385, %v2406
        %v2410 = vmul.f32 %v2386, %v2406
        %v2411 = vmul.f32 %v2387, %v2406
        %v2412 = vmul.f32 %v2388, %v2406
        %v2413 = vmul.f32 %v2389, %v2406
        %v2414 = vmul.f32 %v2390, %v2406
        %v2415 = vmul.f32 %v2391, %v2406
        %v2416 = vmul.f32 %v2392, %v2406
        %v2417 = vmul.f32 %v2393, %v2406
        %v2418 = vmul.f32 %v2394, %v2406
        %v2419 = vmul.f32 %v2395, %v2406
        %v2420 = vmul.f32 %v2396, %v2406
        %v2421 = vmul.f32 %v2397, %v2406
        %v2422 = vmul.f32 %v2398, %v2406
        %v2423 = vmul.f32 %v2399, %v2406
        %v2424 = vmul.f32 %v2400, %v2406
        %v2425 = vmul.f32 %v2401, %v2406
        %v2426 = vld [vmem:[%s3] sm:$0x1]
        %v2428 = vlaneseq
        %v2429 = vshrl.u32 %v2428, 7
        %v2430 = vsub.s32 0, %v2429
        %v2431 = vrot.slane %v2426, %v2430
        %v2433 = vadd.f32 %v2408, %v2431
        %v2434 = vadd.f32 %v2409, %v2431
        %v2435 = vadd.f32 %v2410, %v2431
        %v2436 = vadd.f32 %v2411, %v2431
        %v2437 = vadd.f32 %v2412, %v2431
        %v2438 = vadd.f32 %v2413, %v2431
        %v2439 = vadd.f32 %v2414, %v2431
        %v2440 = vadd.f32 %v2415, %v2431
        %v2441 = vadd.f32 %v2416, %v2431
        %v2442 = vadd.f32 %v2417, %v2431
        %v2443 = vadd.f32 %v2418, %v2431
        %v2444 = vadd.f32 %v2419, %v2431
        %v2445 = vadd.f32 %v2420, %v2431
        %v2446 = vadd.f32 %v2421, %v2431
        %v2447 = vadd.f32 %v2422, %v2431
        %v2448 = vadd.f32 %v2423, %v2431
        %v2449 = vadd.f32 %v2424, %v2431
        %v2450 = vadd.f32 %v2425, %v2431
        %v2451 = vmax.f32 %v2433, 0.0
        %v2452 = vmax.f32 %v2434, 0.0
        %v2453 = vmax.f32 %v2435, 0.0
        %v2454 = vmax.f32 %v2436, 0.0
        %v2455 = vmax.f32 %v2437, 0.0
        %v2456 = vmax.f32 %v2438, 0.0
        %v2457 = vmax.f32 %v2439, 0.0
        %v2458 = vmax.f32 %v2440, 0.0
        %v2459 = vmax.f32 %v2441, 0.0
        %v2460 = vmax.f32 %v2442, 0.0
        %v2461 = vmax.f32 %v2443, 0.0
        %v2462 = vmax.f32 %v2444, 0.0
        %v2463 = vmax.f32 %v2445, 0.0
        %v2464 = vmax.f32 %v2446, 0.0
        %v2465 = vmax.f32 %v2447, 0.0
        %v2466 = vmax.f32 %v2448, 0.0
        %v2467 = vmax.f32 %v2449, 0.0
        %v2468 = vmax.f32 %v2450, 0.0
        %v2469 = vld [vmem:[%s260 + $0x13] sm:$0xff]
        %v2470 = vld [vmem:[%s260 + $0x1b] sm:$0xff]
        %v2471 = vld [vmem:[%s260 + $0x23] sm:$0xff]
        %v2472 = vld [vmem:[%s260 + $0x2b] sm:$0xff]
        %v2473 = vld [vmem:[%s260 + $0x33] sm:$0xff]
        %v2474 = vld [vmem:[%s260 + $0x3b] sm:$0xff]
        %v2475 = vld [vmem:[%s260 + $0x43] sm:$0xff]
        %v2476 = vld [vmem:[%s260 + $0x4b] sm:$0xff]
        %v2477 = vld [vmem:[%s260 + $0x53] sm:$0xff]
        %v2478 = vld [vmem:[%s260 + $0x5b] sm:$0xff]
        %v2479 = vld [vmem:[%s260 + $0x63] sm:$0xff]
        %v2480 = vld [vmem:[%s260 + $0x6b] sm:$0xff]
        %v2481 = vld [vmem:[%s260 + $0x73] sm:$0xff]
        %v2482 = vld [vmem:[%s260 + $0x7b] sm:$0xff]
        %v2483 = vld [vmem:[%s260 + $0x83] sm:$0xff]
        %v2484 = vld [vmem:[%s260 + $0x8b] sm:$0xff]
        %v2485 = vld [vmem:[%s260 + $0x93] sm:$0xff]
        %v2486 = vld [vmem:[%s260 + $0x9b] sm:$0xff]
        %v2487 = vadd.f32 %v2451, %v2469
        %v2488 = vadd.f32 %v2452, %v2470
        %v2489 = vadd.f32 %v2453, %v2471
        %v2490 = vadd.f32 %v2454, %v2472
        %v2491 = vadd.f32 %v2455, %v2473
        %v2492 = vadd.f32 %v2456, %v2474
        %v2493 = vadd.f32 %v2457, %v2475
        %v2494 = vadd.f32 %v2458, %v2476
        %v2495 = vadd.f32 %v2459, %v2477
        %v2496 = vadd.f32 %v2460, %v2478
        %v2497 = vadd.f32 %v2461, %v2479
        %v2498 = vadd.f32 %v2462, %v2480
        %v2499 = vadd.f32 %v2463, %v2481
        %v2500 = vadd.f32 %v2464, %v2482
        %v2501 = vadd.f32 %v2465, %v2483
        %v2502 = vadd.f32 %v2466, %v2484
        %v2503 = vadd.f32 %v2467, %v2485
        %v2504 = vadd.f32 %v2468, %v2486
        %2505 = vst.msk [vmem:[%s267] sm:$0xff] %vm326, %v2487
        %2506 = vst.msk [vmem:[%s267 + $0x8] sm:$0xff] %vm326, %v2488
        %2507 = vst.msk [vmem:[%s267 + $0x10] sm:$0xff] %vm326, %v2489
        %2508 = vst.msk [vmem:[%s267 + $0x18] sm:$0xff] %vm326, %v2490
        %2509 = vst.msk [vmem:[%s267 + $0x20] sm:$0xff] %vm326, %v2491
        %2510 = vst.msk [vmem:[%s267 + $0x28] sm:$0xff] %vm326, %v2492
        %2511 = vst.msk [vmem:[%s267 + $0x30] sm:$0xff] %vm326, %v2493
        %2512 = vst.msk [vmem:[%s267 + $0x38] sm:$0xff] %vm326, %v2494
        %2513 = vst.msk [vmem:[%s267 + $0x40] sm:$0xff] %vm326, %v2495
        %2514 = vst.msk [vmem:[%s267 + $0x48] sm:$0xff] %vm326, %v2496
        %2515 = vst.msk [vmem:[%s267 + $0x50] sm:$0xff] %vm326, %v2497
        %2516 = vst.msk [vmem:[%s267 + $0x58] sm:$0xff] %vm326, %v2498
        %2517 = vst.msk [vmem:[%s267 + $0x60] sm:$0xff] %vm326, %v2499
        %2518 = vst.msk [vmem:[%s267 + $0x68] sm:$0xff] %vm326, %v2500
        %2519 = vst.msk [vmem:[%s267 + $0x70] sm:$0xff] %vm326, %v2501
        %2520 = vst.msk [vmem:[%s267 + $0x78] sm:$0xff] %vm326, %v2502
        %2521 = vst.msk [vmem:[%s267 + $0x80] sm:$0xff] %vm326, %v2503
        %2522 = vst.msk [vmem:[%s267 + $0x88] sm:$0xff] %vm326, %v2504
      $region52: #{_lambda_.10} parent=39 // pred_fallthru
        _
      %s2523 = smul.u32 %s20, %s21
      %p2524 = scmp.lt.s32.totalorder %s2523, 3
      %s2525 = scalar_select %p2524, %s2523, 3
      %s2526 = smul.addr %s2525, 18
      %s2527 = smul.addr %s2526, 8
      %s2528 = scalar_lea.vmem %s5, %s2527
      // Predicated region
      $region53: #{_lambda_.10} parent=39 // pred_check
        %p2529 = pneg %p165
      $region54: #{_lambda_.10} parent=39 // pred_check_branch
        %2531 = sbr.rel (%p2529) target = $region56
      $region55: #{_lambda_.10} parent=39 // pred_region
        %s2532 = smul.u32 %s20, %s21
      $region56: #{_lambda_.10} parent=39 // pred_fallthru
        _
    $region40: #{_lambda_.10} parent=5 // pred_fallthru
      _
    %p2533 = scmp.le.s32.totalorder 2, %s11
    // Predicated region
    $region57: #{_lambda_.10} parent=5 // pred_check
      %p2534 = pneg %p2533
    $region58: #{_lambda_.10} parent=5 // pred_check_branch
      %2536 = sbr.rel (%p2534) target = $region60
    $region59: #{_lambda_.10} parent=5 // pred_region
      %s2537 = ssub.s32 %s11, 2
      // Predicated region
      $region61: #{_lambda_.10} parent=59 // pred_check
        %p2538 = pneg %p171
      $region62: #{_lambda_.10} parent=59 // pred_check_branch
        %2540 = sbr.rel (%p2538) target = $region64
      $region63: #{_lambda_.10} parent=59 // pred_region
        %s2541 = smul.u32 %s22, %s23
        %p2542 = scmp.lt.s32.totalorder %s2541, 3
        %s2543 = scalar_select %p2542, %s2541, 3
        %s2544 = smul.addr %s2543, 18
        %s2545 = smul.addr %s2544, 8
        %s2546 = scalar_lea.vmem %s5, %s2545
      $region64: #{_lambda_.10} parent=59 // pred_fallthru
        _
    $region60: #{_lambda_.10} parent=5 // pred_fallthru
      _
  $region6: #{_lambda_.10} parent=0 // loop_footer
    %s15 = sadd.s32 1, %s11
  $region7: #{_lambda_.10} parent=0 // loop_footer_branch
    %10 = sbr.rel target = $region3
  $region8: #{_lambda_.10} parent=0 // loop_exit
    _

// kernel: _lambda_.8
$region0: #{_lambda_.8}
  #allocation0 [shape = 'u32[]', space=smem, size = 0x4, offset = 0x4, fixed_abs, tag = 'smem constant byte address 0x4 - core index']
  #allocation1 [shape = 'u32[144,128]{1,0:T(1,128)}', space=vmem, size = 0x12000, scoped, tag = 'internal scratch']
  #allocation2 [shape = 'f32[1,8]{1,0:T(1,128)}', space=vmem, size = 0x200, scoped, tag = 'scratch operand']
  #allocation3 [shape = 'f32[1,8]{1,0:T(1,128)}', space=vmem, size = 0x200, scoped, tag = 'scratch operand']
  %s0 = inlined_call_operand.vmem [shape: f32[4,182,8], index: 0, kind: input, shape index: {}]
  %s1 = inlined_call_operand.vmem [shape: bf16[72,8], index: 1, kind: input, shape index: {}]
  %s2 = inlined_call_operand.vmem [shape: f32[1,8], index: 2, kind: input, shape index: {}]
  %s3 = inlined_call_operand.vmem [shape: f32[1,8], index: 3, kind: input, shape index: {}]
  %s4 = inlined_call_operand.vmem [shape: f32[4,144,8], index: 4, kind: output, shape index: {}]
  %s5 = sld [smem:[#allocation0]]
  $region61: #{_lambda_.8} parent=0
    _
  %s7 = ssub.s32 1, %s5
  %s8 = scalar_select 0, %s7, %s5
  loop: start=0, step=1, limit=10
  $region2: #{_lambda_.8} parent=0 // loop_pre_header
    _
  $region3: #{_lambda_.8} parent=0 // loop_header
    %s10 = sphi 0, %s14
    %p11 = scmp.ge.s32.totalorder %s10, 10
    %s17 = sphi 0, %s29
    %s18 = sphi 0, %s25
    %s19 = sphi 0, %s17
    %s20 = sphi 0, %s18
    %s21 = sphi 0, %s19
    %s22 = sphi 0, %s20
    %s32 = sphi 0, %s34
    %s35 = sphi 0, %s32
    %s36 = sphi 0, %s35
    %s52 = sphi 0, %s36
    %s56 = sphi 0, %s56
    %s58 = sphi 0, %s56
    %s59 = sphi 0, %s58
    %s73 = sphi 0, %s59
    %s77 = sphi 0, %s77
    %s79 = sphi 0, %s77
    %s80 = sphi 0, %s79
    %s94 = sphi 0, %s80
    %s98 = sphi 0, %s98
    %s100 = sphi 0, %s98
    %s101 = sphi 0, %s100
    %s115 = sphi 0, %s101
    %s123 = sphi 0, %s125
    %s126 = sphi 0, %s123
    %s127 = sphi 0, %s126
    %s143 = sphi 0, %s127
  $region4: #{_lambda_.8} parent=0 // loop_header_branch
    %13 = sbr.rel (%p11) target = $region8
  $region5: #{_lambda_.8} parent=0 // loop_body
    %s15 = ssub.s32 %s10, 1
    %s16 = ssub.s32 %s10, 2
    %s23 = sadd.s32 1, %s18
    %p24 = scmp.ge.s32.totalorder %s23, 4
    %s25 = scalar_select %p24, 0, %s23
    %s26 = sadd.s32 1, %s17
    %s27 = scalar_select %p24, %s26, %s17
    %p28 = scmp.ge.s32.totalorder %s27, 2
    %s29 = scalar_select %p28, 0, %s27
    %s30 = ssub.s32 %s18, %s25
    %p31 = scmp.eq.s32.totalorder %s30, 0
    %s33 = sadd.s32 %s32, 1
    %s34 = scalar_select %p31, %s32, %s33
    %p37 = pneg %p31
    %p38 = scmp.eq.s32.totalorder %s10, 7
    %p39 = por %p37, %p38
    %p40 = scmp.ne.s32.totalorder %s32, %s35
    %p41 = scmp.eq.s32.totalorder %s10, 0
    %p42 = por %p40, %p41
    %p43 = scmp.ne.s32.totalorder %s32, %s35
    %p44 = scmp.eq.s32.totalorder %s15, 7
    %p45 = por %p43, %p44
    %p46 = scmp.ne.s32.totalorder %s35, %s36
    %p47 = scmp.eq.s32.totalorder %s15, 0
    %p48 = por %p46, %p47
    %p49 = scmp.ne.s32.totalorder %s35, %s36
    %p50 = scmp.eq.s32.totalorder %s16, 7
    %p51 = por %p49, %p50
    %p53 = scmp.ne.s32.totalorder %s36, %s52
    %p54 = scmp.eq.s32.totalorder %s16, 0
    %p55 = por %p53, %p54
    %s57 = sadd.s32 %s56, 1
    %p60 = scmp.eq.s32.totalorder %s10, 7
    %p61 = scmp.ne.s32.totalorder %s56, %s58
    %p62 = scmp.eq.s32.totalorder %s10, 0
    %p63 = por %p61, %p62
    %p64 = scmp.ne.s32.totalorder %s56, %s58
    %p65 = scmp.eq.s32.totalorder %s15, 7
    %p66 = por %p64, %p65
    %p67 = scmp.ne.s32.totalorder %s58, %s59
    %p68 = scmp.eq.s32.totalorder %s15, 0
    %p69 = por %p67, %p68
    %p70 = scmp.ne.s32.totalorder %s58, %s59
    %p71 = scmp.eq.s32.totalorder %s16, 7
    %p72 = por %p70, %p71
    %p74 = scmp.ne.s32.totalorder %s59, %s73
    %p75 = scmp.eq.s32.totalorder %s16, 0
    %p76 = por %p74, %p75
    %s78 = sadd.s32 %s77, 1
    %p81 = scmp.eq.s32.totalorder %s10, 7
    %p82 = scmp.ne.s32.totalorder %s77, %s79
    %p83 = scmp.eq.s32.totalorder %s10, 0
    %p84 = por %p82, %p83
    %p85 = scmp.ne.s32.totalorder %s77, %s79
    %p86 = scmp.eq.s32.totalorder %s15, 7
    %p87 = por %p85, %p86
    %p88 = scmp.ne.s32.totalorder %s79, %s80
    %p89 = scmp.eq.s32.totalorder %s15, 0
    %p90 = por %p88, %p89
    %p91 = scmp.ne.s32.totalorder %s79, %s80
    %p92 = scmp.eq.s32.totalorder %s16, 7
    %p93 = por %p91, %p92
    %p95 = scmp.ne.s32.totalorder %s80, %s94
    %p96 = scmp.eq.s32.totalorder %s16, 0
    %p97 = por %p95, %p96
    %s99 = sadd.s32 %s98, 1
    %p102 = scmp.eq.s32.totalorder %s10, 7
    %p103 = scmp.ne.s32.totalorder %s98, %s100
    %p104 = scmp.eq.s32.totalorder %s10, 0
    %p105 = por %p103, %p104
    %p106 = scmp.ne.s32.totalorder %s98, %s100
    %p107 = scmp.eq.s32.totalorder %s15, 7
    %p108 = por %p106, %p107
    %p109 = scmp.ne.s32.totalorder %s100, %s101
    %p110 = scmp.eq.s32.totalorder %s15, 0
    %p111 = por %p109, %p110
    %p112 = scmp.ne.s32.totalorder %s100, %s101
    %p113 = scmp.eq.s32.totalorder %s16, 7
    %p114 = por %p112, %p113
    %p116 = scmp.ne.s32.totalorder %s101, %s115
    %p117 = scmp.eq.s32.totalorder %s16, 0
    %p118 = por %p116, %p117
    %s119 = smul.u32 %s17, %s18
    %s120 = smul.u32 %s29, %s25
    %s121 = ssub.s32 %s119, %s120
    %p122 = scmp.eq.s32.totalorder %s121, 0
    %s124 = sadd.s32 %s123, 1
    %s125 = scalar_select %p122, %s123, %s124
    %p128 = pneg %p122
    %p129 = scmp.eq.s32.totalorder %s10, 7
    %p130 = por %p128, %p129
    %p131 = scmp.ne.s32.totalorder %s123, %s126
    %p132 = scmp.eq.s32.totalorder %s10, 0
    %p133 = por %p131, %p132
    %p134 = scmp.ne.s32.totalorder %s123, %s126
    %p135 = scmp.eq.s32.totalorder %s15, 7
    %p136 = por %p134, %p135
    %p137 = scmp.ne.s32.totalorder %s126, %s127
    %p138 = scmp.eq.s32.totalorder %s15, 0
    %p139 = por %p137, %p138
    %p140 = scmp.ne.s32.totalorder %s126, %s127
    %p141 = scmp.eq.s32.totalorder %s16, 7
    %p142 = por %p140, %p141
    %p144 = scmp.ne.s32.totalorder %s127, %s143
    %p145 = scmp.eq.s32.totalorder %s16, 0
    %p146 = por %p144, %p145
    %p147 = scmp.le.s32.totalorder 1, %s10
    %p148 = scmp.lt.s32.totalorder %s10, 9
    %p149 = pnand %p147, %p148
    %p150 = pneg %p149
    // Predicated region
    $region9: #{_lambda_.8} parent=5 // pred_check
      _
    $region10: #{_lambda_.8} parent=5 // pred_check_branch
      %152 = sbr.rel (%p149) target = $region12
    $region11: #{_lambda_.8} parent=5 // pred_region
      %s153 = ssub.s32 %s10, 1
      // Predicated region
      $region13: #{_lambda_.8} parent=11 // pred_check
        %p154 = pneg %p69
      $region14: #{_lambda_.8} parent=11 // pred_check_branch
        %156 = sbr.rel (%p154) target = $region16
      $region15: #{_lambda_.8} parent=11 // pred_region
        _
      $region16: #{_lambda_.8} parent=11 // pred_fallthru
        _
      // Predicated region
      $region17: #{_lambda_.8} parent=11 // pred_check
        %p157 = pneg %p90
      $region18: #{_lambda_.8} parent=11 // pred_check_branch
        %159 = sbr.rel (%p157) target = $region20
      $region19: #{_lambda_.8} parent=11 // pred_region
        _
      $region20: #{_lambda_.8} parent=11 // pred_fallthru
        _
      // Predicated region
      $region21: #{_lambda_.8} parent=11 // pred_check
        %p160 = pneg %p111
      $region22: #{_lambda_.8} parent=11 // pred_check_branch
        %162 = sbr.rel (%p160) target = $region24
      $region23: #{_lambda_.8} parent=11 // pred_region
        _
      $region24: #{_lambda_.8} parent=11 // pred_fallthru
        _
    $region12: #{_lambda_.8} parent=5 // pred_fallthru
      _
    %p163 = scmp.lt.s32.totalorder %s10, 8
    // Predicated region
    $region25: #{_lambda_.8} parent=5 // pred_check
      %p164 = pneg %p163
    $region26: #{_lambda_.8} parent=5 // pred_check_branch
      %166 = sbr.rel (%p164) target = $region28
    $region27: #{_lambda_.8} parent=5 // pred_region
      // Predicated region
      $region29: #{_lambda_.8} parent=27 // pred_check
        %p167 = pneg %p42
      $region30: #{_lambda_.8} parent=27 // pred_check_branch
        %169 = sbr.rel (%p167) target = $region32
      $region31: #{_lambda_.8} parent=27 // pred_region
        %p170 = scmp.lt.s32.totalorder %s18, 3
        %s171 = scalar_select %p170, %s18, 3
        %s172 = smul.addr %s171, 23
        %s173 = smul.addr %s172, 8
        %s174 = scalar_lea.vmem %s0, %s173
      $region32: #{_lambda_.8} parent=27 // pred_fallthru
        _
    $region28: #{_lambda_.8} parent=5 // pred_fallthru
      _
    %p175 = scmp.le.s32.totalorder 1, %s10
    %p176 = scmp.lt.s32.totalorder %s10, 9
    %p177 = pnand %p175, %p176
    %p178 = pneg %p177
    // Predicated region
    $region33: #{_lambda_.8} parent=5 // pred_check
      _
    $region34: #{_lambda_.8} parent=5 // pred_check_branch
      %180 = sbr.rel (%p177) target = $region36
    $region35: #{_lambda_.8} parent=5 // pred_region
      %s181 = ssub.s32 %s10, 1
      %p182 = scmp.lt.s32.totalorder %s20, 3
      %s183 = scalar_select %p182, %s20, 3
      %s184 = smul.addr %s183, 23
      %s185 = smul.addr %s184, 8
      %s186 = scalar_lea.vmem %s0, %s185
      %p187 = pneg %p48
      %p188 = pneg %p45
      %p189 = pneg %p69
      %p190 = pneg %p66
      %p191 = pneg %p90
      %p192 = pneg %p87
      %p193 = pneg %p111
      %p194 = pneg %p108
      %p195 = pneg %p139
      %p196 = pneg %p136
      %s197 = smul.u32 %s19, %s20
      %p198 = scmp.lt.s32.totalorder %s197, 3
      %s199 = scalar_select %p198, %s197, 3
      %s200 = smul.addr %s199, 18
      %s201 = smul.addr %s200, 8
      %s202 = scalar_lea.vmem %s4, %s201
      %p203 = scmp.lt.s32.totalorder %s20, 3
      %s204 = scalar_select %p203, %s20, 3
      %s205 = smul.addr %s204, 23
      %s206 = smul.addr %s205, 8
      %s207 = scalar_lea.vmem %s0, %s206
      %s208 = smul.u32 %s19, %s20
      %p209 = scmp.lt.s32.totalorder %s208, 3
      %s210 = scalar_select %p209, %s208, 3
      %s211 = smul.addr %s210, 18
      %s212 = smul.addr %s211, 8
      %s213 = scalar_lea.vmem %s4, %s212
      %s214 = smul.u32 %s19, %s20
      %v216 = vld [vmem:[%s207] sm:$0xff]
      %v217 = vld [vmem:[%s207 + $0x8] sm:$0xff]
      %v218 = vld [vmem:[%s207 + $0x10] sm:$0xff]
      %v219 = vld [vmem:[%s207 + $0x18] sm:$0xff]
      %v220 = vld [vmem:[%s207 + $0x20] sm:$0xff]
      %v221 = vld [vmem:[%s207 + $0x28] sm:$0xff]
      %v222 = vld [vmem:[%s207 + $0x30] sm:$0xff]
      %v223 = vld [vmem:[%s207 + $0x38] sm:$0xff]
      %v224 = vld [vmem:[%s207 + $0x40] sm:$0xff]
      %v225 = vld [vmem:[%s207 + $0x48] sm:$0xff]
      %v226 = vld [vmem:[%s207 + $0x50] sm:$0xff]
      %v227 = vld [vmem:[%s207 + $0x58] sm:$0xff]
      %v228 = vld [vmem:[%s207 + $0x60] sm:$0xff]
      %v229 = vld [vmem:[%s207 + $0x68] sm:$0xff]
      %v230 = vld [vmem:[%s207 + $0x70] sm:$0xff]
      %v231 = vld [vmem:[%s207 + $0x78] sm:$0xff]
      %v232 = vld [vmem:[%s207 + $0x80] sm:$0xff]
      %v233 = vld [vmem:[%s207 + $0x88] sm:$0xff]
      %v234 = vld [vmem:[%s1] sm:$0xf]
      %v235 = vpack.c.bf16 %v217, %v216
      %v236 = vpack.c.bf16 %v219, %v218
      %v237 = vpack.c.bf16 %v221, %v220
      %v238 = vpack.c.bf16 %v223, %v222
      %v239 = vpack.c.bf16 %v225, %v224
      %v240 = vpack.c.bf16 %v227, %v226
      %v241 = vpack.c.bf16 %v229, %v228
      %v242 = vpack.c.bf16 %v231, %v230
      %v243 = vpack.c.bf16 %v233, %v232
      %v244 = vld [vmem:[%s207 + $0x1] sm:$0xff]
      %v245 = vld [vmem:[%s207 + $0x9] sm:$0xff]
      %v246 = vld [vmem:[%s207 + $0x11] sm:$0xff]
      %v247 = vld [vmem:[%s207 + $0x19] sm:$0xff]
      %v248 = vld [vmem:[%s207 + $0x21] sm:$0xff]
      %v249 = vld [vmem:[%s207 + $0x29] sm:$0xff]
      %v250 = vld [vmem:[%s207 + $0x31] sm:$0xff]
      %v251 = vld [vmem:[%s207 + $0x39] sm:$0xff]
      %v252 = vld [vmem:[%s207 + $0x41] sm:$0xff]
      %v253 = vld [vmem:[%s207 + $0x49] sm:$0xff]
      %v254 = vld [vmem:[%s207 + $0x51] sm:$0xff]
      %v255 = vld [vmem:[%s207 + $0x59] sm:$0xff]
      %v256 = vld [vmem:[%s207 + $0x61] sm:$0xff]
      %v257 = vld [vmem:[%s207 + $0x69] sm:$0xff]
      %v258 = vld [vmem:[%s207 + $0x71] sm:$0xff]
      %v259 = vld [vmem:[%s207 + $0x79] sm:$0xff]
      %v260 = vld [vmem:[%s207 + $0x81] sm:$0xff]
      %v261 = vld [vmem:[%s207 + $0x89] sm:$0xff]
      %v262 = vld [vmem:[%s1 + $0x4] sm:$0xf]
      %v263 = vpack.c.bf16 %v245, %v244
      %v264 = vpack.c.bf16 %v247, %v246
      %v265 = vpack.c.bf16 %v249, %v248
      %v266 = vpack.c.bf16 %v251, %v250
      %v267 = vpack.c.bf16 %v253, %v252
      %v268 = vpack.c.bf16 %v255, %v254
      %v269 = vpack.c.bf16 %v257, %v256
      %v270 = vpack.c.bf16 %v259, %v258
      %v271 = vpack.c.bf16 %v261, %v260
      %vm272 = vcmask 64512
      %v274 = vsel %vm272, %v263, 0
      %v277 = vsel %vm272, %v264, 0
      %v280 = vsel %vm272, %v265, 0
      %v283 = vsel %vm272, %v266, 0
      %v286 = vsel %vm272, %v267, 0
      %v289 = vsel %vm272, %v268, 0
      %v292 = vsel %vm272, %v269, 0
      %v295 = vsel %vm272, %v270, 0
      %v298 = vsel %vm272, %v271, 0
      %vm300 = vcmask 1043456
      %v302 = vsel %vm300, %v262, 0
      %304 = vmatprep.subr.bf16.mxu0 0
      %305 = vmatpush1.bf16.msra.mxu0 0
      %306 = vmatprep.subr.bf16.mxu0 0
      %307 = vmatpush1.bf16.msra.mxu0 0
      %308 = vmatprep.subr.bf16.mxu0 0
      %309 = vmatpush1.bf16.msra.mxu0 0
      %310 = vmatprep.subr.bf16.mxu0 0
      %311 = vmatpush1.bf16.msra.mxu0 0
      %312 = vmatprep.subr.bf16.mxu0 0
      %313 = vmatpush1.bf16.msra.mxu0 0
      %314 = vmatprep.subr.bf16.mxu0 0
      %315 = vmatpush1.bf16.msra.mxu0 0
      %316 = vmatprep.subr.bf16.mxu0 0
      %317 = vmatpush1.bf16.msra.mxu0 0
      %318 = vmatprep.subr.bf16.mxu0 0
      %319 = vmatpush1.bf16.msra.mxu0 %v302
      %320 = vmatprep.subr.bf16.mxu0 0
      %321 = vmatpush2.bf16.msra.mxu0 0
      %322 = vmatprep.subr.bf16.mxu0 0
      %323 = vmatpush2.bf16.msra.mxu0 0
      %324 = vmatprep.subr.bf16.mxu0 0
      %325 = vmatpush2.bf16.msra.mxu0 0
      %326 = vmatprep.subr.bf16.mxu0 0
      %327 = vmatpush2.bf16.msra.mxu0 0
      %328 = vmatprep.subr.bf16.mxu0 0
      %329 = vmatpush2.bf16.msra.mxu0 0
      %330 = vmatprep.subr.bf16.mxu0 0
      %331 = vmatpush2.bf16.msra.mxu0 0
      %332 = vmatprep.subr.bf16.mxu0 0
      %333 = vmatpush2.bf16.msra.mxu0 0
      %334 = vmatprep.subr.bf16.mxu0 0
      %335 = vmatpush2.bf16.msra.mxu0 0
      %336 = vmatprep.mubr.bf16.mxu0 0
      %337 = vmatmul.mubr.bf16.gmra.mxu0 %v274
      %v338 = vpop.f32.mrf.mxu0
      %v339 = vadd.f32 0.0, %v338
      %v340 = vpop.f32.mrf.mxu0
      %v341 = vpop.f32.mrf.mxu0
      %v342 = vadd.f32 0.0, %v341
      %v343 = vpop.f32.mrf.mxu0
      %344 = vmatprep.mubr.bf16.mxu0 0
      %345 = vmatmul.mubr.bf16.gmra.mxu0 %v277
      %v346 = vpop.f32.mrf.mxu0
      %v347 = vadd.f32 0.0, %v346
      %v348 = vpop.f32.mrf.mxu0
      %v349 = vpop.f32.mrf.mxu0
      %v350 = vadd.f32 0.0, %v349
      %v351 = vpop.f32.mrf.mxu0
      %352 = vmatprep.mubr.bf16.mxu0 0
      %353 = vmatmul.mubr.bf16.gmra.mxu0 %v280
      %v354 = vpop.f32.mrf.mxu0
      %v355 = vadd.f32 0.0, %v354
      %v356 = vpop.f32.mrf.mxu0
      %v357 = vpop.f32.mrf.mxu0
      %v358 = vadd.f32 0.0, %v357
      %v359 = vpop.f32.mrf.mxu0
      %360 = vmatprep.mubr.bf16.mxu0 0
      %361 = vmatmul.mubr.bf16.gmra.mxu0 %v283
      %v362 = vpop.f32.mrf.mxu0
      %v363 = vadd.f32 0.0, %v362
      %v364 = vpop.f32.mrf.mxu0
      %v365 = vpop.f32.mrf.mxu0
      %v366 = vadd.f32 0.0, %v365
      %v367 = vpop.f32.mrf.mxu0
      %368 = vmatprep.mubr.bf16.mxu0 0
      %369 = vmatmul.mubr.bf16.gmra.mxu0 %v286
      %v370 = vpop.f32.mrf.mxu0
      %v371 = vadd.f32 0.0, %v370
      %v372 = vpop.f32.mrf.mxu0
      %v373 = vpop.f32.mrf.mxu0
      %v374 = vadd.f32 0.0, %v373
      %v375 = vpop.f32.mrf.mxu0
      %376 = vmatprep.mubr.bf16.mxu0 0
      %377 = vmatmul.mubr.bf16.gmra.mxu0 %v289
      %v378 = vpop.f32.mrf.mxu0
      %v379 = vadd.f32 0.0, %v378
      %v380 = vpop.f32.mrf.mxu0
      %v381 = vpop.f32.mrf.mxu0
      %v382 = vadd.f32 0.0, %v381
      %v383 = vpop.f32.mrf.mxu0
      %384 = vmatprep.mubr.bf16.mxu0 0
      %385 = vmatmul.mubr.bf16.gmra.mxu0 %v292
      %v386 = vpop.f32.mrf.mxu0
      %v387 = vadd.f32 0.0, %v386
      %v388 = vpop.f32.mrf.mxu0
      %v389 = vpop.f32.mrf.mxu0
      %v390 = vadd.f32 0.0, %v389
      %v391 = vpop.f32.mrf.mxu0
      %392 = vmatprep.mubr.bf16.mxu0 0
      %393 = vmatmul.mubr.bf16.gmra.mxu0 %v295
      %v394 = vpop.f32.mrf.mxu0
      %v395 = vadd.f32 0.0, %v394
      %v396 = vpop.f32.mrf.mxu0
      %v397 = vpop.f32.mrf.mxu0
      %v398 = vadd.f32 0.0, %v397
      %v399 = vpop.f32.mrf.mxu0
      %400 = vmatprep.mubr.bf16.mxu0 0
      %401 = vmatmul.mubr.bf16.gmra.mxu0 %v298
      %v402 = vpop.f32.mrf.mxu0
      %v403 = vadd.f32 0.0, %v402
      %v404 = vpop.f32.mrf.mxu0
      %v405 = vpop.f32.mrf.mxu0
      %v406 = vadd.f32 0.0, %v405
      %v407 = vpop.f32.mrf.mxu0
      %408 = vdwg.mxu0
      %v410 = vsel %vm272, %v235, 0
      %v413 = vsel %vm272, %v236, 0
      %v416 = vsel %vm272, %v237, 0
      %v419 = vsel %vm272, %v238, 0
      %v422 = vsel %vm272, %v239, 0
      %v425 = vsel %vm272, %v240, 0
      %v428 = vsel %vm272, %v241, 0
      %v431 = vsel %vm272, %v242, 0
      %v434 = vsel %vm272, %v243, 0
      %v437 = vsel %vm300, %v234, 0
      %439 = vmatprep.subr.bf16.mxu0 0
      %440 = vmatpush1.bf16.msra.mxu0 0
      %441 = vmatprep.subr.bf16.mxu0 0
      %442 = vmatpush1.bf16.msra.mxu0 0
      %443 = vmatprep.subr.bf16.mxu0 0
      %444 = vmatpush1.bf16.msra.mxu0 0
      %445 = vmatprep.subr.bf16.mxu0 0
      %446 = vmatpush1.bf16.msra.mxu0 0
      %447 = vmatprep.subr.bf16.mxu0 0
      %448 = vmatpush1.bf16.msra.mxu0 0
      %449 = vmatprep.subr.bf16.mxu0 0
      %450 = vmatpush1.bf16.msra.mxu0 0
      %451 = vmatprep.subr.bf16.mxu0 0
      %452 = vmatpush1.bf16.msra.mxu0 0
      %453 = vmatprep.subr.bf16.mxu0 0
      %454 = vmatpush1.bf16.msra.mxu0 %v437
      %455 = vmatprep.subr.bf16.mxu0 0
      %456 = vmatpush2.bf16.msra.mxu0 0
      %457 = vmatprep.subr.bf16.mxu0 0
      %458 = vmatpush2.bf16.msra.mxu0 0
      %459 = vmatprep.subr.bf16.mxu0 0
      %460 = vmatpush2.bf16.msra.mxu0 0
      %461 = vmatprep.subr.bf16.mxu0 0
      %462 = vmatpush2.bf16.msra.mxu0 0
      %463 = vmatprep.subr.bf16.mxu0 0
      %464 = vmatpush2.bf16.msra.mxu0 0
      %465 = vmatprep.subr.bf16.mxu0 0
      %466 = vmatpush2.bf16.msra.mxu0 0
      %467 = vmatprep.subr.bf16.mxu0 0
      %468 = vmatpush2.bf16.msra.mxu0 0
      %469 = vmatprep.subr.bf16.mxu0 0
      %470 = vmatpush2.bf16.msra.mxu0 0
      %471 = vmatprep.mubr.bf16.mxu0 0
      %472 = vmatmul.mubr.bf16.gmra.mxu0 %v410
      %v473 = vpop.f32.mrf.mxu0
      %v474 = vadd.f32 %v339, %v473
      %v475 = vpop.f32.mrf.mxu0
      %v476 = vpop.f32.mrf.mxu0
      %v477 = vadd.f32 %v342, %v476
      %v478 = vpop.f32.mrf.mxu0
      %479 = vmatprep.mubr.bf16.mxu0 0
      %480 = vmatmul.mubr.bf16.gmra.mxu0 %v413
      %v481 = vpop.f32.mrf.mxu0
      %v482 = vadd.f32 %v347, %v481
      %v483 = vpop.f32.mrf.mxu0
      %v484 = vpop.f32.mrf.mxu0
      %v485 = vadd.f32 %v350, %v484
      %v486 = vpop.f32.mrf.mxu0
      %487 = vmatprep.mubr.bf16.mxu0 0
      %488 = vmatmul.mubr.bf16.gmra.mxu0 %v416
      %v489 = vpop.f32.mrf.mxu0
      %v490 = vadd.f32 %v355, %v489
      %v491 = vpop.f32.mrf.mxu0
      %v492 = vpop.f32.mrf.mxu0
      %v493 = vadd.f32 %v358, %v492
      %v494 = vpop.f32.mrf.mxu0
      %495 = vmatprep.mubr.bf16.mxu0 0
      %496 = vmatmul.mubr.bf16.gmra.mxu0 %v419
      %v497 = vpop.f32.mrf.mxu0
      %v498 = vadd.f32 %v363, %v497
      %v499 = vpop.f32.mrf.mxu0
      %v500 = vpop.f32.mrf.mxu0
      %v501 = vadd.f32 %v366, %v500
      %v502 = vpop.f32.mrf.mxu0
      %503 = vmatprep.mubr.bf16.mxu0 0
      %504 = vmatmul.mubr.bf16.gmra.mxu0 %v422
      %v505 = vpop.f32.mrf.mxu0
      %v506 = vadd.f32 %v371, %v505
      %v507 = vpop.f32.mrf.mxu0
      %v508 = vpop.f32.mrf.mxu0
      %v509 = vadd.f32 %v374, %v508
      %v510 = vpop.f32.mrf.mxu0
      %511 = vmatprep.mubr.bf16.mxu0 0
      %512 = vmatmul.mubr.bf16.gmra.mxu0 %v425
      %v513 = vpop.f32.mrf.mxu0
      %v514 = vadd.f32 %v379, %v513
      %v515 = vpop.f32.mrf.mxu0
      %v516 = vpop.f32.mrf.mxu0
      %v517 = vadd.f32 %v382, %v516
      %v518 = vpop.f32.mrf.mxu0
      %519 = vmatprep.mubr.bf16.mxu0 0
      %520 = vmatmul.mubr.bf16.gmra.mxu0 %v428
      %v521 = vpop.f32.mrf.mxu0
      %v522 = vadd.f32 %v387, %v521
      %v523 = vpop.f32.mrf.mxu0
      %v524 = vpop.f32.mrf.mxu0
      %v525 = vadd.f32 %v390, %v524
      %v526 = vpop.f32.mrf.mxu0
      %527 = vmatprep.mubr.bf16.mxu0 0
      %528 = vmatmul.mubr.bf16.gmra.mxu0 %v431
      %v529 = vpop.f32.mrf.mxu0
      %v530 = vadd.f32 %v395, %v529
      %v531 = vpop.f32.mrf.mxu0
      %v532 = vpop.f32.mrf.mxu0
      %v533 = vadd.f32 %v398, %v532
      %v534 = vpop.f32.mrf.mxu0
      %535 = vmatprep.mubr.bf16.mxu0 0
      %536 = vmatmul.mubr.bf16.gmra.mxu0 %v434
      %v537 = vpop.f32.mrf.mxu0
      %v538 = vadd.f32 %v403, %v537
      %v539 = vpop.f32.mrf.mxu0
      %v540 = vpop.f32.mrf.mxu0
      %v541 = vadd.f32 %v406, %v540
      %v542 = vpop.f32.mrf.mxu0
      %543 = vdwg.mxu0
      %v544 = vld [vmem:[%s207 + $0x2] sm:$0xff]
      %v545 = vld [vmem:[%s207 + $0xa] sm:$0xff]
      %v546 = vld [vmem:[%s207 + $0x12] sm:$0xff]
      %v547 = vld [vmem:[%s207 + $0x1a] sm:$0xff]
      %v548 = vld [vmem:[%s207 + $0x22] sm:$0xff]
      %v549 = vld [vmem:[%s207 + $0x2a] sm:$0xff]
      %v550 = vld [vmem:[%s207 + $0x32] sm:$0xff]
      %v551 = vld [vmem:[%s207 + $0x3a] sm:$0xff]
      %v552 = vld [vmem:[%s207 + $0x42] sm:$0xff]
      %v553 = vld [vmem:[%s207 + $0x4a] sm:$0xff]
      %v554 = vld [vmem:[%s207 + $0x52] sm:$0xff]
      %v555 = vld [vmem:[%s207 + $0x5a] sm:$0xff]
      %v556 = vld [vmem:[%s207 + $0x62] sm:$0xff]
      %v557 = vld [vmem:[%s207 + $0x6a] sm:$0xff]
      %v558 = vld [vmem:[%s207 + $0x72] sm:$0xff]
      %v559 = vld [vmem:[%s207 + $0x7a] sm:$0xff]
      %v560 = vld [vmem:[%s207 + $0x82] sm:$0xff]
      %v561 = vld [vmem:[%s207 + $0x8a] sm:$0xff]
      %v562 = vld [vmem:[%s1 + $0x8] sm:$0xf]
      %v563 = vpack.c.bf16 %v545, %v544
      %v564 = vpack.c.bf16 %v547, %v546
      %v565 = vpack.c.bf16 %v549, %v548
      %v566 = vpack.c.bf16 %v551, %v550
      %v567 = vpack.c.bf16 %v553, %v552
      %v568 = vpack.c.bf16 %v555, %v554
      %v569 = vpack.c.bf16 %v557, %v556
      %v570 = vpack.c.bf16 %v559, %v558
      %v571 = vpack.c.bf16 %v561, %v560
      %v573 = vsel %vm272, %v563, 0
      %v576 = vsel %vm272, %v564, 0
      %v579 = vsel %vm272, %v565, 0
      %v582 = vsel %vm272, %v566, 0
      %v585 = vsel %vm272, %v567, 0
      %v588 = vsel %vm272, %v568, 0
      %v591 = vsel %vm272, %v569, 0
      %v594 = vsel %vm272, %v570, 0
      %v597 = vsel %vm272, %v571, 0
      %v600 = vsel %vm300, %v562, 0
      %602 = vmatprep.subr.bf16.mxu0 0
      %603 = vmatpush1.bf16.msra.mxu0 0
      %604 = vmatprep.subr.bf16.mxu0 0
      %605 = vmatpush1.bf16.msra.mxu0 0
      %606 = vmatprep.subr.bf16.mxu0 0
      %607 = vmatpush1.bf16.msra.mxu0 0
      %608 = vmatprep.subr.bf16.mxu0 0
      %609 = vmatpush1.bf16.msra.mxu0 0
      %610 = vmatprep.subr.bf16.mxu0 0
      %611 = vmatpush1.bf16.msra.mxu0 0
      %612 = vmatprep.subr.bf16.mxu0 0
      %613 = vmatpush1.bf16.msra.mxu0 0
      %614 = vmatprep.subr.bf16.mxu0 0
      %615 = vmatpush1.bf16.msra.mxu0 0
      %616 = vmatprep.subr.bf16.mxu0 0
      %617 = vmatpush1.bf16.msra.mxu0 %v600
      %618 = vmatprep.subr.bf16.mxu0 0
      %619 = vmatpush2.bf16.msra.mxu0 0
      %620 = vmatprep.subr.bf16.mxu0 0
      %621 = vmatpush2.bf16.msra.mxu0 0
      %622 = vmatprep.subr.bf16.mxu0 0
      %623 = vmatpush2.bf16.msra.mxu0 0
      %624 = vmatprep.subr.bf16.mxu0 0
      %625 = vmatpush2.bf16.msra.mxu0 0
      %626 = vmatprep.subr.bf16.mxu0 0
      %627 = vmatpush2.bf16.msra.mxu0 0
      %628 = vmatprep.subr.bf16.mxu0 0
      %629 = vmatpush2.bf16.msra.mxu0 0
      %630 = vmatprep.subr.bf16.mxu0 0
      %631 = vmatpush2.bf16.msra.mxu0 0
      %632 = vmatprep.subr.bf16.mxu0 0
      %633 = vmatpush2.bf16.msra.mxu0 0
      %634 = vmatprep.mubr.bf16.mxu0 0
      %635 = vmatmul.mubr.bf16.gmra.mxu0 %v573
      %v636 = vpop.f32.mrf.mxu0
      %v637 = vadd.f32 0.0, %v636
      %v638 = vpop.f32.mrf.mxu0
      %v639 = vpop.f32.mrf.mxu0
      %v640 = vadd.f32 0.0, %v639
      %v641 = vpop.f32.mrf.mxu0
      %642 = vmatprep.mubr.bf16.mxu0 0
      %643 = vmatmul.mubr.bf16.gmra.mxu0 %v576
      %v644 = vpop.f32.mrf.mxu0
      %v645 = vadd.f32 0.0, %v644
      %v646 = vpop.f32.mrf.mxu0
      %v647 = vpop.f32.mrf.mxu0
      %v648 = vadd.f32 0.0, %v647
      %v649 = vpop.f32.mrf.mxu0
      %650 = vmatprep.mubr.bf16.mxu0 0
      %651 = vmatmul.mubr.bf16.gmra.mxu0 %v579
      %v652 = vpop.f32.mrf.mxu0
      %v653 = vadd.f32 0.0, %v652
      %v654 = vpop.f32.mrf.mxu0
      %v655 = vpop.f32.mrf.mxu0
      %v656 = vadd.f32 0.0, %v655
      %v657 = vpop.f32.mrf.mxu0
      %658 = vmatprep.mubr.bf16.mxu0 0
      %659 = vmatmul.mubr.bf16.gmra.mxu0 %v582
      %v660 = vpop.f32.mrf.mxu0
      %v661 = vadd.f32 0.0, %v660
      %v662 = vpop.f32.mrf.mxu0
      %v663 = vpop.f32.mrf.mxu0
      %v664 = vadd.f32 0.0, %v663
      %v665 = vpop.f32.mrf.mxu0
      %666 = vmatprep.mubr.bf16.mxu0 0
      %667 = vmatmul.mubr.bf16.gmra.mxu0 %v585
      %v668 = vpop.f32.mrf.mxu0
      %v669 = vadd.f32 0.0, %v668
      %v670 = vpop.f32.mrf.mxu0
      %v671 = vpop.f32.mrf.mxu0
      %v672 = vadd.f32 0.0, %v671
      %v673 = vpop.f32.mrf.mxu0
      %674 = vmatprep.mubr.bf16.mxu0 0
      %675 = vmatmul.mubr.bf16.gmra.mxu0 %v588
      %v676 = vpop.f32.mrf.mxu0
      %v677 = vadd.f32 0.0, %v676
      %v678 = vpop.f32.mrf.mxu0
      %v679 = vpop.f32.mrf.mxu0
      %v680 = vadd.f32 0.0, %v679
      %v681 = vpop.f32.mrf.mxu0
      %682 = vmatprep.mubr.bf16.mxu0 0
      %683 = vmatmul.mubr.bf16.gmra.mxu0 %v591
      %v684 = vpop.f32.mrf.mxu0
      %v685 = vadd.f32 0.0, %v684
      %v686 = vpop.f32.mrf.mxu0
      %v687 = vpop.f32.mrf.mxu0
      %v688 = vadd.f32 0.0, %v687
      %v689 = vpop.f32.mrf.mxu0
      %690 = vmatprep.mubr.bf16.mxu0 0
      %691 = vmatmul.mubr.bf16.gmra.mxu0 %v594
      %v692 = vpop.f32.mrf.mxu0
      %v693 = vadd.f32 0.0, %v692
      %v694 = vpop.f32.mrf.mxu0
      %v695 = vpop.f32.mrf.mxu0
      %v696 = vadd.f32 0.0, %v695
      %v697 = vpop.f32.mrf.mxu0
      %698 = vmatprep.mubr.bf16.mxu0 0
      %699 = vmatmul.mubr.bf16.gmra.mxu0 %v597
      %v700 = vpop.f32.mrf.mxu0
      %v701 = vadd.f32 0.0, %v700
      %v702 = vpop.f32.mrf.mxu0
      %v703 = vpop.f32.mrf.mxu0
      %v704 = vadd.f32 0.0, %v703
      %v705 = vpop.f32.mrf.mxu0
      %706 = vdwg.mxu0
      %v707 = vadd.f32 %v474, %v637
      %v708 = vadd.f32 %v477, %v640
      %v709 = vadd.f32 %v482, %v645
      %v710 = vadd.f32 %v485, %v648
      %v711 = vadd.f32 %v490, %v653
      %v712 = vadd.f32 %v493, %v656
      %v713 = vadd.f32 %v498, %v661
      %v714 = vadd.f32 %v501, %v664
      %v715 = vadd.f32 %v506, %v669
      %v716 = vadd.f32 %v509, %v672
      %v717 = vadd.f32 %v514, %v677
      %v718 = vadd.f32 %v517, %v680
      %v719 = vadd.f32 %v522, %v685
      %v720 = vadd.f32 %v525, %v688
      %v721 = vadd.f32 %v530, %v693
      %v722 = vadd.f32 %v533, %v696
      %v723 = vadd.f32 %v538, %v701
      %v724 = vadd.f32 %v541, %v704
      %v725 = vld [vmem:[%s207 + $0x12] sm:$0xff]
      %v726 = vld [vmem:[%s207 + $0x1a] sm:$0xff]
      %v727 = vld [vmem:[%s207 + $0x22] sm:$0xff]
      %v728 = vld [vmem:[%s207 + $0x2a] sm:$0xff]
      %v729 = vld [vmem:[%s207 + $0x32] sm:$0xff]
      %v730 = vld [vmem:[%s207 + $0x3a] sm:$0xff]
      %v731 = vld [vmem:[%s207 + $0x42] sm:$0xff]
      %v732 = vld [vmem:[%s207 + $0x4a] sm:$0xff]
      %v733 = vld [vmem:[%s207 + $0x52] sm:$0xff]
      %v734 = vld [vmem:[%s207 + $0x5a] sm:$0xff]
      %v735 = vld [vmem:[%s207 + $0x62] sm:$0xff]
      %v736 = vld [vmem:[%s207 + $0x6a] sm:$0xff]
      %v737 = vld [vmem:[%s207 + $0x72] sm:$0xff]
      %v738 = vld [vmem:[%s207 + $0x7a] sm:$0xff]
      %v739 = vld [vmem:[%s207 + $0x82] sm:$0xff]
      %v740 = vld [vmem:[%s207 + $0x8a] sm:$0xff]
      %v741 = vld [vmem:[%s207 + $0x92] sm:$0xff]
      %v742 = vld [vmem:[%s207 + $0x9a] sm:$0xff]
      %v743 = vld [vmem:[%s1 + $0xc] sm:$0xf]
      %v744 = vpack.c.bf16 %v726, %v725
      %v745 = vpack.c.bf16 %v728, %v727
      %v746 = vpack.c.bf16 %v730, %v729
      %v747 = vpack.c.bf16 %v732, %v731
      %v748 = vpack.c.bf16 %v734, %v733
      %v749 = vpack.c.bf16 %v736, %v735
      %v750 = vpack.c.bf16 %v738, %v737
      %v751 = vpack.c.bf16 %v740, %v739
      %v752 = vpack.c.bf16 %v742, %v741
      %v754 = vsel %vm272, %v744, 0
      %v757 = vsel %vm272, %v745, 0
      %v760 = vsel %vm272, %v746, 0
      %v763 = vsel %vm272, %v747, 0
      %v766 = vsel %vm272, %v748, 0
      %v769 = vsel %vm272, %v749, 0
      %v772 = vsel %vm272, %v750, 0
      %v775 = vsel %vm272, %v751, 0
      %v778 = vsel %vm272, %v752, 0
      %v781 = vsel %vm300, %v743, 0
      %783 = vmatprep.subr.bf16.mxu0 0
      %784 = vmatpush1.bf16.msra.mxu0 0
      %785 = vmatprep.subr.bf16.mxu0 0
      %786 = vmatpush1.bf16.msra.mxu0 0
      %787 = vmatprep.subr.bf16.mxu0 0
      %788 = vmatpush1.bf16.msra.mxu0 0
      %789 = vmatprep.subr.bf16.mxu0 0
      %790 = vmatpush1.bf16.msra.mxu0 0
      %791 = vmatprep.subr.bf16.mxu0 0
      %792 = vmatpush1.bf16.msra.mxu0 0
      %793 = vmatprep.subr.bf16.mxu0 0
      %794 = vmatpush1.bf16.msra.mxu0 0
      %795 = vmatprep.subr.bf16.mxu0 0
      %796 = vmatpush1.bf16.msra.mxu0 0
      %797 = vmatprep.subr.bf16.mxu0 0
      %798 = vmatpush1.bf16.msra.mxu0 %v781
      %799 = vmatprep.subr.bf16.mxu0 0
      %800 = vmatpush2.bf16.msra.mxu0 0
      %801 = vmatprep.subr.bf16.mxu0 0
      %802 = vmatpush2.bf16.msra.mxu0 0
      %803 = vmatprep.subr.bf16.mxu0 0
      %804 = vmatpush2.bf16.msra.mxu0 0
      %805 = vmatprep.subr.bf16.mxu0 0
      %806 = vmatpush2.bf16.msra.mxu0 0
      %807 = vmatprep.subr.bf16.mxu0 0
      %808 = vmatpush2.bf16.msra.mxu0 0
      %809 = vmatprep.subr.bf16.mxu0 0
      %810 = vmatpush2.bf16.msra.mxu0 0
      %811 = vmatprep.subr.bf16.mxu0 0
      %812 = vmatpush2.bf16.msra.mxu0 0
      %813 = vmatprep.subr.bf16.mxu0 0
      %814 = vmatpush2.bf16.msra.mxu0 0
      %815 = vmatprep.mubr.bf16.mxu0 0
      %816 = vmatmul.mubr.bf16.gmra.mxu0 %v754
      %v817 = vpop.f32.mrf.mxu0
      %v818 = vadd.f32 0.0, %v817
      %v819 = vpop.f32.mrf.mxu0
      %v820 = vpop.f32.mrf.mxu0
      %v821 = vadd.f32 0.0, %v820
      %v822 = vpop.f32.mrf.mxu0
      %823 = vmatprep.mubr.bf16.mxu0 0
      %824 = vmatmul.mubr.bf16.gmra.mxu0 %v757
      %v825 = vpop.f32.mrf.mxu0
      %v826 = vadd.f32 0.0, %v825
      %v827 = vpop.f32.mrf.mxu0
      %v828 = vpop.f32.mrf.mxu0
      %v829 = vadd.f32 0.0, %v828
      %v830 = vpop.f32.mrf.mxu0
      %831 = vmatprep.mubr.bf16.mxu0 0
      %832 = vmatmul.mubr.bf16.gmra.mxu0 %v760
      %v833 = vpop.f32.mrf.mxu0
      %v834 = vadd.f32 0.0, %v833
      %v835 = vpop.f32.mrf.mxu0
      %v836 = vpop.f32.mrf.mxu0
      %v837 = vadd.f32 0.0, %v836
      %v838 = vpop.f32.mrf.mxu0
      %839 = vmatprep.mubr.bf16.mxu0 0
      %840 = vmatmul.mubr.bf16.gmra.mxu0 %v763
      %v841 = vpop.f32.mrf.mxu0
      %v842 = vadd.f32 0.0, %v841
      %v843 = vpop.f32.mrf.mxu0
      %v844 = vpop.f32.mrf.mxu0
      %v845 = vadd.f32 0.0, %v844
      %v846 = vpop.f32.mrf.mxu0
      %847 = vmatprep.mubr.bf16.mxu0 0
      %848 = vmatmul.mubr.bf16.gmra.mxu0 %v766
      %v849 = vpop.f32.mrf.mxu0
      %v850 = vadd.f32 0.0, %v849
      %v851 = vpop.f32.mrf.mxu0
      %v852 = vpop.f32.mrf.mxu0
      %v853 = vadd.f32 0.0, %v852
      %v854 = vpop.f32.mrf.mxu0
      %855 = vmatprep.mubr.bf16.mxu0 0
      %856 = vmatmul.mubr.bf16.gmra.mxu0 %v769
      %v857 = vpop.f32.mrf.mxu0
      %v858 = vadd.f32 0.0, %v857
      %v859 = vpop.f32.mrf.mxu0
      %v860 = vpop.f32.mrf.mxu0
      %v861 = vadd.f32 0.0, %v860
      %v862 = vpop.f32.mrf.mxu0
      %863 = vmatprep.mubr.bf16.mxu0 0
      %864 = vmatmul.mubr.bf16.gmra.mxu0 %v772
      %v865 = vpop.f32.mrf.mxu0
      %v866 = vadd.f32 0.0, %v865
      %v867 = vpop.f32.mrf.mxu0
      %v868 = vpop.f32.mrf.mxu0
      %v869 = vadd.f32 0.0, %v868
      %v870 = vpop.f32.mrf.mxu0
      %871 = vmatprep.mubr.bf16.mxu0 0
      %872 = vmatmul.mubr.bf16.gmra.mxu0 %v775
      %v873 = vpop.f32.mrf.mxu0
      %v874 = vadd.f32 0.0, %v873
      %v875 = vpop.f32.mrf.mxu0
      %v876 = vpop.f32.mrf.mxu0
      %v877 = vadd.f32 0.0, %v876
      %v878 = vpop.f32.mrf.mxu0
      %879 = vmatprep.mubr.bf16.mxu0 0
      %880 = vmatmul.mubr.bf16.gmra.mxu0 %v778
      %v881 = vpop.f32.mrf.mxu0
      %v882 = vadd.f32 0.0, %v881
      %v883 = vpop.f32.mrf.mxu0
      %v884 = vpop.f32.mrf.mxu0
      %v885 = vadd.f32 0.0, %v884
      %v886 = vpop.f32.mrf.mxu0
      %887 = vdwg.mxu0
      %v888 = vadd.f32 %v707, %v818
      %v889 = vadd.f32 %v708, %v821
      %v890 = vadd.f32 %v709, %v826
      %v891 = vadd.f32 %v710, %v829
      %v892 = vadd.f32 %v711, %v834
      %v893 = vadd.f32 %v712, %v837
      %v894 = vadd.f32 %v713, %v842
      %v895 = vadd.f32 %v714, %v845
      %v896 = vadd.f32 %v715, %v850
      %v897 = vadd.f32 %v716, %v853
      %v898 = vadd.f32 %v717, %v858
      %v899 = vadd.f32 %v718, %v861
      %v900 = vadd.f32 %v719, %v866
      %v901 = vadd.f32 %v720, %v869
      %v902 = vadd.f32 %v721, %v874
      %v903 = vadd.f32 %v722, %v877
      %v904 = vadd.f32 %v723, %v882
      %v905 = vadd.f32 %v724, %v885
      %v906 = vld [vmem:[%s207 + $0x13] sm:$0xff]
      %v907 = vld [vmem:[%s207 + $0x1b] sm:$0xff]
      %v908 = vld [vmem:[%s207 + $0x23] sm:$0xff]
      %v909 = vld [vmem:[%s207 + $0x2b] sm:$0xff]
      %v910 = vld [vmem:[%s207 + $0x33] sm:$0xff]
      %v911 = vld [vmem:[%s207 + $0x3b] sm:$0xff]
      %v912 = vld [vmem:[%s207 + $0x43] sm:$0xff]
      %v913 = vld [vmem:[%s207 + $0x4b] sm:$0xff]
      %v914 = vld [vmem:[%s207 + $0x53] sm:$0xff]
      %v915 = vld [vmem:[%s207 + $0x5b] sm:$0xff]
      %v916 = vld [vmem:[%s207 + $0x63] sm:$0xff]
      %v917 = vld [vmem:[%s207 + $0x6b] sm:$0xff]
      %v918 = vld [vmem:[%s207 + $0x73] sm:$0xff]
      %v919 = vld [vmem:[%s207 + $0x7b] sm:$0xff]
      %v920 = vld [vmem:[%s207 + $0x83] sm:$0xff]
      %v921 = vld [vmem:[%s207 + $0x8b] sm:$0xff]
      %v922 = vld [vmem:[%s207 + $0x93] sm:$0xff]
      %v923 = vld [vmem:[%s207 + $0x9b] sm:$0xff]
      %v924 = vld [vmem:[%s1 + $0x10] sm:$0xf]
      %v925 = vpack.c.bf16 %v907, %v906
      %v926 = vpack.c.bf16 %v909, %v908
      %v927 = vpack.c.bf16 %v911, %v910
      %v928 = vpack.c.bf16 %v913, %v912
      %v929 = vpack.c.bf16 %v915, %v914
      %v930 = vpack.c.bf16 %v917, %v916
      %v931 = vpack.c.bf16 %v919, %v918
      %v932 = vpack.c.bf16 %v921, %v920
      %v933 = vpack.c.bf16 %v923, %v922
      %v935 = vsel %vm272, %v925, 0
      %v938 = vsel %vm272, %v926, 0
      %v941 = vsel %vm272, %v927, 0
      %v944 = vsel %vm272, %v928, 0
      %v947 = vsel %vm272, %v929, 0
      %v950 = vsel %vm272, %v930, 0
      %v953 = vsel %vm272, %v931, 0
      %v956 = vsel %vm272, %v932, 0
      %v959 = vsel %vm272, %v933, 0
      %v962 = vsel %vm300, %v924, 0
      %964 = vmatprep.subr.bf16.mxu0 0
      %965 = vmatpush1.bf16.msra.mxu0 0
      %966 = vmatprep.subr.bf16.mxu0 0
      %967 = vmatpush1.bf16.msra.mxu0 0
      %968 = vmatprep.subr.bf16.mxu0 0
      %969 = vmatpush1.bf16.msra.mxu0 0
      %970 = vmatprep.subr.bf16.mxu0 0
      %971 = vmatpush1.bf16.msra.mxu0 0
      %972 = vmatprep.subr.bf16.mxu0 0
      %973 = vmatpush1.bf16.msra.mxu0 0
      %974 = vmatprep.subr.bf16.mxu0 0
      %975 = vmatpush1.bf16.msra.mxu0 0
      %976 = vmatprep.subr.bf16.mxu0 0
      %977 = vmatpush1.bf16.msra.mxu0 0
      %978 = vmatprep.subr.bf16.mxu0 0
      %979 = vmatpush1.bf16.msra.mxu0 %v962
      %980 = vmatprep.subr.bf16.mxu0 0
      %981 = vmatpush2.bf16.msra.mxu0 0
      %982 = vmatprep.subr.bf16.mxu0 0
      %983 = vmatpush2.bf16.msra.mxu0 0
      %984 = vmatprep.subr.bf16.mxu0 0
      %985 = vmatpush2.bf16.msra.mxu0 0
      %986 = vmatprep.subr.bf16.mxu0 0
      %987 = vmatpush2.bf16.msra.mxu0 0
      %988 = vmatprep.subr.bf16.mxu0 0
      %989 = vmatpush2.bf16.msra.mxu0 0
      %990 = vmatprep.subr.bf16.mxu0 0
      %991 = vmatpush2.bf16.msra.mxu0 0
      %992 = vmatprep.subr.bf16.mxu0 0
      %993 = vmatpush2.bf16.msra.mxu0 0
      %994 = vmatprep.subr.bf16.mxu0 0
      %995 = vmatpush2.bf16.msra.mxu0 0
      %996 = vmatprep.mubr.bf16.mxu0 0
      %997 = vmatmul.mubr.bf16.gmra.mxu0 %v935
      %v998 = vpop.f32.mrf.mxu0
      %v999 = vadd.f32 0.0, %v998
      %v1000 = vpop.f32.mrf.mxu0
      %v1001 = vpop.f32.mrf.mxu0
      %v1002 = vadd.f32 0.0, %v1001
      %v1003 = vpop.f32.mrf.mxu0
      %1004 = vmatprep.mubr.bf16.mxu0 0
      %1005 = vmatmul.mubr.bf16.gmra.mxu0 %v938
      %v1006 = vpop.f32.mrf.mxu0
      %v1007 = vadd.f32 0.0, %v1006
      %v1008 = vpop.f32.mrf.mxu0
      %v1009 = vpop.f32.mrf.mxu0
      %v1010 = vadd.f32 0.0, %v1009
      %v1011 = vpop.f32.mrf.mxu0
      %1012 = vmatprep.mubr.bf16.mxu0 0
      %1013 = vmatmul.mubr.bf16.gmra.mxu0 %v941
      %v1014 = vpop.f32.mrf.mxu0
      %v1015 = vadd.f32 0.0, %v1014
      %v1016 = vpop.f32.mrf.mxu0
      %v1017 = vpop.f32.mrf.mxu0
      %v1018 = vadd.f32 0.0, %v1017
      %v1019 = vpop.f32.mrf.mxu0
      %1020 = vmatprep.mubr.bf16.mxu0 0
      %1021 = vmatmul.mubr.bf16.gmra.mxu0 %v944
      %v1022 = vpop.f32.mrf.mxu0
      %v1023 = vadd.f32 0.0, %v1022
      %v1024 = vpop.f32.mrf.mxu0
      %v1025 = vpop.f32.mrf.mxu0
      %v1026 = vadd.f32 0.0, %v1025
      %v1027 = vpop.f32.mrf.mxu0
      %1028 = vmatprep.mubr.bf16.mxu0 0
      %1029 = vmatmul.mubr.bf16.gmra.mxu0 %v947
      %v1030 = vpop.f32.mrf.mxu0
      %v1031 = vadd.f32 0.0, %v1030
      %v1032 = vpop.f32.mrf.mxu0
      %v1033 = vpop.f32.mrf.mxu0
      %v1034 = vadd.f32 0.0, %v1033
      %v1035 = vpop.f32.mrf.mxu0
      %1036 = vmatprep.mubr.bf16.mxu0 0
      %1037 = vmatmul.mubr.bf16.gmra.mxu0 %v950
      %v1038 = vpop.f32.mrf.mxu0
      %v1039 = vadd.f32 0.0, %v1038
      %v1040 = vpop.f32.mrf.mxu0
      %v1041 = vpop.f32.mrf.mxu0
      %v1042 = vadd.f32 0.0, %v1041
      %v1043 = vpop.f32.mrf.mxu0
      %1044 = vmatprep.mubr.bf16.mxu0 0
      %1045 = vmatmul.mubr.bf16.gmra.mxu0 %v953
      %v1046 = vpop.f32.mrf.mxu0
      %v1047 = vadd.f32 0.0, %v1046
      %v1048 = vpop.f32.mrf.mxu0
      %v1049 = vpop.f32.mrf.mxu0
      %v1050 = vadd.f32 0.0, %v1049
      %v1051 = vpop.f32.mrf.mxu0
      %1052 = vmatprep.mubr.bf16.mxu0 0
      %1053 = vmatmul.mubr.bf16.gmra.mxu0 %v956
      %v1054 = vpop.f32.mrf.mxu0
      %v1055 = vadd.f32 0.0, %v1054
      %v1056 = vpop.f32.mrf.mxu0
      %v1057 = vpop.f32.mrf.mxu0
      %v1058 = vadd.f32 0.0, %v1057
      %v1059 = vpop.f32.mrf.mxu0
      %1060 = vmatprep.mubr.bf16.mxu0 0
      %1061 = vmatmul.mubr.bf16.gmra.mxu0 %v959
      %v1062 = vpop.f32.mrf.mxu0
      %v1063 = vadd.f32 0.0, %v1062
      %v1064 = vpop.f32.mrf.mxu0
      %v1065 = vpop.f32.mrf.mxu0
      %v1066 = vadd.f32 0.0, %v1065
      %v1067 = vpop.f32.mrf.mxu0
      %1068 = vdwg.mxu0
      %v1069 = vadd.f32 %v888, %v999
      %v1070 = vadd.f32 %v889, %v1002
      %v1071 = vadd.f32 %v890, %v1007
      %v1072 = vadd.f32 %v891, %v1010
      %v1073 = vadd.f32 %v892, %v1015
      %v1074 = vadd.f32 %v893, %v1018
      %v1075 = vadd.f32 %v894, %v1023
      %v1076 = vadd.f32 %v895, %v1026
      %v1077 = vadd.f32 %v896, %v1031
      %v1078 = vadd.f32 %v897, %v1034
      %v1079 = vadd.f32 %v898, %v1039
      %v1080 = vadd.f32 %v899, %v1042
      %v1081 = vadd.f32 %v900, %v1047
      %v1082 = vadd.f32 %v901, %v1050
      %v1083 = vadd.f32 %v902, %v1055
      %v1084 = vadd.f32 %v903, %v1058
      %v1085 = vadd.f32 %v904, %v1063
      %v1086 = vadd.f32 %v905, %v1066
      %v1087 = vld [vmem:[%s207 + $0x14] sm:$0xff]
      %v1088 = vld [vmem:[%s207 + $0x1c] sm:$0xff]
      %v1089 = vld [vmem:[%s207 + $0x24] sm:$0xff]
      %v1090 = vld [vmem:[%s207 + $0x2c] sm:$0xff]
      %v1091 = vld [vmem:[%s207 + $0x34] sm:$0xff]
      %v1092 = vld [vmem:[%s207 + $0x3c] sm:$0xff]
      %v1093 = vld [vmem:[%s207 + $0x44] sm:$0xff]
      %v1094 = vld [vmem:[%s207 + $0x4c] sm:$0xff]
      %v1095 = vld [vmem:[%s207 + $0x54] sm:$0xff]
      %v1096 = vld [vmem:[%s207 + $0x5c] sm:$0xff]
      %v1097 = vld [vmem:[%s207 + $0x64] sm:$0xff]
      %v1098 = vld [vmem:[%s207 + $0x6c] sm:$0xff]
      %v1099 = vld [vmem:[%s207 + $0x74] sm:$0xff]
      %v1100 = vld [vmem:[%s207 + $0x7c] sm:$0xff]
      %v1101 = vld [vmem:[%s207 + $0x84] sm:$0xff]
      %v1102 = vld [vmem:[%s207 + $0x8c] sm:$0xff]
      %v1103 = vld [vmem:[%s207 + $0x94] sm:$0xff]
      %v1104 = vld [vmem:[%s207 + $0x9c] sm:$0xff]
      %v1105 = vld [vmem:[%s1 + $0x14] sm:$0xf]
      %v1106 = vpack.c.bf16 %v1088, %v1087
      %v1107 = vpack.c.bf16 %v1090, %v1089
      %v1108 = vpack.c.bf16 %v1092, %v1091
      %v1109 = vpack.c.bf16 %v1094, %v1093
      %v1110 = vpack.c.bf16 %v1096, %v1095
      %v1111 = vpack.c.bf16 %v1098, %v1097
      %v1112 = vpack.c.bf16 %v1100, %v1099
      %v1113 = vpack.c.bf16 %v1102, %v1101
      %v1114 = vpack.c.bf16 %v1104, %v1103
      %v1116 = vsel %vm272, %v1106, 0
      %v1119 = vsel %vm272, %v1107, 0
      %v1122 = vsel %vm272, %v1108, 0
      %v1125 = vsel %vm272, %v1109, 0
      %v1128 = vsel %vm272, %v1110, 0
      %v1131 = vsel %vm272, %v1111, 0
      %v1134 = vsel %vm272, %v1112, 0
      %v1137 = vsel %vm272, %v1113, 0
      %v1140 = vsel %vm272, %v1114, 0
      %v1143 = vsel %vm300, %v1105, 0
      %1145 = vmatprep.subr.bf16.mxu0 0
      %1146 = vmatpush1.bf16.msra.mxu0 0
      %1147 = vmatprep.subr.bf16.mxu0 0
      %1148 = vmatpush1.bf16.msra.mxu0 0
      %1149 = vmatprep.subr.bf16.mxu0 0
      %1150 = vmatpush1.bf16.msra.mxu0 0
      %1151 = vmatprep.subr.bf16.mxu0 0
      %1152 = vmatpush1.bf16.msra.mxu0 0
      %1153 = vmatprep.subr.bf16.mxu0 0
      %1154 = vmatpush1.bf16.msra.mxu0 0
      %1155 = vmatprep.subr.bf16.mxu0 0
      %1156 = vmatpush1.bf16.msra.mxu0 0
      %1157 = vmatprep.subr.bf16.mxu0 0
      %1158 = vmatpush1.bf16.msra.mxu0 0
      %1159 = vmatprep.subr.bf16.mxu0 0
      %1160 = vmatpush1.bf16.msra.mxu0 %v1143
      %1161 = vmatprep.subr.bf16.mxu0 0
      %1162 = vmatpush2.bf16.msra.mxu0 0
      %1163 = vmatprep.subr.bf16.mxu0 0
      %1164 = vmatpush2.bf16.msra.mxu0 0
      %1165 = vmatprep.subr.bf16.mxu0 0
      %1166 = vmatpush2.bf16.msra.mxu0 0
      %1167 = vmatprep.subr.bf16.mxu0 0
      %1168 = vmatpush2.bf16.msra.mxu0 0
      %1169 = vmatprep.subr.bf16.mxu0 0
      %1170 = vmatpush2.bf16.msra.mxu0 0
      %1171 = vmatprep.subr.bf16.mxu0 0
      %1172 = vmatpush2.bf16.msra.mxu0 0
      %1173 = vmatprep.subr.bf16.mxu0 0
      %1174 = vmatpush2.bf16.msra.mxu0 0
      %1175 = vmatprep.subr.bf16.mxu0 0
      %1176 = vmatpush2.bf16.msra.mxu0 0
      %1177 = vmatprep.mubr.bf16.mxu0 0
      %1178 = vmatmul.mubr.bf16.gmra.mxu0 %v1116
      %v1179 = vpop.f32.mrf.mxu0
      %v1180 = vadd.f32 0.0, %v1179
      %v1181 = vpop.f32.mrf.mxu0
      %v1182 = vpop.f32.mrf.mxu0
      %v1183 = vadd.f32 0.0, %v1182
      %v1184 = vpop.f32.mrf.mxu0
      %1185 = vmatprep.mubr.bf16.mxu0 0
      %1186 = vmatmul.mubr.bf16.gmra.mxu0 %v1119
      %v1187 = vpop.f32.mrf.mxu0
      %v1188 = vadd.f32 0.0, %v1187
      %v1189 = vpop.f32.mrf.mxu0
      %v1190 = vpop.f32.mrf.mxu0
      %v1191 = vadd.f32 0.0, %v1190
      %v1192 = vpop.f32.mrf.mxu0
      %1193 = vmatprep.mubr.bf16.mxu0 0
      %1194 = vmatmul.mubr.bf16.gmra.mxu0 %v1122
      %v1195 = vpop.f32.mrf.mxu0
      %v1196 = vadd.f32 0.0, %v1195
      %v1197 = vpop.f32.mrf.mxu0
      %v1198 = vpop.f32.mrf.mxu0
      %v1199 = vadd.f32 0.0, %v1198
      %v1200 = vpop.f32.mrf.mxu0
      %1201 = vmatprep.mubr.bf16.mxu0 0
      %1202 = vmatmul.mubr.bf16.gmra.mxu0 %v1125
      %v1203 = vpop.f32.mrf.mxu0
      %v1204 = vadd.f32 0.0, %v1203
      %v1205 = vpop.f32.mrf.mxu0
      %v1206 = vpop.f32.mrf.mxu0
      %v1207 = vadd.f32 0.0, %v1206
      %v1208 = vpop.f32.mrf.mxu0
      %1209 = vmatprep.mubr.bf16.mxu0 0
      %1210 = vmatmul.mubr.bf16.gmra.mxu0 %v1128
      %v1211 = vpop.f32.mrf.mxu0
      %v1212 = vadd.f32 0.0, %v1211
      %v1213 = vpop.f32.mrf.mxu0
      %v1214 = vpop.f32.mrf.mxu0
      %v1215 = vadd.f32 0.0, %v1214
      %v1216 = vpop.f32.mrf.mxu0
      %1217 = vmatprep.mubr.bf16.mxu0 0
      %1218 = vmatmul.mubr.bf16.gmra.mxu0 %v1131
      %v1219 = vpop.f32.mrf.mxu0
      %v1220 = vadd.f32 0.0, %v1219
      %v1221 = vpop.f32.mrf.mxu0
      %v1222 = vpop.f32.mrf.mxu0
      %v1223 = vadd.f32 0.0, %v1222
      %v1224 = vpop.f32.mrf.mxu0
      %1225 = vmatprep.mubr.bf16.mxu0 0
      %1226 = vmatmul.mubr.bf16.gmra.mxu0 %v1134
      %v1227 = vpop.f32.mrf.mxu0
      %v1228 = vadd.f32 0.0, %v1227
      %v1229 = vpop.f32.mrf.mxu0
      %v1230 = vpop.f32.mrf.mxu0
      %v1231 = vadd.f32 0.0, %v1230
      %v1232 = vpop.f32.mrf.mxu0
      %1233 = vmatprep.mubr.bf16.mxu0 0
      %1234 = vmatmul.mubr.bf16.gmra.mxu0 %v1137
      %v1235 = vpop.f32.mrf.mxu0
      %v1236 = vadd.f32 0.0, %v1235
      %v1237 = vpop.f32.mrf.mxu0
      %v1238 = vpop.f32.mrf.mxu0
      %v1239 = vadd.f32 0.0, %v1238
      %v1240 = vpop.f32.mrf.mxu0
      %1241 = vmatprep.mubr.bf16.mxu0 0
      %1242 = vmatmul.mubr.bf16.gmra.mxu0 %v1140
      %v1243 = vpop.f32.mrf.mxu0
      %v1244 = vadd.f32 0.0, %v1243
      %v1245 = vpop.f32.mrf.mxu0
      %v1246 = vpop.f32.mrf.mxu0
      %v1247 = vadd.f32 0.0, %v1246
      %v1248 = vpop.f32.mrf.mxu0
      %1249 = vdwg.mxu0
      %v1250 = vadd.f32 %v1069, %v1180
      %v1251 = vadd.f32 %v1070, %v1183
      %v1252 = vadd.f32 %v1071, %v1188
      %v1253 = vadd.f32 %v1072, %v1191
      %v1254 = vadd.f32 %v1073, %v1196
      %v1255 = vadd.f32 %v1074, %v1199
      %v1256 = vadd.f32 %v1075, %v1204
      %v1257 = vadd.f32 %v1076, %v1207
      %v1258 = vadd.f32 %v1077, %v1212
      %v1259 = vadd.f32 %v1078, %v1215
      %v1260 = vadd.f32 %v1079, %v1220
      %v1261 = vadd.f32 %v1080, %v1223
      %v1262 = vadd.f32 %v1081, %v1228
      %v1263 = vadd.f32 %v1082, %v1231
      %v1264 = vadd.f32 %v1083, %v1236
      %v1265 = vadd.f32 %v1084, %v1239
      %v1266 = vadd.f32 %v1085, %v1244
      %v1267 = vadd.f32 %v1086, %v1247
      %v1268 = vld [vmem:[%s207 + $0x24] sm:$0xff]
      %v1269 = vld [vmem:[%s207 + $0x2c] sm:$0xff]
      %v1270 = vld [vmem:[%s207 + $0x34] sm:$0xff]
      %v1271 = vld [vmem:[%s207 + $0x3c] sm:$0xff]
      %v1272 = vld [vmem:[%s207 + $0x44] sm:$0xff]
      %v1273 = vld [vmem:[%s207 + $0x4c] sm:$0xff]
      %v1274 = vld [vmem:[%s207 + $0x54] sm:$0xff]
      %v1275 = vld [vmem:[%s207 + $0x5c] sm:$0xff]
      %v1276 = vld [vmem:[%s207 + $0x64] sm:$0xff]
      %v1277 = vld [vmem:[%s207 + $0x6c] sm:$0xff]
      %v1278 = vld [vmem:[%s207 + $0x74] sm:$0xff]
      %v1279 = vld [vmem:[%s207 + $0x7c] sm:$0xff]
      %v1280 = vld [vmem:[%s207 + $0x84] sm:$0xff]
      %v1281 = vld [vmem:[%s207 + $0x8c] sm:$0xff]
      %v1282 = vld [vmem:[%s207 + $0x94] sm:$0xff]
      %v1283 = vld [vmem:[%s207 + $0x9c] sm:$0xff]
      %v1284 = vld [vmem:[%s207 + $0xa4] sm:$0xff]
      %v1285 = vld [vmem:[%s207 + $0xac] sm:$0xff]
      %v1286 = vld [vmem:[%s1 + $0x18] sm:$0xf]
      %v1287 = vpack.c.bf16 %v1269, %v1268
      %v1288 = vpack.c.bf16 %v1271, %v1270
      %v1289 = vpack.c.bf16 %v1273, %v1272
      %v1290 = vpack.c.bf16 %v1275, %v1274
      %v1291 = vpack.c.bf16 %v1277, %v1276
      %v1292 = vpack.c.bf16 %v1279, %v1278
      %v1293 = vpack.c.bf16 %v1281, %v1280
      %v1294 = vpack.c.bf16 %v1283, %v1282
      %v1295 = vpack.c.bf16 %v1285, %v1284
      %v1297 = vsel %vm272, %v1287, 0
      %v1300 = vsel %vm272, %v1288, 0
      %v1303 = vsel %vm272, %v1289, 0
      %v1306 = vsel %vm272, %v1290, 0
      %v1309 = vsel %vm272, %v1291, 0
      %v1312 = vsel %vm272, %v1292, 0
      %v1315 = vsel %vm272, %v1293, 0
      %v1318 = vsel %vm272, %v1294, 0
      %v1321 = vsel %vm272, %v1295, 0
      %v1324 = vsel %vm300, %v1286, 0
      %1326 = vmatprep.subr.bf16.mxu0 0
      %1327 = vmatpush1.bf16.msra.mxu0 0
      %1328 = vmatprep.subr.bf16.mxu0 0
      %1329 = vmatpush1.bf16.msra.mxu0 0
      %1330 = vmatprep.subr.bf16.mxu0 0
      %1331 = vmatpush1.bf16.msra.mxu0 0
      %1332 = vmatprep.subr.bf16.mxu0 0
      %1333 = vmatpush1.bf16.msra.mxu0 0
      %1334 = vmatprep.subr.bf16.mxu0 0
      %1335 = vmatpush1.bf16.msra.mxu0 0
      %1336 = vmatprep.subr.bf16.mxu0 0
      %1337 = vmatpush1.bf16.msra.mxu0 0
      %1338 = vmatprep.subr.bf16.mxu0 0
      %1339 = vmatpush1.bf16.msra.mxu0 0
      %1340 = vmatprep.subr.bf16.mxu0 0
      %1341 = vmatpush1.bf16.msra.mxu0 %v1324
      %1342 = vmatprep.subr.bf16.mxu0 0
      %1343 = vmatpush2.bf16.msra.mxu0 0
      %1344 = vmatprep.subr.bf16.mxu0 0
      %1345 = vmatpush2.bf16.msra.mxu0 0
      %1346 = vmatprep.subr.bf16.mxu0 0
      %1347 = vmatpush2.bf16.msra.mxu0 0
      %1348 = vmatprep.subr.bf16.mxu0 0
      %1349 = vmatpush2.bf16.msra.mxu0 0
      %1350 = vmatprep.subr.bf16.mxu0 0
      %1351 = vmatpush2.bf16.msra.mxu0 0
      %1352 = vmatprep.subr.bf16.mxu0 0
      %1353 = vmatpush2.bf16.msra.mxu0 0
      %1354 = vmatprep.subr.bf16.mxu0 0
      %1355 = vmatpush2.bf16.msra.mxu0 0
      %1356 = vmatprep.subr.bf16.mxu0 0
      %1357 = vmatpush2.bf16.msra.mxu0 0
      %1358 = vmatprep.mubr.bf16.mxu0 0
      %1359 = vmatmul.mubr.bf16.gmra.mxu0 %v1297
      %v1360 = vpop.f32.mrf.mxu0
      %v1361 = vadd.f32 0.0, %v1360
      %v1362 = vpop.f32.mrf.mxu0
      %v1363 = vpop.f32.mrf.mxu0
      %v1364 = vadd.f32 0.0, %v1363
      %v1365 = vpop.f32.mrf.mxu0
      %1366 = vmatprep.mubr.bf16.mxu0 0
      %1367 = vmatmul.mubr.bf16.gmra.mxu0 %v1300
      %v1368 = vpop.f32.mrf.mxu0
      %v1369 = vadd.f32 0.0, %v1368
      %v1370 = vpop.f32.mrf.mxu0
      %v1371 = vpop.f32.mrf.mxu0
      %v1372 = vadd.f32 0.0, %v1371
      %v1373 = vpop.f32.mrf.mxu0
      %1374 = vmatprep.mubr.bf16.mxu0 0
      %1375 = vmatmul.mubr.bf16.gmra.mxu0 %v1303
      %v1376 = vpop.f32.mrf.mxu0
      %v1377 = vadd.f32 0.0, %v1376
      %v1378 = vpop.f32.mrf.mxu0
      %v1379 = vpop.f32.mrf.mxu0
      %v1380 = vadd.f32 0.0, %v1379
      %v1381 = vpop.f32.mrf.mxu0
      %1382 = vmatprep.mubr.bf16.mxu0 0
      %1383 = vmatmul.mubr.bf16.gmra.mxu0 %v1306
      %v1384 = vpop.f32.mrf.mxu0
      %v1385 = vadd.f32 0.0, %v1384
      %v1386 = vpop.f32.mrf.mxu0
      %v1387 = vpop.f32.mrf.mxu0
      %v1388 = vadd.f32 0.0, %v1387
      %v1389 = vpop.f32.mrf.mxu0
      %1390 = vmatprep.mubr.bf16.mxu0 0
      %1391 = vmatmul.mubr.bf16.gmra.mxu0 %v1309
      %v1392 = vpop.f32.mrf.mxu0
      %v1393 = vadd.f32 0.0, %v1392
      %v1394 = vpop.f32.mrf.mxu0
      %v1395 = vpop.f32.mrf.mxu0
      %v1396 = vadd.f32 0.0, %v1395
      %v1397 = vpop.f32.mrf.mxu0
      %1398 = vmatprep.mubr.bf16.mxu0 0
      %1399 = vmatmul.mubr.bf16.gmra.mxu0 %v1312
      %v1400 = vpop.f32.mrf.mxu0
      %v1401 = vadd.f32 0.0, %v1400
      %v1402 = vpop.f32.mrf.mxu0
      %v1403 = vpop.f32.mrf.mxu0
      %v1404 = vadd.f32 0.0, %v1403
      %v1405 = vpop.f32.mrf.mxu0
      %1406 = vmatprep.mubr.bf16.mxu0 0
      %1407 = vmatmul.mubr.bf16.gmra.mxu0 %v1315
      %v1408 = vpop.f32.mrf.mxu0
      %v1409 = vadd.f32 0.0, %v1408
      %v1410 = vpop.f32.mrf.mxu0
      %v1411 = vpop.f32.mrf.mxu0
      %v1412 = vadd.f32 0.0, %v1411
      %v1413 = vpop.f32.mrf.mxu0
      %1414 = vmatprep.mubr.bf16.mxu0 0
      %1415 = vmatmul.mubr.bf16.gmra.mxu0 %v1318
      %v1416 = vpop.f32.mrf.mxu0
      %v1417 = vadd.f32 0.0, %v1416
      %v1418 = vpop.f32.mrf.mxu0
      %v1419 = vpop.f32.mrf.mxu0
      %v1420 = vadd.f32 0.0, %v1419
      %v1421 = vpop.f32.mrf.mxu0
      %1422 = vmatprep.mubr.bf16.mxu0 0
      %1423 = vmatmul.mubr.bf16.gmra.mxu0 %v1321
      %v1424 = vpop.f32.mrf.mxu0
      %v1425 = vadd.f32 0.0, %v1424
      %v1426 = vpop.f32.mrf.mxu0
      %v1427 = vpop.f32.mrf.mxu0
      %v1428 = vadd.f32 0.0, %v1427
      %v1429 = vpop.f32.mrf.mxu0
      %1430 = vdwg.mxu0
      %v1431 = vadd.f32 %v1250, %v1361
      %v1432 = vadd.f32 %v1251, %v1364
      %v1433 = vadd.f32 %v1252, %v1369
      %v1434 = vadd.f32 %v1253, %v1372
      %v1435 = vadd.f32 %v1254, %v1377
      %v1436 = vadd.f32 %v1255, %v1380
      %v1437 = vadd.f32 %v1256, %v1385
      %v1438 = vadd.f32 %v1257, %v1388
      %v1439 = vadd.f32 %v1258, %v1393
      %v1440 = vadd.f32 %v1259, %v1396
      %v1441 = vadd.f32 %v1260, %v1401
      %v1442 = vadd.f32 %v1261, %v1404
      %v1443 = vadd.f32 %v1262, %v1409
      %v1444 = vadd.f32 %v1263, %v1412
      %v1445 = vadd.f32 %v1264, %v1417
      %v1446 = vadd.f32 %v1265, %v1420
      %v1447 = vadd.f32 %v1266, %v1425
      %v1448 = vadd.f32 %v1267, %v1428
      %v1449 = vld [vmem:[%s207 + $0x25] sm:$0xff]
      %v1450 = vld [vmem:[%s207 + $0x2d] sm:$0xff]
      %v1451 = vld [vmem:[%s207 + $0x35] sm:$0xff]
      %v1452 = vld [vmem:[%s207 + $0x3d] sm:$0xff]
      %v1453 = vld [vmem:[%s207 + $0x45] sm:$0xff]
      %v1454 = vld [vmem:[%s207 + $0x4d] sm:$0xff]
      %v1455 = vld [vmem:[%s207 + $0x55] sm:$0xff]
      %v1456 = vld [vmem:[%s207 + $0x5d] sm:$0xff]
      %v1457 = vld [vmem:[%s207 + $0x65] sm:$0xff]
      %v1458 = vld [vmem:[%s207 + $0x6d] sm:$0xff]
      %v1459 = vld [vmem:[%s207 + $0x75] sm:$0xff]
      %v1460 = vld [vmem:[%s207 + $0x7d] sm:$0xff]
      %v1461 = vld [vmem:[%s207 + $0x85] sm:$0xff]
      %v1462 = vld [vmem:[%s207 + $0x8d] sm:$0xff]
      %v1463 = vld [vmem:[%s207 + $0x95] sm:$0xff]
      %v1464 = vld [vmem:[%s207 + $0x9d] sm:$0xff]
      %v1465 = vld [vmem:[%s207 + $0xa5] sm:$0xff]
      %v1466 = vld [vmem:[%s207 + $0xad] sm:$0xff]
      %v1467 = vld [vmem:[%s1 + $0x1c] sm:$0xf]
      %v1468 = vpack.c.bf16 %v1450, %v1449
      %v1469 = vpack.c.bf16 %v1452, %v1451
      %v1470 = vpack.c.bf16 %v1454, %v1453
      %v1471 = vpack.c.bf16 %v1456, %v1455
      %v1472 = vpack.c.bf16 %v1458, %v1457
      %v1473 = vpack.c.bf16 %v1460, %v1459
      %v1474 = vpack.c.bf16 %v1462, %v1461
      %v1475 = vpack.c.bf16 %v1464, %v1463
      %v1476 = vpack.c.bf16 %v1466, %v1465
      %v1478 = vsel %vm272, %v1468, 0
      %v1481 = vsel %vm272, %v1469, 0
      %v1484 = vsel %vm272, %v1470, 0
      %v1487 = vsel %vm272, %v1471, 0
      %v1490 = vsel %vm272, %v1472, 0
      %v1493 = vsel %vm272, %v1473, 0
      %v1496 = vsel %vm272, %v1474, 0
      %v1499 = vsel %vm272, %v1475, 0
      %v1502 = vsel %vm272, %v1476, 0
      %v1505 = vsel %vm300, %v1467, 0
      %1507 = vmatprep.subr.bf16.mxu0 0
      %1508 = vmatpush1.bf16.msra.mxu0 0
      %1509 = vmatprep.subr.bf16.mxu0 0
      %1510 = vmatpush1.bf16.msra.mxu0 0
      %1511 = vmatprep.subr.bf16.mxu0 0
      %1512 = vmatpush1.bf16.msra.mxu0 0
      %1513 = vmatprep.subr.bf16.mxu0 0
      %1514 = vmatpush1.bf16.msra.mxu0 0
      %1515 = vmatprep.subr.bf16.mxu0 0
      %1516 = vmatpush1.bf16.msra.mxu0 0
      %1517 = vmatprep.subr.bf16.mxu0 0
      %1518 = vmatpush1.bf16.msra.mxu0 0
      %1519 = vmatprep.subr.bf16.mxu0 0
      %1520 = vmatpush1.bf16.msra.mxu0 0
      %1521 = vmatprep.subr.bf16.mxu0 0
      %1522 = vmatpush1.bf16.msra.mxu0 %v1505
      %1523 = vmatprep.subr.bf16.mxu0 0
      %1524 = vmatpush2.bf16.msra.mxu0 0
      %1525 = vmatprep.subr.bf16.mxu0 0
      %1526 = vmatpush2.bf16.msra.mxu0 0
      %1527 = vmatprep.subr.bf16.mxu0 0
      %1528 = vmatpush2.bf16.msra.mxu0 0
      %1529 = vmatprep.subr.bf16.mxu0 0
      %1530 = vmatpush2.bf16.msra.mxu0 0
      %1531 = vmatprep.subr.bf16.mxu0 0
      %1532 = vmatpush2.bf16.msra.mxu0 0
      %1533 = vmatprep.subr.bf16.mxu0 0
      %1534 = vmatpush2.bf16.msra.mxu0 0
      %1535 = vmatprep.subr.bf16.mxu0 0
      %1536 = vmatpush2.bf16.msra.mxu0 0
      %1537 = vmatprep.subr.bf16.mxu0 0
      %1538 = vmatpush2.bf16.msra.mxu0 0
      %1539 = vmatprep.mubr.bf16.mxu0 0
      %1540 = vmatmul.mubr.bf16.gmra.mxu0 %v1478
      %v1541 = vpop.f32.mrf.mxu0
      %v1542 = vadd.f32 0.0, %v1541
      %v1543 = vpop.f32.mrf.mxu0
      %v1544 = vpop.f32.mrf.mxu0
      %v1545 = vadd.f32 0.0, %v1544
      %v1546 = vpop.f32.mrf.mxu0
      %1547 = vmatprep.mubr.bf16.mxu0 0
      %1548 = vmatmul.mubr.bf16.gmra.mxu0 %v1481
      %v1549 = vpop.f32.mrf.mxu0
      %v1550 = vadd.f32 0.0, %v1549
      %v1551 = vpop.f32.mrf.mxu0
      %v1552 = vpop.f32.mrf.mxu0
      %v1553 = vadd.f32 0.0, %v1552
      %v1554 = vpop.f32.mrf.mxu0
      %1555 = vmatprep.mubr.bf16.mxu0 0
      %1556 = vmatmul.mubr.bf16.gmra.mxu0 %v1484
      %v1557 = vpop.f32.mrf.mxu0
      %v1558 = vadd.f32 0.0, %v1557
      %v1559 = vpop.f32.mrf.mxu0
      %v1560 = vpop.f32.mrf.mxu0
      %v1561 = vadd.f32 0.0, %v1560
      %v1562 = vpop.f32.mrf.mxu0
      %1563 = vmatprep.mubr.bf16.mxu0 0
      %1564 = vmatmul.mubr.bf16.gmra.mxu0 %v1487
      %v1565 = vpop.f32.mrf.mxu0
      %v1566 = vadd.f32 0.0, %v1565
      %v1567 = vpop.f32.mrf.mxu0
      %v1568 = vpop.f32.mrf.mxu0
      %v1569 = vadd.f32 0.0, %v1568
      %v1570 = vpop.f32.mrf.mxu0
      %1571 = vmatprep.mubr.bf16.mxu0 0
      %1572 = vmatmul.mubr.bf16.gmra.mxu0 %v1490
      %v1573 = vpop.f32.mrf.mxu0
      %v1574 = vadd.f32 0.0, %v1573
      %v1575 = vpop.f32.mrf.mxu0
      %v1576 = vpop.f32.mrf.mxu0
      %v1577 = vadd.f32 0.0, %v1576
      %v1578 = vpop.f32.mrf.mxu0
      %1579 = vmatprep.mubr.bf16.mxu0 0
      %1580 = vmatmul.mubr.bf16.gmra.mxu0 %v1493
      %v1581 = vpop.f32.mrf.mxu0
      %v1582 = vadd.f32 0.0, %v1581
      %v1583 = vpop.f32.mrf.mxu0
      %v1584 = vpop.f32.mrf.mxu0
      %v1585 = vadd.f32 0.0, %v1584
      %v1586 = vpop.f32.mrf.mxu0
      %1587 = vmatprep.mubr.bf16.mxu0 0
      %1588 = vmatmul.mubr.bf16.gmra.mxu0 %v1496
      %v1589 = vpop.f32.mrf.mxu0
      %v1590 = vadd.f32 0.0, %v1589
      %v1591 = vpop.f32.mrf.mxu0
      %v1592 = vpop.f32.mrf.mxu0
      %v1593 = vadd.f32 0.0, %v1592
      %v1594 = vpop.f32.mrf.mxu0
      %1595 = vmatprep.mubr.bf16.mxu0 0
      %1596 = vmatmul.mubr.bf16.gmra.mxu0 %v1499
      %v1597 = vpop.f32.mrf.mxu0
      %v1598 = vadd.f32 0.0, %v1597
      %v1599 = vpop.f32.mrf.mxu0
      %v1600 = vpop.f32.mrf.mxu0
      %v1601 = vadd.f32 0.0, %v1600
      %v1602 = vpop.f32.mrf.mxu0
      %1603 = vmatprep.mubr.bf16.mxu0 0
      %1604 = vmatmul.mubr.bf16.gmra.mxu0 %v1502
      %v1605 = vpop.f32.mrf.mxu0
      %v1606 = vadd.f32 0.0, %v1605
      %v1607 = vpop.f32.mrf.mxu0
      %v1608 = vpop.f32.mrf.mxu0
      %v1609 = vadd.f32 0.0, %v1608
      %v1610 = vpop.f32.mrf.mxu0
      %1611 = vdwg.mxu0
      %v1612 = vadd.f32 %v1431, %v1542
      %v1613 = vadd.f32 %v1432, %v1545
      %v1614 = vadd.f32 %v1433, %v1550
      %v1615 = vadd.f32 %v1434, %v1553
      %v1616 = vadd.f32 %v1435, %v1558
      %v1617 = vadd.f32 %v1436, %v1561
      %v1618 = vadd.f32 %v1437, %v1566
      %v1619 = vadd.f32 %v1438, %v1569
      %v1620 = vadd.f32 %v1439, %v1574
      %v1621 = vadd.f32 %v1440, %v1577
      %v1622 = vadd.f32 %v1441, %v1582
      %v1623 = vadd.f32 %v1442, %v1585
      %v1624 = vadd.f32 %v1443, %v1590
      %v1625 = vadd.f32 %v1444, %v1593
      %v1626 = vadd.f32 %v1445, %v1598
      %v1627 = vadd.f32 %v1446, %v1601
      %v1628 = vadd.f32 %v1447, %v1606
      %v1629 = vadd.f32 %v1448, %v1609
      %v1630 = vld [vmem:[%s207 + $0x26] sm:$0xff]
      %v1631 = vld [vmem:[%s207 + $0x2e] sm:$0xff]
      %v1632 = vld [vmem:[%s207 + $0x36] sm:$0xff]
      %v1633 = vld [vmem:[%s207 + $0x3e] sm:$0xff]
      %v1634 = vld [vmem:[%s207 + $0x46] sm:$0xff]
      %v1635 = vld [vmem:[%s207 + $0x4e] sm:$0xff]
      %v1636 = vld [vmem:[%s207 + $0x56] sm:$0xff]
      %v1637 = vld [vmem:[%s207 + $0x5e] sm:$0xff]
      %v1638 = vld [vmem:[%s207 + $0x66] sm:$0xff]
      %v1639 = vld [vmem:[%s207 + $0x6e] sm:$0xff]
      %v1640 = vld [vmem:[%s207 + $0x76] sm:$0xff]
      %v1641 = vld [vmem:[%s207 + $0x7e] sm:$0xff]
      %v1642 = vld [vmem:[%s207 + $0x86] sm:$0xff]
      %v1643 = vld [vmem:[%s207 + $0x8e] sm:$0xff]
      %v1644 = vld [vmem:[%s207 + $0x96] sm:$0xff]
      %v1645 = vld [vmem:[%s207 + $0x9e] sm:$0xff]
      %v1646 = vld [vmem:[%s207 + $0xa6] sm:$0xff]
      %v1647 = vld [vmem:[%s207 + $0xae] sm:$0xff]
      %v1648 = vld [vmem:[%s1 + $0x20] sm:$0xf]
      %v1649 = vpack.c.bf16 %v1631, %v1630
      %v1650 = vpack.c.bf16 %v1633, %v1632
      %v1651 = vpack.c.bf16 %v1635, %v1634
      %v1652 = vpack.c.bf16 %v1637, %v1636
      %v1653 = vpack.c.bf16 %v1639, %v1638
      %v1654 = vpack.c.bf16 %v1641, %v1640
      %v1655 = vpack.c.bf16 %v1643, %v1642
      %v1656 = vpack.c.bf16 %v1645, %v1644
      %v1657 = vpack.c.bf16 %v1647, %v1646
      %v1659 = vsel %vm272, %v1649, 0
      %v1662 = vsel %vm272, %v1650, 0
      %v1665 = vsel %vm272, %v1651, 0
      %v1668 = vsel %vm272, %v1652, 0
      %v1671 = vsel %vm272, %v1653, 0
      %v1674 = vsel %vm272, %v1654, 0
      %v1677 = vsel %vm272, %v1655, 0
      %v1680 = vsel %vm272, %v1656, 0
      %v1683 = vsel %vm272, %v1657, 0
      %v1686 = vsel %vm300, %v1648, 0
      %1688 = vmatprep.subr.bf16.mxu0 0
      %1689 = vmatpush1.bf16.msra.mxu0 0
      %1690 = vmatprep.subr.bf16.mxu0 0
      %1691 = vmatpush1.bf16.msra.mxu0 0
      %1692 = vmatprep.subr.bf16.mxu0 0
      %1693 = vmatpush1.bf16.msra.mxu0 0
      %1694 = vmatprep.subr.bf16.mxu0 0
      %1695 = vmatpush1.bf16.msra.mxu0 0
      %1696 = vmatprep.subr.bf16.mxu0 0
      %1697 = vmatpush1.bf16.msra.mxu0 0
      %1698 = vmatprep.subr.bf16.mxu0 0
      %1699 = vmatpush1.bf16.msra.mxu0 0
      %1700 = vmatprep.subr.bf16.mxu0 0
      %1701 = vmatpush1.bf16.msra.mxu0 0
      %1702 = vmatprep.subr.bf16.mxu0 0
      %1703 = vmatpush1.bf16.msra.mxu0 %v1686
      %1704 = vmatprep.subr.bf16.mxu0 0
      %1705 = vmatpush2.bf16.msra.mxu0 0
      %1706 = vmatprep.subr.bf16.mxu0 0
      %1707 = vmatpush2.bf16.msra.mxu0 0
      %1708 = vmatprep.subr.bf16.mxu0 0
      %1709 = vmatpush2.bf16.msra.mxu0 0
      %1710 = vmatprep.subr.bf16.mxu0 0
      %1711 = vmatpush2.bf16.msra.mxu0 0
      %1712 = vmatprep.subr.bf16.mxu0 0
      %1713 = vmatpush2.bf16.msra.mxu0 0
      %1714 = vmatprep.subr.bf16.mxu0 0
      %1715 = vmatpush2.bf16.msra.mxu0 0
      %1716 = vmatprep.subr.bf16.mxu0 0
      %1717 = vmatpush2.bf16.msra.mxu0 0
      %1718 = vmatprep.subr.bf16.mxu0 0
      %1719 = vmatpush2.bf16.msra.mxu0 0
      %1720 = vmatprep.mubr.bf16.mxu0 0
      %1721 = vmatmul.mubr.bf16.gmra.mxu0 %v1659
      %v1722 = vpop.f32.mrf.mxu0
      %v1723 = vadd.f32 0.0, %v1722
      %v1724 = vpop.f32.mrf.mxu0
      %v1725 = vpop.f32.mrf.mxu0
      %v1726 = vadd.f32 0.0, %v1725
      %v1727 = vpop.f32.mrf.mxu0
      %1728 = vmatprep.mubr.bf16.mxu0 0
      %1729 = vmatmul.mubr.bf16.gmra.mxu0 %v1662
      %v1730 = vpop.f32.mrf.mxu0
      %v1731 = vadd.f32 0.0, %v1730
      %v1732 = vpop.f32.mrf.mxu0
      %v1733 = vpop.f32.mrf.mxu0
      %v1734 = vadd.f32 0.0, %v1733
      %v1735 = vpop.f32.mrf.mxu0
      %1736 = vmatprep.mubr.bf16.mxu0 0
      %1737 = vmatmul.mubr.bf16.gmra.mxu0 %v1665
      %v1738 = vpop.f32.mrf.mxu0
      %v1739 = vadd.f32 0.0, %v1738
      %v1740 = vpop.f32.mrf.mxu0
      %v1741 = vpop.f32.mrf.mxu0
      %v1742 = vadd.f32 0.0, %v1741
      %v1743 = vpop.f32.mrf.mxu0
      %1744 = vmatprep.mubr.bf16.mxu0 0
      %1745 = vmatmul.mubr.bf16.gmra.mxu0 %v1668
      %v1746 = vpop.f32.mrf.mxu0
      %v1747 = vadd.f32 0.0, %v1746
      %v1748 = vpop.f32.mrf.mxu0
      %v1749 = vpop.f32.mrf.mxu0
      %v1750 = vadd.f32 0.0, %v1749
      %v1751 = vpop.f32.mrf.mxu0
      %1752 = vmatprep.mubr.bf16.mxu0 0
      %1753 = vmatmul.mubr.bf16.gmra.mxu0 %v1671
      %v1754 = vpop.f32.mrf.mxu0
      %v1755 = vadd.f32 0.0, %v1754
      %v1756 = vpop.f32.mrf.mxu0
      %v1757 = vpop.f32.mrf.mxu0
      %v1758 = vadd.f32 0.0, %v1757
      %v1759 = vpop.f32.mrf.mxu0
      %1760 = vmatprep.mubr.bf16.mxu0 0
      %1761 = vmatmul.mubr.bf16.gmra.mxu0 %v1674
      %v1762 = vpop.f32.mrf.mxu0
      %v1763 = vadd.f32 0.0, %v1762
      %v1764 = vpop.f32.mrf.mxu0
      %v1765 = vpop.f32.mrf.mxu0
      %v1766 = vadd.f32 0.0, %v1765
      %v1767 = vpop.f32.mrf.mxu0
      %1768 = vmatprep.mubr.bf16.mxu0 0
      %1769 = vmatmul.mubr.bf16.gmra.mxu0 %v1677
      %v1770 = vpop.f32.mrf.mxu0
      %v1771 = vadd.f32 0.0, %v1770
      %v1772 = vpop.f32.mrf.mxu0
      %v1773 = vpop.f32.mrf.mxu0
      %v1774 = vadd.f32 0.0, %v1773
      %v1775 = vpop.f32.mrf.mxu0
      %1776 = vmatprep.mubr.bf16.mxu0 0
      %1777 = vmatmul.mubr.bf16.gmra.mxu0 %v1680
      %v1778 = vpop.f32.mrf.mxu0
      %v1779 = vadd.f32 0.0, %v1778
      %v1780 = vpop.f32.mrf.mxu0
      %v1781 = vpop.f32.mrf.mxu0
      %v1782 = vadd.f32 0.0, %v1781
      %v1783 = vpop.f32.mrf.mxu0
      %1784 = vmatprep.mubr.bf16.mxu0 0
      %1785 = vmatmul.mubr.bf16.gmra.mxu0 %v1683
      %v1786 = vpop.f32.mrf.mxu0
      %v1787 = vadd.f32 0.0, %v1786
      %v1788 = vpop.f32.mrf.mxu0
      %v1789 = vpop.f32.mrf.mxu0
      %v1790 = vadd.f32 0.0, %v1789
      %v1791 = vpop.f32.mrf.mxu0
      %1792 = vdwg.mxu0
      %v1793 = vadd.f32 %v1612, %v1723
      %v1794 = vadd.f32 %v1613, %v1726
      %v1795 = vadd.f32 %v1614, %v1731
      %v1796 = vadd.f32 %v1615, %v1734
      %v1797 = vadd.f32 %v1616, %v1739
      %v1798 = vadd.f32 %v1617, %v1742
      %v1799 = vadd.f32 %v1618, %v1747
      %v1800 = vadd.f32 %v1619, %v1750
      %v1801 = vadd.f32 %v1620, %v1755
      %v1802 = vadd.f32 %v1621, %v1758
      %v1803 = vadd.f32 %v1622, %v1763
      %v1804 = vadd.f32 %v1623, %v1766
      %v1805 = vadd.f32 %v1624, %v1771
      %v1806 = vadd.f32 %v1625, %v1774
      %v1807 = vadd.f32 %v1626, %v1779
      %v1808 = vadd.f32 %v1627, %v1782
      %v1809 = vadd.f32 %v1628, %v1787
      %v1810 = vadd.f32 %v1629, %v1790
      %p1811 = scmp.eq.s32.totalorder %s19, 0
      %p1812 = scmp.eq.s32.totalorder %s20, 0
      %p1813 = pnand %p1811, %p1812
      %p1814 = pneg %p1813
      // Predicated region
      $region37: #{_lambda_.8} parent=35 // pred_check
        _
      $region38: #{_lambda_.8} parent=35 // pred_check_branch
        %1816 = sbr.rel (%p1813) target = $region40
      $region39: #{_lambda_.8} parent=35 // pred_region
        %vm1817 = vcmask 57344
        %1818 = vst.msk [vmem:[#allocation2] sm:$0x1] %vm1817, 0.0
        %1819 = vst.msk [vmem:[#allocation3] sm:$0x1] %vm1817, 0.0
      $region40: #{_lambda_.8} parent=35 // pred_fallthru
        _
      // Predicated region
      $region41: #{_lambda_.8} parent=35 // pred_check
        %p1820 = pneg %p1811
      $region42: #{_lambda_.8} parent=35 // pred_check_branch
        %1822 = sbr.rel (%p1820) target = $region44
      $region43: #{_lambda_.8} parent=35 // pred_region
        %v1823 = vlaneseq
        %v1824 = vshrl.u32 %v1823, 7
        %v1825 = vadd.s32 %v1824, 8
        %v1826 = vadd.s32 %v1824, 16
        %v1827 = vadd.s32 %v1824, 24
        %v1828 = vadd.s32 %v1824, 32
        %v1829 = vadd.s32 %v1824, 40
        %v1830 = vadd.s32 %v1824, 48
        %v1831 = vadd.s32 %v1824, 56
        %v1832 = vadd.s32 %v1824, 64
        %v1833 = vadd.s32 %v1824, 72
        %v1834 = vadd.s32 %v1824, 80
        %v1835 = vadd.s32 %v1824, 88
        %v1836 = vadd.s32 %v1824, 96
        %v1837 = vadd.s32 %v1824, 104
        %v1838 = vadd.s32 %v1824, 112
        %v1839 = vadd.s32 %v1824, 120
        %v1840 = vadd.s32 %v1824, 128
        %v1841 = vadd.s32 %v1824, 136
        %vm1842 = vcmp.lt.s32.totalorder %v1824, 0
        %v1843 = vsub.s32 0, %v1824
        %v1844 = vsel %vm1842, %v1843, %v1824
        %v1845 = vmul.u32.u64.compose %v1844, 3817748708
        %v1846 = vextract.low.u32 %v1845
        %v1847 = vextract.high.u32 %v1845
        %v1848 = vshrl.u32 %v1847, 4
        %v1849 = vmul.u32 %v1848, 18
        %v1850 = vsub.s32 %v1844, %v1849
        %v1851 = vsub.s32 0, %v1850
        %v1852 = vsel %vm1842, %v1851, %v1850
        %vm1853 = vcmp.lt.s32.totalorder %v1825, 0
        %v1854 = vsub.s32 0, %v1825
        %v1855 = vsel %vm1853, %v1854, %v1825
        %v1856 = vmul.u32.u64.compose %v1855, 3817748708
        %v1857 = vextract.low.u32 %v1856
        %v1858 = vextract.high.u32 %v1856
        %v1859 = vshrl.u32 %v1858, 4
        %v1860 = vmul.u32 %v1859, 18
        %v1861 = vsub.s32 %v1855, %v1860
        %v1862 = vsub.s32 0, %v1861
        %v1863 = vsel %vm1853, %v1862, %v1861
        %vm1864 = vcmp.lt.s32.totalorder %v1826, 0
        %v1865 = vsub.s32 0, %v1826
        %v1866 = vsel %vm1864, %v1865, %v1826
        %v1867 = vmul.u32.u64.compose %v1866, 3817748708
        %v1868 = vextract.low.u32 %v1867
        %v1869 = vextract.high.u32 %v1867
        %v1870 = vshrl.u32 %v1869, 4
        %v1871 = vmul.u32 %v1870, 18
        %v1872 = vsub.s32 %v1866, %v1871
        %v1873 = vsub.s32 0, %v1872
        %v1874 = vsel %vm1864, %v1873, %v1872
        %vm1875 = vcmp.lt.s32.totalorder %v1827, 0
        %v1876 = vsub.s32 0, %v1827
        %v1877 = vsel %vm1875, %v1876, %v1827
        %v1878 = vmul.u32.u64.compose %v1877, 3817748708
        %v1879 = vextract.low.u32 %v1878
        %v1880 = vextract.high.u32 %v1878
        %v1881 = vshrl.u32 %v1880, 4
        %v1882 = vmul.u32 %v1881, 18
        %v1883 = vsub.s32 %v1877, %v1882
        %v1884 = vsub.s32 0, %v1883
        %v1885 = vsel %vm1875, %v1884, %v1883
        %vm1886 = vcmp.lt.s32.totalorder %v1828, 0
        %v1887 = vsub.s32 0, %v1828
        %v1888 = vsel %vm1886, %v1887, %v1828
        %v1889 = vmul.u32.u64.compose %v1888, 3817748708
        %v1890 = vextract.low.u32 %v1889
        %v1891 = vextract.high.u32 %v1889
        %v1892 = vshrl.u32 %v1891, 4
        %v1893 = vmul.u32 %v1892, 18
        %v1894 = vsub.s32 %v1888, %v1893
        %v1895 = vsub.s32 0, %v1894
        %v1896 = vsel %vm1886, %v1895, %v1894
        %vm1897 = vcmp.lt.s32.totalorder %v1829, 0
        %v1898 = vsub.s32 0, %v1829
        %v1899 = vsel %vm1897, %v1898, %v1829
        %v1900 = vmul.u32.u64.compose %v1899, 3817748708
        %v1901 = vextract.low.u32 %v1900
        %v1902 = vextract.high.u32 %v1900
        %v1903 = vshrl.u32 %v1902, 4
        %v1904 = vmul.u32 %v1903, 18
        %v1905 = vsub.s32 %v1899, %v1904
        %v1906 = vsub.s32 0, %v1905
        %v1907 = vsel %vm1897, %v1906, %v1905
        %vm1908 = vcmp.lt.s32.totalorder %v1830, 0
        %v1909 = vsub.s32 0, %v1830
        %v1910 = vsel %vm1908, %v1909, %v1830
        %v1911 = vmul.u32.u64.compose %v1910, 3817748708
        %v1912 = vextract.low.u32 %v1911
        %v1913 = vextract.high.u32 %v1911
        %v1914 = vshrl.u32 %v1913, 4
        %v1915 = vmul.u32 %v1914, 18
        %v1916 = vsub.s32 %v1910, %v1915
        %v1917 = vsub.s32 0, %v1916
        %v1918 = vsel %vm1908, %v1917, %v1916
        %vm1919 = vcmp.lt.s32.totalorder %v1831, 0
        %v1920 = vsub.s32 0, %v1831
        %v1921 = vsel %vm1919, %v1920, %v1831
        %v1922 = vmul.u32.u64.compose %v1921, 3817748708
        %v1923 = vextract.low.u32 %v1922
        %v1924 = vextract.high.u32 %v1922
        %v1925 = vshrl.u32 %v1924, 4
        %v1926 = vmul.u32 %v1925, 18
        %v1927 = vsub.s32 %v1921, %v1926
        %v1928 = vsub.s32 0, %v1927
        %v1929 = vsel %vm1919, %v1928, %v1927
        %vm1930 = vcmp.lt.s32.totalorder %v1832, 0
        %v1931 = vsub.s32 0, %v1832
        %v1932 = vsel %vm1930, %v1931, %v1832
        %v1933 = vmul.u32.u64.compose %v1932, 3817748708
        %v1934 = vextract.low.u32 %v1933
        %v1935 = vextract.high.u32 %v1933
        %v1936 = vshrl.u32 %v1935, 4
        %v1937 = vmul.u32 %v1936, 18
        %v1938 = vsub.s32 %v1932, %v1937
        %v1939 = vsub.s32 0, %v1938
        %v1940 = vsel %vm1930, %v1939, %v1938
        %vm1941 = vcmp.lt.s32.totalorder %v1833, 0
        %v1942 = vsub.s32 0, %v1833
        %v1943 = vsel %vm1941, %v1942, %v1833
        %v1944 = vmul.u32.u64.compose %v1943, 3817748708
        %v1945 = vextract.low.u32 %v1944
        %v1946 = vextract.high.u32 %v1944
        %v1947 = vshrl.u32 %v1946, 4
        %v1948 = vmul.u32 %v1947, 18
        %v1949 = vsub.s32 %v1943, %v1948
        %v1950 = vsub.s32 0, %v1949
        %v1951 = vsel %vm1941, %v1950, %v1949
        %vm1952 = vcmp.lt.s32.totalorder %v1834, 0
        %v1953 = vsub.s32 0, %v1834
        %v1954 = vsel %vm1952, %v1953, %v1834
        %v1955 = vmul.u32.u64.compose %v1954, 3817748708
        %v1956 = vextract.low.u32 %v1955
        %v1957 = vextract.high.u32 %v1955
        %v1958 = vshrl.u32 %v1957, 4
        %v1959 = vmul.u32 %v1958, 18
        %v1960 = vsub.s32 %v1954, %v1959
        %v1961 = vsub.s32 0, %v1960
        %v1962 = vsel %vm1952, %v1961, %v1960
        %vm1963 = vcmp.lt.s32.totalorder %v1835, 0
        %v1964 = vsub.s32 0, %v1835
        %v1965 = vsel %vm1963, %v1964, %v1835
        %v1966 = vmul.u32.u64.compose %v1965, 3817748708
        %v1967 = vextract.low.u32 %v1966
        %v1968 = vextract.high.u32 %v1966
        %v1969 = vshrl.u32 %v1968, 4
        %v1970 = vmul.u32 %v1969, 18
        %v1971 = vsub.s32 %v1965, %v1970
        %v1972 = vsub.s32 0, %v1971
        %v1973 = vsel %vm1963, %v1972, %v1971
        %vm1974 = vcmp.lt.s32.totalorder %v1836, 0
        %v1975 = vsub.s32 0, %v1836
        %v1976 = vsel %vm1974, %v1975, %v1836
        %v1977 = vmul.u32.u64.compose %v1976, 3817748708
        %v1978 = vextract.low.u32 %v1977
        %v1979 = vextract.high.u32 %v1977
        %v1980 = vshrl.u32 %v1979, 4
        %v1981 = vmul.u32 %v1980, 18
        %v1982 = vsub.s32 %v1976, %v1981
        %v1983 = vsub.s32 0, %v1982
        %v1984 = vsel %vm1974, %v1983, %v1982
        %vm1985 = vcmp.lt.s32.totalorder %v1837, 0
        %v1986 = vsub.s32 0, %v1837
        %v1987 = vsel %vm1985, %v1986, %v1837
        %v1988 = vmul.u32.u64.compose %v1987, 3817748708
        %v1989 = vextract.low.u32 %v1988
        %v1990 = vextract.high.u32 %v1988
        %v1991 = vshrl.u32 %v1990, 4
        %v1992 = vmul.u32 %v1991, 18
        %v1993 = vsub.s32 %v1987, %v1992
        %v1994 = vsub.s32 0, %v1993
        %v1995 = vsel %vm1985, %v1994, %v1993
        %vm1996 = vcmp.lt.s32.totalorder %v1838, 0
        %v1997 = vsub.s32 0, %v1838
        %v1998 = vsel %vm1996, %v1997, %v1838
        %v1999 = vmul.u32.u64.compose %v1998, 3817748708
        %v2000 = vextract.low.u32 %v1999
        %v2001 = vextract.high.u32 %v1999
        %v2002 = vshrl.u32 %v2001, 4
        %v2003 = vmul.u32 %v2002, 18
        %v2004 = vsub.s32 %v1998, %v2003
        %v2005 = vsub.s32 0, %v2004
        %v2006 = vsel %vm1996, %v2005, %v2004
        %vm2007 = vcmp.lt.s32.totalorder %v1839, 0
        %v2008 = vsub.s32 0, %v1839
        %v2009 = vsel %vm2007, %v2008, %v1839
        %v2010 = vmul.u32.u64.compose %v2009, 3817748708
        %v2011 = vextract.low.u32 %v2010
        %v2012 = vextract.high.u32 %v2010
        %v2013 = vshrl.u32 %v2012, 4
        %v2014 = vmul.u32 %v2013, 18
        %v2015 = vsub.s32 %v2009, %v2014
        %v2016 = vsub.s32 0, %v2015
        %v2017 = vsel %vm2007, %v2016, %v2015
        %vm2018 = vcmp.lt.s32.totalorder %v1840, 0
        %v2019 = vsub.s32 0, %v1840
        %v2020 = vsel %vm2018, %v2019, %v1840
        %v2021 = vmul.u32.u64.compose %v2020, 3817748708
        %v2022 = vextract.low.u32 %v2021
        %v2023 = vextract.high.u32 %v2021
        %v2024 = vshrl.u32 %v2023, 4
        %v2025 = vmul.u32 %v2024, 18
        %v2026 = vsub.s32 %v2020, %v2025
        %v2027 = vsub.s32 0, %v2026
        %v2028 = vsel %vm2018, %v2027, %v2026
        %vm2029 = vcmp.lt.s32.totalorder %v1841, 0
        %v2030 = vsub.s32 0, %v1841
        %v2031 = vsel %vm2029, %v2030, %v1841
        %v2032 = vmul.u32.u64.compose %v2031, 3817748708
        %v2033 = vextract.low.u32 %v2032
        %v2034 = vextract.high.u32 %v2032
        %v2035 = vshrl.u32 %v2034, 4
        %v2036 = vmul.u32 %v2035, 18
        %v2037 = vsub.s32 %v2031, %v2036
        %v2038 = vsub.s32 0, %v2037
        %v2039 = vsel %vm2029, %v2038, %v2037
        %vm2040 = vcmp.ne.s32.totalorder %v1852, 0
        %vm2041 = vcmp.ne.s32.totalorder %v1863, 0
        %vm2042 = vcmp.ne.s32.totalorder %v1874, 0
        %vm2043 = vcmp.ne.s32.totalorder %v1885, 0
        %vm2044 = vcmp.ne.s32.totalorder %v1896, 0
        %vm2045 = vcmp.ne.s32.totalorder %v1907, 0
        %vm2046 = vcmp.ne.s32.totalorder %v1918, 0
        %vm2047 = vcmp.ne.s32.totalorder %v1929, 0
        %vm2048 = vcmp.ne.s32.totalorder %v1940, 0
        %vm2049 = vcmp.ne.s32.totalorder %v1951, 0
        %vm2050 = vcmp.ne.s32.totalorder %v1962, 0
        %vm2051 = vcmp.ne.s32.totalorder %v1973, 0
        %vm2052 = vcmp.ne.s32.totalorder %v1984, 0
        %vm2053 = vcmp.ne.s32.totalorder %v1995, 0
        %vm2054 = vcmp.ne.s32.totalorder %v2006, 0
        %vm2055 = vcmp.ne.s32.totalorder %v2017, 0
        %vm2056 = vcmp.ne.s32.totalorder %v2028, 0
        %vm2057 = vcmp.ne.s32.totalorder %v2039, 0
        %vm2058 = vcmp.lt.s32.totalorder %v1852, 0
        %vm2059 = vcmp.lt.s32.totalorder %v1863, 0
        %vm2060 = vcmp.lt.s32.totalorder %v1874, 0
        %vm2061 = vcmp.lt.s32.totalorder %v1885, 0
        %vm2062 = vcmp.lt.s32.totalorder %v1896, 0
        %vm2063 = vcmp.lt.s32.totalorder %v1907, 0
        %vm2064 = vcmp.lt.s32.totalorder %v1918, 0
        %vm2065 = vcmp.lt.s32.totalorder %v1929, 0
        %vm2066 = vcmp.lt.s32.totalorder %v1940, 0
        %vm2067 = vcmp.lt.s32.totalorder %v1951, 0
        %vm2068 = vcmp.lt.s32.totalorder %v1962, 0
        %vm2069 = vcmp.lt.s32.totalorder %v1973, 0
        %vm2070 = vcmp.lt.s32.totalorder %v1984, 0
        %vm2071 = vcmp.lt.s32.totalorder %v1995, 0
        %vm2072 = vcmp.lt.s32.totalorder %v2006, 0
        %vm2073 = vcmp.lt.s32.totalorder %v2017, 0
        %vm2074 = vcmp.lt.s32.totalorder %v2028, 0
        %vm2075 = vcmp.lt.s32.totalorder %v2039, 0
        %vm2076 = vmand %vm2058, %vm2040
        %vm2077 = vmand %vm2059, %vm2041
        %vm2078 = vmand %vm2060, %vm2042
        %vm2079 = vmand %vm2061, %vm2043
        %vm2080 = vmand %vm2062, %vm2044
        %vm2081 = vmand %vm2063, %vm2045
        %vm2082 = vmand %vm2064, %vm2046
        %vm2083 = vmand %vm2065, %vm2047
        %vm2084 = vmand %vm2066, %vm2048
        %vm2085 = vmand %vm2067, %vm2049
        %vm2086 = vmand %vm2068, %vm2050
        %vm2087 = vmand %vm2069, %vm2051
        %vm2088 = vmand %vm2070, %vm2052
        %vm2089 = vmand %vm2071, %vm2053
        %vm2090 = vmand %vm2072, %vm2054
        %vm2091 = vmand %vm2073, %vm2055
        %vm2092 = vmand %vm2074, %vm2056
        %vm2093 = vmand %vm2075, %vm2057
        %v2094 = vadd.s32 %v1852, 18
        %v2095 = vadd.s32 %v1863, 18
        %v2096 = vadd.s32 %v1874, 18
        %v2097 = vadd.s32 %v1885, 18
        %v2098 = vadd.s32 %v1896, 18
        %v2099 = vadd.s32 %v1907, 18
        %v2100 = vadd.s32 %v1918, 18
        %v2101 = vadd.s32 %v1929, 18
        %v2102 = vadd.s32 %v1940, 18
        %v2103 = vadd.s32 %v1951, 18
        %v2104 = vadd.s32 %v1962, 18
        %v2105 = vadd.s32 %v1973, 18
        %v2106 = vadd.s32 %v1984, 18
        %v2107 = vadd.s32 %v1995, 18
        %v2108 = vadd.s32 %v2006, 18
        %v2109 = vadd.s32 %v2017, 18
        %v2110 = vadd.s32 %v2028, 18
        %v2111 = vadd.s32 %v2039, 18
        %v2112 = vsel %vm2076, %v2094, %v1852
        %v2113 = vsel %vm2077, %v2095, %v1863
        %v2114 = vsel %vm2078, %v2096, %v1874
        %v2115 = vsel %vm2079, %v2097, %v1885
        %v2116 = vsel %vm2080, %v2098, %v1896
        %v2117 = vsel %vm2081, %v2099, %v1907
        %v2118 = vsel %vm2082, %v2100, %v1918
        %v2119 = vsel %vm2083, %v2101, %v1929
        %v2120 = vsel %vm2084, %v2102, %v1940
        %v2121 = vsel %vm2085, %v2103, %v1951
        %v2122 = vsel %vm2086, %v2104, %v1962
        %v2123 = vsel %vm2087, %v2105, %v1973
        %v2124 = vsel %vm2088, %v2106, %v1984
        %v2125 = vsel %vm2089, %v2107, %v1995
        %v2126 = vsel %vm2090, %v2108, %v2006
        %v2127 = vsel %vm2091, %v2109, %v2017
        %v2128 = vsel %vm2092, %v2110, %v2028
        %v2129 = vsel %vm2093, %v2111, %v2039
        %vm2130 = vcmp.lt.s32.totalorder %v2112, 16
        %vm2131 = vcmp.lt.s32.totalorder %v2113, 16
        %vm2132 = vcmp.lt.s32.totalorder %v2114, 16
        %vm2133 = vcmp.lt.s32.totalorder %v2115, 16
        %vm2134 = vcmp.lt.s32.totalorder %v2116, 16
        %vm2135 = vcmp.lt.s32.totalorder %v2117, 16
        %vm2136 = vcmp.lt.s32.totalorder %v2118, 16
        %vm2137 = vcmp.lt.s32.totalorder %v2119, 16
        %vm2138 = vcmp.lt.s32.totalorder %v2120, 16
        %vm2139 = vcmp.lt.s32.totalorder %v2121, 16
        %vm2140 = vcmp.lt.s32.totalorder %v2122, 16
        %vm2141 = vcmp.lt.s32.totalorder %v2123, 16
        %vm2142 = vcmp.lt.s32.totalorder %v2124, 16
        %vm2143 = vcmp.lt.s32.totalorder %v2125, 16
        %vm2144 = vcmp.lt.s32.totalorder %v2126, 16
        %vm2145 = vcmp.lt.s32.totalorder %v2127, 16
        %vm2146 = vcmp.lt.s32.totalorder %v2128, 16
        %vm2147 = vcmp.lt.s32.totalorder %v2129, 16
        %v2148 = vsel %vm2130, 1, 0
        %v2149 = vsel %vm2131, 1, 0
        %v2150 = vsel %vm2132, 1, 0
        %v2151 = vsel %vm2133, 1, 0
        %v2152 = vsel %vm2134, 1, 0
        %v2153 = vsel %vm2135, 1, 0
        %v2154 = vsel %vm2136, 1, 0
        %v2155 = vsel %vm2137, 1, 0
        %v2156 = vsel %vm2138, 1, 0
        %v2157 = vsel %vm2139, 1, 0
        %v2158 = vsel %vm2140, 1, 0
        %v2159 = vsel %vm2141, 1, 0
        %v2160 = vsel %vm2142, 1, 0
        %v2161 = vsel %vm2143, 1, 0
        %v2162 = vsel %vm2144, 1, 0
        %v2163 = vsel %vm2145, 1, 0
        %v2164 = vsel %vm2146, 1, 0
        %v2165 = vsel %vm2147, 1, 0
        %vm2166 = vcmp.eq.s32.totalorder %v2148, 1
        %vm2167 = vcmp.eq.s32.totalorder %v2149, 1
        %vm2168 = vcmp.eq.s32.totalorder %v2150, 1
        %vm2169 = vcmp.eq.s32.totalorder %v2151, 1
        %vm2170 = vcmp.eq.s32.totalorder %v2152, 1
        %vm2171 = vcmp.eq.s32.totalorder %v2153, 1
        %vm2172 = vcmp.eq.s32.totalorder %v2154, 1
        %vm2173 = vcmp.eq.s32.totalorder %v2155, 1
        %vm2174 = vcmp.eq.s32.totalorder %v2156, 1
        %vm2175 = vcmp.eq.s32.totalorder %v2157, 1
        %vm2176 = vcmp.eq.s32.totalorder %v2158, 1
        %vm2177 = vcmp.eq.s32.totalorder %v2159, 1
        %vm2178 = vcmp.eq.s32.totalorder %v2160, 1
        %vm2179 = vcmp.eq.s32.totalorder %v2161, 1
        %vm2180 = vcmp.eq.s32.totalorder %v2162, 1
        %vm2181 = vcmp.eq.s32.totalorder %v2163, 1
        %vm2182 = vcmp.eq.s32.totalorder %v2164, 1
        %vm2183 = vcmp.eq.s32.totalorder %v2165, 1
        %v2184 = vsel %vm2166, %v1793, 0.0
        %v2185 = vsel %vm2167, %v1794, 0.0
        %v2186 = vsel %vm2168, %v1795, 0.0
        %v2187 = vsel %vm2169, %v1796, 0.0
        %v2188 = vsel %vm2170, %v1797, 0.0
        %v2189 = vsel %vm2171, %v1798, 0.0
        %v2190 = vsel %vm2172, %v1799, 0.0
        %v2191 = vsel %vm2173, %v1800, 0.0
        %v2192 = vsel %vm2174, %v1801, 0.0
        %v2193 = vsel %vm2175, %v1802, 0.0
        %v2194 = vsel %vm2176, %v1803, 0.0
        %v2195 = vsel %vm2177, %v1804, 0.0
        %v2196 = vsel %vm2178, %v1805, 0.0
        %v2197 = vsel %vm2179, %v1806, 0.0
        %v2198 = vsel %vm2180, %v1807, 0.0
        %v2199 = vsel %vm2181, %v1808, 0.0
        %v2200 = vsel %vm2182, %v1809, 0.0
        %v2201 = vsel %vm2183, %v1810, 0.0
        %v2202 = vld [vmem:[#allocation2] sm:$0x1]
        %v2203 = vsel %vm272, %v2184, 0.0
        %v2204 = vsel %vm272, %v2185, 0.0
        %v2205 = vadd.f32 %v2203, %v2204
        %v2206 = vsel %vm272, %v2186, 0.0
        %v2207 = vadd.f32 %v2205, %v2206
        %v2208 = vsel %vm272, %v2187, 0.0
        %v2209 = vadd.f32 %v2207, %v2208
        %v2210 = vsel %vm272, %v2188, 0.0
        %v2211 = vadd.f32 %v2209, %v2210
        %v2212 = vsel %vm272, %v2189, 0.0
        %v2213 = vadd.f32 %v2211, %v2212
        %v2214 = vsel %vm272, %v2190, 0.0
        %v2215 = vadd.f32 %v2213, %v2214
        %v2216 = vsel %vm272, %v2191, 0.0
        %v2217 = vadd.f32 %v2215, %v2216
        %v2218 = vsel %vm272, %v2192, 0.0
        %v2219 = vadd.f32 %v2217, %v2218
        %v2220 = vsel %vm272, %v2193, 0.0
        %v2221 = vadd.f32 %v2219, %v2220
        %v2222 = vsel %vm272, %v2194, 0.0
        %v2223 = vadd.f32 %v2221, %v2222
        %v2224 = vsel %vm272, %v2195, 0.0
        %v2225 = vadd.f32 %v2223, %v2224
        %v2226 = vsel %vm272, %v2196, 0.0
        %v2227 = vadd.f32 %v2225, %v2226
        %v2228 = vsel %vm272, %v2197, 0.0
        %v2229 = vadd.f32 %v2227, %v2228
        %v2230 = vsel %vm272, %v2198, 0.0
        %v2231 = vadd.f32 %v2229, %v2230
        %v2232 = vsel %vm272, %v2199, 0.0
        %v2233 = vadd.f32 %v2231, %v2232
        %v2234 = vsel %vm272, %v2200, 0.0
        %v2235 = vadd.f32 %v2233, %v2234
        %v2236 = vsel %vm272, %v2201, 0.0
        %v2237 = vadd.f32 %v2235, %v2236
        %v2238 = vrot.slane %v2237, 4
        %v2239 = vadd.f32 %v2237, %v2238
        %v2240 = vrot.slane %v2239, 2
        %v2241 = vadd.f32 %v2239, %v2240
        %v2242 = vrot.slane %v2241, 1
        %v2243 = vadd.f32 %v2241, %v2242
        %v2244 = vadd.f32 %v2202, %v2243
        %vm2245 = vcmask 57344
        %2246 = vst.msk [vmem:[#allocation2] sm:$0x1] %vm2245, %v2244
        %v2247 = vld [vmem:[#allocation3] sm:$0x1]
        %v2248 = vmul.f32 %v2184, %v2184
        %v2249 = vmul.f32 %v2185, %v2185
        %v2250 = vmul.f32 %v2186, %v2186
        %v2251 = vmul.f32 %v2187, %v2187
        %v2252 = vmul.f32 %v2188, %v2188
        %v2253 = vmul.f32 %v2189, %v2189
        %v2254 = vmul.f32 %v2190, %v2190
        %v2255 = vmul.f32 %v2191, %v2191
        %v2256 = vmul.f32 %v2192, %v2192
        %v2257 = vmul.f32 %v2193, %v2193
        %v2258 = vmul.f32 %v2194, %v2194
        %v2259 = vmul.f32 %v2195, %v2195
        %v2260 = vmul.f32 %v2196, %v2196
        %v2261 = vmul.f32 %v2197, %v2197
        %v2262 = vmul.f32 %v2198, %v2198
        %v2263 = vmul.f32 %v2199, %v2199
        %v2264 = vmul.f32 %v2200, %v2200
        %v2265 = vmul.f32 %v2201, %v2201
        %v2266 = vsel %vm272, %v2248, 0.0
        %v2267 = vsel %vm272, %v2249, 0.0
        %v2268 = vadd.f32 %v2266, %v2267
        %v2269 = vsel %vm272, %v2250, 0.0
        %v2270 = vadd.f32 %v2268, %v2269
        %v2271 = vsel %vm272, %v2251, 0.0
        %v2272 = vadd.f32 %v2270, %v2271
        %v2273 = vsel %vm272, %v2252, 0.0
        %v2274 = vadd.f32 %v2272, %v2273
        %v2275 = vsel %vm272, %v2253, 0.0
        %v2276 = vadd.f32 %v2274, %v2275
        %v2277 = vsel %vm272, %v2254, 0.0
        %v2278 = vadd.f32 %v2276, %v2277
        %v2279 = vsel %vm272, %v2255, 0.0
        %v2280 = vadd.f32 %v2278, %v2279
        %v2281 = vsel %vm272, %v2256, 0.0
        %v2282 = vadd.f32 %v2280, %v2281
        %v2283 = vsel %vm272, %v2257, 0.0
        %v2284 = vadd.f32 %v2282, %v2283
        %v2285 = vsel %vm272, %v2258, 0.0
        %v2286 = vadd.f32 %v2284, %v2285
        %v2287 = vsel %vm272, %v2259, 0.0
        %v2288 = vadd.f32 %v2286, %v2287
        %v2289 = vsel %vm272, %v2260, 0.0
        %v2290 = vadd.f32 %v2288, %v2289
        %v2291 = vsel %vm272, %v2261, 0.0
        %v2292 = vadd.f32 %v2290, %v2291
        %v2293 = vsel %vm272, %v2262, 0.0
        %v2294 = vadd.f32 %v2292, %v2293
        %v2295 = vsel %vm272, %v2263, 0.0
        %v2296 = vadd.f32 %v2294, %v2295
        %v2297 = vsel %vm272, %v2264, 0.0
        %v2298 = vadd.f32 %v2296, %v2297
        %v2299 = vsel %vm272, %v2265, 0.0
        %v2300 = vadd.f32 %v2298, %v2299
        %v2301 = vrot.slane %v2300, 4
        %v2302 = vadd.f32 %v2300, %v2301
        %v2303 = vrot.slane %v2302, 2
        %v2304 = vadd.f32 %v2302, %v2303
        %v2305 = vrot.slane %v2304, 1
        %v2306 = vadd.f32 %v2304, %v2305
        %v2307 = vadd.f32 %v2247, %v2306
        %2308 = vst.msk [vmem:[#allocation3] sm:$0x1] %vm2245, %v2307
      $region44: #{_lambda_.8} parent=35 // pred_fallthru
        _
      %p2309 = scmp.eq.s32.totalorder %s19, 1
      // Predicated region
      $region45: #{_lambda_.8} parent=35 // pred_check
        %p2310 = pneg %p2309
      $region46: #{_lambda_.8} parent=35 // pred_check_branch
        %2312 = sbr.rel (%p2310) target = $region48
      $region47: #{_lambda_.8} parent=35 // pred_region
        %v2313 = vld [vmem:[#allocation2] sm:$0x1]
        %v2314 = vmul.f32 %v2313, 0.001953125
        %v2315 = vld [vmem:[#allocation3] sm:$0x1]
        %v2316 = vmul.f32 %v2315, 0.001953125
        %v2317 = vmul.f32 %v2314, %v2314
        %v2318 = vsub.f32 %v2316, %v2317
        %v2319 = vmax.f32 %v2318, 0.0
        %v2320 = vadd.f32 %v2319, 1e-05
        %v2321 = vrsqrt.pop %v2320
        %v2322 = vld [vmem:[%s2] sm:$0x1]
        %v2323 = vmul.f32 %v2321, %v2322
        %v2325 = vlaneseq
        %v2326 = vshrl.u32 %v2325, 7
        %v2327 = vsub.s32 0, %v2326
        %v2328 = vrot.slane %v2314, %v2327
        %v2330 = vsub.f32 %v1793, %v2328
        %v2331 = vsub.f32 %v1794, %v2328
        %v2332 = vsub.f32 %v1795, %v2328
        %v2333 = vsub.f32 %v1796, %v2328
        %v2334 = vsub.f32 %v1797, %v2328
        %v2335 = vsub.f32 %v1798, %v2328
        %v2336 = vsub.f32 %v1799, %v2328
        %v2337 = vsub.f32 %v1800, %v2328
        %v2338 = vsub.f32 %v1801, %v2328
        %v2339 = vsub.f32 %v1802, %v2328
        %v2340 = vsub.f32 %v1803, %v2328
        %v2341 = vsub.f32 %v1804, %v2328
        %v2342 = vsub.f32 %v1805, %v2328
        %v2343 = vsub.f32 %v1806, %v2328
        %v2344 = vsub.f32 %v1807, %v2328
        %v2345 = vsub.f32 %v1808, %v2328
        %v2346 = vsub.f32 %v1809, %v2328
        %v2347 = vsub.f32 %v1810, %v2328
        %v2349 = vlaneseq
        %v2350 = vshrl.u32 %v2349, 7
        %v2351 = vsub.s32 0, %v2350
        %v2352 = vrot.slane %v2323, %v2351
        %v2354 = vmul.f32 %v2330, %v2352
        %v2355 = vmul.f32 %v2331, %v2352
        %v2356 = vmul.f32 %v2332, %v2352
        %v2357 = vmul.f32 %v2333, %v2352
        %v2358 = vmul.f32 %v2334, %v2352
        %v2359 = vmul.f32 %v2335, %v2352
        %v2360 = vmul.f32 %v2336, %v2352
        %v2361 = vmul.f32 %v2337, %v2352
        %v2362 = vmul.f32 %v2338, %v2352
        %v2363 = vmul.f32 %v2339, %v2352
        %v2364 = vmul.f32 %v2340, %v2352
        %v2365 = vmul.f32 %v2341, %v2352
        %v2366 = vmul.f32 %v2342, %v2352
        %v2367 = vmul.f32 %v2343, %v2352
        %v2368 = vmul.f32 %v2344, %v2352
        %v2369 = vmul.f32 %v2345, %v2352
        %v2370 = vmul.f32 %v2346, %v2352
        %v2371 = vmul.f32 %v2347, %v2352
        %v2372 = vld [vmem:[%s3] sm:$0x1]
        %v2374 = vlaneseq
        %v2375 = vshrl.u32 %v2374, 7
        %v2376 = vsub.s32 0, %v2375
        %v2377 = vrot.slane %v2372, %v2376
        %v2379 = vadd.f32 %v2354, %v2377
        %v2380 = vadd.f32 %v2355, %v2377
        %v2381 = vadd.f32 %v2356, %v2377
        %v2382 = vadd.f32 %v2357, %v2377
        %v2383 = vadd.f32 %v2358, %v2377
        %v2384 = vadd.f32 %v2359, %v2377
        %v2385 = vadd.f32 %v2360, %v2377
        %v2386 = vadd.f32 %v2361, %v2377
        %v2387 = vadd.f32 %v2362, %v2377
        %v2388 = vadd.f32 %v2363, %v2377
        %v2389 = vadd.f32 %v2364, %v2377
        %v2390 = vadd.f32 %v2365, %v2377
        %v2391 = vadd.f32 %v2366, %v2377
        %v2392 = vadd.f32 %v2367, %v2377
        %v2393 = vadd.f32 %v2368, %v2377
        %v2394 = vadd.f32 %v2369, %v2377
        %v2395 = vadd.f32 %v2370, %v2377
        %v2396 = vadd.f32 %v2371, %v2377
        %v2397 = vmax.f32 %v2379, 0.0
        %v2398 = vmax.f32 %v2380, 0.0
        %v2399 = vmax.f32 %v2381, 0.0
        %v2400 = vmax.f32 %v2382, 0.0
        %v2401 = vmax.f32 %v2383, 0.0
        %v2402 = vmax.f32 %v2384, 0.0
        %v2403 = vmax.f32 %v2385, 0.0
        %v2404 = vmax.f32 %v2386, 0.0
        %v2405 = vmax.f32 %v2387, 0.0
        %v2406 = vmax.f32 %v2388, 0.0
        %v2407 = vmax.f32 %v2389, 0.0
        %v2408 = vmax.f32 %v2390, 0.0
        %v2409 = vmax.f32 %v2391, 0.0
        %v2410 = vmax.f32 %v2392, 0.0
        %v2411 = vmax.f32 %v2393, 0.0
        %v2412 = vmax.f32 %v2394, 0.0
        %v2413 = vmax.f32 %v2395, 0.0
        %v2414 = vmax.f32 %v2396, 0.0
        %2415 = vst.msk [vmem:[%s213] sm:$0xff] %vm272, %v2397
        %2416 = vst.msk [vmem:[%s213 + $0x8] sm:$0xff] %vm272, %v2398
        %2417 = vst.msk [vmem:[%s213 + $0x10] sm:$0xff] %vm272, %v2399
        %2418 = vst.msk [vmem:[%s213 + $0x18] sm:$0xff] %vm272, %v2400
        %2419 = vst.msk [vmem:[%s213 + $0x20] sm:$0xff] %vm272, %v2401
        %2420 = vst.msk [vmem:[%s213 + $0x28] sm:$0xff] %vm272, %v2402
        %2421 = vst.msk [vmem:[%s213 + $0x30] sm:$0xff] %vm272, %v2403
        %2422 = vst.msk [vmem:[%s213 + $0x38] sm:$0xff] %vm272, %v2404
        %2423 = vst.msk [vmem:[%s213 + $0x40] sm:$0xff] %vm272, %v2405
        %2424 = vst.msk [vmem:[%s213 + $0x48] sm:$0xff] %vm272, %v2406
        %2425 = vst.msk [vmem:[%s213 + $0x50] sm:$0xff] %vm272, %v2407
        %2426 = vst.msk [vmem:[%s213 + $0x58] sm:$0xff] %vm272, %v2408
        %2427 = vst.msk [vmem:[%s213 + $0x60] sm:$0xff] %vm272, %v2409
        %2428 = vst.msk [vmem:[%s213 + $0x68] sm:$0xff] %vm272, %v2410
        %2429 = vst.msk [vmem:[%s213 + $0x70] sm:$0xff] %vm272, %v2411
        %2430 = vst.msk [vmem:[%s213 + $0x78] sm:$0xff] %vm272, %v2412
        %2431 = vst.msk [vmem:[%s213 + $0x80] sm:$0xff] %vm272, %v2413
        %2432 = vst.msk [vmem:[%s213 + $0x88] sm:$0xff] %vm272, %v2414
      $region48: #{_lambda_.8} parent=35 // pred_fallthru
        _
      %s2433 = smul.u32 %s19, %s20
      %p2434 = scmp.lt.s32.totalorder %s2433, 3
      %s2435 = scalar_select %p2434, %s2433, 3
      %s2436 = smul.addr %s2435, 18
      %s2437 = smul.addr %s2436, 8
      %s2438 = scalar_lea.vmem %s4, %s2437
      // Predicated region
      $region49: #{_lambda_.8} parent=35 // pred_check
        %p2439 = pneg %p136
      $region50: #{_lambda_.8} parent=35 // pred_check_branch
        %2441 = sbr.rel (%p2439) target = $region52
      $region51: #{_lambda_.8} parent=35 // pred_region
        %s2442 = smul.u32 %s19, %s20
      $region52: #{_lambda_.8} parent=35 // pred_fallthru
        _
    $region36: #{_lambda_.8} parent=5 // pred_fallthru
      _
    %p2443 = scmp.le.s32.totalorder 2, %s10
    // Predicated region
    $region53: #{_lambda_.8} parent=5 // pred_check
      %p2444 = pneg %p2443
    $region54: #{_lambda_.8} parent=5 // pred_check_branch
      %2446 = sbr.rel (%p2444) target = $region56
    $region55: #{_lambda_.8} parent=5 // pred_region
      %s2447 = ssub.s32 %s10, 2
      // Predicated region
      $region57: #{_lambda_.8} parent=55 // pred_check
        %p2448 = pneg %p142
      $region58: #{_lambda_.8} parent=55 // pred_check_branch
        %2450 = sbr.rel (%p2448) target = $region60
      $region59: #{_lambda_.8} parent=55 // pred_region
        %s2451 = smul.u32 %s21, %s22
        %p2452 = scmp.lt.s32.totalorder %s2451, 3
        %s2453 = scalar_select %p2452, %s2451, 3
        %s2454 = smul.addr %s2453, 18
        %s2455 = smul.addr %s2454, 8
        %s2456 = scalar_lea.vmem %s4, %s2455
      $region60: #{_lambda_.8} parent=55 // pred_fallthru
        _
    $region56: #{_lambda_.8} parent=5 // pred_fallthru
      _
  $region6: #{_lambda_.8} parent=0 // loop_footer
    %s14 = sadd.s32 1, %s10
  $region7: #{_lambda_.8} parent=0 // loop_footer_branch
    %9 = sbr.rel target = $region3
  $region8: #{_lambda_.8} parent=0 // loop_exit
    _

</llo_original>
